<compile_context>
chip_gen: v5e
topology: v5e:2x2
jax: 0.10.0
libtpu: 0.0.40
codegen_flags: <defaults>
</compile_context>

<pallas_src>
import math

import jax
import jax.numpy as jnp
from jax.experimental import pallas as pl
from jax.experimental.pallas import tpu as pltpu

_LANE = 128
_HAS_BUFFERED = hasattr(pl, "Buffered")


def _leaky_relu(x, slope=0.2):
    # mul + max (2 VALU ops) instead of cmp + mul + select (3).
    return jnp.maximum(x, slope * x)


def _make_kernel(layer_num, act_dtype, single_pass):
    def kernel(*refs):
        f_ref = refs[0]
        conv_refs = refs[1:1 + 2 * layer_num]
        head_w_ref = refs[1 + 2 * layer_num]
        head_b_ref = refs[2 + 2 * layer_num]
        out_ref = refs[3 + 2 * layer_num]

        tb, tn, c0 = f_ref.shape
        # Flatten (tb, tn, C0) -> (tb*tn, C0): lanes stay on channels and tn is a multiple
        # of 8 (or == N), so this is a free relayout; each Conv1d(k=1) is one clean MXU dot.
        x = f_ref[...].reshape(tb * tn, c0)

        for l in range(layer_num):
            w = conv_refs[2 * l][...]          # (Cin, Cout) in conv dtype
            b = conv_refs[2 * l + 1][...]      # (1, Cout) in activation dtype
            y = jnp.dot(x.astype(w.dtype), w, preferred_element_type=jnp.float32)
            y = y.astype(act_dtype) + b        # bias-add + activation in act dtype
            x = _leaky_relu(y)

        c_last = x.shape[-1]
        # Per-tile max over the vertex axis (free reshape; XLU reduction).
        tile_max = jnp.max(x.reshape(tb, tn, c_last), axis=1)

        def _head(pooled_f32):
            out = jnp.dot(pooled_f32, head_w_ref[...],
                          preferred_element_type=jnp.float32) + head_b_ref[...]
            out_ref[...] = out.astype(out_ref.dtype)

        if single_pass:
            _head(tile_max.astype(jnp.float32))
        else:
            max_ref = refs[4 + 2 * layer_num]
            n = pl.program_id(1)

            @pl.when(n == 0)
            def _():
                max_ref[...] = jnp.full(max_ref.shape, -jnp.inf, max_ref.dtype)

            max_ref[...] = jnp.maximum(max_ref[...], tile_max.astype(jnp.float32))

            @pl.when(n == pl.num_programs(1) - 1)
            def _():
                _head(max_ref[...])

    return kernel


def _compose_linear(w1, b1, w2, b2):
    """(x @ w1 + b1) @ w2 + b2 == x @ (w1 @ w2) + (b1 @ w2 + b2); folded at highest precision."""
    mm = lambda a, b: jnp.dot(a, b, precision=jax.lax.Precision.HIGHEST,
                              preferred_element_type=jnp.float32)
    return mm(w1, w2), mm(b1, w2) + b2


def _fold_tail(params, layer_num, num_classes):
    """Fold final_layer + fc_dis / fc_aux (all plain Linear in the PyTorch module) into one
    lane-dense (C_last, 128) head: lane 0 = realfake, lanes 1..num_classes = class logits."""
    idx = 2 * layer_num
    w, b = params[idx], params[idx + 1]
    idx += 2
    for _ in range(2):                                            # final_layer[1:3]
        w, b = _compose_linear(w, b, params[idx], params[idx + 1]); idx += 2
    wd, bd = _compose_linear(w, b, params[idx], params[idx + 1]); idx += 2   # fc_dis[0]
    wd, bd = _compose_linear(wd, bd, params[idx], params[idx + 1]); idx += 2  # fc_dis[1]
    wa, ba = _compose_linear(w, b, params[idx], params[idx + 1]); idx += 2   # fc_aux[0]
    wa, ba = _compose_linear(wa, ba, params[idx], params[idx + 1]); idx += 2  # fc_aux[1]

    head_w = jnp.concatenate([wd, wa], axis=1)     # (C_last, 1 + num_classes)
    head_b = jnp.concatenate([bd, ba], axis=1)
    pad = _LANE - head_w.shape[1]
    assert pad >= 0, "num_classes must be < 128 for the lane-dense output slab"
    head_w = jnp.pad(head_w, ((0, 0), (0, pad)))
    head_b = jnp.pad(head_b, ((0, 0), (0, pad)))
    return head_w.astype(jnp.float32), head_b.astype(jnp.float32)


# ----------------------------- chip-aware defaults ----------------------------------------


def _device_kind():
    try:
        return jax.devices()[0].device_kind.lower()
    except Exception:
        return ""


def _vmem_limit_bytes():
    try:
        cap = int(pltpu.get_tpu_info().vmem_capacity_bytes)
    except Exception:
        cap = 64 * 1024 * 1024          # conservative (v7x-sized) fallback
    # v5e/v6e (128 MiB physical): 64 MiB; v7x (64 MiB physical): 48 MiB.
    return int(min(3 * cap // 4, 64 * 1024 * 1024))


def _default_act_dtype(conv_dtype):
    if jnp.dtype(conv_dtype) == jnp.dtype(jnp.float32):
        return jnp.float32
    kind = _device_kind()
    if "v5e" in kind or "v5 lite" in kind or "v5lite" in kind:
        return jnp.float32              # v5e has no bf16 VALU; packed bf16 would unpack
    return jnp.bfloat16


def _default_tb(B):
    # >= 2 batch tiles (parallel axis) whenever B allows tiles that stay a multiple of 8,
    # so v7x's second TensorCore has work; otherwise a single full-batch tile.
    if B >= 16 and B % 16 == 0:
        return 8
    return B


def _default_tn(N, tb, c0, c_max, f_itemsize, act_itemsize, vmem_limit):
    budget = vmem_limit // 2
    best = None
    for tn in sorted({c for c in (128, 256, 512, 1024, 2048, N)
                      if c <= N and N % c == 0}):
        live = tb * tn * c_max * (4 + act_itemsize)   # f32 matmul result + act-dtype copy
        live += 2 * tb * tn * c0 * f_itemsize         # double-buffered input block
        if live <= budget:
            best = tn
    if best is None:
        best = next((t for t in (8, 16, 32, 64, 128) if N % t == 0), N)
    return best


# --------------------------------- wrapper -------------------------------------------------


def aux_discriminator(f, params, *, layer_num, num_classes,
                      tb=None, tn=None, conv_dtype=jnp.bfloat16, act_dtype=None):
    """f: (B, N, features[0]); params: flat [w, b, ...] list (weights stored (in, out))."""
    B, N, C0 = f.shape
    if act_dtype is None:
        act_dtype = _default_act_dtype(conv_dtype)
    vmem_limit = _vmem_limit_bytes()

    conv_ws = [params[2 * i].astype(conv_dtype) for i in range(layer_num)]
    conv_bs = [params[2 * i + 1].astype(act_dtype) for i in range(layer_num)]
    head_w, head_b = _fold_tail(params, layer_num, num_classes)
    c_last = int(conv_ws[-1].shape[1])
    c_max = max(int(w.shape[1]) for w in conv_ws)

    if tb is None:
        tb = _default_tb(B)
    if tn is None:
        tn = _default_tn(N, tb, C0, c_max, f.dtype.itemsize,
                         jnp.dtype(act_dtype).itemsize, vmem_limit)
    assert B % tb == 0 and N % tn == 0, "tile sizes must divide (B, N)"
    assert tn == N or tn % 8 == 0, "vertex tile must be a multiple of 8 (or equal N)"

    single_pass = (tn == N)          # small N: drop the reduction grid axis entirely
    grid = (B // tb,) if single_pass else (B // tb, N // tn)
    semantics = ("parallel",) if single_pass else ("parallel", "arbitrary")

    if single_pass:
        f_spec = pl.BlockSpec((tb, tn, C0), lambda b: (b, 0, 0))
        out_spec = pl.BlockSpec((tb, _LANE), lambda b: (b, 0))
        scratch = []
    else:
        f_spec = pl.BlockSpec((tb, tn, C0), lambda b, n: (b, n, 0))
        out_spec = pl.BlockSpec((tb, _LANE), lambda b, n: (b, 0))
        scratch = [pltpu.VMEM((tb, c_last), jnp.float32)]

    def const_spec(arr, single_buffer):
        nd = arr.ndim
        if single_pass:
            idx = lambda b, _nd=nd: (0,) * _nd
        else:
            idx = lambda b, n, _nd=nd: (0,) * _nd
        if single_buffer and _HAS_BUFFERED:
            # Constant block index -> second pipeline buffer is dead VMEM; ask for one buffer.
            return pl.BlockSpec(arr.shape, idx, pipeline_mode=pl.Buffered(1))
        return pl.BlockSpec(arr.shape, idx)

    const_arrays = []
    for w, bia in zip(conv_ws, conv_bs):
        const_arrays += [w, bia]
    const_arrays += [head_w, head_b]
    in_arrays = [f] + const_arrays

    out_shape = jax.ShapeDtypeStruct((B, _LANE), jnp.float32)

    flops = 2 * B * N * sum(int(w.shape[0]) * int(w.shape[1]) for w in conv_ws)
    flops += 2 * B * c_last * _LANE
    bytes_accessed = int(f.size) * f.dtype.itemsize
    bytes_accessed += sum(int(a.size) * a.dtype.itemsize for a in const_arrays)
    bytes_accessed += B * _LANE * 4

    def run(single_buffer_consts):
        in_specs = [f_spec] + [const_spec(a, single_buffer_consts) for a in const_arrays]
        call = pl.pallas_call(
            _make_kernel(layer_num, act_dtype, single_pass),
            out_shape=out_shape,
            grid_spec=pltpu.PrefetchScalarGridSpec(
                num_scalar_prefetch=0,
                grid=grid,
                in_specs=in_specs,
                out_specs=out_spec,
                scratch_shapes=scratch,
            ),
            compiler_params=pltpu.CompilerParams(
                dimension_semantics=semantics,
                vmem_limit_bytes=vmem_limit,
            ),
            cost_estimate=pl.CostEstimate(
                flops=flops, transcendentals=0, bytes_accessed=bytes_accessed),
        )
        return call(*in_arrays)

    try:
        slab = run(True)                 # single-buffered VMEM-resident constants
    except Exception:
        slab = run(False)                # fall back to default double-buffering

    realfake = slab[:, 0:1]
    classes = slab[:, 1:1 + num_classes]
    return realfake, classes


# --------------------------------- params / reference --------------------------------------


def init_params(key, features, num_classes):
    """PyTorch-default-style init (uniform +-1/sqrt(fan_in)). Weights stored (in, out)."""
    layer_num = len(features) - 1

    def linear_params(k, fan_in, fan_out):
        k1, k2 = jax.random.split(k)
        bound = 1.0 / math.sqrt(fan_in)
        w = jax.random.uniform(k1, (fan_in, fan_out), jnp.float32, -bound, bound)
        b = jax.random.uniform(k2, (1, fan_out), jnp.float32, -bound, bound)
        return w, b

    shapes = []
    for inx in range(layer_num):                       # fc_layers: Conv1d(k=1)
        shapes.append((features[inx], features[inx + 1]))
    shapes.append((features[-1], features[-1]))        # final_layer[0]
    shapes.append((features[-1], features[-2]))        # final_layer[1]
    shapes.append((features[-2], features[-2]))        # final_layer[2]
    shapes.append((features[-2], features[-2]))        # fc_dis[0]
    shapes.append((features[-2], 1))                   # fc_dis[1]
    shapes.append((features[-2], features[-2]))        # fc_aux[0]
    shapes.append((features[-2], num_classes))         # fc_aux[1]

    keys = jax.random.split(key, len(shapes))
    params = []
    for k, (fi, fo) in zip(keys, shapes):
        w, b = linear_params(k, fi, fo)
        params += [w, b]
    return params


def reference_forward(f, params, *, layer_num):
    """Pure-JAX reference: same math as the PyTorch module (un-folded tail)."""
    idx = 0
    feat = f
    for _ in range(layer_num):
        w, b = params[idx], params[idx + 1]; idx += 2
        feat = jnp.einsum("bnc,cd->bnd", feat, w) + b
        feat = jnp.where(feat >= 0, feat, 0.2 * feat)
    out = jnp.max(feat, axis=1)
    for _ in range(3):
        out = out @ params[idx] + params[idx + 1]; idx += 2
    d = out @ params[idx] + params[idx + 1]; idx += 2
    d = d @ params[idx] + params[idx + 1]; idx += 2
    a = out @ params[idx] + params[idx + 1]; idx += 2
    a = a @ params[idx] + params[idx + 1]; idx += 2
    return d, a


if __name__ == "__main__":
    features = [32, 64, 128]
    num_classes = 2
    layer_num = len(features) - 1
    B, N = 16, 256          # batch, vertex count

    key = jax.random.PRNGKey(0)
    kf, kp = jax.random.split(key)
    f = jax.random.normal(kf, (B, N, features[0]), dtype=jnp.float32)
    params = init_params(kp, features, num_classes)

    d_ref, a_ref = reference_forward(f, params, layer_num=layer_num)

    # 1) f32 path with a forced multi-tile vertex reduction (exercises the running-max
    #    accumulator + pl.when init/finalize). Tight tolerance.
    d32, a32 = aux_discriminator(f, params, layer_num=layer_num,
                                 num_classes=num_classes, tb=8, tn=128,
                                 conv_dtype=jnp.float32)
    jax.block_until_ready((d32, a32))
    assert d32.shape == (B, 1) and a32.shape == (B, num_classes)
    assert jnp.allclose(d32, d_ref, rtol=1e-4, atol=1e-4)
    assert jnp.allclose(a32, a_ref, rtol=1e-4, atol=1e-4)

    # 2) default path: chip-aware tiles (collapses the vertex grid axis for this small N),
    #    bf16 conv stack, chip-dependent bf16 activations, f32 accumulation/pooling/head.
    d16, a16 = aux_discriminator(f, params, layer_num=layer_num, num_classes=num_classes)
    jax.block_until_ready((d16, a16))
    assert d16.shape == (B, 1) and a16.shape == (B, num_classes)
    assert jnp.allclose(d16, d_ref, rtol=5e-2, atol=5e-2)
    assert jnp.allclose(a16, a_ref, rtol=5e-2, atol=5e-2)

    # 3) bf16 activation input produced "upstream" (halves the streamed f HBM traffic;
    #    no wrapper-side astype inside aux_discriminator).
    f_bf16 = f.astype(jnp.bfloat16)
    db, ab = aux_discriminator(f_bf16, params, layer_num=layer_num, num_classes=num_classes)
    jax.block_until_ready((db, ab))
    assert db.shape == (B, 1) and ab.shape == (B, num_classes)
    assert jnp.allclose(db, d_ref, rtol=5e-2, atol=5e-2)
    assert jnp.allclose(ab, a_ref, rtol=5e-2, atol=5e-2)

    print("KERNEL_OK")
</pallas_src>

<mosaic_0001>
module attributes {stable_mosaic.version = 11 : i64} {
  func.func @kernel(%arg0: i32, %arg1: i32, %arg2: memref<8x128x32xf32, #tpu.memory_space<vmem>>, %arg3: memref<32x64xf32, #tpu.memory_space<vmem>>, %arg4: memref<1x64xf32, #tpu.memory_space<vmem>>, %arg5: memref<64x128xf32, #tpu.memory_space<vmem>>, %arg6: memref<1x128xf32, #tpu.memory_space<vmem>>, %arg7: memref<128x128xf32, #tpu.memory_space<vmem>>, %arg8: memref<1x128xf32, #tpu.memory_space<vmem>>, %arg9: memref<8x128xf32, #tpu.memory_space<vmem>>, %arg10: memref<8x128xf32, #tpu.memory_space<vmem>>) attributes {dimension_semantics = [#tpu.dimension_semantics<parallel>, #tpu.dimension_semantics<arbitrary>], iteration_bounds = array<i64: 2, 2>, scalar_prefetch = 0 : i64, scratch_operands = 1 : i64, tpu.core_type = #tpu.core_type<tc>, window_params = [{transform_indices = @transform_0, window_bounds = array<i64: 8, 128, 32>}, {pipeline_mode = #tpu.pipeline_mode<synchronous>, transform_indices = @transform_1, window_bounds = array<i64: 32, 64>}, {pipeline_mode = #tpu.pipeline_mode<synchronous>, transform_indices = @transform_2, window_bounds = array<i64: 1, 64>}, {pipeline_mode = #tpu.pipeline_mode<synchronous>, transform_indices = @transform_3, window_bounds = array<i64: 64, 128>}, {pipeline_mode = #tpu.pipeline_mode<synchronous>, transform_indices = @transform_4, window_bounds = array<i64: 1, 128>}, {pipeline_mode = #tpu.pipeline_mode<synchronous>, transform_indices = @transform_5, window_bounds = array<i64: 128, 128>}, {pipeline_mode = #tpu.pipeline_mode<synchronous>, transform_indices = @transform_6, window_bounds = array<i64: 1, 128>}, {transform_indices = @transform_7, window_bounds = array<i64: 8, 128>}]} {
    %c0 = arith.constant 0 : index
    %c0_0 = arith.constant 0 : index
    %c0_1 = arith.constant 0 : index
    %0 = vector.load %arg2[%c0, %c0_0, %c0_1] : memref<8x128x32xf32, #tpu.memory_space<vmem>>, vector<8x128x32xf32>
    %1 = vector.shape_cast %0 : vector<8x128x32xf32> to vector<1024x32xf32>
    %c0_2 = arith.constant 0 : index
    %c0_3 = arith.constant 0 : index
    %2 = vector.load %arg3[%c0_2, %c0_3] : memref<32x64xf32, #tpu.memory_space<vmem>>, vector<32x64xf32>
    %c0_4 = arith.constant 0 : index
    %c0_5 = arith.constant 0 : index
    %3 = vector.load %arg4[%c0_4, %c0_5] : memref<1x64xf32, #tpu.memory_space<vmem>>, vector<1x64xf32>
    %cst = arith.constant dense<0.000000e+00> : vector<1024x64xf32>
    %4 = tpu.matmul %1, %2, %cst {dimension_numbers = #tpu.dot_dimension_numbers<[1], [0], [0], [1], [0, 0, 1, 1], [], []>} : vector<1024x32xf32>, vector<32x64xf32>, vector<1024x64xf32> -> vector<1024x64xf32>
    %5 = vector.broadcast %3 : vector<1x64xf32> to vector<1024x64xf32>
    %6 = arith.addf %4, %5 : vector<1024x64xf32>
    %cst_6 = arith.constant 2.000000e-01 : f32
    %7 = vector.broadcast %cst_6 : f32 to vector<1024x64xf32>
    %8 = arith.mulf %7, %6 : vector<1024x64xf32>
    %9 = arith.maximumf %6, %8 : vector<1024x64xf32>
    %c0_7 = arith.constant 0 : index
    %c0_8 = arith.constant 0 : index
    %10 = vector.load %arg5[%c0_7, %c0_8] : memref<64x128xf32, #tpu.memory_space<vmem>>, vector<64x128xf32>
    %c0_9 = arith.constant 0 : index
    %c0_10 = arith.constant 0 : index
    %11 = vector.load %arg6[%c0_9, %c0_10] : memref<1x128xf32, #tpu.memory_space<vmem>>, vector<1x128xf32>
    %cst_11 = arith.constant dense<0.000000e+00> : vector<1024x128xf32>
    %12 = tpu.matmul %9, %10, %cst_11 {dimension_numbers = #tpu.dot_dimension_numbers<[1], [0], [0], [1], [0, 0, 1, 1], [], []>} : vector<1024x64xf32>, vector<64x128xf32>, vector<1024x128xf32> -> vector<1024x128xf32>
    %13 = vector.broadcast %11 : vector<1x128xf32> to vector<1024x128xf32>
    %14 = arith.addf %12, %13 : vector<1024x128xf32>
    %cst_12 = arith.constant 2.000000e-01 : f32
    %15 = vector.broadcast %cst_12 : f32 to vector<1024x128xf32>
    %16 = arith.mulf %15, %14 : vector<1024x128xf32>
    %17 = arith.maximumf %14, %16 : vector<1024x128xf32>
    %18 = vector.shape_cast %17 : vector<1024x128xf32> to vector<8x128x128xf32>
    %cst_13 = arith.constant dense<0xFF800000> : vector<8x128xf32>
    %19 = vector.multi_reduction <maximumf>, %18, %cst_13 [1] : vector<8x128x128xf32> to vector<8x128xf32>
    %c0_i32 = arith.constant 0 : i32
    %20 = arith.cmpi eq, %arg1, %c0_i32 : i32
    %21 = arith.extui %20 : i1 to i32
    %c0_i32_14 = arith.constant 0 : i32
    %22 = arith.cmpi ne, %21, %c0_i32_14 : i32
    scf.if %22 {
      %cst_20 = arith.constant 0xFF800000 : f32
      %29 = vector.broadcast %cst_20 : f32 to vector<8x128xf32>
      %c0_21 = arith.constant 0 : index
      %c0_22 = arith.constant 0 : index
      %30 = vector.load %arg10[%c0_21, %c0_22] : memref<8x128xf32, #tpu.memory_space<vmem>>, vector<8x128xf32>
      tpu.vector_store %arg10[%c0_21, %c0_22], %29 {strides = array<i32>} : memref<8x128xf32, #tpu.memory_space<vmem>>, vector<8x128xf32>,
    } else {
    }
    %c0_15 = arith.constant 0 : index
    %c0_16 = arith.constant 0 : index
    %23 = vector.load %arg10[%c0_15, %c0_16] : memref<8x128xf32, #tpu.memory_space<vmem>>, vector<8x128xf32>
    %24 = arith.maximumf %23, %19 : vector<8x128xf32>
    %c0_17 = arith.constant 0 : index
    %c0_18 = arith.constant 0 : index
    %25 = vector.load %arg10[%c0_17, %c0_18] : memref<8x128xf32, #tpu.memory_space<vmem>>, vector<8x128xf32>
    tpu.vector_store %arg10[%c0_17, %c0_18], %24 {strides = array<i32>} : memref<8x128xf32, #tpu.memory_space<vmem>>, vector<8x128xf32>,
    %c1_i32 = arith.constant 1 : i32
    %26 = arith.cmpi eq, %arg1, %c1_i32 : i32
    %27 = arith.extui %26 : i1 to i32
    %c0_i32_19 = arith.constant 0 : i32
    %28 = arith.cmpi ne, %27, %c0_i32_19 : i32
    scf.if %28 {
      %c0_20 = arith.constant 0 : index
      %c0_21 = arith.constant 0 : index
      %29 = vector.load %arg10[%c0_20, %c0_21] : memref<8x128xf32, #tpu.memory_space<vmem>>, vector<8x128xf32>
      %c0_22 = arith.constant 0 : index
      %c0_23 = arith.constant 0 : index
      %30 = vector.load %arg7[%c0_22, %c0_23] : memref<128x128xf32, #tpu.memory_space<vmem>>, vector<128x128xf32>
      %cst_24 = arith.constant dense<0.000000e+00> : vector<8x128xf32>
      %31 = tpu.matmul %29, %30, %cst_24 {dimension_numbers = #tpu.dot_dimension_numbers<[1], [0], [0], [1], [0, 0, 1, 1], [], []>} : vector<8x128xf32>, vector<128x128xf32>, vector<8x128xf32> -> vector<8x128xf32>
      %c0_25 = arith.constant 0 : index
      %c0_26 = arith.constant 0 : index
      %32 = vector.load %arg8[%c0_25, %c0_26] : memref<1x128xf32, #tpu.memory_space<vmem>>, vector<1x128xf32>
      %33 = vector.broadcast %32 : vector<1x128xf32> to vector<8x128xf32>
      %34 = arith.addf %31, %33 : vector<8x128xf32>
      %c0_27 = arith.constant 0 : index
      %c0_28 = arith.constant 0 : index
      %35 = vector.load %arg9[%c0_27, %c0_28] : memref<8x128xf32, #tpu.memory_space<vmem>>, vector<8x128xf32>
      tpu.vector_store %arg9[%c0_27, %c0_28], %34 {strides = array<i32>} : memref<8x128xf32, #tpu.memory_space<vmem>>, vector<8x128xf32>,
    } else {
    }
    return
  }
  func.func @transform_0(%arg0: i32, %arg1: i32) -> (i32, i32, i32) {
    %c0_i32 = arith.constant 0 : i32
    %c0_i32_0 = arith.constant 0 : i32
    return %arg0, %arg1, %c0_i32 : i32, i32, i32
  }
  func.func @transform_1(%arg0: i32, %arg1: i32) -> (i32, i32) {
    %c0_i32 = arith.constant 0 : i32
    %c0_i32_0 = arith.constant 0 : i32
    %c0_i32_1 = arith.constant 0 : i32
    return %c0_i32, %c0_i32_0 : i32, i32
  }
  func.func @transform_2(%arg0: i32, %arg1: i32) -> (i32, i32) {
    %c0_i32 = arith.constant 0 : i32
    %c0_i32_0 = arith.constant 0 : i32
    %c0_i32_1 = arith.constant 0 : i32
    return %c0_i32, %c0_i32_0 : i32, i32
  }
  func.func @transform_3(%arg0: i32, %arg1: i32) -> (i32, i32) {
    %c0_i32 = arith.constant 0 : i32
    %c0_i32_0 = arith.constant 0 : i32
    %c0_i32_1 = arith.constant 0 : i32
    return %c0_i32, %c0_i32_0 : i32, i32
  }
  func.func @transform_4(%arg0: i32, %arg1: i32) -> (i32, i32) {
    %c0_i32 = arith.constant 0 : i32
    %c0_i32_0 = arith.constant 0 : i32
    %c0_i32_1 = arith.constant 0 : i32
    return %c0_i32, %c0_i32_0 : i32, i32
  }
  func.func @transform_5(%arg0: i32, %arg1: i32) -> (i32, i32) {
    %c0_i32 = arith.constant 0 : i32
    %c0_i32_0 = arith.constant 0 : i32
    %c0_i32_1 = arith.constant 0 : i32
    return %c0_i32, %c0_i32_0 : i32, i32
  }
  func.func @transform_6(%arg0: i32, %arg1: i32) -> (i32, i32) {
    %c0_i32 = arith.constant 0 : i32
    %c0_i32_0 = arith.constant 0 : i32
    %c0_i32_1 = arith.constant 0 : i32
    return %c0_i32, %c0_i32_0 : i32, i32
  }
  func.func @transform_7(%arg0: i32, %arg1: i32) -> (i32, i32) {
    %c0_i32 = arith.constant 0 : i32
    %c0_i32_0 = arith.constant 0 : i32
    return %arg0, %c0_i32 : i32, i32
  }
}

module attributes {stable_mosaic.version = 11 : i64} {
  func.func @kernel(%arg0: i32, %arg1: i32, %arg2: memref<8x128x32xf32, #tpu.memory_space<vmem>>, %arg3: memref<32x64xf32, #tpu.memory_space<vmem>>, %arg4: memref<1x64xf32, #tpu.memory_space<vmem>>, %arg5: memref<64x128xf32, #tpu.memory_space<vmem>>, %arg6: memref<1x128xf32, #tpu.memory_space<vmem>>, %arg7: memref<128x128xf32, #tpu.memory_space<vmem>>, %arg8: memref<1x128xf32, #tpu.memory_space<vmem>>, %arg9: memref<8x128xf32, #tpu.memory_space<vmem>>, %arg10: memref<8x128xf32, #tpu.memory_space<vmem>>) attributes {dimension_semantics = [#tpu.dimension_semantics<parallel>, #tpu.dimension_semantics<arbitrary>], iteration_bounds = array<i64: 2, 2>, scalar_prefetch = 0 : i64, scratch_operands = 1 : i64, tpu.core_type = #tpu.core_type<tc>, window_params = [{transform_indices = @transform_0, window_bounds = array<i64: 8, 128, 32>}, {pipeline_mode = #tpu.pipeline_mode<synchronous>, transform_indices = @transform_1, window_bounds = array<i64: 32, 64>}, {pipeline_mode = #tpu.pipeline_mode<synchronous>, transform_indices = @transform_2, window_bounds = array<i64: 1, 64>}, {pipeline_mode = #tpu.pipeline_mode<synchronous>, transform_indices = @transform_3, window_bounds = array<i64: 64, 128>}, {pipeline_mode = #tpu.pipeline_mode<synchronous>, transform_indices = @transform_4, window_bounds = array<i64: 1, 128>}, {pipeline_mode = #tpu.pipeline_mode<synchronous>, transform_indices = @transform_5, window_bounds = array<i64: 128, 128>}, {pipeline_mode = #tpu.pipeline_mode<synchronous>, transform_indices = @transform_6, window_bounds = array<i64: 1, 128>}, {transform_indices = @transform_7, window_bounds = array<i64: 8, 128>}]} {
    %c0 = arith.constant 0 : index
    %c0_0 = arith.constant 0 : index
    %c0_1 = arith.constant 0 : index
    %0 = vector.load %arg2[%c0, %c0_0, %c0_1] : memref<8x128x32xf32, #tpu.memory_space<vmem>>, vector<8x128x32xf32>
    %1 = vector.shape_cast %0 : vector<8x128x32xf32> to vector<1024x32xf32>
    %c0_2 = arith.constant 0 : index
    %c0_3 = arith.constant 0 : index
    %2 = vector.load %arg3[%c0_2, %c0_3] : memref<32x64xf32, #tpu.memory_space<vmem>>, vector<32x64xf32>
    %c0_4 = arith.constant 0 : index
    %c0_5 = arith.constant 0 : index
    %3 = vector.load %arg4[%c0_4, %c0_5] : memref<1x64xf32, #tpu.memory_space<vmem>>, vector<1x64xf32>
    %cst = arith.constant dense<0.000000e+00> : vector<1024x64xf32>
    %4 = tpu.matmul %1, %2, %cst {dimension_numbers = #tpu.dot_dimension_numbers<[1], [0], [0], [1], [0, 0, 1, 1], [], []>} : vector<1024x32xf32>, vector<32x64xf32>, vector<1024x64xf32> -> vector<1024x64xf32>
    %5 = vector.broadcast %3 : vector<1x64xf32> to vector<1024x64xf32>
    %6 = arith.addf %4, %5 : vector<1024x64xf32>
    %cst_6 = arith.constant 2.000000e-01 : f32
    %7 = vector.broadcast %cst_6 : f32 to vector<1024x64xf32>
    %8 = arith.mulf %7, %6 : vector<1024x64xf32>
    %9 = arith.maximumf %6, %8 : vector<1024x64xf32>
    %c0_7 = arith.constant 0 : index
    %c0_8 = arith.constant 0 : index
    %10 = vector.load %arg5[%c0_7, %c0_8] : memref<64x128xf32, #tpu.memory_space<vmem>>, vector<64x128xf32>
    %c0_9 = arith.constant 0 : index
    %c0_10 = arith.constant 0 : index
    %11 = vector.load %arg6[%c0_9, %c0_10] : memref<1x128xf32, #tpu.memory_space<vmem>>, vector<1x128xf32>
    %cst_11 = arith.constant dense<0.000000e+00> : vector<1024x128xf32>
    %12 = tpu.matmul %9, %10, %cst_11 {dimension_numbers = #tpu.dot_dimension_numbers<[1], [0], [0], [1], [0, 0, 1, 1], [], []>} : vector<1024x64xf32>, vector<64x128xf32>, vector<1024x128xf32> -> vector<1024x128xf32>
    %13 = vector.broadcast %11 : vector<1x128xf32> to vector<1024x128xf32>
    %14 = arith.addf %12, %13 : vector<1024x128xf32>
    %cst_12 = arith.constant 2.000000e-01 : f32
    %15 = vector.broadcast %cst_12 : f32 to vector<1024x128xf32>
    %16 = arith.mulf %15, %14 : vector<1024x128xf32>
    %17 = arith.maximumf %14, %16 : vector<1024x128xf32>
    %18 = vector.shape_cast %17 : vector<1024x128xf32> to vector<8x128x128xf32>
    %cst_13 = arith.constant dense<0xFF800000> : vector<8x128xf32>
    %19 = vector.multi_reduction <maximumf>, %18, %cst_13 [1] : vector<8x128x128xf32> to vector<8x128xf32>
    %c0_i32 = arith.constant 0 : i32
    %20 = arith.cmpi eq, %arg1, %c0_i32 : i32
    %21 = arith.extui %20 : i1 to i32
    %c0_i32_14 = arith.constant 0 : i32
    %22 = arith.cmpi ne, %21, %c0_i32_14 : i32
    scf.if %22 {
      %cst_20 = arith.constant 0xFF800000 : f32
      %29 = vector.broadcast %cst_20 : f32 to vector<8x128xf32>
      %c0_21 = arith.constant 0 : index
      %c0_22 = arith.constant 0 : index
      %30 = vector.load %arg10[%c0_21, %c0_22] : memref<8x128xf32, #tpu.memory_space<vmem>>, vector<8x128xf32>
      tpu.vector_store %arg10[%c0_21, %c0_22], %29 {strides = array<i32>} : memref<8x128xf32, #tpu.memory_space<vmem>>, vector<8x128xf32>,
    } else {
    }
    %c0_15 = arith.constant 0 : index
    %c0_16 = arith.constant 0 : index
    %23 = vector.load %arg10[%c0_15, %c0_16] : memref<8x128xf32, #tpu.memory_space<vmem>>, vector<8x128xf32>
    %24 = arith.maximumf %23, %19 : vector<8x128xf32>
    %c0_17 = arith.constant 0 : index
    %c0_18 = arith.constant 0 : index
    %25 = vector.load %arg10[%c0_17, %c0_18] : memref<8x128xf32, #tpu.memory_space<vmem>>, vector<8x128xf32>
    tpu.vector_store %arg10[%c0_17, %c0_18], %24 {strides = array<i32>} : memref<8x128xf32, #tpu.memory_space<vmem>>, vector<8x128xf32>,
    %c1_i32 = arith.constant 1 : i32
    %26 = arith.cmpi eq, %arg1, %c1_i32 : i32
    %27 = arith.extui %26 : i1 to i32
    %c0_i32_19 = arith.constant 0 : i32
    %28 = arith.cmpi ne, %27, %c0_i32_19 : i32
    scf.if %28 {
      %c0_20 = arith.constant 0 : index
      %c0_21 = arith.constant 0 : index
      %29 = vector.load %arg10[%c0_20, %c0_21] : memref<8x128xf32, #tpu.memory_space<vmem>>, vector<8x128xf32>
      %c0_22 = arith.constant 0 : index
      %c0_23 = arith.constant 0 : index
      %30 = vector.load %arg7[%c0_22, %c0_23] : memref<128x128xf32, #tpu.memory_space<vmem>>, vector<128x128xf32>
      %cst_24 = arith.constant dense<0.000000e+00> : vector<8x128xf32>
      %31 = tpu.matmul %29, %30, %cst_24 {dimension_numbers = #tpu.dot_dimension_numbers<[1], [0], [0], [1], [0, 0, 1, 1], [], []>} : vector<8x128xf32>, vector<128x128xf32>, vector<8x128xf32> -> vector<8x128xf32>
      %c0_25 = arith.constant 0 : index
      %c0_26 = arith.constant 0 : index
      %32 = vector.load %arg8[%c0_25, %c0_26] : memref<1x128xf32, #tpu.memory_space<vmem>>, vector<1x128xf32>
      %33 = vector.broadcast %32 : vector<1x128xf32> to vector<8x128xf32>
      %34 = arith.addf %31, %33 : vector<8x128xf32>
      %c0_27 = arith.constant 0 : index
      %c0_28 = arith.constant 0 : index
      %35 = vector.load %arg9[%c0_27, %c0_28] : memref<8x128xf32, #tpu.memory_space<vmem>>, vector<8x128xf32>
      tpu.vector_store %arg9[%c0_27, %c0_28], %34 {strides = array<i32>} : memref<8x128xf32, #tpu.memory_space<vmem>>, vector<8x128xf32>,
    } else {
    }
    return
  }
  func.func @transform_0(%arg0: i32, %arg1: i32) -> (i32, i32, i32) {
    %c0_i32 = arith.constant 0 : i32
    %c0_i32_0 = arith.constant 0 : i32
    return %arg0, %arg1, %c0_i32 : i32, i32, i32
  }
  func.func @transform_1(%arg0: i32, %arg1: i32) -> (i32, i32) {
    %c0_i32 = arith.constant 0 : i32
    %c0_i32_0 = arith.constant 0 : i32
    %c0_i32_1 = arith.constant 0 : i32
    return %c0_i32, %c0_i32_0 : i32, i32
  }
  func.func @transform_2(%arg0: i32, %arg1: i32) -> (i32, i32) {
    %c0_i32 = arith.constant 0 : i32
    %c0_i32_0 = arith.constant 0 : i32
    %c0_i32_1 = arith.constant 0 : i32
    return %c0_i32, %c0_i32_0 : i32, i32
  }
  func.func @transform_3(%arg0: i32, %arg1: i32) -> (i32, i32) {
    %c0_i32 = arith.constant 0 : i32
    %c0_i32_0 = arith.constant 0 : i32
    %c0_i32_1 = arith.constant 0 : i32
    return %c0_i32, %c0_i32_0 : i32, i32
  }
  func.func @transform_4(%arg0: i32, %arg1: i32) -> (i32, i32) {
    %c0_i32 = arith.constant 0 : i32
    %c0_i32_0 = arith.constant 0 : i32
    %c0_i32_1 = arith.constant 0 : i32
    return %c0_i32, %c0_i32_0 : i32, i32
  }
  func.func @transform_5(%arg0: i32, %arg1: i32) -> (i32, i32) {
    %c0_i32 = arith.constant 0 : i32
    %c0_i32_0 = arith.constant 0 : i32
    %c0_i32_1 = arith.constant 0 : i32
    return %c0_i32, %c0_i32_0 : i32, i32
  }
  func.func @transform_6(%arg0: i32, %arg1: i32) -> (i32, i32) {
    %c0_i32 = arith.constant 0 : i32
    %c0_i32_0 = arith.constant 0 : i32
    %c0_i32_1 = arith.constant 0 : i32
    return %c0_i32, %c0_i32_0 : i32, i32
  }
  func.func @transform_7(%arg0: i32, %arg1: i32) -> (i32, i32) {
    %c0_i32 = arith.constant 0 : i32
    %c0_i32_0 = arith.constant 0 : i32
    return %arg0, %c0_i32 : i32, i32
  }
}

</mosaic_0001>

<llo_original>
// kernel: tpu_custom_call.1
$region0: #{tpu_custom_call.1}
  #allocation0 [shape = 'u32[]', space=smem, size = 0x4, offset = 0x4, fixed_abs, tag = 'smem constant byte address 0x4 - core index']
  #allocation1 [shape = 'u32[72,128]{1,0:T(1,128)}', space=vmem, size = 0x9000, scoped, tag = 'internal scratch']
  #allocation2 [shape = 'f32[8,128]{1,0:T(8,128)}', space=vmem, size = 0x1000, scoped, tag = 'scratch operand']
  %s0 = inlined_call_operand.vmem [shape: f32[16,256,32], index: 0, kind: input, shape index: {}]
  %s1 = inlined_call_operand.vmem [shape: f32[32,64], index: 1, kind: input, shape index: {}]
  %s2 = inlined_call_operand.vmem [shape: f32[1,64], index: 2, kind: input, shape index: {}]
  %s3 = inlined_call_operand.vmem [shape: f32[64,128], index: 3, kind: input, shape index: {}]
  %s4 = inlined_call_operand.vmem [shape: f32[1,128], index: 4, kind: input, shape index: {}]
  %s5 = inlined_call_operand.vmem [shape: f32[128,128], index: 5, kind: input, shape index: {}]
  %s6 = inlined_call_operand.vmem [shape: f32[1,128], index: 6, kind: input, shape index: {}]
  %s7 = inlined_call_operand.hbm [shape: f32[16,128], index: 7, kind: output, shape index: {}]
  %s8 = sld [smem:[#allocation0]]
  $region107: #{tpu_custom_call.1} parent=0
    _
  %s10 = ssub.s32 1, %s8
  %s11 = scalar_select 0, %s10, %s8
  $region1: #{tpu_custom_call.1} parent=0
    #allocation3 [shape = 'u8[1048576]{0}', space=vmem, size = 0x100000, scoped, tag = 'input window, operand 0']
    #allocation4 [shape = 'u8[8192]{0}', space=vmem, size = 0x2000, scoped, tag = 'output window, operand 0']
    #allocation5 [shape = 's32[2]{0}', space=sflag, size = 0x8, scoped, tag = 'scoped memory for tpu_custom_call.1']
    %12 = vsyncpa [#allocation5], 0
    %s13 = scalar_lea.sflag [#allocation5], 1
    %14 = vsyncpa %s13, 0
    loop: start=0, step=1, limit=6
    $region2: #{tpu_custom_call.1} parent=1 // loop_pre_header
      _
    $region3: #{tpu_custom_call.1} parent=1 // loop_header
      %s16 = sphi 0, %s20
      %p17 = scmp.ge.s32.totalorder %s16, 6
      %s23 = sphi 0, %s35
      %s24 = sphi 0, %s31
      %s25 = sphi 0, %s23
      %s26 = sphi 0, %s24
      %s27 = sphi 0, %s25
      %s28 = sphi 0, %s26
      %s40 = sphi 0, %s42
      %s43 = sphi 0, %s40
      %s44 = sphi 0, %s43
      %s60 = sphi 0, %s44
      %s64 = sphi 0, %s64
      %s66 = sphi 0, %s64
      %s67 = sphi 0, %s66
      %s81 = sphi 0, %s67
      %s85 = sphi 0, %s85
      %s87 = sphi 0, %s85
      %s88 = sphi 0, %s87
      %s102 = sphi 0, %s88
      %s106 = sphi 0, %s106
      %s108 = sphi 0, %s106
      %s109 = sphi 0, %s108
      %s123 = sphi 0, %s109
      %s127 = sphi 0, %s127
      %s129 = sphi 0, %s127
      %s130 = sphi 0, %s129
      %s144 = sphi 0, %s130
      %s148 = sphi 0, %s148
      %s150 = sphi 0, %s148
      %s151 = sphi 0, %s150
      %s165 = sphi 0, %s151
      %s169 = sphi 0, %s169
      %s171 = sphi 0, %s169
      %s172 = sphi 0, %s171
      %s186 = sphi 0, %s172
      %s192 = sphi 0, %s194
      %s195 = sphi 0, %s192
      %s196 = sphi 0, %s195
      %s212 = sphi 0, %s196
    $region4: #{tpu_custom_call.1} parent=1 // loop_header_branch
      %19 = sbr.rel (%p17) target = $region8
    $region5: #{tpu_custom_call.1} parent=1 // loop_body
      %s21 = ssub.s32 %s16, 1
      %s22 = ssub.s32 %s16, 2
      %s29 = sadd.s32 1, %s24
      %p30 = scmp.ge.s32.totalorder %s29, 2
      %s31 = scalar_select %p30, 0, %s29
      %s32 = sadd.s32 1, %s23
      %s33 = scalar_select %p30, %s32, %s23
      %p34 = scmp.ge.s32.totalorder %s33, 2
      %s35 = scalar_select %p34, 0, %s33
      %s36 = ssub.s32 %s23, %s35
      %s37 = ssub.s32 %s24, %s31
      %s38 = sor.u32 %s36, %s37
      %p39 = scmp.eq.s32.totalorder %s38, 0
      %s41 = sadd.s32 %s40, 1
      %s42 = scalar_select %p39, %s40, %s41
      %p45 = pneg %p39
      %p46 = scmp.eq.s32.totalorder %s16, 3
      %p47 = por %p45, %p46
      %p48 = scmp.ne.s32.totalorder %s40, %s43
      %p49 = scmp.eq.s32.totalorder %s16, 0
      %p50 = por %p48, %p49
      %p51 = scmp.ne.s32.totalorder %s40, %s43
      %p52 = scmp.eq.s32.totalorder %s21, 3
      %p53 = por %p51, %p52
      %p54 = scmp.ne.s32.totalorder %s43, %s44
      %p55 = scmp.eq.s32.totalorder %s21, 0
      %p56 = por %p54, %p55
      %p57 = scmp.ne.s32.totalorder %s43, %s44
      %p58 = scmp.eq.s32.totalorder %s22, 3
      %p59 = por %p57, %p58
      %p61 = scmp.ne.s32.totalorder %s44, %s60
      %p62 = scmp.eq.s32.totalorder %s22, 0
      %p63 = por %p61, %p62
      %s65 = sadd.s32 %s64, 1
      %p68 = scmp.eq.s32.totalorder %s16, 3
      %p69 = scmp.ne.s32.totalorder %s64, %s66
      %p70 = scmp.eq.s32.totalorder %s16, 0
      %p71 = por %p69, %p70
      %p72 = scmp.ne.s32.totalorder %s64, %s66
      %p73 = scmp.eq.s32.totalorder %s21, 3
      %p74 = por %p72, %p73
      %p75 = scmp.ne.s32.totalorder %s66, %s67
      %p76 = scmp.eq.s32.totalorder %s21, 0
      %p77 = por %p75, %p76
      %p78 = scmp.ne.s32.totalorder %s66, %s67
      %p79 = scmp.eq.s32.totalorder %s22, 3
      %p80 = por %p78, %p79
      %p82 = scmp.ne.s32.totalorder %s67, %s81
      %p83 = scmp.eq.s32.totalorder %s22, 0
      %p84 = por %p82, %p83
      %s86 = sadd.s32 %s85, 1
      %p89 = scmp.eq.s32.totalorder %s16, 3
      %p90 = scmp.ne.s32.totalorder %s85, %s87
      %p91 = scmp.eq.s32.totalorder %s16, 0
      %p92 = por %p90, %p91
      %p93 = scmp.ne.s32.totalorder %s85, %s87
      %p94 = scmp.eq.s32.totalorder %s21, 3
      %p95 = por %p93, %p94
      %p96 = scmp.ne.s32.totalorder %s87, %s88
      %p97 = scmp.eq.s32.totalorder %s21, 0
      %p98 = por %p96, %p97
      %p99 = scmp.ne.s32.totalorder %s87, %s88
      %p100 = scmp.eq.s32.totalorder %s22, 3
      %p101 = por %p99, %p100
      %p103 = scmp.ne.s32.totalorder %s88, %s102
      %p104 = scmp.eq.s32.totalorder %s22, 0
      %p105 = por %p103, %p104
      %s107 = sadd.s32 %s106, 1
      %p110 = scmp.eq.s32.totalorder %s16, 3
      %p111 = scmp.ne.s32.totalorder %s106, %s108
      %p112 = scmp.eq.s32.totalorder %s16, 0
      %p113 = por %p111, %p112
      %p114 = scmp.ne.s32.totalorder %s106, %s108
      %p115 = scmp.eq.s32.totalorder %s21, 3
      %p116 = por %p114, %p115
      %p117 = scmp.ne.s32.totalorder %s108, %s109
      %p118 = scmp.eq.s32.totalorder %s21, 0
      %p119 = por %p117, %p118
      %p120 = scmp.ne.s32.totalorder %s108, %s109
      %p121 = scmp.eq.s32.totalorder %s22, 3
      %p122 = por %p120, %p121
      %p124 = scmp.ne.s32.totalorder %s109, %s123
      %p125 = scmp.eq.s32.totalorder %s22, 0
      %p126 = por %p124, %p125
      %s128 = sadd.s32 %s127, 1
      %p131 = scmp.eq.s32.totalorder %s16, 3
      %p132 = scmp.ne.s32.totalorder %s127, %s129
      %p133 = scmp.eq.s32.totalorder %s16, 0
      %p134 = por %p132, %p133
      %p135 = scmp.ne.s32.totalorder %s127, %s129
      %p136 = scmp.eq.s32.totalorder %s21, 3
      %p137 = por %p135, %p136
      %p138 = scmp.ne.s32.totalorder %s129, %s130
      %p139 = scmp.eq.s32.totalorder %s21, 0
      %p140 = por %p138, %p139
      %p141 = scmp.ne.s32.totalorder %s129, %s130
      %p142 = scmp.eq.s32.totalorder %s22, 3
      %p143 = por %p141, %p142
      %p145 = scmp.ne.s32.totalorder %s130, %s144
      %p146 = scmp.eq.s32.totalorder %s22, 0
      %p147 = por %p145, %p146
      %s149 = sadd.s32 %s148, 1
      %p152 = scmp.eq.s32.totalorder %s16, 3
      %p153 = scmp.ne.s32.totalorder %s148, %s150
      %p154 = scmp.eq.s32.totalorder %s16, 0
      %p155 = por %p153, %p154
      %p156 = scmp.ne.s32.totalorder %s148, %s150
      %p157 = scmp.eq.s32.totalorder %s21, 3
      %p158 = por %p156, %p157
      %p159 = scmp.ne.s32.totalorder %s150, %s151
      %p160 = scmp.eq.s32.totalorder %s21, 0
      %p161 = por %p159, %p160
      %p162 = scmp.ne.s32.totalorder %s150, %s151
      %p163 = scmp.eq.s32.totalorder %s22, 3
      %p164 = por %p162, %p163
      %p166 = scmp.ne.s32.totalorder %s151, %s165
      %p167 = scmp.eq.s32.totalorder %s22, 0
      %p168 = por %p166, %p167
      %s170 = sadd.s32 %s169, 1
      %p173 = scmp.eq.s32.totalorder %s16, 3
      %p174 = scmp.ne.s32.totalorder %s169, %s171
      %p175 = scmp.eq.s32.totalorder %s16, 0
      %p176 = por %p174, %p175
      %p177 = scmp.ne.s32.totalorder %s169, %s171
      %p178 = scmp.eq.s32.totalorder %s21, 3
      %p179 = por %p177, %p178
      %p180 = scmp.ne.s32.totalorder %s171, %s172
      %p181 = scmp.eq.s32.totalorder %s21, 0
      %p182 = por %p180, %p181
      %p183 = scmp.ne.s32.totalorder %s171, %s172
      %p184 = scmp.eq.s32.totalorder %s22, 3
      %p185 = por %p183, %p184
      %p187 = scmp.ne.s32.totalorder %s172, %s186
      %p188 = scmp.eq.s32.totalorder %s22, 0
      %p189 = por %p187, %p188
      %s190 = ssub.s32 %s23, %s35
      %p191 = scmp.eq.s32.totalorder %s190, 0
      %s193 = sadd.s32 %s192, 1
      %s194 = scalar_select %p191, %s192, %s193
      %p197 = pneg %p191
      %p198 = scmp.eq.s32.totalorder %s16, 3
      %p199 = por %p197, %p198
      %p200 = scmp.ne.s32.totalorder %s192, %s195
      %p201 = scmp.eq.s32.totalorder %s16, 0
      %p202 = por %p200, %p201
      %p203 = scmp.ne.s32.totalorder %s192, %s195
      %p204 = scmp.eq.s32.totalorder %s21, 3
      %p205 = por %p203, %p204
      %p206 = scmp.ne.s32.totalorder %s195, %s196
      %p207 = scmp.eq.s32.totalorder %s21, 0
      %p208 = por %p206, %p207
      %p209 = scmp.ne.s32.totalorder %s195, %s196
      %p210 = scmp.eq.s32.totalorder %s22, 3
      %p211 = por %p209, %p210
      %p213 = scmp.ne.s32.totalorder %s196, %s212
      %p214 = scmp.eq.s32.totalorder %s22, 0
      %p215 = por %p213, %p214
      %p216 = scmp.le.s32.totalorder 1, %s16
      %p217 = scmp.lt.s32.totalorder %s16, 5
      %p218 = pnand %p216, %p217
      %p219 = pneg %p218
      // Predicated region
      $region9: #{tpu_custom_call.1} parent=5 // pred_check
        _
      $region10: #{tpu_custom_call.1} parent=5 // pred_check_branch
        %221 = sbr.rel (%p218) target = $region12
      $region11: #{tpu_custom_call.1} parent=5 // pred_region
        %s222 = ssub.s32 %s16, 1
        // Predicated region
        $region13: #{tpu_custom_call.1} parent=11 // pred_check
          %p223 = pneg %p77
        $region14: #{tpu_custom_call.1} parent=11 // pred_check_branch
          %225 = sbr.rel (%p223) target = $region16
        $region15: #{tpu_custom_call.1} parent=11 // pred_region
          _
        $region16: #{tpu_custom_call.1} parent=11 // pred_fallthru
          _
        // Predicated region
        $region17: #{tpu_custom_call.1} parent=11 // pred_check
          %p226 = pneg %p98
        $region18: #{tpu_custom_call.1} parent=11 // pred_check_branch
          %228 = sbr.rel (%p226) target = $region20
        $region19: #{tpu_custom_call.1} parent=11 // pred_region
          _
        $region20: #{tpu_custom_call.1} parent=11 // pred_fallthru
          _
        // Predicated region
        $region21: #{tpu_custom_call.1} parent=11 // pred_check
          %p229 = pneg %p119
        $region22: #{tpu_custom_call.1} parent=11 // pred_check_branch
          %231 = sbr.rel (%p229) target = $region24
        $region23: #{tpu_custom_call.1} parent=11 // pred_region
          _
        $region24: #{tpu_custom_call.1} parent=11 // pred_fallthru
          _
        // Predicated region
        $region25: #{tpu_custom_call.1} parent=11 // pred_check
          %p232 = pneg %p140
        $region26: #{tpu_custom_call.1} parent=11 // pred_check_branch
          %234 = sbr.rel (%p232) target = $region28
        $region27: #{tpu_custom_call.1} parent=11 // pred_region
          _
        $region28: #{tpu_custom_call.1} parent=11 // pred_fallthru
          _
        // Predicated region
        $region29: #{tpu_custom_call.1} parent=11 // pred_check
          %p235 = pneg %p161
        $region30: #{tpu_custom_call.1} parent=11 // pred_check_branch
          %237 = sbr.rel (%p235) target = $region32
        $region31: #{tpu_custom_call.1} parent=11 // pred_region
          _
        $region32: #{tpu_custom_call.1} parent=11 // pred_fallthru
          _
        // Predicated region
        $region33: #{tpu_custom_call.1} parent=11 // pred_check
          %p238 = pneg %p182
        $region34: #{tpu_custom_call.1} parent=11 // pred_check_branch
          %240 = sbr.rel (%p238) target = $region36
        $region35: #{tpu_custom_call.1} parent=11 // pred_region
          _
        $region36: #{tpu_custom_call.1} parent=11 // pred_fallthru
          _
      $region12: #{tpu_custom_call.1} parent=5 // pred_fallthru
        _
      %p241 = scmp.lt.s32.totalorder %s16, 4
      // Predicated region
      $region37: #{tpu_custom_call.1} parent=5 // pred_check
        %p242 = pneg %p241
      $region38: #{tpu_custom_call.1} parent=5 // pred_check_branch
        %244 = sbr.rel (%p242) target = $region40
      $region39: #{tpu_custom_call.1} parent=5 // pred_region
        // Predicated region
        $region41: #{tpu_custom_call.1} parent=39 // pred_check
          %p245 = pneg %p50
        $region42: #{tpu_custom_call.1} parent=39 // pred_check_branch
          %247 = sbr.rel (%p245) target = $region44
        $region43: #{tpu_custom_call.1} parent=39 // pred_region
          %s248 = sand.u32 %s40, 1
          %s249 = sand.u32 %s40, 1
          %s250 = smul.addr %s249, 1024
          %s251 = scalar_lea.vmem [#allocation3], %s250
          %s252 = smul.u32 8, %s23
          %s253 = smul.u32 16, %s24
          %s254 = smul.addr %s252, 32
          %s255 = sadd.s32 %s253, %s254
          %s256 = smul.addr %s255, 8
          %s257 = scalar_lea.vmem %s0, %s256
          // Predicated region
          $region45: #{tpu_custom_call.1} parent=43 // pred_check
            _
          $region46: #{tpu_custom_call.1} parent=43 // pred_check_branch
            %259 = sbr.rel (0) target = $region48
          $region47: #{tpu_custom_call.1} parent=43 // pred_region
            // Predicated region
            $region49: #{tpu_custom_call.1} parent=47 // pred_check
              _
            $region50: #{tpu_custom_call.1} parent=47 // pred_check_branch
              %261 = sbr.rel (0) target = $region52
            $region51: #{tpu_custom_call.1} parent=47 // pred_region
              // Predicated region
              $region64: #{tpu_custom_call.1} parent=51 // pred_check
                _
              $region65: #{tpu_custom_call.1} parent=51 // pred_check_branch
                %531 = sbr.rel (0) target = $region67
              $region66: #{tpu_custom_call.1} parent=51 // pred_region
                loop: start=0, step=1, limit=1
                $region68: #{tpu_custom_call.1} parent=66 // loop_pre_header
                  _
                $region69: #{tpu_custom_call.1} parent=66 // loop_header
                  %s533 = sphi 0, %s537
                  %p534 = scmp.ge.s32.totalorder %s533, 1
                  %s538 = sphi %s257, %s257
                  %s539 = sphi %s251, %s251
                $region70: #{tpu_custom_call.1} parent=66 // loop_header_branch
                  %536 = sbr.rel (%p534) target = $region74
                $region71: #{tpu_custom_call.1} parent=66 // loop_body
                  %v540 = vld [vmem:[%s538] sm:$0xff]
                  %541 = vst [vmem:[%s539] sm:$0xff] %v540
                  %v542 = vld [vmem:[%s538 + $0x8] sm:$0xff]
                  %543 = vst [vmem:[%s539 + $0x8] sm:$0xff] %v542
                  %v544 = vld [vmem:[%s538 + $0x10] sm:$0xff]
                  %545 = vst [vmem:[%s539 + $0x10] sm:$0xff] %v544
                  %v546 = vld [vmem:[%s538 + $0x18] sm:$0xff]
                  %547 = vst [vmem:[%s539 + $0x18] sm:$0xff] %v546
                  %v548 = vld [vmem:[%s538 + $0x20] sm:$0xff]
                  %549 = vst [vmem:[%s539 + $0x20] sm:$0xff] %v548
                  %v550 = vld [vmem:[%s538 + $0x28] sm:$0xff]
                  %551 = vst [vmem:[%s539 + $0x28] sm:$0xff] %v550
                  %v552 = vld [vmem:[%s538 + $0x30] sm:$0xff]
                  %553 = vst [vmem:[%s539 + $0x30] sm:$0xff] %v552
                  %v554 = vld [vmem:[%s538 + $0x38] sm:$0xff]
                  %555 = vst [vmem:[%s539 + $0x38] sm:$0xff] %v554
                  %v556 = vld [vmem:[%s538 + $0x40] sm:$0xff]
                  %557 = vst [vmem:[%s539 + $0x40] sm:$0xff] %v556
                  %v558 = vld [vmem:[%s538 + $0x48] sm:$0xff]
                  %559 = vst [vmem:[%s539 + $0x48] sm:$0xff] %v558
                  %v560 = vld [vmem:[%s538 + $0x50] sm:$0xff]
                  %561 = vst [vmem:[%s539 + $0x50] sm:$0xff] %v560
                  %v562 = vld [vmem:[%s538 + $0x58] sm:$0xff]
                  %563 = vst [vmem:[%s539 + $0x58] sm:$0xff] %v562
                  %v564 = vld [vmem:[%s538 + $0x60] sm:$0xff]
                  %565 = vst [vmem:[%s539 + $0x60] sm:$0xff] %v564
                  %v566 = vld [vmem:[%s538 + $0x68] sm:$0xff]
                  %567 = vst [vmem:[%s539 + $0x68] sm:$0xff] %v566
                  %v568 = vld [vmem:[%s538 + $0x70] sm:$0xff]
                  %569 = vst [vmem:[%s539 + $0x70] sm:$0xff] %v568
                  %v570 = vld [vmem:[%s538 + $0x78] sm:$0xff]
                  %571 = vst [vmem:[%s539 + $0x78] sm:$0xff] %v570
                  %v572 = vld [vmem:[%s538 + $0x100] sm:$0xff]
                  %573 = vst [vmem:[%s539 + $0x80] sm:$0xff] %v572
                  %v574 = vld [vmem:[%s538 + $0x108] sm:$0xff]
                  %575 = vst [vmem:[%s539 + $0x88] sm:$0xff] %v574
                  %v576 = vld [vmem:[%s538 + $0x110] sm:$0xff]
                  %577 = vst [vmem:[%s539 + $0x90] sm:$0xff] %v576
                  %v578 = vld [vmem:[%s538 + $0x118] sm:$0xff]
                  %579 = vst [vmem:[%s539 + $0x98] sm:$0xff] %v578
                  %v580 = vld [vmem:[%s538 + $0x120] sm:$0xff]
                  %581 = vst [vmem:[%s539 + $0xa0] sm:$0xff] %v580
                  %v582 = vld [vmem:[%s538 + $0x128] sm:$0xff]
                  %583 = vst [vmem:[%s539 + $0xa8] sm:$0xff] %v582
                  %v584 = vld [vmem:[%s538 + $0x130] sm:$0xff]
                  %585 = vst [vmem:[%s539 + $0xb0] sm:$0xff] %v584
                  %v586 = vld [vmem:[%s538 + $0x138] sm:$0xff]
                  %587 = vst [vmem:[%s539 + $0xb8] sm:$0xff] %v586
                  %v588 = vld [vmem:[%s538 + $0x140] sm:$0xff]
                  %589 = vst [vmem:[%s539 + $0xc0] sm:$0xff] %v588
                  %v590 = vld [vmem:[%s538 + $0x148] sm:$0xff]
                  %591 = vst [vmem:[%s539 + $0xc8] sm:$0xff] %v590
                  %v592 = vld [vmem:[%s538 + $0x150] sm:$0xff]
                  %593 = vst [vmem:[%s539 + $0xd0] sm:$0xff] %v592
                  %v594 = vld [vmem:[%s538 + $0x158] sm:$0xff]
                  %595 = vst [vmem:[%s539 + $0xd8] sm:$0xff] %v594
                  %v596 = vld [vmem:[%s538 + $0x160] sm:$0xff]
                  %597 = vst [vmem:[%s539 + $0xe0] sm:$0xff] %v596
                  %v598 = vld [vmem:[%s538 + $0x168] sm:$0xff]
                  %599 = vst [vmem:[%s539 + $0xe8] sm:$0xff] %v598
                  %v600 = vld [vmem:[%s538 + $0x170] sm:$0xff]
                  %601 = vst [vmem:[%s539 + $0xf0] sm:$0xff] %v600
                  %v602 = vld [vmem:[%s538 + $0x178] sm:$0xff]
                  %603 = vst [vmem:[%s539 + $0xf8] sm:$0xff] %v602
                  %v604 = vld [vmem:[%s538 + $0x200] sm:$0xff]
                  %605 = vst [vmem:[%s539 + $0x100] sm:$0xff] %v604
                  %v606 = vld [vmem:[%s538 + $0x208] sm:$0xff]
                  %607 = vst [vmem:[%s539 + $0x108] sm:$0xff] %v606
                  %v608 = vld [vmem:[%s538 + $0x210] sm:$0xff]
                  %609 = vst [vmem:[%s539 + $0x110] sm:$0xff] %v608
                  %v610 = vld [vmem:[%s538 + $0x218] sm:$0xff]
                  %611 = vst [vmem:[%s539 + $0x118] sm:$0xff] %v610
                  %v612 = vld [vmem:[%s538 + $0x220] sm:$0xff]
                  %613 = vst [vmem:[%s539 + $0x120] sm:$0xff] %v612
                  %v614 = vld [vmem:[%s538 + $0x228] sm:$0xff]
                  %615 = vst [vmem:[%s539 + $0x128] sm:$0xff] %v614
                  %v616 = vld [vmem:[%s538 + $0x230] sm:$0xff]
                  %617 = vst [vmem:[%s539 + $0x130] sm:$0xff] %v616
                  %v618 = vld [vmem:[%s538 + $0x238] sm:$0xff]
                  %619 = vst [vmem:[%s539 + $0x138] sm:$0xff] %v618
                  %v620 = vld [vmem:[%s538 + $0x240] sm:$0xff]
                  %621 = vst [vmem:[%s539 + $0x140] sm:$0xff] %v620
                  %v622 = vld [vmem:[%s538 + $0x248] sm:$0xff]
                  %623 = vst [vmem:[%s539 + $0x148] sm:$0xff] %v622
                  %v624 = vld [vmem:[%s538 + $0x250] sm:$0xff]
                  %625 = vst [vmem:[%s539 + $0x150] sm:$0xff] %v624
                  %v626 = vld [vmem:[%s538 + $0x258] sm:$0xff]
                  %627 = vst [vmem:[%s539 + $0x158] sm:$0xff] %v626
                  %v628 = vld [vmem:[%s538 + $0x260] sm:$0xff]
                  %629 = vst [vmem:[%s539 + $0x160] sm:$0xff] %v628
                  %v630 = vld [vmem:[%s538 + $0x268] sm:$0xff]
                  %631 = vst [vmem:[%s539 + $0x168] sm:$0xff] %v630
                  %v632 = vld [vmem:[%s538 + $0x270] sm:$0xff]
                  %633 = vst [vmem:[%s539 + $0x170] sm:$0xff] %v632
                  %v634 = vld [vmem:[%s538 + $0x278] sm:$0xff]
                  %635 = vst [vmem:[%s539 + $0x178] sm:$0xff] %v634
                  %v636 = vld [vmem:[%s538 + $0x300] sm:$0xff]
                  %637 = vst [vmem:[%s539 + $0x180] sm:$0xff] %v636
                  %v638 = vld [vmem:[%s538 + $0x308] sm:$0xff]
                  %639 = vst [vmem:[%s539 + $0x188] sm:$0xff] %v638
                  %v640 = vld [vmem:[%s538 + $0x310] sm:$0xff]
                  %641 = vst [vmem:[%s539 + $0x190] sm:$0xff] %v640
                  %v642 = vld [vmem:[%s538 + $0x318] sm:$0xff]
                  %643 = vst [vmem:[%s539 + $0x198] sm:$0xff] %v642
                  %v644 = vld [vmem:[%s538 + $0x320] sm:$0xff]
                  %645 = vst [vmem:[%s539 + $0x1a0] sm:$0xff] %v644
                  %v646 = vld [vmem:[%s538 + $0x328] sm:$0xff]
                  %647 = vst [vmem:[%s539 + $0x1a8] sm:$0xff] %v646
                  %v648 = vld [vmem:[%s538 + $0x330] sm:$0xff]
                  %649 = vst [vmem:[%s539 + $0x1b0] sm:$0xff] %v648
                  %v650 = vld [vmem:[%s538 + $0x338] sm:$0xff]
                  %651 = vst [vmem:[%s539 + $0x1b8] sm:$0xff] %v650
                  %v652 = vld [vmem:[%s538 + $0x340] sm:$0xff]
                  %653 = vst [vmem:[%s539 + $0x1c0] sm:$0xff] %v652
                  %v654 = vld [vmem:[%s538 + $0x348] sm:$0xff]
                  %655 = vst [vmem:[%s539 + $0x1c8] sm:$0xff] %v654
                  %v656 = vld [vmem:[%s538 + $0x350] sm:$0xff]
                  %657 = vst [vmem:[%s539 + $0x1d0] sm:$0xff] %v656
                  %v658 = vld [vmem:[%s538 + $0x358] sm:$0xff]
                  %659 = vst [vmem:[%s539 + $0x1d8] sm:$0xff] %v658
                  %v660 = vld [vmem:[%s538 + $0x360] sm:$0xff]
                  %661 = vst [vmem:[%s539 + $0x1e0] sm:$0xff] %v660
                  %v662 = vld [vmem:[%s538 + $0x368] sm:$0xff]
                  %663 = vst [vmem:[%s539 + $0x1e8] sm:$0xff] %v662
                  %v664 = vld [vmem:[%s538 + $0x370] sm:$0xff]
                  %665 = vst [vmem:[%s539 + $0x1f0] sm:$0xff] %v664
                  %v666 = vld [vmem:[%s538 + $0x378] sm:$0xff]
                  %667 = vst [vmem:[%s539 + $0x1f8] sm:$0xff] %v666
                  %v668 = vld [vmem:[%s538 + $0x400] sm:$0xff]
                  %669 = vst [vmem:[%s539 + $0x200] sm:$0xff] %v668
                  %v670 = vld [vmem:[%s538 + $0x408] sm:$0xff]
                  %671 = vst [vmem:[%s539 + $0x208] sm:$0xff] %v670
                  %v672 = vld [vmem:[%s538 + $0x410] sm:$0xff]
                  %673 = vst [vmem:[%s539 + $0x210] sm:$0xff] %v672
                  %v674 = vld [vmem:[%s538 + $0x418] sm:$0xff]
                  %675 = vst [vmem:[%s539 + $0x218] sm:$0xff] %v674
                  %v676 = vld [vmem:[%s538 + $0x420] sm:$0xff]
                  %677 = vst [vmem:[%s539 + $0x220] sm:$0xff] %v676
                  %v678 = vld [vmem:[%s538 + $0x428] sm:$0xff]
                  %679 = vst [vmem:[%s539 + $0x228] sm:$0xff] %v678
                  %v680 = vld [vmem:[%s538 + $0x430] sm:$0xff]
                  %681 = vst [vmem:[%s539 + $0x230] sm:$0xff] %v680
                  %v682 = vld [vmem:[%s538 + $0x438] sm:$0xff]
                  %683 = vst [vmem:[%s539 + $0x238] sm:$0xff] %v682
                  %v684 = vld [vmem:[%s538 + $0x440] sm:$0xff]
                  %685 = vst [vmem:[%s539 + $0x240] sm:$0xff] %v684
                  %v686 = vld [vmem:[%s538 + $0x448] sm:$0xff]
                  %687 = vst [vmem:[%s539 + $0x248] sm:$0xff] %v686
                  %v688 = vld [vmem:[%s538 + $0x450] sm:$0xff]
                  %689 = vst [vmem:[%s539 + $0x250] sm:$0xff] %v688
                  %v690 = vld [vmem:[%s538 + $0x458] sm:$0xff]
                  %691 = vst [vmem:[%s539 + $0x258] sm:$0xff] %v690
                  %v692 = vld [vmem:[%s538 + $0x460] sm:$0xff]
                  %693 = vst [vmem:[%s539 + $0x260] sm:$0xff] %v692
                  %v694 = vld [vmem:[%s538 + $0x468] sm:$0xff]
                  %695 = vst [vmem:[%s539 + $0x268] sm:$0xff] %v694
                  %v696 = vld [vmem:[%s538 + $0x470] sm:$0xff]
                  %697 = vst [vmem:[%s539 + $0x270] sm:$0xff] %v696
                  %v698 = vld [vmem:[%s538 + $0x478] sm:$0xff]
                  %699 = vst [vmem:[%s539 + $0x278] sm:$0xff] %v698
                  %v700 = vld [vmem:[%s538 + $0x500] sm:$0xff]
                  %701 = vst [vmem:[%s539 + $0x280] sm:$0xff] %v700
                  %v702 = vld [vmem:[%s538 + $0x508] sm:$0xff]
                  %703 = vst [vmem:[%s539 + $0x288] sm:$0xff] %v702
                  %v704 = vld [vmem:[%s538 + $0x510] sm:$0xff]
                  %705 = vst [vmem:[%s539 + $0x290] sm:$0xff] %v704
                  %v706 = vld [vmem:[%s538 + $0x518] sm:$0xff]
                  %707 = vst [vmem:[%s539 + $0x298] sm:$0xff] %v706
                  %v708 = vld [vmem:[%s538 + $0x520] sm:$0xff]
                  %709 = vst [vmem:[%s539 + $0x2a0] sm:$0xff] %v708
                  %v710 = vld [vmem:[%s538 + $0x528] sm:$0xff]
                  %711 = vst [vmem:[%s539 + $0x2a8] sm:$0xff] %v710
                  %v712 = vld [vmem:[%s538 + $0x530] sm:$0xff]
                  %713 = vst [vmem:[%s539 + $0x2b0] sm:$0xff] %v712
                  %v714 = vld [vmem:[%s538 + $0x538] sm:$0xff]
                  %715 = vst [vmem:[%s539 + $0x2b8] sm:$0xff] %v714
                  %v716 = vld [vmem:[%s538 + $0x540] sm:$0xff]
                  %717 = vst [vmem:[%s539 + $0x2c0] sm:$0xff] %v716
                  %v718 = vld [vmem:[%s538 + $0x548] sm:$0xff]
                  %719 = vst [vmem:[%s539 + $0x2c8] sm:$0xff] %v718
                  %v720 = vld [vmem:[%s538 + $0x550] sm:$0xff]
                  %721 = vst [vmem:[%s539 + $0x2d0] sm:$0xff] %v720
                  %v722 = vld [vmem:[%s538 + $0x558] sm:$0xff]
                  %723 = vst [vmem:[%s539 + $0x2d8] sm:$0xff] %v722
                  %v724 = vld [vmem:[%s538 + $0x560] sm:$0xff]
                  %725 = vst [vmem:[%s539 + $0x2e0] sm:$0xff] %v724
                  %v726 = vld [vmem:[%s538 + $0x568] sm:$0xff]
                  %727 = vst [vmem:[%s539 + $0x2e8] sm:$0xff] %v726
                  %v728 = vld [vmem:[%s538 + $0x570] sm:$0xff]
                  %729 = vst [vmem:[%s539 + $0x2f0] sm:$0xff] %v728
                  %v730 = vld [vmem:[%s538 + $0x578] sm:$0xff]
                  %731 = vst [vmem:[%s539 + $0x2f8] sm:$0xff] %v730
                  %v732 = vld [vmem:[%s538 + $0x600] sm:$0xff]
                  %733 = vst [vmem:[%s539 + $0x300] sm:$0xff] %v732
                  %v734 = vld [vmem:[%s538 + $0x608] sm:$0xff]
                  %735 = vst [vmem:[%s539 + $0x308] sm:$0xff] %v734
                  %v736 = vld [vmem:[%s538 + $0x610] sm:$0xff]
                  %737 = vst [vmem:[%s539 + $0x310] sm:$0xff] %v736
                  %v738 = vld [vmem:[%s538 + $0x618] sm:$0xff]
                  %739 = vst [vmem:[%s539 + $0x318] sm:$0xff] %v738
                  %v740 = vld [vmem:[%s538 + $0x620] sm:$0xff]
                  %741 = vst [vmem:[%s539 + $0x320] sm:$0xff] %v740
                  %v742 = vld [vmem:[%s538 + $0x628] sm:$0xff]
                  %743 = vst [vmem:[%s539 + $0x328] sm:$0xff] %v742
                  %v744 = vld [vmem:[%s538 + $0x630] sm:$0xff]
                  %745 = vst [vmem:[%s539 + $0x330] sm:$0xff] %v744
                  %v746 = vld [vmem:[%s538 + $0x638] sm:$0xff]
                  %747 = vst [vmem:[%s539 + $0x338] sm:$0xff] %v746
                  %v748 = vld [vmem:[%s538 + $0x640] sm:$0xff]
                  %749 = vst [vmem:[%s539 + $0x340] sm:$0xff] %v748
                  %v750 = vld [vmem:[%s538 + $0x648] sm:$0xff]
                  %751 = vst [vmem:[%s539 + $0x348] sm:$0xff] %v750
                  %v752 = vld [vmem:[%s538 + $0x650] sm:$0xff]
                  %753 = vst [vmem:[%s539 + $0x350] sm:$0xff] %v752
                  %v754 = vld [vmem:[%s538 + $0x658] sm:$0xff]
                  %755 = vst [vmem:[%s539 + $0x358] sm:$0xff] %v754
                  %v756 = vld [vmem:[%s538 + $0x660] sm:$0xff]
                  %757 = vst [vmem:[%s539 + $0x360] sm:$0xff] %v756
                  %v758 = vld [vmem:[%s538 + $0x668] sm:$0xff]
                  %759 = vst [vmem:[%s539 + $0x368] sm:$0xff] %v758
                  %v760 = vld [vmem:[%s538 + $0x670] sm:$0xff]
                  %761 = vst [vmem:[%s539 + $0x370] sm:$0xff] %v760
                  %v762 = vld [vmem:[%s538 + $0x678] sm:$0xff]
                  %763 = vst [vmem:[%s539 + $0x378] sm:$0xff] %v762
                  %v764 = vld [vmem:[%s538 + $0x700] sm:$0xff]
                  %765 = vst [vmem:[%s539 + $0x380] sm:$0xff] %v764
                  %v766 = vld [vmem:[%s538 + $0x708] sm:$0xff]
                  %767 = vst [vmem:[%s539 + $0x388] sm:$0xff] %v766
                  %v768 = vld [vmem:[%s538 + $0x710] sm:$0xff]
                  %769 = vst [vmem:[%s539 + $0x390] sm:$0xff] %v768
                  %v770 = vld [vmem:[%s538 + $0x718] sm:$0xff]
                  %771 = vst [vmem:[%s539 + $0x398] sm:$0xff] %v770
                  %v772 = vld [vmem:[%s538 + $0x720] sm:$0xff]
                  %773 = vst [vmem:[%s539 + $0x3a0] sm:$0xff] %v772
                  %v774 = vld [vmem:[%s538 + $0x728] sm:$0xff]
                  %775 = vst [vmem:[%s539 + $0x3a8] sm:$0xff] %v774
                  %v776 = vld [vmem:[%s538 + $0x730] sm:$0xff]
                  %777 = vst [vmem:[%s539 + $0x3b0] sm:$0xff] %v776
                  %v778 = vld [vmem:[%s538 + $0x738] sm:$0xff]
                  %779 = vst [vmem:[%s539 + $0x3b8] sm:$0xff] %v778
                  %v780 = vld [vmem:[%s538 + $0x740] sm:$0xff]
                  %781 = vst [vmem:[%s539 + $0x3c0] sm:$0xff] %v780
                  %v782 = vld [vmem:[%s538 + $0x748] sm:$0xff]
                  %783 = vst [vmem:[%s539 + $0x3c8] sm:$0xff] %v782
                  %v784 = vld [vmem:[%s538 + $0x750] sm:$0xff]
                  %785 = vst [vmem:[%s539 + $0x3d0] sm:$0xff] %v784
                  %v786 = vld [vmem:[%s538 + $0x758] sm:$0xff]
                  %787 = vst [vmem:[%s539 + $0x3d8] sm:$0xff] %v786
                  %v788 = vld [vmem:[%s538 + $0x760] sm:$0xff]
                  %789 = vst [vmem:[%s539 + $0x3e0] sm:$0xff] %v788
                  %v790 = vld [vmem:[%s538 + $0x768] sm:$0xff]
                  %791 = vst [vmem:[%s539 + $0x3e8] sm:$0xff] %v790
                  %v792 = vld [vmem:[%s538 + $0x770] sm:$0xff]
                  %793 = vst [vmem:[%s539 + $0x3f0] sm:$0xff] %v792
                  %v794 = vld [vmem:[%s538 + $0x778] sm:$0xff]
                  %795 = vst [vmem:[%s539 + $0x3f8] sm:$0xff] %v794
                $region72: #{tpu_custom_call.1} parent=66 // loop_footer
                  %s537 = sadd.s32 1, %s533
                $region73: #{tpu_custom_call.1} parent=66 // loop_footer_branch
                  %532 = sbr.rel target = $region69
                $region74: #{tpu_custom_call.1} parent=66 // loop_exit
                  _
              $region67: #{tpu_custom_call.1} parent=51 // pred_fallthru
                _
              // Predicated region
              $region75: #{tpu_custom_call.1} parent=51 // pred_check
                _
              $region76: #{tpu_custom_call.1} parent=51 // pred_check_branch
                %797 = sbr.rel target = $region78
              $region77: #{tpu_custom_call.1} parent=51 // pred_region
                _
              $region78: #{tpu_custom_call.1} parent=51 // pred_fallthru
                _
            $region52: #{tpu_custom_call.1} parent=47 // pred_fallthru
              _
            // Predicated region
            $region53: #{tpu_custom_call.1} parent=47 // pred_check
              _
            $region54: #{tpu_custom_call.1} parent=47 // pred_check_branch
              %263 = sbr.rel target = $region56
            $region55: #{tpu_custom_call.1} parent=47 // pred_region
              %s265 = ssub.s32 256, 1
              loop: start=0, step=1, limit=1
              $region57: #{tpu_custom_call.1} parent=55 // loop_pre_header
                _
              $region58: #{tpu_custom_call.1} parent=55 // loop_header
                %s267 = sphi 0, %s271
                %p268 = scmp.ge.s32.totalorder %s267, 1
                %s272 = sphi %s257, %s257
                %s273 = sphi %s251, %s251
              $region59: #{tpu_custom_call.1} parent=55 // loop_header_branch
                %270 = sbr.rel (%p268) target = $region63
              $region60: #{tpu_custom_call.1} parent=55 // loop_body
                %v274 = vld [vmem:[%s272] sm:%s265]
                %275 = vst [vmem:[%s273] sm:%s265] %v274
                %v276 = vld [vmem:[%s272 + $0x8] sm:%s265]
                %277 = vst [vmem:[%s273 + $0x8] sm:%s265] %v276
                %v278 = vld [vmem:[%s272 + $0x10] sm:%s265]
                %279 = vst [vmem:[%s273 + $0x10] sm:%s265] %v278
                %v280 = vld [vmem:[%s272 + $0x18] sm:%s265]
                %281 = vst [vmem:[%s273 + $0x18] sm:%s265] %v280
                %v282 = vld [vmem:[%s272 + $0x20] sm:%s265]
                %283 = vst [vmem:[%s273 + $0x20] sm:%s265] %v282
                %v284 = vld [vmem:[%s272 + $0x28] sm:%s265]
                %285 = vst [vmem:[%s273 + $0x28] sm:%s265] %v284
                %v286 = vld [vmem:[%s272 + $0x30] sm:%s265]
                %287 = vst [vmem:[%s273 + $0x30] sm:%s265] %v286
                %v288 = vld [vmem:[%s272 + $0x38] sm:%s265]
                %289 = vst [vmem:[%s273 + $0x38] sm:%s265] %v288
                %v290 = vld [vmem:[%s272 + $0x40] sm:%s265]
                %291 = vst [vmem:[%s273 + $0x40] sm:%s265] %v290
                %v292 = vld [vmem:[%s272 + $0x48] sm:%s265]
                %293 = vst [vmem:[%s273 + $0x48] sm:%s265] %v292
                %v294 = vld [vmem:[%s272 + $0x50] sm:%s265]
                %295 = vst [vmem:[%s273 + $0x50] sm:%s265] %v294
                %v296 = vld [vmem:[%s272 + $0x58] sm:%s265]
                %297 = vst [vmem:[%s273 + $0x58] sm:%s265] %v296
                %v298 = vld [vmem:[%s272 + $0x60] sm:%s265]
                %299 = vst [vmem:[%s273 + $0x60] sm:%s265] %v298
                %v300 = vld [vmem:[%s272 + $0x68] sm:%s265]
                %301 = vst [vmem:[%s273 + $0x68] sm:%s265] %v300
                %v302 = vld [vmem:[%s272 + $0x70] sm:%s265]
                %303 = vst [vmem:[%s273 + $0x70] sm:%s265] %v302
                %v304 = vld [vmem:[%s272 + $0x78] sm:%s265]
                %305 = vst [vmem:[%s273 + $0x78] sm:%s265] %v304
                %v306 = vld [vmem:[%s272 + $0x100] sm:%s265]
                %307 = vst [vmem:[%s273 + $0x80] sm:%s265] %v306
                %v308 = vld [vmem:[%s272 + $0x108] sm:%s265]
                %309 = vst [vmem:[%s273 + $0x88] sm:%s265] %v308
                %v310 = vld [vmem:[%s272 + $0x110] sm:%s265]
                %311 = vst [vmem:[%s273 + $0x90] sm:%s265] %v310
                %v312 = vld [vmem:[%s272 + $0x118] sm:%s265]
                %313 = vst [vmem:[%s273 + $0x98] sm:%s265] %v312
                %v314 = vld [vmem:[%s272 + $0x120] sm:%s265]
                %315 = vst [vmem:[%s273 + $0xa0] sm:%s265] %v314
                %v316 = vld [vmem:[%s272 + $0x128] sm:%s265]
                %317 = vst [vmem:[%s273 + $0xa8] sm:%s265] %v316
                %v318 = vld [vmem:[%s272 + $0x130] sm:%s265]
                %319 = vst [vmem:[%s273 + $0xb0] sm:%s265] %v318
                %v320 = vld [vmem:[%s272 + $0x138] sm:%s265]
                %321 = vst [vmem:[%s273 + $0xb8] sm:%s265] %v320
                %v322 = vld [vmem:[%s272 + $0x140] sm:%s265]
                %323 = vst [vmem:[%s273 + $0xc0] sm:%s265] %v322
                %v324 = vld [vmem:[%s272 + $0x148] sm:%s265]
                %325 = vst [vmem:[%s273 + $0xc8] sm:%s265] %v324
                %v326 = vld [vmem:[%s272 + $0x150] sm:%s265]
                %327 = vst [vmem:[%s273 + $0xd0] sm:%s265] %v326
                %v328 = vld [vmem:[%s272 + $0x158] sm:%s265]
                %329 = vst [vmem:[%s273 + $0xd8] sm:%s265] %v328
                %v330 = vld [vmem:[%s272 + $0x160] sm:%s265]
                %331 = vst [vmem:[%s273 + $0xe0] sm:%s265] %v330
                %v332 = vld [vmem:[%s272 + $0x168] sm:%s265]
                %333 = vst [vmem:[%s273 + $0xe8] sm:%s265] %v332
                %v334 = vld [vmem:[%s272 + $0x170] sm:%s265]
                %335 = vst [vmem:[%s273 + $0xf0] sm:%s265] %v334
                %v336 = vld [vmem:[%s272 + $0x178] sm:%s265]
                %337 = vst [vmem:[%s273 + $0xf8] sm:%s265] %v336
                %v338 = vld [vmem:[%s272 + $0x200] sm:%s265]
                %339 = vst [vmem:[%s273 + $0x100] sm:%s265] %v338
                %v340 = vld [vmem:[%s272 + $0x208] sm:%s265]
                %341 = vst [vmem:[%s273 + $0x108] sm:%s265] %v340
                %v342 = vld [vmem:[%s272 + $0x210] sm:%s265]
                %343 = vst [vmem:[%s273 + $0x110] sm:%s265] %v342
                %v344 = vld [vmem:[%s272 + $0x218] sm:%s265]
                %345 = vst [vmem:[%s273 + $0x118] sm:%s265] %v344
                %v346 = vld [vmem:[%s272 + $0x220] sm:%s265]
                %347 = vst [vmem:[%s273 + $0x120] sm:%s265] %v346
                %v348 = vld [vmem:[%s272 + $0x228] sm:%s265]
                %349 = vst [vmem:[%s273 + $0x128] sm:%s265] %v348
                %v350 = vld [vmem:[%s272 + $0x230] sm:%s265]
                %351 = vst [vmem:[%s273 + $0x130] sm:%s265] %v350
                %v352 = vld [vmem:[%s272 + $0x238] sm:%s265]
                %353 = vst [vmem:[%s273 + $0x138] sm:%s265] %v352
                %v354 = vld [vmem:[%s272 + $0x240] sm:%s265]
                %355 = vst [vmem:[%s273 + $0x140] sm:%s265] %v354
                %v356 = vld [vmem:[%s272 + $0x248] sm:%s265]
                %357 = vst [vmem:[%s273 + $0x148] sm:%s265] %v356
                %v358 = vld [vmem:[%s272 + $0x250] sm:%s265]
                %359 = vst [vmem:[%s273 + $0x150] sm:%s265] %v358
                %v360 = vld [vmem:[%s272 + $0x258] sm:%s265]
                %361 = vst [vmem:[%s273 + $0x158] sm:%s265] %v360
                %v362 = vld [vmem:[%s272 + $0x260] sm:%s265]
                %363 = vst [vmem:[%s273 + $0x160] sm:%s265] %v362
                %v364 = vld [vmem:[%s272 + $0x268] sm:%s265]
                %365 = vst [vmem:[%s273 + $0x168] sm:%s265] %v364
                %v366 = vld [vmem:[%s272 + $0x270] sm:%s265]
                %367 = vst [vmem:[%s273 + $0x170] sm:%s265] %v366
                %v368 = vld [vmem:[%s272 + $0x278] sm:%s265]
                %369 = vst [vmem:[%s273 + $0x178] sm:%s265] %v368
                %v370 = vld [vmem:[%s272 + $0x300] sm:%s265]
                %371 = vst [vmem:[%s273 + $0x180] sm:%s265] %v370
                %v372 = vld [vmem:[%s272 + $0x308] sm:%s265]
                %373 = vst [vmem:[%s273 + $0x188] sm:%s265] %v372
                %v374 = vld [vmem:[%s272 + $0x310] sm:%s265]
                %375 = vst [vmem:[%s273 + $0x190] sm:%s265] %v374
                %v376 = vld [vmem:[%s272 + $0x318] sm:%s265]
                %377 = vst [vmem:[%s273 + $0x198] sm:%s265] %v376
                %v378 = vld [vmem:[%s272 + $0x320] sm:%s265]
                %379 = vst [vmem:[%s273 + $0x1a0] sm:%s265] %v378
                %v380 = vld [vmem:[%s272 + $0x328] sm:%s265]
                %381 = vst [vmem:[%s273 + $0x1a8] sm:%s265] %v380
                %v382 = vld [vmem:[%s272 + $0x330] sm:%s265]
                %383 = vst [vmem:[%s273 + $0x1b0] sm:%s265] %v382
                %v384 = vld [vmem:[%s272 + $0x338] sm:%s265]
                %385 = vst [vmem:[%s273 + $0x1b8] sm:%s265] %v384
                %v386 = vld [vmem:[%s272 + $0x340] sm:%s265]
                %387 = vst [vmem:[%s273 + $0x1c0] sm:%s265] %v386
                %v388 = vld [vmem:[%s272 + $0x348] sm:%s265]
                %389 = vst [vmem:[%s273 + $0x1c8] sm:%s265] %v388
                %v390 = vld [vmem:[%s272 + $0x350] sm:%s265]
                %391 = vst [vmem:[%s273 + $0x1d0] sm:%s265] %v390
                %v392 = vld [vmem:[%s272 + $0x358] sm:%s265]
                %393 = vst [vmem:[%s273 + $0x1d8] sm:%s265] %v392
                %v394 = vld [vmem:[%s272 + $0x360] sm:%s265]
                %395 = vst [vmem:[%s273 + $0x1e0] sm:%s265] %v394
                %v396 = vld [vmem:[%s272 + $0x368] sm:%s265]
                %397 = vst [vmem:[%s273 + $0x1e8] sm:%s265] %v396
                %v398 = vld [vmem:[%s272 + $0x370] sm:%s265]
                %399 = vst [vmem:[%s273 + $0x1f0] sm:%s265] %v398
                %v400 = vld [vmem:[%s272 + $0x378] sm:%s265]
                %401 = vst [vmem:[%s273 + $0x1f8] sm:%s265] %v400
                %v402 = vld [vmem:[%s272 + $0x400] sm:%s265]
                %403 = vst [vmem:[%s273 + $0x200] sm:%s265] %v402
                %v404 = vld [vmem:[%s272 + $0x408] sm:%s265]
                %405 = vst [vmem:[%s273 + $0x208] sm:%s265] %v404
                %v406 = vld [vmem:[%s272 + $0x410] sm:%s265]
                %407 = vst [vmem:[%s273 + $0x210] sm:%s265] %v406
                %v408 = vld [vmem:[%s272 + $0x418] sm:%s265]
                %409 = vst [vmem:[%s273 + $0x218] sm:%s265] %v408
                %v410 = vld [vmem:[%s272 + $0x420] sm:%s265]
                %411 = vst [vmem:[%s273 + $0x220] sm:%s265] %v410
                %v412 = vld [vmem:[%s272 + $0x428] sm:%s265]
                %413 = vst [vmem:[%s273 + $0x228] sm:%s265] %v412
                %v414 = vld [vmem:[%s272 + $0x430] sm:%s265]
                %415 = vst [vmem:[%s273 + $0x230] sm:%s265] %v414
                %v416 = vld [vmem:[%s272 + $0x438] sm:%s265]
                %417 = vst [vmem:[%s273 + $0x238] sm:%s265] %v416
                %v418 = vld [vmem:[%s272 + $0x440] sm:%s265]
                %419 = vst [vmem:[%s273 + $0x240] sm:%s265] %v418
                %v420 = vld [vmem:[%s272 + $0x448] sm:%s265]
                %421 = vst [vmem:[%s273 + $0x248] sm:%s265] %v420
                %v422 = vld [vmem:[%s272 + $0x450] sm:%s265]
                %423 = vst [vmem:[%s273 + $0x250] sm:%s265] %v422
                %v424 = vld [vmem:[%s272 + $0x458] sm:%s265]
                %425 = vst [vmem:[%s273 + $0x258] sm:%s265] %v424
                %v426 = vld [vmem:[%s272 + $0x460] sm:%s265]
                %427 = vst [vmem:[%s273 + $0x260] sm:%s265] %v426
                %v428 = vld [vmem:[%s272 + $0x468] sm:%s265]
                %429 = vst [vmem:[%s273 + $0x268] sm:%s265] %v428
                %v430 = vld [vmem:[%s272 + $0x470] sm:%s265]
                %431 = vst [vmem:[%s273 + $0x270] sm:%s265] %v430
                %v432 = vld [vmem:[%s272 + $0x478] sm:%s265]
                %433 = vst [vmem:[%s273 + $0x278] sm:%s265] %v432
                %v434 = vld [vmem:[%s272 + $0x500] sm:%s265]
                %435 = vst [vmem:[%s273 + $0x280] sm:%s265] %v434
                %v436 = vld [vmem:[%s272 + $0x508] sm:%s265]
                %437 = vst [vmem:[%s273 + $0x288] sm:%s265] %v436
                %v438 = vld [vmem:[%s272 + $0x510] sm:%s265]
                %439 = vst [vmem:[%s273 + $0x290] sm:%s265] %v438
                %v440 = vld [vmem:[%s272 + $0x518] sm:%s265]
                %441 = vst [vmem:[%s273 + $0x298] sm:%s265] %v440
                %v442 = vld [vmem:[%s272 + $0x520] sm:%s265]
                %443 = vst [vmem:[%s273 + $0x2a0] sm:%s265] %v442
                %v444 = vld [vmem:[%s272 + $0x528] sm:%s265]
                %445 = vst [vmem:[%s273 + $0x2a8] sm:%s265] %v444
                %v446 = vld [vmem:[%s272 + $0x530] sm:%s265]
                %447 = vst [vmem:[%s273 + $0x2b0] sm:%s265] %v446
                %v448 = vld [vmem:[%s272 + $0x538] sm:%s265]
                %449 = vst [vmem:[%s273 + $0x2b8] sm:%s265] %v448
                %v450 = vld [vmem:[%s272 + $0x540] sm:%s265]
                %451 = vst [vmem:[%s273 + $0x2c0] sm:%s265] %v450
                %v452 = vld [vmem:[%s272 + $0x548] sm:%s265]
                %453 = vst [vmem:[%s273 + $0x2c8] sm:%s265] %v452
                %v454 = vld [vmem:[%s272 + $0x550] sm:%s265]
                %455 = vst [vmem:[%s273 + $0x2d0] sm:%s265] %v454
                %v456 = vld [vmem:[%s272 + $0x558] sm:%s265]
                %457 = vst [vmem:[%s273 + $0x2d8] sm:%s265] %v456
                %v458 = vld [vmem:[%s272 + $0x560] sm:%s265]
                %459 = vst [vmem:[%s273 + $0x2e0] sm:%s265] %v458
                %v460 = vld [vmem:[%s272 + $0x568] sm:%s265]
                %461 = vst [vmem:[%s273 + $0x2e8] sm:%s265] %v460
                %v462 = vld [vmem:[%s272 + $0x570] sm:%s265]
                %463 = vst [vmem:[%s273 + $0x2f0] sm:%s265] %v462
                %v464 = vld [vmem:[%s272 + $0x578] sm:%s265]
                %465 = vst [vmem:[%s273 + $0x2f8] sm:%s265] %v464
                %v466 = vld [vmem:[%s272 + $0x600] sm:%s265]
                %467 = vst [vmem:[%s273 + $0x300] sm:%s265] %v466
                %v468 = vld [vmem:[%s272 + $0x608] sm:%s265]
                %469 = vst [vmem:[%s273 + $0x308] sm:%s265] %v468
                %v470 = vld [vmem:[%s272 + $0x610] sm:%s265]
                %471 = vst [vmem:[%s273 + $0x310] sm:%s265] %v470
                %v472 = vld [vmem:[%s272 + $0x618] sm:%s265]
                %473 = vst [vmem:[%s273 + $0x318] sm:%s265] %v472
                %v474 = vld [vmem:[%s272 + $0x620] sm:%s265]
                %475 = vst [vmem:[%s273 + $0x320] sm:%s265] %v474
                %v476 = vld [vmem:[%s272 + $0x628] sm:%s265]
                %477 = vst [vmem:[%s273 + $0x328] sm:%s265] %v476
                %v478 = vld [vmem:[%s272 + $0x630] sm:%s265]
                %479 = vst [vmem:[%s273 + $0x330] sm:%s265] %v478
                %v480 = vld [vmem:[%s272 + $0x638] sm:%s265]
                %481 = vst [vmem:[%s273 + $0x338] sm:%s265] %v480
                %v482 = vld [vmem:[%s272 + $0x640] sm:%s265]
                %483 = vst [vmem:[%s273 + $0x340] sm:%s265] %v482
                %v484 = vld [vmem:[%s272 + $0x648] sm:%s265]
                %485 = vst [vmem:[%s273 + $0x348] sm:%s265] %v484
                %v486 = vld [vmem:[%s272 + $0x650] sm:%s265]
                %487 = vst [vmem:[%s273 + $0x350] sm:%s265] %v486
                %v488 = vld [vmem:[%s272 + $0x658] sm:%s265]
                %489 = vst [vmem:[%s273 + $0x358] sm:%s265] %v488
                %v490 = vld [vmem:[%s272 + $0x660] sm:%s265]
                %491 = vst [vmem:[%s273 + $0x360] sm:%s265] %v490
                %v492 = vld [vmem:[%s272 + $0x668] sm:%s265]
                %493 = vst [vmem:[%s273 + $0x368] sm:%s265] %v492
                %v494 = vld [vmem:[%s272 + $0x670] sm:%s265]
                %495 = vst [vmem:[%s273 + $0x370] sm:%s265] %v494
                %v496 = vld [vmem:[%s272 + $0x678] sm:%s265]
                %497 = vst [vmem:[%s273 + $0x378] sm:%s265] %v496
                %v498 = vld [vmem:[%s272 + $0x700] sm:%s265]
                %499 = vst [vmem:[%s273 + $0x380] sm:%s265] %v498
                %v500 = vld [vmem:[%s272 + $0x708] sm:%s265]
                %501 = vst [vmem:[%s273 + $0x388] sm:%s265] %v500
                %v502 = vld [vmem:[%s272 + $0x710] sm:%s265]
                %503 = vst [vmem:[%s273 + $0x390] sm:%s265] %v502
                %v504 = vld [vmem:[%s272 + $0x718] sm:%s265]
                %505 = vst [vmem:[%s273 + $0x398] sm:%s265] %v504
                %v506 = vld [vmem:[%s272 + $0x720] sm:%s265]
                %507 = vst [vmem:[%s273 + $0x3a0] sm:%s265] %v506
                %v508 = vld [vmem:[%s272 + $0x728] sm:%s265]
                %509 = vst [vmem:[%s273 + $0x3a8] sm:%s265] %v508
                %v510 = vld [vmem:[%s272 + $0x730] sm:%s265]
                %511 = vst [vmem:[%s273 + $0x3b0] sm:%s265] %v510
                %v512 = vld [vmem:[%s272 + $0x738] sm:%s265]
                %513 = vst [vmem:[%s273 + $0x3b8] sm:%s265] %v512
                %v514 = vld [vmem:[%s272 + $0x740] sm:%s265]
                %515 = vst [vmem:[%s273 + $0x3c0] sm:%s265] %v514
                %v516 = vld [vmem:[%s272 + $0x748] sm:%s265]
                %517 = vst [vmem:[%s273 + $0x3c8] sm:%s265] %v516
                %v518 = vld [vmem:[%s272 + $0x750] sm:%s265]
                %519 = vst [vmem:[%s273 + $0x3d0] sm:%s265] %v518
                %v520 = vld [vmem:[%s272 + $0x758] sm:%s265]
                %521 = vst [vmem:[%s273 + $0x3d8] sm:%s265] %v520
                %v522 = vld [vmem:[%s272 + $0x760] sm:%s265]
                %523 = vst [vmem:[%s273 + $0x3e0] sm:%s265] %v522
                %v524 = vld [vmem:[%s272 + $0x768] sm:%s265]
                %525 = vst [vmem:[%s273 + $0x3e8] sm:%s265] %v524
                %v526 = vld [vmem:[%s272 + $0x770] sm:%s265]
                %527 = vst [vmem:[%s273 + $0x3f0] sm:%s265] %v526
                %v528 = vld [vmem:[%s272 + $0x778] sm:%s265]
                %529 = vst [vmem:[%s273 + $0x3f8] sm:%s265] %v528
              $region61: #{tpu_custom_call.1} parent=55 // loop_footer
                %s271 = sadd.s32 1, %s267
              $region62: #{tpu_custom_call.1} parent=55 // loop_footer_branch
                %266 = sbr.rel target = $region58
              $region63: #{tpu_custom_call.1} parent=55 // loop_exit
                _
            $region56: #{tpu_custom_call.1} parent=47 // pred_fallthru
              _
          $region48: #{tpu_custom_call.1} parent=43 // pred_fallthru
            _
          %798 = vnop
        $region44: #{tpu_custom_call.1} parent=39 // pred_fallthru
          _
      $region40: #{tpu_custom_call.1} parent=5 // pred_fallthru
        _
      %p799 = scmp.le.s32.totalorder 1, %s16
      %p800 = scmp.lt.s32.totalorder %s16, 5
      %p801 = pnand %p799, %p800
      %p802 = pneg %p801
      // Predicated region
      $region79: #{tpu_custom_call.1} parent=5 // pred_check
        _
      $region80: #{tpu_custom_call.1} parent=5 // pred_check_branch
        %804 = sbr.rel (%p801) target = $region82
      $region81: #{tpu_custom_call.1} parent=5 // pred_region
        %s805 = ssub.s32 %s16, 1
        %s806 = sand.u32 %s43, 1
        %s807 = sand.u32 %s43, 1
        %s808 = smul.addr %s807, 1024
        %s809 = scalar_lea.vmem [#allocation3], %s808
        // Predicated region
        $region83: #{tpu_custom_call.1} parent=81 // pred_check
          %p810 = pneg %p56
        $region84: #{tpu_custom_call.1} parent=81 // pred_check_branch
          %812 = sbr.rel (%p810) target = $region86
        $region85: #{tpu_custom_call.1} parent=81 // pred_region
          _
        $region86: #{tpu_custom_call.1} parent=81 // pred_fallthru
          _
        %s813 = sand.u32 %s43, 1
        %s814 = sand.u32 %s43, 1
        %s815 = smul.addr %s814, 1024
        %s816 = scalar_lea.vmem [#allocation3], %s815
        %p817 = pneg %p56
        %p818 = pneg %p53
        %p819 = pneg %p77
        %p820 = pneg %p74
        %p821 = pneg %p98
        %p822 = pneg %p95
        %p823 = pneg %p119
        %p824 = pneg %p116
        %p825 = pneg %p140
        %p826 = pneg %p137
        %p827 = pneg %p161
        %p828 = pneg %p158
        %p829 = pneg %p182
        %p830 = pneg %p179
        %p831 = pneg %p208
        %p832 = pneg %p205
        %s833 = sand.u32 %s195, 1
        %s834 = scalar_lea.sflag [#allocation5], %s833
        %s835 = sand.u32 %s195, 1
        %s836 = smul.addr %s835, 8
        %s837 = scalar_lea.vmem [#allocation4], %s836
        %s838 = smul.u32 8, %s25
        %s839 = smul.u32 16, %s26
        %v840 = vld [vmem:[%s809] sm:$0xff]
        %v841 = vld [vmem:[%s809 + $0x8] sm:$0xff]
        %v842 = vld [vmem:[%s809 + $0x10] sm:$0xff]
        %v843 = vld [vmem:[%s809 + $0x18] sm:$0xff]
        %v844 = vld [vmem:[%s809 + $0x20] sm:$0xff]
        %v845 = vld [vmem:[%s809 + $0x28] sm:$0xff]
        %v846 = vld [vmem:[%s809 + $0x30] sm:$0xff]
        %v847 = vld [vmem:[%s809 + $0x38] sm:$0xff]
        %v848 = vld [vmem:[%s809 + $0x40] sm:$0xff]
        %v849 = vld [vmem:[%s809 + $0x48] sm:$0xff]
        %v850 = vld [vmem:[%s809 + $0x50] sm:$0xff]
        %v851 = vld [vmem:[%s809 + $0x58] sm:$0xff]
        %v852 = vld [vmem:[%s809 + $0x60] sm:$0xff]
        %v853 = vld [vmem:[%s809 + $0x68] sm:$0xff]
        %v854 = vld [vmem:[%s809 + $0x70] sm:$0xff]
        %v855 = vld [vmem:[%s809 + $0x78] sm:$0xff]
        %v856 = vld [vmem:[%s809 + $0x80] sm:$0xff]
        %v857 = vld [vmem:[%s809 + $0x88] sm:$0xff]
        %v858 = vld [vmem:[%s809 + $0x90] sm:$0xff]
        %v859 = vld [vmem:[%s809 + $0x98] sm:$0xff]
        %v860 = vld [vmem:[%s809 + $0xa0] sm:$0xff]
        %v861 = vld [vmem:[%s809 + $0xa8] sm:$0xff]
        %v862 = vld [vmem:[%s809 + $0xb0] sm:$0xff]
        %v863 = vld [vmem:[%s809 + $0xb8] sm:$0xff]
        %v864 = vld [vmem:[%s809 + $0xc0] sm:$0xff]
        %v865 = vld [vmem:[%s809 + $0xc8] sm:$0xff]
        %v866 = vld [vmem:[%s809 + $0xd0] sm:$0xff]
        %v867 = vld [vmem:[%s809 + $0xd8] sm:$0xff]
        %v868 = vld [vmem:[%s809 + $0xe0] sm:$0xff]
        %v869 = vld [vmem:[%s809 + $0xe8] sm:$0xff]
        %v870 = vld [vmem:[%s809 + $0xf0] sm:$0xff]
        %v871 = vld [vmem:[%s809 + $0xf8] sm:$0xff]
        %v872 = vld [vmem:[%s809 + $0x100] sm:$0xff]
        %v873 = vld [vmem:[%s809 + $0x108] sm:$0xff]
        %v874 = vld [vmem:[%s809 + $0x110] sm:$0xff]
        %v875 = vld [vmem:[%s809 + $0x118] sm:$0xff]
        %v876 = vld [vmem:[%s809 + $0x120] sm:$0xff]
        %v877 = vld [vmem:[%s809 + $0x128] sm:$0xff]
        %v878 = vld [vmem:[%s809 + $0x130] sm:$0xff]
        %v879 = vld [vmem:[%s809 + $0x138] sm:$0xff]
        %v880 = vld [vmem:[%s809 + $0x140] sm:$0xff]
        %v881 = vld [vmem:[%s809 + $0x148] sm:$0xff]
        %v882 = vld [vmem:[%s809 + $0x150] sm:$0xff]
        %v883 = vld [vmem:[%s809 + $0x158] sm:$0xff]
        %v884 = vld [vmem:[%s809 + $0x160] sm:$0xff]
        %v885 = vld [vmem:[%s809 + $0x168] sm:$0xff]
        %v886 = vld [vmem:[%s809 + $0x170] sm:$0xff]
        %v887 = vld [vmem:[%s809 + $0x178] sm:$0xff]
        %v888 = vld [vmem:[%s809 + $0x180] sm:$0xff]
        %v889 = vld [vmem:[%s809 + $0x188] sm:$0xff]
        %v890 = vld [vmem:[%s809 + $0x190] sm:$0xff]
        %v891 = vld [vmem:[%s809 + $0x198] sm:$0xff]
        %v892 = vld [vmem:[%s809 + $0x1a0] sm:$0xff]
        %v893 = vld [vmem:[%s809 + $0x1a8] sm:$0xff]
        %v894 = vld [vmem:[%s809 + $0x1b0] sm:$0xff]
        %v895 = vld [vmem:[%s809 + $0x1b8] sm:$0xff]
        %v896 = vld [vmem:[%s809 + $0x1c0] sm:$0xff]
        %v897 = vld [vmem:[%s809 + $0x1c8] sm:$0xff]
        %v898 = vld [vmem:[%s809 + $0x1d0] sm:$0xff]
        %v899 = vld [vmem:[%s809 + $0x1d8] sm:$0xff]
        %v900 = vld [vmem:[%s809 + $0x1e0] sm:$0xff]
        %v901 = vld [vmem:[%s809 + $0x1e8] sm:$0xff]
        %v902 = vld [vmem:[%s809 + $0x1f0] sm:$0xff]
        %v903 = vld [vmem:[%s809 + $0x1f8] sm:$0xff]
        %v904 = vld [vmem:[%s809 + $0x200] sm:$0xff]
        %v905 = vld [vmem:[%s809 + $0x208] sm:$0xff]
        %v906 = vld [vmem:[%s809 + $0x210] sm:$0xff]
        %v907 = vld [vmem:[%s809 + $0x218] sm:$0xff]
        %v908 = vld [vmem:[%s809 + $0x220] sm:$0xff]
        %v909 = vld [vmem:[%s809 + $0x228] sm:$0xff]
        %v910 = vld [vmem:[%s809 + $0x230] sm:$0xff]
        %v911 = vld [vmem:[%s809 + $0x238] sm:$0xff]
        %v912 = vld [vmem:[%s809 + $0x240] sm:$0xff]
        %v913 = vld [vmem:[%s809 + $0x248] sm:$0xff]
        %v914 = vld [vmem:[%s809 + $0x250] sm:$0xff]
        %v915 = vld [vmem:[%s809 + $0x258] sm:$0xff]
        %v916 = vld [vmem:[%s809 + $0x260] sm:$0xff]
        %v917 = vld [vmem:[%s809 + $0x268] sm:$0xff]
        %v918 = vld [vmem:[%s809 + $0x270] sm:$0xff]
        %v919 = vld [vmem:[%s809 + $0x278] sm:$0xff]
        %v920 = vld [vmem:[%s809 + $0x280] sm:$0xff]
        %v921 = vld [vmem:[%s809 + $0x288] sm:$0xff]
        %v922 = vld [vmem:[%s809 + $0x290] sm:$0xff]
        %v923 = vld [vmem:[%s809 + $0x298] sm:$0xff]
        %v924 = vld [vmem:[%s809 + $0x2a0] sm:$0xff]
        %v925 = vld [vmem:[%s809 + $0x2a8] sm:$0xff]
        %v926 = vld [vmem:[%s809 + $0x2b0] sm:$0xff]
        %v927 = vld [vmem:[%s809 + $0x2b8] sm:$0xff]
        %v928 = vld [vmem:[%s809 + $0x2c0] sm:$0xff]
        %v929 = vld [vmem:[%s809 + $0x2c8] sm:$0xff]
        %v930 = vld [vmem:[%s809 + $0x2d0] sm:$0xff]
        %v931 = vld [vmem:[%s809 + $0x2d8] sm:$0xff]
        %v932 = vld [vmem:[%s809 + $0x2e0] sm:$0xff]
        %v933 = vld [vmem:[%s809 + $0x2e8] sm:$0xff]
        %v934 = vld [vmem:[%s809 + $0x2f0] sm:$0xff]
        %v935 = vld [vmem:[%s809 + $0x2f8] sm:$0xff]
        %v936 = vld [vmem:[%s809 + $0x300] sm:$0xff]
        %v937 = vld [vmem:[%s809 + $0x308] sm:$0xff]
        %v938 = vld [vmem:[%s809 + $0x310] sm:$0xff]
        %v939 = vld [vmem:[%s809 + $0x318] sm:$0xff]
        %v940 = vld [vmem:[%s809 + $0x320] sm:$0xff]
        %v941 = vld [vmem:[%s809 + $0x328] sm:$0xff]
        %v942 = vld [vmem:[%s809 + $0x330] sm:$0xff]
        %v943 = vld [vmem:[%s809 + $0x338] sm:$0xff]
        %v944 = vld [vmem:[%s809 + $0x340] sm:$0xff]
        %v945 = vld [vmem:[%s809 + $0x348] sm:$0xff]
        %v946 = vld [vmem:[%s809 + $0x350] sm:$0xff]
        %v947 = vld [vmem:[%s809 + $0x358] sm:$0xff]
        %v948 = vld [vmem:[%s809 + $0x360] sm:$0xff]
        %v949 = vld [vmem:[%s809 + $0x368] sm:$0xff]
        %v950 = vld [vmem:[%s809 + $0x370] sm:$0xff]
        %v951 = vld [vmem:[%s809 + $0x378] sm:$0xff]
        %v952 = vld [vmem:[%s809 + $0x380] sm:$0xff]
        %v953 = vld [vmem:[%s809 + $0x388] sm:$0xff]
        %v954 = vld [vmem:[%s809 + $0x390] sm:$0xff]
        %v955 = vld [vmem:[%s809 + $0x398] sm:$0xff]
        %v956 = vld [vmem:[%s809 + $0x3a0] sm:$0xff]
        %v957 = vld [vmem:[%s809 + $0x3a8] sm:$0xff]
        %v958 = vld [vmem:[%s809 + $0x3b0] sm:$0xff]
        %v959 = vld [vmem:[%s809 + $0x3b8] sm:$0xff]
        %v960 = vld [vmem:[%s809 + $0x3c0] sm:$0xff]
        %v961 = vld [vmem:[%s809 + $0x3c8] sm:$0xff]
        %v962 = vld [vmem:[%s809 + $0x3d0] sm:$0xff]
        %v963 = vld [vmem:[%s809 + $0x3d8] sm:$0xff]
        %v964 = vld [vmem:[%s809 + $0x3e0] sm:$0xff]
        %v965 = vld [vmem:[%s809 + $0x3e8] sm:$0xff]
        %v966 = vld [vmem:[%s809 + $0x3f0] sm:$0xff]
        %v967 = vld [vmem:[%s809 + $0x3f8] sm:$0xff]
        %v968 = vld [vmem:[%s1] sm:$0xff]
        %v969 = vld [vmem:[%s1 + $0x8] sm:$0xff]
        %v970 = vld [vmem:[%s1 + $0x10] sm:$0xff]
        %v971 = vld [vmem:[%s1 + $0x18] sm:$0xff]
        %v972 = vld [vmem:[%s2] sm:$0x1]
        %v974 = vperm.slane %v972, 0
        %vm976 = vcmask 261120
        %v978 = vsel %vm976, %v840, 0
        %v981 = vsel %vm976, %v841, 0
        %v984 = vsel %vm976, %v842, 0
        %v987 = vsel %vm976, %v843, 0
        %v990 = vsel %vm976, %v844, 0
        %v993 = vsel %vm976, %v845, 0
        %v996 = vsel %vm976, %v846, 0
        %v999 = vsel %vm976, %v847, 0
        %v1002 = vsel %vm976, %v848, 0
        %v1005 = vsel %vm976, %v849, 0
        %v1008 = vsel %vm976, %v850, 0
        %v1011 = vsel %vm976, %v851, 0
        %v1014 = vsel %vm976, %v852, 0
        %v1017 = vsel %vm976, %v853, 0
        %v1020 = vsel %vm976, %v854, 0
        %v1023 = vsel %vm976, %v855, 0
        %v1026 = vsel %vm976, %v856, 0
        %v1029 = vsel %vm976, %v857, 0
        %v1032 = vsel %vm976, %v858, 0
        %v1035 = vsel %vm976, %v859, 0
        %v1038 = vsel %vm976, %v860, 0
        %v1041 = vsel %vm976, %v861, 0
        %v1044 = vsel %vm976, %v862, 0
        %v1047 = vsel %vm976, %v863, 0
        %v1050 = vsel %vm976, %v864, 0
        %v1053 = vsel %vm976, %v865, 0
        %v1056 = vsel %vm976, %v866, 0
        %v1059 = vsel %vm976, %v867, 0
        %v1062 = vsel %vm976, %v868, 0
        %v1065 = vsel %vm976, %v869, 0
        %v1068 = vsel %vm976, %v870, 0
        %v1071 = vsel %vm976, %v871, 0
        %v1074 = vsel %vm976, %v872, 0
        %v1077 = vsel %vm976, %v873, 0
        %v1080 = vsel %vm976, %v874, 0
        %v1083 = vsel %vm976, %v875, 0
        %v1086 = vsel %vm976, %v876, 0
        %v1089 = vsel %vm976, %v877, 0
        %v1092 = vsel %vm976, %v878, 0
        %v1095 = vsel %vm976, %v879, 0
        %v1098 = vsel %vm976, %v880, 0
        %v1101 = vsel %vm976, %v881, 0
        %v1104 = vsel %vm976, %v882, 0
        %v1107 = vsel %vm976, %v883, 0
        %v1110 = vsel %vm976, %v884, 0
        %v1113 = vsel %vm976, %v885, 0
        %v1116 = vsel %vm976, %v886, 0
        %v1119 = vsel %vm976, %v887, 0
        %v1122 = vsel %vm976, %v888, 0
        %v1125 = vsel %vm976, %v889, 0
        %v1128 = vsel %vm976, %v890, 0
        %v1131 = vsel %vm976, %v891, 0
        %v1134 = vsel %vm976, %v892, 0
        %v1137 = vsel %vm976, %v893, 0
        %v1140 = vsel %vm976, %v894, 0
        %v1143 = vsel %vm976, %v895, 0
        %v1146 = vsel %vm976, %v896, 0
        %v1149 = vsel %vm976, %v897, 0
        %v1152 = vsel %vm976, %v898, 0
        %v1155 = vsel %vm976, %v899, 0
        %v1158 = vsel %vm976, %v900, 0
        %v1161 = vsel %vm976, %v901, 0
        %v1164 = vsel %vm976, %v902, 0
        %v1167 = vsel %vm976, %v903, 0
        %v1170 = vsel %vm976, %v904, 0
        %v1173 = vsel %vm976, %v905, 0
        %v1176 = vsel %vm976, %v906, 0
        %v1179 = vsel %vm976, %v907, 0
        %v1182 = vsel %vm976, %v908, 0
        %v1185 = vsel %vm976, %v909, 0
        %v1188 = vsel %vm976, %v910, 0
        %v1191 = vsel %vm976, %v911, 0
        %v1194 = vsel %vm976, %v912, 0
        %v1197 = vsel %vm976, %v913, 0
        %v1200 = vsel %vm976, %v914, 0
        %v1203 = vsel %vm976, %v915, 0
        %v1206 = vsel %vm976, %v916, 0
        %v1209 = vsel %vm976, %v917, 0
        %v1212 = vsel %vm976, %v918, 0
        %v1215 = vsel %vm976, %v919, 0
        %v1218 = vsel %vm976, %v920, 0
        %v1221 = vsel %vm976, %v921, 0
        %v1224 = vsel %vm976, %v922, 0
        %v1227 = vsel %vm976, %v923, 0
        %v1230 = vsel %vm976, %v924, 0
        %v1233 = vsel %vm976, %v925, 0
        %v1236 = vsel %vm976, %v926, 0
        %v1239 = vsel %vm976, %v927, 0
        %v1242 = vsel %vm976, %v928, 0
        %v1245 = vsel %vm976, %v929, 0
        %v1248 = vsel %vm976, %v930, 0
        %v1251 = vsel %vm976, %v931, 0
        %v1254 = vsel %vm976, %v932, 0
        %v1257 = vsel %vm976, %v933, 0
        %v1260 = vsel %vm976, %v934, 0
        %v1263 = vsel %vm976, %v935, 0
        %v1266 = vsel %vm976, %v936, 0
        %v1269 = vsel %vm976, %v937, 0
        %v1272 = vsel %vm976, %v938, 0
        %v1275 = vsel %vm976, %v939, 0
        %v1278 = vsel %vm976, %v940, 0
        %v1281 = vsel %vm976, %v941, 0
        %v1284 = vsel %vm976, %v942, 0
        %v1287 = vsel %vm976, %v943, 0
        %v1290 = vsel %vm976, %v944, 0
        %v1293 = vsel %vm976, %v945, 0
        %v1296 = vsel %vm976, %v946, 0
        %v1299 = vsel %vm976, %v947, 0
        %v1302 = vsel %vm976, %v948, 0
        %v1305 = vsel %vm976, %v949, 0
        %v1308 = vsel %vm976, %v950, 0
        %v1311 = vsel %vm976, %v951, 0
        %v1314 = vsel %vm976, %v952, 0
        %v1317 = vsel %vm976, %v953, 0
        %v1320 = vsel %vm976, %v954, 0
        %v1323 = vsel %vm976, %v955, 0
        %v1326 = vsel %vm976, %v956, 0
        %v1329 = vsel %vm976, %v957, 0
        %v1332 = vsel %vm976, %v958, 0
        %v1335 = vsel %vm976, %v959, 0
        %v1338 = vsel %vm976, %v960, 0
        %v1341 = vsel %vm976, %v961, 0
        %v1344 = vsel %vm976, %v962, 0
        %v1347 = vsel %vm976, %v963, 0
        %v1350 = vsel %vm976, %v964, 0
        %v1353 = vsel %vm976, %v965, 0
        %v1356 = vsel %vm976, %v966, 0
        %v1359 = vsel %vm976, %v967, 0
        %1361 = vmatpush.msra.mxu0 0.0
        %1362 = vmatpush.msra.mxu0 0.0
        %1363 = vmatpush.msra.mxu0 0.0
        %1364 = vmatpush.msra.mxu0 0.0
        %1365 = vmatpush.msra.mxu0 0.0
        %1366 = vmatpush.msra.mxu0 0.0
        %1367 = vmatpush.msra.mxu0 0.0
        %1368 = vmatpush.msra.mxu0 0.0
        %1369 = vmatpush.msra.mxu0 0.0
        %1370 = vmatpush.msra.mxu0 0.0
        %1371 = vmatpush.msra.mxu0 0.0
        %1372 = vmatpush.msra.mxu0 0.0
        %1373 = vmatpush.msra.mxu0 %v971
        %1374 = vmatpush.msra.mxu0 %v970
        %1375 = vmatpush.msra.mxu0 %v969
        %1376 = vmatpush.msra.mxu0 %v968
        %1377 = vmatmul.f32.gmra.mxu0 %v978
        %v1378 = vpop.f32.mrf.mxu0
        %v1379 = vadd.f32 %v974, %v1378
        %1380 = vmatmul.f32.gmra.mxu0 %v981
        %v1381 = vpop.f32.mrf.mxu0
        %v1382 = vadd.f32 %v974, %v1381
        %1383 = vmatmul.f32.gmra.mxu0 %v984
        %v1384 = vpop.f32.mrf.mxu0
        %v1385 = vadd.f32 %v974, %v1384
        %1386 = vmatmul.f32.gmra.mxu0 %v987
        %v1387 = vpop.f32.mrf.mxu0
        %v1388 = vadd.f32 %v974, %v1387
        %1389 = vmatmul.f32.gmra.mxu0 %v990
        %v1390 = vpop.f32.mrf.mxu0
        %v1391 = vadd.f32 %v974, %v1390
        %1392 = vmatmul.f32.gmra.mxu0 %v993
        %v1393 = vpop.f32.mrf.mxu0
        %v1394 = vadd.f32 %v974, %v1393
        %1395 = vmatmul.f32.gmra.mxu0 %v996
        %v1396 = vpop.f32.mrf.mxu0
        %v1397 = vadd.f32 %v974, %v1396
        %1398 = vmatmul.f32.gmra.mxu0 %v999
        %v1399 = vpop.f32.mrf.mxu0
        %v1400 = vadd.f32 %v974, %v1399
        %1401 = vmatmul.f32.gmra.mxu0 %v1002
        %v1402 = vpop.f32.mrf.mxu0
        %v1403 = vadd.f32 %v974, %v1402
        %1404 = vmatmul.f32.gmra.mxu0 %v1005
        %v1405 = vpop.f32.mrf.mxu0
        %v1406 = vadd.f32 %v974, %v1405
        %1407 = vmatmul.f32.gmra.mxu0 %v1008
        %v1408 = vpop.f32.mrf.mxu0
        %v1409 = vadd.f32 %v974, %v1408
        %1410 = vmatmul.f32.gmra.mxu0 %v1011
        %v1411 = vpop.f32.mrf.mxu0
        %v1412 = vadd.f32 %v974, %v1411
        %1413 = vmatmul.f32.gmra.mxu0 %v1014
        %v1414 = vpop.f32.mrf.mxu0
        %v1415 = vadd.f32 %v974, %v1414
        %1416 = vmatmul.f32.gmra.mxu0 %v1017
        %v1417 = vpop.f32.mrf.mxu0
        %v1418 = vadd.f32 %v974, %v1417
        %1419 = vmatmul.f32.gmra.mxu0 %v1020
        %v1420 = vpop.f32.mrf.mxu0
        %v1421 = vadd.f32 %v974, %v1420
        %1422 = vmatmul.f32.gmra.mxu0 %v1023
        %v1423 = vpop.f32.mrf.mxu0
        %v1424 = vadd.f32 %v974, %v1423
        %1425 = vmatmul.f32.gmra.mxu0 %v1026
        %v1426 = vpop.f32.mrf.mxu0
        %v1427 = vadd.f32 %v974, %v1426
        %1428 = vmatmul.f32.gmra.mxu0 %v1029
        %v1429 = vpop.f32.mrf.mxu0
        %v1430 = vadd.f32 %v974, %v1429
        %1431 = vmatmul.f32.gmra.mxu0 %v1032
        %v1432 = vpop.f32.mrf.mxu0
        %v1433 = vadd.f32 %v974, %v1432
        %1434 = vmatmul.f32.gmra.mxu0 %v1035
        %v1435 = vpop.f32.mrf.mxu0
        %v1436 = vadd.f32 %v974, %v1435
        %1437 = vmatmul.f32.gmra.mxu0 %v1038
        %v1438 = vpop.f32.mrf.mxu0
        %v1439 = vadd.f32 %v974, %v1438
        %1440 = vmatmul.f32.gmra.mxu0 %v1041
        %v1441 = vpop.f32.mrf.mxu0
        %v1442 = vadd.f32 %v974, %v1441
        %1443 = vmatmul.f32.gmra.mxu0 %v1044
        %v1444 = vpop.f32.mrf.mxu0
        %v1445 = vadd.f32 %v974, %v1444
        %1446 = vmatmul.f32.gmra.mxu0 %v1047
        %v1447 = vpop.f32.mrf.mxu0
        %v1448 = vadd.f32 %v974, %v1447
        %1449 = vmatmul.f32.gmra.mxu0 %v1050
        %v1450 = vpop.f32.mrf.mxu0
        %v1451 = vadd.f32 %v974, %v1450
        %1452 = vmatmul.f32.gmra.mxu0 %v1053
        %v1453 = vpop.f32.mrf.mxu0
        %v1454 = vadd.f32 %v974, %v1453
        %1455 = vmatmul.f32.gmra.mxu0 %v1056
        %v1456 = vpop.f32.mrf.mxu0
        %v1457 = vadd.f32 %v974, %v1456
        %1458 = vmatmul.f32.gmra.mxu0 %v1059
        %v1459 = vpop.f32.mrf.mxu0
        %v1460 = vadd.f32 %v974, %v1459
        %1461 = vmatmul.f32.gmra.mxu0 %v1062
        %v1462 = vpop.f32.mrf.mxu0
        %v1463 = vadd.f32 %v974, %v1462
        %1464 = vmatmul.f32.gmra.mxu0 %v1065
        %v1465 = vpop.f32.mrf.mxu0
        %v1466 = vadd.f32 %v974, %v1465
        %1467 = vmatmul.f32.gmra.mxu0 %v1068
        %v1468 = vpop.f32.mrf.mxu0
        %v1469 = vadd.f32 %v974, %v1468
        %1470 = vmatmul.f32.gmra.mxu0 %v1071
        %v1471 = vpop.f32.mrf.mxu0
        %v1472 = vadd.f32 %v974, %v1471
        %1473 = vmatmul.f32.gmra.mxu0 %v1074
        %v1474 = vpop.f32.mrf.mxu0
        %v1475 = vadd.f32 %v974, %v1474
        %1476 = vmatmul.f32.gmra.mxu0 %v1077
        %v1477 = vpop.f32.mrf.mxu0
        %v1478 = vadd.f32 %v974, %v1477
        %1479 = vmatmul.f32.gmra.mxu0 %v1080
        %v1480 = vpop.f32.mrf.mxu0
        %v1481 = vadd.f32 %v974, %v1480
        %1482 = vmatmul.f32.gmra.mxu0 %v1083
        %v1483 = vpop.f32.mrf.mxu0
        %v1484 = vadd.f32 %v974, %v1483
        %1485 = vmatmul.f32.gmra.mxu0 %v1086
        %v1486 = vpop.f32.mrf.mxu0
        %v1487 = vadd.f32 %v974, %v1486
        %1488 = vmatmul.f32.gmra.mxu0 %v1089
        %v1489 = vpop.f32.mrf.mxu0
        %v1490 = vadd.f32 %v974, %v1489
        %1491 = vmatmul.f32.gmra.mxu0 %v1092
        %v1492 = vpop.f32.mrf.mxu0
        %v1493 = vadd.f32 %v974, %v1492
        %1494 = vmatmul.f32.gmra.mxu0 %v1095
        %v1495 = vpop.f32.mrf.mxu0
        %v1496 = vadd.f32 %v974, %v1495
        %1497 = vmatmul.f32.gmra.mxu0 %v1098
        %v1498 = vpop.f32.mrf.mxu0
        %v1499 = vadd.f32 %v974, %v1498
        %1500 = vmatmul.f32.gmra.mxu0 %v1101
        %v1501 = vpop.f32.mrf.mxu0
        %v1502 = vadd.f32 %v974, %v1501
        %1503 = vmatmul.f32.gmra.mxu0 %v1104
        %v1504 = vpop.f32.mrf.mxu0
        %v1505 = vadd.f32 %v974, %v1504
        %1506 = vmatmul.f32.gmra.mxu0 %v1107
        %v1507 = vpop.f32.mrf.mxu0
        %v1508 = vadd.f32 %v974, %v1507
        %1509 = vmatmul.f32.gmra.mxu0 %v1110
        %v1510 = vpop.f32.mrf.mxu0
        %v1511 = vadd.f32 %v974, %v1510
        %1512 = vmatmul.f32.gmra.mxu0 %v1113
        %v1513 = vpop.f32.mrf.mxu0
        %v1514 = vadd.f32 %v974, %v1513
        %1515 = vmatmul.f32.gmra.mxu0 %v1116
        %v1516 = vpop.f32.mrf.mxu0
        %v1517 = vadd.f32 %v974, %v1516
        %1518 = vmatmul.f32.gmra.mxu0 %v1119
        %v1519 = vpop.f32.mrf.mxu0
        %v1520 = vadd.f32 %v974, %v1519
        %1521 = vmatmul.f32.gmra.mxu0 %v1122
        %v1522 = vpop.f32.mrf.mxu0
        %v1523 = vadd.f32 %v974, %v1522
        %1524 = vmatmul.f32.gmra.mxu0 %v1125
        %v1525 = vpop.f32.mrf.mxu0
        %v1526 = vadd.f32 %v974, %v1525
        %1527 = vmatmul.f32.gmra.mxu0 %v1128
        %v1528 = vpop.f32.mrf.mxu0
        %v1529 = vadd.f32 %v974, %v1528
        %1530 = vmatmul.f32.gmra.mxu0 %v1131
        %v1531 = vpop.f32.mrf.mxu0
        %v1532 = vadd.f32 %v974, %v1531
        %1533 = vmatmul.f32.gmra.mxu0 %v1134
        %v1534 = vpop.f32.mrf.mxu0
        %v1535 = vadd.f32 %v974, %v1534
        %1536 = vmatmul.f32.gmra.mxu0 %v1137
        %v1537 = vpop.f32.mrf.mxu0
        %v1538 = vadd.f32 %v974, %v1537
        %1539 = vmatmul.f32.gmra.mxu0 %v1140
        %v1540 = vpop.f32.mrf.mxu0
        %v1541 = vadd.f32 %v974, %v1540
        %1542 = vmatmul.f32.gmra.mxu0 %v1143
        %v1543 = vpop.f32.mrf.mxu0
        %v1544 = vadd.f32 %v974, %v1543
        %1545 = vmatmul.f32.gmra.mxu0 %v1146
        %v1546 = vpop.f32.mrf.mxu0
        %v1547 = vadd.f32 %v974, %v1546
        %1548 = vmatmul.f32.gmra.mxu0 %v1149
        %v1549 = vpop.f32.mrf.mxu0
        %v1550 = vadd.f32 %v974, %v1549
        %1551 = vmatmul.f32.gmra.mxu0 %v1152
        %v1552 = vpop.f32.mrf.mxu0
        %v1553 = vadd.f32 %v974, %v1552
        %1554 = vmatmul.f32.gmra.mxu0 %v1155
        %v1555 = vpop.f32.mrf.mxu0
        %v1556 = vadd.f32 %v974, %v1555
        %1557 = vmatmul.f32.gmra.mxu0 %v1158
        %v1558 = vpop.f32.mrf.mxu0
        %v1559 = vadd.f32 %v974, %v1558
        %1560 = vmatmul.f32.gmra.mxu0 %v1161
        %v1561 = vpop.f32.mrf.mxu0
        %v1562 = vadd.f32 %v974, %v1561
        %1563 = vmatmul.f32.gmra.mxu0 %v1164
        %v1564 = vpop.f32.mrf.mxu0
        %v1565 = vadd.f32 %v974, %v1564
        %1566 = vmatmul.f32.gmra.mxu0 %v1167
        %v1567 = vpop.f32.mrf.mxu0
        %v1568 = vadd.f32 %v974, %v1567
        %1569 = vmatmul.f32.gmra.mxu0 %v1170
        %v1570 = vpop.f32.mrf.mxu0
        %v1571 = vadd.f32 %v974, %v1570
        %1572 = vmatmul.f32.gmra.mxu0 %v1173
        %v1573 = vpop.f32.mrf.mxu0
        %v1574 = vadd.f32 %v974, %v1573
        %1575 = vmatmul.f32.gmra.mxu0 %v1176
        %v1576 = vpop.f32.mrf.mxu0
        %v1577 = vadd.f32 %v974, %v1576
        %1578 = vmatmul.f32.gmra.mxu0 %v1179
        %v1579 = vpop.f32.mrf.mxu0
        %v1580 = vadd.f32 %v974, %v1579
        %1581 = vmatmul.f32.gmra.mxu0 %v1182
        %v1582 = vpop.f32.mrf.mxu0
        %v1583 = vadd.f32 %v974, %v1582
        %1584 = vmatmul.f32.gmra.mxu0 %v1185
        %v1585 = vpop.f32.mrf.mxu0
        %v1586 = vadd.f32 %v974, %v1585
        %1587 = vmatmul.f32.gmra.mxu0 %v1188
        %v1588 = vpop.f32.mrf.mxu0
        %v1589 = vadd.f32 %v974, %v1588
        %1590 = vmatmul.f32.gmra.mxu0 %v1191
        %v1591 = vpop.f32.mrf.mxu0
        %v1592 = vadd.f32 %v974, %v1591
        %1593 = vmatmul.f32.gmra.mxu0 %v1194
        %v1594 = vpop.f32.mrf.mxu0
        %v1595 = vadd.f32 %v974, %v1594
        %1596 = vmatmul.f32.gmra.mxu0 %v1197
        %v1597 = vpop.f32.mrf.mxu0
        %v1598 = vadd.f32 %v974, %v1597
        %1599 = vmatmul.f32.gmra.mxu0 %v1200
        %v1600 = vpop.f32.mrf.mxu0
        %v1601 = vadd.f32 %v974, %v1600
        %1602 = vmatmul.f32.gmra.mxu0 %v1203
        %v1603 = vpop.f32.mrf.mxu0
        %v1604 = vadd.f32 %v974, %v1603
        %1605 = vmatmul.f32.gmra.mxu0 %v1206
        %v1606 = vpop.f32.mrf.mxu0
        %v1607 = vadd.f32 %v974, %v1606
        %1608 = vmatmul.f32.gmra.mxu0 %v1209
        %v1609 = vpop.f32.mrf.mxu0
        %v1610 = vadd.f32 %v974, %v1609
        %1611 = vmatmul.f32.gmra.mxu0 %v1212
        %v1612 = vpop.f32.mrf.mxu0
        %v1613 = vadd.f32 %v974, %v1612
        %1614 = vmatmul.f32.gmra.mxu0 %v1215
        %v1615 = vpop.f32.mrf.mxu0
        %v1616 = vadd.f32 %v974, %v1615
        %1617 = vmatmul.f32.gmra.mxu0 %v1218
        %v1618 = vpop.f32.mrf.mxu0
        %v1619 = vadd.f32 %v974, %v1618
        %1620 = vmatmul.f32.gmra.mxu0 %v1221
        %v1621 = vpop.f32.mrf.mxu0
        %v1622 = vadd.f32 %v974, %v1621
        %1623 = vmatmul.f32.gmra.mxu0 %v1224
        %v1624 = vpop.f32.mrf.mxu0
        %v1625 = vadd.f32 %v974, %v1624
        %1626 = vmatmul.f32.gmra.mxu0 %v1227
        %v1627 = vpop.f32.mrf.mxu0
        %v1628 = vadd.f32 %v974, %v1627
        %1629 = vmatmul.f32.gmra.mxu0 %v1230
        %v1630 = vpop.f32.mrf.mxu0
        %v1631 = vadd.f32 %v974, %v1630
        %1632 = vmatmul.f32.gmra.mxu0 %v1233
        %v1633 = vpop.f32.mrf.mxu0
        %v1634 = vadd.f32 %v974, %v1633
        %1635 = vmatmul.f32.gmra.mxu0 %v1236
        %v1636 = vpop.f32.mrf.mxu0
        %v1637 = vadd.f32 %v974, %v1636
        %1638 = vmatmul.f32.gmra.mxu0 %v1239
        %v1639 = vpop.f32.mrf.mxu0
        %v1640 = vadd.f32 %v974, %v1639
        %1641 = vmatmul.f32.gmra.mxu0 %v1242
        %v1642 = vpop.f32.mrf.mxu0
        %v1643 = vadd.f32 %v974, %v1642
        %1644 = vmatmul.f32.gmra.mxu0 %v1245
        %v1645 = vpop.f32.mrf.mxu0
        %v1646 = vadd.f32 %v974, %v1645
        %1647 = vmatmul.f32.gmra.mxu0 %v1248
        %v1648 = vpop.f32.mrf.mxu0
        %v1649 = vadd.f32 %v974, %v1648
        %1650 = vmatmul.f32.gmra.mxu0 %v1251
        %v1651 = vpop.f32.mrf.mxu0
        %v1652 = vadd.f32 %v974, %v1651
        %1653 = vmatmul.f32.gmra.mxu0 %v1254
        %v1654 = vpop.f32.mrf.mxu0
        %v1655 = vadd.f32 %v974, %v1654
        %1656 = vmatmul.f32.gmra.mxu0 %v1257
        %v1657 = vpop.f32.mrf.mxu0
        %v1658 = vadd.f32 %v974, %v1657
        %1659 = vmatmul.f32.gmra.mxu0 %v1260
        %v1660 = vpop.f32.mrf.mxu0
        %v1661 = vadd.f32 %v974, %v1660
        %1662 = vmatmul.f32.gmra.mxu0 %v1263
        %v1663 = vpop.f32.mrf.mxu0
        %v1664 = vadd.f32 %v974, %v1663
        %1665 = vmatmul.f32.gmra.mxu0 %v1266
        %v1666 = vpop.f32.mrf.mxu0
        %v1667 = vadd.f32 %v974, %v1666
        %1668 = vmatmul.f32.gmra.mxu0 %v1269
        %v1669 = vpop.f32.mrf.mxu0
        %v1670 = vadd.f32 %v974, %v1669
        %1671 = vmatmul.f32.gmra.mxu0 %v1272
        %v1672 = vpop.f32.mrf.mxu0
        %v1673 = vadd.f32 %v974, %v1672
        %1674 = vmatmul.f32.gmra.mxu0 %v1275
        %v1675 = vpop.f32.mrf.mxu0
        %v1676 = vadd.f32 %v974, %v1675
        %1677 = vmatmul.f32.gmra.mxu0 %v1278
        %v1678 = vpop.f32.mrf.mxu0
        %v1679 = vadd.f32 %v974, %v1678
        %1680 = vmatmul.f32.gmra.mxu0 %v1281
        %v1681 = vpop.f32.mrf.mxu0
        %v1682 = vadd.f32 %v974, %v1681
        %1683 = vmatmul.f32.gmra.mxu0 %v1284
        %v1684 = vpop.f32.mrf.mxu0
        %v1685 = vadd.f32 %v974, %v1684
        %1686 = vmatmul.f32.gmra.mxu0 %v1287
        %v1687 = vpop.f32.mrf.mxu0
        %v1688 = vadd.f32 %v974, %v1687
        %1689 = vmatmul.f32.gmra.mxu0 %v1290
        %v1690 = vpop.f32.mrf.mxu0
        %v1691 = vadd.f32 %v974, %v1690
        %1692 = vmatmul.f32.gmra.mxu0 %v1293
        %v1693 = vpop.f32.mrf.mxu0
        %v1694 = vadd.f32 %v974, %v1693
        %1695 = vmatmul.f32.gmra.mxu0 %v1296
        %v1696 = vpop.f32.mrf.mxu0
        %v1697 = vadd.f32 %v974, %v1696
        %1698 = vmatmul.f32.gmra.mxu0 %v1299
        %v1699 = vpop.f32.mrf.mxu0
        %v1700 = vadd.f32 %v974, %v1699
        %1701 = vmatmul.f32.gmra.mxu0 %v1302
        %v1702 = vpop.f32.mrf.mxu0
        %v1703 = vadd.f32 %v974, %v1702
        %1704 = vmatmul.f32.gmra.mxu0 %v1305
        %v1705 = vpop.f32.mrf.mxu0
        %v1706 = vadd.f32 %v974, %v1705
        %1707 = vmatmul.f32.gmra.mxu0 %v1308
        %v1708 = vpop.f32.mrf.mxu0
        %v1709 = vadd.f32 %v974, %v1708
        %1710 = vmatmul.f32.gmra.mxu0 %v1311
        %v1711 = vpop.f32.mrf.mxu0
        %v1712 = vadd.f32 %v974, %v1711
        %1713 = vmatmul.f32.gmra.mxu0 %v1314
        %v1714 = vpop.f32.mrf.mxu0
        %v1715 = vadd.f32 %v974, %v1714
        %1716 = vmatmul.f32.gmra.mxu0 %v1317
        %v1717 = vpop.f32.mrf.mxu0
        %v1718 = vadd.f32 %v974, %v1717
        %1719 = vmatmul.f32.gmra.mxu0 %v1320
        %v1720 = vpop.f32.mrf.mxu0
        %v1721 = vadd.f32 %v974, %v1720
        %1722 = vmatmul.f32.gmra.mxu0 %v1323
        %v1723 = vpop.f32.mrf.mxu0
        %v1724 = vadd.f32 %v974, %v1723
        %1725 = vmatmul.f32.gmra.mxu0 %v1326
        %v1726 = vpop.f32.mrf.mxu0
        %v1727 = vadd.f32 %v974, %v1726
        %1728 = vmatmul.f32.gmra.mxu0 %v1329
        %v1729 = vpop.f32.mrf.mxu0
        %v1730 = vadd.f32 %v974, %v1729
        %1731 = vmatmul.f32.gmra.mxu0 %v1332
        %v1732 = vpop.f32.mrf.mxu0
        %v1733 = vadd.f32 %v974, %v1732
        %1734 = vmatmul.f32.gmra.mxu0 %v1335
        %v1735 = vpop.f32.mrf.mxu0
        %v1736 = vadd.f32 %v974, %v1735
        %1737 = vmatmul.f32.gmra.mxu0 %v1338
        %v1738 = vpop.f32.mrf.mxu0
        %v1739 = vadd.f32 %v974, %v1738
        %1740 = vmatmul.f32.gmra.mxu0 %v1341
        %v1741 = vpop.f32.mrf.mxu0
        %v1742 = vadd.f32 %v974, %v1741
        %1743 = vmatmul.f32.gmra.mxu0 %v1344
        %v1744 = vpop.f32.mrf.mxu0
        %v1745 = vadd.f32 %v974, %v1744
        %1746 = vmatmul.f32.gmra.mxu0 %v1347
        %v1747 = vpop.f32.mrf.mxu0
        %v1748 = vadd.f32 %v974, %v1747
        %1749 = vmatmul.f32.gmra.mxu0 %v1350
        %v1750 = vpop.f32.mrf.mxu0
        %v1751 = vadd.f32 %v974, %v1750
        %1752 = vmatmul.f32.gmra.mxu0 %v1353
        %v1753 = vpop.f32.mrf.mxu0
        %v1754 = vadd.f32 %v974, %v1753
        %1755 = vmatmul.f32.gmra.mxu0 %v1356
        %v1756 = vpop.f32.mrf.mxu0
        %v1757 = vadd.f32 %v974, %v1756
        %1758 = vmatmul.f32.gmra.mxu0 %v1359
        %v1759 = vpop.f32.mrf.mxu0
        %v1760 = vadd.f32 %v974, %v1759
        %1761 = vdwg.mxu0
        %v1762 = vmul.f32 %v1379, 0.2
        %v1763 = vmul.f32 %v1382, 0.2
        %v1764 = vmul.f32 %v1385, 0.2
        %v1765 = vmul.f32 %v1388, 0.2
        %v1766 = vmul.f32 %v1391, 0.2
        %v1767 = vmul.f32 %v1394, 0.2
        %v1768 = vmul.f32 %v1397, 0.2
        %v1769 = vmul.f32 %v1400, 0.2
        %v1770 = vmul.f32 %v1403, 0.2
        %v1771 = vmul.f32 %v1406, 0.2
        %v1772 = vmul.f32 %v1409, 0.2
        %v1773 = vmul.f32 %v1412, 0.2
        %v1774 = vmul.f32 %v1415, 0.2
        %v1775 = vmul.f32 %v1418, 0.2
        %v1776 = vmul.f32 %v1421, 0.2
        %v1777 = vmul.f32 %v1424, 0.2
        %v1778 = vmul.f32 %v1427, 0.2
        %v1779 = vmul.f32 %v1430, 0.2
        %v1780 = vmul.f32 %v1433, 0.2
        %v1781 = vmul.f32 %v1436, 0.2
        %v1782 = vmul.f32 %v1439, 0.2
        %v1783 = vmul.f32 %v1442, 0.2
        %v1784 = vmul.f32 %v1445, 0.2
        %v1785 = vmul.f32 %v1448, 0.2
        %v1786 = vmul.f32 %v1451, 0.2
        %v1787 = vmul.f32 %v1454, 0.2
        %v1788 = vmul.f32 %v1457, 0.2
        %v1789 = vmul.f32 %v1460, 0.2
        %v1790 = vmul.f32 %v1463, 0.2
        %v1791 = vmul.f32 %v1466, 0.2
        %v1792 = vmul.f32 %v1469, 0.2
        %v1793 = vmul.f32 %v1472, 0.2
        %v1794 = vmul.f32 %v1475, 0.2
        %v1795 = vmul.f32 %v1478, 0.2
        %v1796 = vmul.f32 %v1481, 0.2
        %v1797 = vmul.f32 %v1484, 0.2
        %v1798 = vmul.f32 %v1487, 0.2
        %v1799 = vmul.f32 %v1490, 0.2
        %v1800 = vmul.f32 %v1493, 0.2
        %v1801 = vmul.f32 %v1496, 0.2
        %v1802 = vmul.f32 %v1499, 0.2
        %v1803 = vmul.f32 %v1502, 0.2
        %v1804 = vmul.f32 %v1505, 0.2
        %v1805 = vmul.f32 %v1508, 0.2
        %v1806 = vmul.f32 %v1511, 0.2
        %v1807 = vmul.f32 %v1514, 0.2
        %v1808 = vmul.f32 %v1517, 0.2
        %v1809 = vmul.f32 %v1520, 0.2
        %v1810 = vmul.f32 %v1523, 0.2
        %v1811 = vmul.f32 %v1526, 0.2
        %v1812 = vmul.f32 %v1529, 0.2
        %v1813 = vmul.f32 %v1532, 0.2
        %v1814 = vmul.f32 %v1535, 0.2
        %v1815 = vmul.f32 %v1538, 0.2
        %v1816 = vmul.f32 %v1541, 0.2
        %v1817 = vmul.f32 %v1544, 0.2
        %v1818 = vmul.f32 %v1547, 0.2
        %v1819 = vmul.f32 %v1550, 0.2
        %v1820 = vmul.f32 %v1553, 0.2
        %v1821 = vmul.f32 %v1556, 0.2
        %v1822 = vmul.f32 %v1559, 0.2
        %v1823 = vmul.f32 %v1562, 0.2
        %v1824 = vmul.f32 %v1565, 0.2
        %v1825 = vmul.f32 %v1568, 0.2
        %v1826 = vmul.f32 %v1571, 0.2
        %v1827 = vmul.f32 %v1574, 0.2
        %v1828 = vmul.f32 %v1577, 0.2
        %v1829 = vmul.f32 %v1580, 0.2
        %v1830 = vmul.f32 %v1583, 0.2
        %v1831 = vmul.f32 %v1586, 0.2
        %v1832 = vmul.f32 %v1589, 0.2
        %v1833 = vmul.f32 %v1592, 0.2
        %v1834 = vmul.f32 %v1595, 0.2
        %v1835 = vmul.f32 %v1598, 0.2
        %v1836 = vmul.f32 %v1601, 0.2
        %v1837 = vmul.f32 %v1604, 0.2
        %v1838 = vmul.f32 %v1607, 0.2
        %v1839 = vmul.f32 %v1610, 0.2
        %v1840 = vmul.f32 %v1613, 0.2
        %v1841 = vmul.f32 %v1616, 0.2
        %v1842 = vmul.f32 %v1619, 0.2
        %v1843 = vmul.f32 %v1622, 0.2
        %v1844 = vmul.f32 %v1625, 0.2
        %v1845 = vmul.f32 %v1628, 0.2
        %v1846 = vmul.f32 %v1631, 0.2
        %v1847 = vmul.f32 %v1634, 0.2
        %v1848 = vmul.f32 %v1637, 0.2
        %v1849 = vmul.f32 %v1640, 0.2
        %v1850 = vmul.f32 %v1643, 0.2
        %v1851 = vmul.f32 %v1646, 0.2
        %v1852 = vmul.f32 %v1649, 0.2
        %v1853 = vmul.f32 %v1652, 0.2
        %v1854 = vmul.f32 %v1655, 0.2
        %v1855 = vmul.f32 %v1658, 0.2
        %v1856 = vmul.f32 %v1661, 0.2
        %v1857 = vmul.f32 %v1664, 0.2
        %v1858 = vmul.f32 %v1667, 0.2
        %v1859 = vmul.f32 %v1670, 0.2
        %v1860 = vmul.f32 %v1673, 0.2
        %v1861 = vmul.f32 %v1676, 0.2
        %v1862 = vmul.f32 %v1679, 0.2
        %v1863 = vmul.f32 %v1682, 0.2
        %v1864 = vmul.f32 %v1685, 0.2
        %v1865 = vmul.f32 %v1688, 0.2
        %v1866 = vmul.f32 %v1691, 0.2
        %v1867 = vmul.f32 %v1694, 0.2
        %v1868 = vmul.f32 %v1697, 0.2
        %v1869 = vmul.f32 %v1700, 0.2
        %v1870 = vmul.f32 %v1703, 0.2
        %v1871 = vmul.f32 %v1706, 0.2
        %v1872 = vmul.f32 %v1709, 0.2
        %v1873 = vmul.f32 %v1712, 0.2
        %v1874 = vmul.f32 %v1715, 0.2
        %v1875 = vmul.f32 %v1718, 0.2
        %v1876 = vmul.f32 %v1721, 0.2
        %v1877 = vmul.f32 %v1724, 0.2
        %v1878 = vmul.f32 %v1727, 0.2
        %v1879 = vmul.f32 %v1730, 0.2
        %v1880 = vmul.f32 %v1733, 0.2
        %v1881 = vmul.f32 %v1736, 0.2
        %v1882 = vmul.f32 %v1739, 0.2
        %v1883 = vmul.f32 %v1742, 0.2
        %v1884 = vmul.f32 %v1745, 0.2
        %v1885 = vmul.f32 %v1748, 0.2
        %v1886 = vmul.f32 %v1751, 0.2
        %v1887 = vmul.f32 %v1754, 0.2
        %v1888 = vmul.f32 %v1757, 0.2
        %v1889 = vmul.f32 %v1760, 0.2
        %v1890 = vmax.f32 %v1379, %v1762
        %v1891 = vmax.f32 %v1382, %v1763
        %v1892 = vmax.f32 %v1385, %v1764
        %v1893 = vmax.f32 %v1388, %v1765
        %v1894 = vmax.f32 %v1391, %v1766
        %v1895 = vmax.f32 %v1394, %v1767
        %v1896 = vmax.f32 %v1397, %v1768
        %v1897 = vmax.f32 %v1400, %v1769
        %v1898 = vmax.f32 %v1403, %v1770
        %v1899 = vmax.f32 %v1406, %v1771
        %v1900 = vmax.f32 %v1409, %v1772
        %v1901 = vmax.f32 %v1412, %v1773
        %v1902 = vmax.f32 %v1415, %v1774
        %v1903 = vmax.f32 %v1418, %v1775
        %v1904 = vmax.f32 %v1421, %v1776
        %v1905 = vmax.f32 %v1424, %v1777
        %v1906 = vmax.f32 %v1427, %v1778
        %v1907 = vmax.f32 %v1430, %v1779
        %v1908 = vmax.f32 %v1433, %v1780
        %v1909 = vmax.f32 %v1436, %v1781
        %v1910 = vmax.f32 %v1439, %v1782
        %v1911 = vmax.f32 %v1442, %v1783
        %v1912 = vmax.f32 %v1445, %v1784
        %v1913 = vmax.f32 %v1448, %v1785
        %v1914 = vmax.f32 %v1451, %v1786
        %v1915 = vmax.f32 %v1454, %v1787
        %v1916 = vmax.f32 %v1457, %v1788
        %v1917 = vmax.f32 %v1460, %v1789
        %v1918 = vmax.f32 %v1463, %v1790
        %v1919 = vmax.f32 %v1466, %v1791
        %v1920 = vmax.f32 %v1469, %v1792
        %v1921 = vmax.f32 %v1472, %v1793
        %v1922 = vmax.f32 %v1475, %v1794
        %v1923 = vmax.f32 %v1478, %v1795
        %v1924 = vmax.f32 %v1481, %v1796
        %v1925 = vmax.f32 %v1484, %v1797
        %v1926 = vmax.f32 %v1487, %v1798
        %v1927 = vmax.f32 %v1490, %v1799
        %v1928 = vmax.f32 %v1493, %v1800
        %v1929 = vmax.f32 %v1496, %v1801
        %v1930 = vmax.f32 %v1499, %v1802
        %v1931 = vmax.f32 %v1502, %v1803
        %v1932 = vmax.f32 %v1505, %v1804
        %v1933 = vmax.f32 %v1508, %v1805
        %v1934 = vmax.f32 %v1511, %v1806
        %v1935 = vmax.f32 %v1514, %v1807
        %v1936 = vmax.f32 %v1517, %v1808
        %v1937 = vmax.f32 %v1520, %v1809
        %v1938 = vmax.f32 %v1523, %v1810
        %v1939 = vmax.f32 %v1526, %v1811
        %v1940 = vmax.f32 %v1529, %v1812
        %v1941 = vmax.f32 %v1532, %v1813
        %v1942 = vmax.f32 %v1535, %v1814
        %v1943 = vmax.f32 %v1538, %v1815
        %v1944 = vmax.f32 %v1541, %v1816
        %v1945 = vmax.f32 %v1544, %v1817
        %v1946 = vmax.f32 %v1547, %v1818
        %v1947 = vmax.f32 %v1550, %v1819
        %v1948 = vmax.f32 %v1553, %v1820
        %v1949 = vmax.f32 %v1556, %v1821
        %v1950 = vmax.f32 %v1559, %v1822
        %v1951 = vmax.f32 %v1562, %v1823
        %v1952 = vmax.f32 %v1565, %v1824
        %v1953 = vmax.f32 %v1568, %v1825
        %v1954 = vmax.f32 %v1571, %v1826
        %v1955 = vmax.f32 %v1574, %v1827
        %v1956 = vmax.f32 %v1577, %v1828
        %v1957 = vmax.f32 %v1580, %v1829
        %v1958 = vmax.f32 %v1583, %v1830
        %v1959 = vmax.f32 %v1586, %v1831
        %v1960 = vmax.f32 %v1589, %v1832
        %v1961 = vmax.f32 %v1592, %v1833
        %v1962 = vmax.f32 %v1595, %v1834
        %v1963 = vmax.f32 %v1598, %v1835
        %v1964 = vmax.f32 %v1601, %v1836
        %v1965 = vmax.f32 %v1604, %v1837
        %v1966 = vmax.f32 %v1607, %v1838
        %v1967 = vmax.f32 %v1610, %v1839
        %v1968 = vmax.f32 %v1613, %v1840
        %v1969 = vmax.f32 %v1616, %v1841
        %v1970 = vmax.f32 %v1619, %v1842
        %v1971 = vmax.f32 %v1622, %v1843
        %v1972 = vmax.f32 %v1625, %v1844
        %v1973 = vmax.f32 %v1628, %v1845
        %v1974 = vmax.f32 %v1631, %v1846
        %v1975 = vmax.f32 %v1634, %v1847
        %v1976 = vmax.f32 %v1637, %v1848
        %v1977 = vmax.f32 %v1640, %v1849
        %v1978 = vmax.f32 %v1643, %v1850
        %v1979 = vmax.f32 %v1646, %v1851
        %v1980 = vmax.f32 %v1649, %v1852
        %v1981 = vmax.f32 %v1652, %v1853
        %v1982 = vmax.f32 %v1655, %v1854
        %v1983 = vmax.f32 %v1658, %v1855
        %v1984 = vmax.f32 %v1661, %v1856
        %v1985 = vmax.f32 %v1664, %v1857
        %v1986 = vmax.f32 %v1667, %v1858
        %v1987 = vmax.f32 %v1670, %v1859
        %v1988 = vmax.f32 %v1673, %v1860
        %v1989 = vmax.f32 %v1676, %v1861
        %v1990 = vmax.f32 %v1679, %v1862
        %v1991 = vmax.f32 %v1682, %v1863
        %v1992 = vmax.f32 %v1685, %v1864
        %v1993 = vmax.f32 %v1688, %v1865
        %v1994 = vmax.f32 %v1691, %v1866
        %v1995 = vmax.f32 %v1694, %v1867
        %v1996 = vmax.f32 %v1697, %v1868
        %v1997 = vmax.f32 %v1700, %v1869
        %v1998 = vmax.f32 %v1703, %v1870
        %v1999 = vmax.f32 %v1706, %v1871
        %v2000 = vmax.f32 %v1709, %v1872
        %v2001 = vmax.f32 %v1712, %v1873
        %v2002 = vmax.f32 %v1715, %v1874
        %v2003 = vmax.f32 %v1718, %v1875
        %v2004 = vmax.f32 %v1721, %v1876
        %v2005 = vmax.f32 %v1724, %v1877
        %v2006 = vmax.f32 %v1727, %v1878
        %v2007 = vmax.f32 %v1730, %v1879
        %v2008 = vmax.f32 %v1733, %v1880
        %v2009 = vmax.f32 %v1736, %v1881
        %v2010 = vmax.f32 %v1739, %v1882
        %v2011 = vmax.f32 %v1742, %v1883
        %v2012 = vmax.f32 %v1745, %v1884
        %v2013 = vmax.f32 %v1748, %v1885
        %v2014 = vmax.f32 %v1751, %v1886
        %v2015 = vmax.f32 %v1754, %v1887
        %v2016 = vmax.f32 %v1757, %v1888
        %v2017 = vmax.f32 %v1760, %v1889
        %v2018 = vld [vmem:[%s3] sm:$0xff]
        %v2019 = vld [vmem:[%s3 + $0x8] sm:$0xff]
        %v2020 = vld [vmem:[%s3 + $0x10] sm:$0xff]
        %v2021 = vld [vmem:[%s3 + $0x18] sm:$0xff]
        %v2022 = vld [vmem:[%s3 + $0x20] sm:$0xff]
        %v2023 = vld [vmem:[%s3 + $0x28] sm:$0xff]
        %v2024 = vld [vmem:[%s3 + $0x30] sm:$0xff]
        %v2025 = vld [vmem:[%s3 + $0x38] sm:$0xff]
        %v2026 = vld [vmem:[%s4] sm:$0x1]
        %v2028 = vperm.slane %v2026, 0
        %vm2030 = vcmask 523264
        %v2032 = vsel %vm2030, %v1890, 0
        %v2035 = vsel %vm2030, %v1891, 0
        %v2038 = vsel %vm2030, %v1892, 0
        %v2041 = vsel %vm2030, %v1893, 0
        %v2044 = vsel %vm2030, %v1894, 0
        %v2047 = vsel %vm2030, %v1895, 0
        %v2050 = vsel %vm2030, %v1896, 0
        %v2053 = vsel %vm2030, %v1897, 0
        %v2056 = vsel %vm2030, %v1898, 0
        %v2059 = vsel %vm2030, %v1899, 0
        %v2062 = vsel %vm2030, %v1900, 0
        %v2065 = vsel %vm2030, %v1901, 0
        %v2068 = vsel %vm2030, %v1902, 0
        %v2071 = vsel %vm2030, %v1903, 0
        %v2074 = vsel %vm2030, %v1904, 0
        %v2077 = vsel %vm2030, %v1905, 0
        %v2080 = vsel %vm2030, %v1906, 0
        %v2083 = vsel %vm2030, %v1907, 0
        %v2086 = vsel %vm2030, %v1908, 0
        %v2089 = vsel %vm2030, %v1909, 0
        %v2092 = vsel %vm2030, %v1910, 0
        %v2095 = vsel %vm2030, %v1911, 0
        %v2098 = vsel %vm2030, %v1912, 0
        %v2101 = vsel %vm2030, %v1913, 0
        %v2104 = vsel %vm2030, %v1914, 0
        %v2107 = vsel %vm2030, %v1915, 0
        %v2110 = vsel %vm2030, %v1916, 0
        %v2113 = vsel %vm2030, %v1917, 0
        %v2116 = vsel %vm2030, %v1918, 0
        %v2119 = vsel %vm2030, %v1919, 0
        %v2122 = vsel %vm2030, %v1920, 0
        %v2125 = vsel %vm2030, %v1921, 0
        %v2128 = vsel %vm2030, %v1922, 0
        %v2131 = vsel %vm2030, %v1923, 0
        %v2134 = vsel %vm2030, %v1924, 0
        %v2137 = vsel %vm2030, %v1925, 0
        %v2140 = vsel %vm2030, %v1926, 0
        %v2143 = vsel %vm2030, %v1927, 0
        %v2146 = vsel %vm2030, %v1928, 0
        %v2149 = vsel %vm2030, %v1929, 0
        %v2152 = vsel %vm2030, %v1930, 0
        %v2155 = vsel %vm2030, %v1931, 0
        %v2158 = vsel %vm2030, %v1932, 0
        %v2161 = vsel %vm2030, %v1933, 0
        %v2164 = vsel %vm2030, %v1934, 0
        %v2167 = vsel %vm2030, %v1935, 0
        %v2170 = vsel %vm2030, %v1936, 0
        %v2173 = vsel %vm2030, %v1937, 0
        %v2176 = vsel %vm2030, %v1938, 0
        %v2179 = vsel %vm2030, %v1939, 0
        %v2182 = vsel %vm2030, %v1940, 0
        %v2185 = vsel %vm2030, %v1941, 0
        %v2188 = vsel %vm2030, %v1942, 0
        %v2191 = vsel %vm2030, %v1943, 0
        %v2194 = vsel %vm2030, %v1944, 0
        %v2197 = vsel %vm2030, %v1945, 0
        %v2200 = vsel %vm2030, %v1946, 0
        %v2203 = vsel %vm2030, %v1947, 0
        %v2206 = vsel %vm2030, %v1948, 0
        %v2209 = vsel %vm2030, %v1949, 0
        %v2212 = vsel %vm2030, %v1950, 0
        %v2215 = vsel %vm2030, %v1951, 0
        %v2218 = vsel %vm2030, %v1952, 0
        %v2221 = vsel %vm2030, %v1953, 0
        %v2224 = vsel %vm2030, %v1954, 0
        %v2227 = vsel %vm2030, %v1955, 0
        %v2230 = vsel %vm2030, %v1956, 0
        %v2233 = vsel %vm2030, %v1957, 0
        %v2236 = vsel %vm2030, %v1958, 0
        %v2239 = vsel %vm2030, %v1959, 0
        %v2242 = vsel %vm2030, %v1960, 0
        %v2245 = vsel %vm2030, %v1961, 0
        %v2248 = vsel %vm2030, %v1962, 0
        %v2251 = vsel %vm2030, %v1963, 0
        %v2254 = vsel %vm2030, %v1964, 0
        %v2257 = vsel %vm2030, %v1965, 0
        %v2260 = vsel %vm2030, %v1966, 0
        %v2263 = vsel %vm2030, %v1967, 0
        %v2266 = vsel %vm2030, %v1968, 0
        %v2269 = vsel %vm2030, %v1969, 0
        %v2272 = vsel %vm2030, %v1970, 0
        %v2275 = vsel %vm2030, %v1971, 0
        %v2278 = vsel %vm2030, %v1972, 0
        %v2281 = vsel %vm2030, %v1973, 0
        %v2284 = vsel %vm2030, %v1974, 0
        %v2287 = vsel %vm2030, %v1975, 0
        %v2290 = vsel %vm2030, %v1976, 0
        %v2293 = vsel %vm2030, %v1977, 0
        %v2296 = vsel %vm2030, %v1978, 0
        %v2299 = vsel %vm2030, %v1979, 0
        %v2302 = vsel %vm2030, %v1980, 0
        %v2305 = vsel %vm2030, %v1981, 0
        %v2308 = vsel %vm2030, %v1982, 0
        %v2311 = vsel %vm2030, %v1983, 0
        %v2314 = vsel %vm2030, %v1984, 0
        %v2317 = vsel %vm2030, %v1985, 0
        %v2320 = vsel %vm2030, %v1986, 0
        %v2323 = vsel %vm2030, %v1987, 0
        %v2326 = vsel %vm2030, %v1988, 0
        %v2329 = vsel %vm2030, %v1989, 0
        %v2332 = vsel %vm2030, %v1990, 0
        %v2335 = vsel %vm2030, %v1991, 0
        %v2338 = vsel %vm2030, %v1992, 0
        %v2341 = vsel %vm2030, %v1993, 0
        %v2344 = vsel %vm2030, %v1994, 0
        %v2347 = vsel %vm2030, %v1995, 0
        %v2350 = vsel %vm2030, %v1996, 0
        %v2353 = vsel %vm2030, %v1997, 0
        %v2356 = vsel %vm2030, %v1998, 0
        %v2359 = vsel %vm2030, %v1999, 0
        %v2362 = vsel %vm2030, %v2000, 0
        %v2365 = vsel %vm2030, %v2001, 0
        %v2368 = vsel %vm2030, %v2002, 0
        %v2371 = vsel %vm2030, %v2003, 0
        %v2374 = vsel %vm2030, %v2004, 0
        %v2377 = vsel %vm2030, %v2005, 0
        %v2380 = vsel %vm2030, %v2006, 0
        %v2383 = vsel %vm2030, %v2007, 0
        %v2386 = vsel %vm2030, %v2008, 0
        %v2389 = vsel %vm2030, %v2009, 0
        %v2392 = vsel %vm2030, %v2010, 0
        %v2395 = vsel %vm2030, %v2011, 0
        %v2398 = vsel %vm2030, %v2012, 0
        %v2401 = vsel %vm2030, %v2013, 0
        %v2404 = vsel %vm2030, %v2014, 0
        %v2407 = vsel %vm2030, %v2015, 0
        %v2410 = vsel %vm2030, %v2016, 0
        %v2413 = vsel %vm2030, %v2017, 0
        %2415 = vmatpush.msra.mxu0 0.0
        %2416 = vmatpush.msra.mxu0 0.0
        %2417 = vmatpush.msra.mxu0 0.0
        %2418 = vmatpush.msra.mxu0 0.0
        %2419 = vmatpush.msra.mxu0 0.0
        %2420 = vmatpush.msra.mxu0 0.0
        %2421 = vmatpush.msra.mxu0 0.0
        %2422 = vmatpush.msra.mxu0 0.0
        %2423 = vmatpush.msra.mxu0 %v2025
        %2424 = vmatpush.msra.mxu0 %v2024
        %2425 = vmatpush.msra.mxu0 %v2023
        %2426 = vmatpush.msra.mxu0 %v2022
        %2427 = vmatpush.msra.mxu0 %v2021
        %2428 = vmatpush.msra.mxu0 %v2020
        %2429 = vmatpush.msra.mxu0 %v2019
        %2430 = vmatpush.msra.mxu0 %v2018
        %2431 = vmatmul.f32.gmra.mxu0 %v2032
        %v2432 = vpop.f32.mrf.mxu0
        %v2433 = vadd.f32 %v2028, %v2432
        %2434 = vmatmul.f32.gmra.mxu0 %v2035
        %v2435 = vpop.f32.mrf.mxu0
        %v2436 = vadd.f32 %v2028, %v2435
        %2437 = vmatmul.f32.gmra.mxu0 %v2038
        %v2438 = vpop.f32.mrf.mxu0
        %v2439 = vadd.f32 %v2028, %v2438
        %2440 = vmatmul.f32.gmra.mxu0 %v2041
        %v2441 = vpop.f32.mrf.mxu0
        %v2442 = vadd.f32 %v2028, %v2441
        %2443 = vmatmul.f32.gmra.mxu0 %v2044
        %v2444 = vpop.f32.mrf.mxu0
        %v2445 = vadd.f32 %v2028, %v2444
        %2446 = vmatmul.f32.gmra.mxu0 %v2047
        %v2447 = vpop.f32.mrf.mxu0
        %v2448 = vadd.f32 %v2028, %v2447
        %2449 = vmatmul.f32.gmra.mxu0 %v2050
        %v2450 = vpop.f32.mrf.mxu0
        %v2451 = vadd.f32 %v2028, %v2450
        %2452 = vmatmul.f32.gmra.mxu0 %v2053
        %v2453 = vpop.f32.mrf.mxu0
        %v2454 = vadd.f32 %v2028, %v2453
        %2455 = vmatmul.f32.gmra.mxu0 %v2056
        %v2456 = vpop.f32.mrf.mxu0
        %v2457 = vadd.f32 %v2028, %v2456
        %2458 = vmatmul.f32.gmra.mxu0 %v2059
        %v2459 = vpop.f32.mrf.mxu0
        %v2460 = vadd.f32 %v2028, %v2459
        %2461 = vmatmul.f32.gmra.mxu0 %v2062
        %v2462 = vpop.f32.mrf.mxu0
        %v2463 = vadd.f32 %v2028, %v2462
        %2464 = vmatmul.f32.gmra.mxu0 %v2065
        %v2465 = vpop.f32.mrf.mxu0
        %v2466 = vadd.f32 %v2028, %v2465
        %2467 = vmatmul.f32.gmra.mxu0 %v2068
        %v2468 = vpop.f32.mrf.mxu0
        %v2469 = vadd.f32 %v2028, %v2468
        %2470 = vmatmul.f32.gmra.mxu0 %v2071
        %v2471 = vpop.f32.mrf.mxu0
        %v2472 = vadd.f32 %v2028, %v2471
        %2473 = vmatmul.f32.gmra.mxu0 %v2074
        %v2474 = vpop.f32.mrf.mxu0
        %v2475 = vadd.f32 %v2028, %v2474
        %2476 = vmatmul.f32.gmra.mxu0 %v2077
        %v2477 = vpop.f32.mrf.mxu0
        %v2478 = vadd.f32 %v2028, %v2477
        %2479 = vmatmul.f32.gmra.mxu0 %v2080
        %v2480 = vpop.f32.mrf.mxu0
        %v2481 = vadd.f32 %v2028, %v2480
        %2482 = vmatmul.f32.gmra.mxu0 %v2083
        %v2483 = vpop.f32.mrf.mxu0
        %v2484 = vadd.f32 %v2028, %v2483
        %2485 = vmatmul.f32.gmra.mxu0 %v2086
        %v2486 = vpop.f32.mrf.mxu0
        %v2487 = vadd.f32 %v2028, %v2486
        %2488 = vmatmul.f32.gmra.mxu0 %v2089
        %v2489 = vpop.f32.mrf.mxu0
        %v2490 = vadd.f32 %v2028, %v2489
        %2491 = vmatmul.f32.gmra.mxu0 %v2092
        %v2492 = vpop.f32.mrf.mxu0
        %v2493 = vadd.f32 %v2028, %v2492
        %2494 = vmatmul.f32.gmra.mxu0 %v2095
        %v2495 = vpop.f32.mrf.mxu0
        %v2496 = vadd.f32 %v2028, %v2495
        %2497 = vmatmul.f32.gmra.mxu0 %v2098
        %v2498 = vpop.f32.mrf.mxu0
        %v2499 = vadd.f32 %v2028, %v2498
        %2500 = vmatmul.f32.gmra.mxu0 %v2101
        %v2501 = vpop.f32.mrf.mxu0
        %v2502 = vadd.f32 %v2028, %v2501
        %2503 = vmatmul.f32.gmra.mxu0 %v2104
        %v2504 = vpop.f32.mrf.mxu0
        %v2505 = vadd.f32 %v2028, %v2504
        %2506 = vmatmul.f32.gmra.mxu0 %v2107
        %v2507 = vpop.f32.mrf.mxu0
        %v2508 = vadd.f32 %v2028, %v2507
        %2509 = vmatmul.f32.gmra.mxu0 %v2110
        %v2510 = vpop.f32.mrf.mxu0
        %v2511 = vadd.f32 %v2028, %v2510
        %2512 = vmatmul.f32.gmra.mxu0 %v2113
        %v2513 = vpop.f32.mrf.mxu0
        %v2514 = vadd.f32 %v2028, %v2513
        %2515 = vmatmul.f32.gmra.mxu0 %v2116
        %v2516 = vpop.f32.mrf.mxu0
        %v2517 = vadd.f32 %v2028, %v2516
        %2518 = vmatmul.f32.gmra.mxu0 %v2119
        %v2519 = vpop.f32.mrf.mxu0
        %v2520 = vadd.f32 %v2028, %v2519
        %2521 = vmatmul.f32.gmra.mxu0 %v2122
        %v2522 = vpop.f32.mrf.mxu0
        %v2523 = vadd.f32 %v2028, %v2522
        %2524 = vmatmul.f32.gmra.mxu0 %v2125
        %v2525 = vpop.f32.mrf.mxu0
        %v2526 = vadd.f32 %v2028, %v2525
        %2527 = vmatmul.f32.gmra.mxu0 %v2128
        %v2528 = vpop.f32.mrf.mxu0
        %v2529 = vadd.f32 %v2028, %v2528
        %2530 = vmatmul.f32.gmra.mxu0 %v2131
        %v2531 = vpop.f32.mrf.mxu0
        %v2532 = vadd.f32 %v2028, %v2531
        %2533 = vmatmul.f32.gmra.mxu0 %v2134
        %v2534 = vpop.f32.mrf.mxu0
        %v2535 = vadd.f32 %v2028, %v2534
        %2536 = vmatmul.f32.gmra.mxu0 %v2137
        %v2537 = vpop.f32.mrf.mxu0
        %v2538 = vadd.f32 %v2028, %v2537
        %2539 = vmatmul.f32.gmra.mxu0 %v2140
        %v2540 = vpop.f32.mrf.mxu0
        %v2541 = vadd.f32 %v2028, %v2540
        %2542 = vmatmul.f32.gmra.mxu0 %v2143
        %v2543 = vpop.f32.mrf.mxu0
        %v2544 = vadd.f32 %v2028, %v2543
        %2545 = vmatmul.f32.gmra.mxu0 %v2146
        %v2546 = vpop.f32.mrf.mxu0
        %v2547 = vadd.f32 %v2028, %v2546
        %2548 = vmatmul.f32.gmra.mxu0 %v2149
        %v2549 = vpop.f32.mrf.mxu0
        %v2550 = vadd.f32 %v2028, %v2549
        %2551 = vmatmul.f32.gmra.mxu0 %v2152
        %v2552 = vpop.f32.mrf.mxu0
        %v2553 = vadd.f32 %v2028, %v2552
        %2554 = vmatmul.f32.gmra.mxu0 %v2155
        %v2555 = vpop.f32.mrf.mxu0
        %v2556 = vadd.f32 %v2028, %v2555
        %2557 = vmatmul.f32.gmra.mxu0 %v2158
        %v2558 = vpop.f32.mrf.mxu0
        %v2559 = vadd.f32 %v2028, %v2558
        %2560 = vmatmul.f32.gmra.mxu0 %v2161
        %v2561 = vpop.f32.mrf.mxu0
        %v2562 = vadd.f32 %v2028, %v2561
        %2563 = vmatmul.f32.gmra.mxu0 %v2164
        %v2564 = vpop.f32.mrf.mxu0
        %v2565 = vadd.f32 %v2028, %v2564
        %2566 = vmatmul.f32.gmra.mxu0 %v2167
        %v2567 = vpop.f32.mrf.mxu0
        %v2568 = vadd.f32 %v2028, %v2567
        %2569 = vmatmul.f32.gmra.mxu0 %v2170
        %v2570 = vpop.f32.mrf.mxu0
        %v2571 = vadd.f32 %v2028, %v2570
        %2572 = vmatmul.f32.gmra.mxu0 %v2173
        %v2573 = vpop.f32.mrf.mxu0
        %v2574 = vadd.f32 %v2028, %v2573
        %2575 = vmatmul.f32.gmra.mxu0 %v2176
        %v2576 = vpop.f32.mrf.mxu0
        %v2577 = vadd.f32 %v2028, %v2576
        %2578 = vmatmul.f32.gmra.mxu0 %v2179
        %v2579 = vpop.f32.mrf.mxu0
        %v2580 = vadd.f32 %v2028, %v2579
        %2581 = vmatmul.f32.gmra.mxu0 %v2182
        %v2582 = vpop.f32.mrf.mxu0
        %v2583 = vadd.f32 %v2028, %v2582
        %2584 = vmatmul.f32.gmra.mxu0 %v2185
        %v2585 = vpop.f32.mrf.mxu0
        %v2586 = vadd.f32 %v2028, %v2585
        %2587 = vmatmul.f32.gmra.mxu0 %v2188
        %v2588 = vpop.f32.mrf.mxu0
        %v2589 = vadd.f32 %v2028, %v2588
        %2590 = vmatmul.f32.gmra.mxu0 %v2191
        %v2591 = vpop.f32.mrf.mxu0
        %v2592 = vadd.f32 %v2028, %v2591
        %2593 = vmatmul.f32.gmra.mxu0 %v2194
        %v2594 = vpop.f32.mrf.mxu0
        %v2595 = vadd.f32 %v2028, %v2594
        %2596 = vmatmul.f32.gmra.mxu0 %v2197
        %v2597 = vpop.f32.mrf.mxu0
        %v2598 = vadd.f32 %v2028, %v2597
        %2599 = vmatmul.f32.gmra.mxu0 %v2200
        %v2600 = vpop.f32.mrf.mxu0
        %v2601 = vadd.f32 %v2028, %v2600
        %2602 = vmatmul.f32.gmra.mxu0 %v2203
        %v2603 = vpop.f32.mrf.mxu0
        %v2604 = vadd.f32 %v2028, %v2603
        %2605 = vmatmul.f32.gmra.mxu0 %v2206
        %v2606 = vpop.f32.mrf.mxu0
        %v2607 = vadd.f32 %v2028, %v2606
        %2608 = vmatmul.f32.gmra.mxu0 %v2209
        %v2609 = vpop.f32.mrf.mxu0
        %v2610 = vadd.f32 %v2028, %v2609
        %2611 = vmatmul.f32.gmra.mxu0 %v2212
        %v2612 = vpop.f32.mrf.mxu0
        %v2613 = vadd.f32 %v2028, %v2612
        %2614 = vmatmul.f32.gmra.mxu0 %v2215
        %v2615 = vpop.f32.mrf.mxu0
        %v2616 = vadd.f32 %v2028, %v2615
        %2617 = vmatmul.f32.gmra.mxu0 %v2218
        %v2618 = vpop.f32.mrf.mxu0
        %v2619 = vadd.f32 %v2028, %v2618
        %2620 = vmatmul.f32.gmra.mxu0 %v2221
        %v2621 = vpop.f32.mrf.mxu0
        %v2622 = vadd.f32 %v2028, %v2621
        %2623 = vmatmul.f32.gmra.mxu0 %v2224
        %v2624 = vpop.f32.mrf.mxu0
        %v2625 = vadd.f32 %v2028, %v2624
        %2626 = vmatmul.f32.gmra.mxu0 %v2227
        %v2627 = vpop.f32.mrf.mxu0
        %v2628 = vadd.f32 %v2028, %v2627
        %2629 = vmatmul.f32.gmra.mxu0 %v2230
        %v2630 = vpop.f32.mrf.mxu0
        %v2631 = vadd.f32 %v2028, %v2630
        %2632 = vmatmul.f32.gmra.mxu0 %v2233
        %v2633 = vpop.f32.mrf.mxu0
        %v2634 = vadd.f32 %v2028, %v2633
        %2635 = vmatmul.f32.gmra.mxu0 %v2236
        %v2636 = vpop.f32.mrf.mxu0
        %v2637 = vadd.f32 %v2028, %v2636
        %2638 = vmatmul.f32.gmra.mxu0 %v2239
        %v2639 = vpop.f32.mrf.mxu0
        %v2640 = vadd.f32 %v2028, %v2639
        %2641 = vmatmul.f32.gmra.mxu0 %v2242
        %v2642 = vpop.f32.mrf.mxu0
        %v2643 = vadd.f32 %v2028, %v2642
        %2644 = vmatmul.f32.gmra.mxu0 %v2245
        %v2645 = vpop.f32.mrf.mxu0
        %v2646 = vadd.f32 %v2028, %v2645
        %2647 = vmatmul.f32.gmra.mxu0 %v2248
        %v2648 = vpop.f32.mrf.mxu0
        %v2649 = vadd.f32 %v2028, %v2648
        %2650 = vmatmul.f32.gmra.mxu0 %v2251
        %v2651 = vpop.f32.mrf.mxu0
        %v2652 = vadd.f32 %v2028, %v2651
        %2653 = vmatmul.f32.gmra.mxu0 %v2254
        %v2654 = vpop.f32.mrf.mxu0
        %v2655 = vadd.f32 %v2028, %v2654
        %2656 = vmatmul.f32.gmra.mxu0 %v2257
        %v2657 = vpop.f32.mrf.mxu0
        %v2658 = vadd.f32 %v2028, %v2657
        %2659 = vmatmul.f32.gmra.mxu0 %v2260
        %v2660 = vpop.f32.mrf.mxu0
        %v2661 = vadd.f32 %v2028, %v2660
        %2662 = vmatmul.f32.gmra.mxu0 %v2263
        %v2663 = vpop.f32.mrf.mxu0
        %v2664 = vadd.f32 %v2028, %v2663
        %2665 = vmatmul.f32.gmra.mxu0 %v2266
        %v2666 = vpop.f32.mrf.mxu0
        %v2667 = vadd.f32 %v2028, %v2666
        %2668 = vmatmul.f32.gmra.mxu0 %v2269
        %v2669 = vpop.f32.mrf.mxu0
        %v2670 = vadd.f32 %v2028, %v2669
        %2671 = vmatmul.f32.gmra.mxu0 %v2272
        %v2672 = vpop.f32.mrf.mxu0
        %v2673 = vadd.f32 %v2028, %v2672
        %2674 = vmatmul.f32.gmra.mxu0 %v2275
        %v2675 = vpop.f32.mrf.mxu0
        %v2676 = vadd.f32 %v2028, %v2675
        %2677 = vmatmul.f32.gmra.mxu0 %v2278
        %v2678 = vpop.f32.mrf.mxu0
        %v2679 = vadd.f32 %v2028, %v2678
        %2680 = vmatmul.f32.gmra.mxu0 %v2281
        %v2681 = vpop.f32.mrf.mxu0
        %v2682 = vadd.f32 %v2028, %v2681
        %2683 = vmatmul.f32.gmra.mxu0 %v2284
        %v2684 = vpop.f32.mrf.mxu0
        %v2685 = vadd.f32 %v2028, %v2684
        %2686 = vmatmul.f32.gmra.mxu0 %v2287
        %v2687 = vpop.f32.mrf.mxu0
        %v2688 = vadd.f32 %v2028, %v2687
        %2689 = vmatmul.f32.gmra.mxu0 %v2290
        %v2690 = vpop.f32.mrf.mxu0
        %v2691 = vadd.f32 %v2028, %v2690
        %2692 = vmatmul.f32.gmra.mxu0 %v2293
        %v2693 = vpop.f32.mrf.mxu0
        %v2694 = vadd.f32 %v2028, %v2693
        %2695 = vmatmul.f32.gmra.mxu0 %v2296
        %v2696 = vpop.f32.mrf.mxu0
        %v2697 = vadd.f32 %v2028, %v2696
        %2698 = vmatmul.f32.gmra.mxu0 %v2299
        %v2699 = vpop.f32.mrf.mxu0
        %v2700 = vadd.f32 %v2028, %v2699
        %2701 = vmatmul.f32.gmra.mxu0 %v2302
        %v2702 = vpop.f32.mrf.mxu0
        %v2703 = vadd.f32 %v2028, %v2702
        %2704 = vmatmul.f32.gmra.mxu0 %v2305
        %v2705 = vpop.f32.mrf.mxu0
        %v2706 = vadd.f32 %v2028, %v2705
        %2707 = vmatmul.f32.gmra.mxu0 %v2308
        %v2708 = vpop.f32.mrf.mxu0
        %v2709 = vadd.f32 %v2028, %v2708
        %2710 = vmatmul.f32.gmra.mxu0 %v2311
        %v2711 = vpop.f32.mrf.mxu0
        %v2712 = vadd.f32 %v2028, %v2711
        %2713 = vmatmul.f32.gmra.mxu0 %v2314
        %v2714 = vpop.f32.mrf.mxu0
        %v2715 = vadd.f32 %v2028, %v2714
        %2716 = vmatmul.f32.gmra.mxu0 %v2317
        %v2717 = vpop.f32.mrf.mxu0
        %v2718 = vadd.f32 %v2028, %v2717
        %2719 = vmatmul.f32.gmra.mxu0 %v2320
        %v2720 = vpop.f32.mrf.mxu0
        %v2721 = vadd.f32 %v2028, %v2720
        %2722 = vmatmul.f32.gmra.mxu0 %v2323
        %v2723 = vpop.f32.mrf.mxu0
        %v2724 = vadd.f32 %v2028, %v2723
        %2725 = vmatmul.f32.gmra.mxu0 %v2326
        %v2726 = vpop.f32.mrf.mxu0
        %v2727 = vadd.f32 %v2028, %v2726
        %2728 = vmatmul.f32.gmra.mxu0 %v2329
        %v2729 = vpop.f32.mrf.mxu0
        %v2730 = vadd.f32 %v2028, %v2729
        %2731 = vmatmul.f32.gmra.mxu0 %v2332
        %v2732 = vpop.f32.mrf.mxu0
        %v2733 = vadd.f32 %v2028, %v2732
        %2734 = vmatmul.f32.gmra.mxu0 %v2335
        %v2735 = vpop.f32.mrf.mxu0
        %v2736 = vadd.f32 %v2028, %v2735
        %2737 = vmatmul.f32.gmra.mxu0 %v2338
        %v2738 = vpop.f32.mrf.mxu0
        %v2739 = vadd.f32 %v2028, %v2738
        %2740 = vmatmul.f32.gmra.mxu0 %v2341
        %v2741 = vpop.f32.mrf.mxu0
        %v2742 = vadd.f32 %v2028, %v2741
        %2743 = vmatmul.f32.gmra.mxu0 %v2344
        %v2744 = vpop.f32.mrf.mxu0
        %v2745 = vadd.f32 %v2028, %v2744
        %2746 = vmatmul.f32.gmra.mxu0 %v2347
        %v2747 = vpop.f32.mrf.mxu0
        %v2748 = vadd.f32 %v2028, %v2747
        %2749 = vmatmul.f32.gmra.mxu0 %v2350
        %v2750 = vpop.f32.mrf.mxu0
        %v2751 = vadd.f32 %v2028, %v2750
        %2752 = vmatmul.f32.gmra.mxu0 %v2353
        %v2753 = vpop.f32.mrf.mxu0
        %v2754 = vadd.f32 %v2028, %v2753
        %2755 = vmatmul.f32.gmra.mxu0 %v2356
        %v2756 = vpop.f32.mrf.mxu0
        %v2757 = vadd.f32 %v2028, %v2756
        %2758 = vmatmul.f32.gmra.mxu0 %v2359
        %v2759 = vpop.f32.mrf.mxu0
        %v2760 = vadd.f32 %v2028, %v2759
        %2761 = vmatmul.f32.gmra.mxu0 %v2362
        %v2762 = vpop.f32.mrf.mxu0
        %v2763 = vadd.f32 %v2028, %v2762
        %2764 = vmatmul.f32.gmra.mxu0 %v2365
        %v2765 = vpop.f32.mrf.mxu0
        %v2766 = vadd.f32 %v2028, %v2765
        %2767 = vmatmul.f32.gmra.mxu0 %v2368
        %v2768 = vpop.f32.mrf.mxu0
        %v2769 = vadd.f32 %v2028, %v2768
        %2770 = vmatmul.f32.gmra.mxu0 %v2371
        %v2771 = vpop.f32.mrf.mxu0
        %v2772 = vadd.f32 %v2028, %v2771
        %2773 = vmatmul.f32.gmra.mxu0 %v2374
        %v2774 = vpop.f32.mrf.mxu0
        %v2775 = vadd.f32 %v2028, %v2774
        %2776 = vmatmul.f32.gmra.mxu0 %v2377
        %v2777 = vpop.f32.mrf.mxu0
        %v2778 = vadd.f32 %v2028, %v2777
        %2779 = vmatmul.f32.gmra.mxu0 %v2380
        %v2780 = vpop.f32.mrf.mxu0
        %v2781 = vadd.f32 %v2028, %v2780
        %2782 = vmatmul.f32.gmra.mxu0 %v2383
        %v2783 = vpop.f32.mrf.mxu0
        %v2784 = vadd.f32 %v2028, %v2783
        %2785 = vmatmul.f32.gmra.mxu0 %v2386
        %v2786 = vpop.f32.mrf.mxu0
        %v2787 = vadd.f32 %v2028, %v2786
        %2788 = vmatmul.f32.gmra.mxu0 %v2389
        %v2789 = vpop.f32.mrf.mxu0
        %v2790 = vadd.f32 %v2028, %v2789
        %2791 = vmatmul.f32.gmra.mxu0 %v2392
        %v2792 = vpop.f32.mrf.mxu0
        %v2793 = vadd.f32 %v2028, %v2792
        %2794 = vmatmul.f32.gmra.mxu0 %v2395
        %v2795 = vpop.f32.mrf.mxu0
        %v2796 = vadd.f32 %v2028, %v2795
        %2797 = vmatmul.f32.gmra.mxu0 %v2398
        %v2798 = vpop.f32.mrf.mxu0
        %v2799 = vadd.f32 %v2028, %v2798
        %2800 = vmatmul.f32.gmra.mxu0 %v2401
        %v2801 = vpop.f32.mrf.mxu0
        %v2802 = vadd.f32 %v2028, %v2801
        %2803 = vmatmul.f32.gmra.mxu0 %v2404
        %v2804 = vpop.f32.mrf.mxu0
        %v2805 = vadd.f32 %v2028, %v2804
        %2806 = vmatmul.f32.gmra.mxu0 %v2407
        %v2807 = vpop.f32.mrf.mxu0
        %v2808 = vadd.f32 %v2028, %v2807
        %2809 = vmatmul.f32.gmra.mxu0 %v2410
        %v2810 = vpop.f32.mrf.mxu0
        %v2811 = vadd.f32 %v2028, %v2810
        %2812 = vmatmul.f32.gmra.mxu0 %v2413
        %v2813 = vpop.f32.mrf.mxu0
        %v2814 = vadd.f32 %v2028, %v2813
        %2815 = vdwg.mxu0
        %v2816 = vmul.f32 %v2433, 0.2
        %v2817 = vmul.f32 %v2436, 0.2
        %v2818 = vmul.f32 %v2439, 0.2
        %v2819 = vmul.f32 %v2442, 0.2
        %v2820 = vmul.f32 %v2445, 0.2
        %v2821 = vmul.f32 %v2448, 0.2
        %v2822 = vmul.f32 %v2451, 0.2
        %v2823 = vmul.f32 %v2454, 0.2
        %v2824 = vmul.f32 %v2457, 0.2
        %v2825 = vmul.f32 %v2460, 0.2
        %v2826 = vmul.f32 %v2463, 0.2
        %v2827 = vmul.f32 %v2466, 0.2
        %v2828 = vmul.f32 %v2469, 0.2
        %v2829 = vmul.f32 %v2472, 0.2
        %v2830 = vmul.f32 %v2475, 0.2
        %v2831 = vmul.f32 %v2478, 0.2
        %v2832 = vmul.f32 %v2481, 0.2
        %v2833 = vmul.f32 %v2484, 0.2
        %v2834 = vmul.f32 %v2487, 0.2
        %v2835 = vmul.f32 %v2490, 0.2
        %v2836 = vmul.f32 %v2493, 0.2
        %v2837 = vmul.f32 %v2496, 0.2
        %v2838 = vmul.f32 %v2499, 0.2
        %v2839 = vmul.f32 %v2502, 0.2
        %v2840 = vmul.f32 %v2505, 0.2
        %v2841 = vmul.f32 %v2508, 0.2
        %v2842 = vmul.f32 %v2511, 0.2
        %v2843 = vmul.f32 %v2514, 0.2
        %v2844 = vmul.f32 %v2517, 0.2
        %v2845 = vmul.f32 %v2520, 0.2
        %v2846 = vmul.f32 %v2523, 0.2
        %v2847 = vmul.f32 %v2526, 0.2
        %v2848 = vmul.f32 %v2529, 0.2
        %v2849 = vmul.f32 %v2532, 0.2
        %v2850 = vmul.f32 %v2535, 0.2
        %v2851 = vmul.f32 %v2538, 0.2
        %v2852 = vmul.f32 %v2541, 0.2
        %v2853 = vmul.f32 %v2544, 0.2
        %v2854 = vmul.f32 %v2547, 0.2
        %v2855 = vmul.f32 %v2550, 0.2
        %v2856 = vmul.f32 %v2553, 0.2
        %v2857 = vmul.f32 %v2556, 0.2
        %v2858 = vmul.f32 %v2559, 0.2
        %v2859 = vmul.f32 %v2562, 0.2
        %v2860 = vmul.f32 %v2565, 0.2
        %v2861 = vmul.f32 %v2568, 0.2
        %v2862 = vmul.f32 %v2571, 0.2
        %v2863 = vmul.f32 %v2574, 0.2
        %v2864 = vmul.f32 %v2577, 0.2
        %v2865 = vmul.f32 %v2580, 0.2
        %v2866 = vmul.f32 %v2583, 0.2
        %v2867 = vmul.f32 %v2586, 0.2
        %v2868 = vmul.f32 %v2589, 0.2
        %v2869 = vmul.f32 %v2592, 0.2
        %v2870 = vmul.f32 %v2595, 0.2
        %v2871 = vmul.f32 %v2598, 0.2
        %v2872 = vmul.f32 %v2601, 0.2
        %v2873 = vmul.f32 %v2604, 0.2
        %v2874 = vmul.f32 %v2607, 0.2
        %v2875 = vmul.f32 %v2610, 0.2
        %v2876 = vmul.f32 %v2613, 0.2
        %v2877 = vmul.f32 %v2616, 0.2
        %v2878 = vmul.f32 %v2619, 0.2
        %v2879 = vmul.f32 %v2622, 0.2
        %v2880 = vmul.f32 %v2625, 0.2
        %v2881 = vmul.f32 %v2628, 0.2
        %v2882 = vmul.f32 %v2631, 0.2
        %v2883 = vmul.f32 %v2634, 0.2
        %v2884 = vmul.f32 %v2637, 0.2
        %v2885 = vmul.f32 %v2640, 0.2
        %v2886 = vmul.f32 %v2643, 0.2
        %v2887 = vmul.f32 %v2646, 0.2
        %v2888 = vmul.f32 %v2649, 0.2
        %v2889 = vmul.f32 %v2652, 0.2
        %v2890 = vmul.f32 %v2655, 0.2
        %v2891 = vmul.f32 %v2658, 0.2
        %v2892 = vmul.f32 %v2661, 0.2
        %v2893 = vmul.f32 %v2664, 0.2
        %v2894 = vmul.f32 %v2667, 0.2
        %v2895 = vmul.f32 %v2670, 0.2
        %v2896 = vmul.f32 %v2673, 0.2
        %v2897 = vmul.f32 %v2676, 0.2
        %v2898 = vmul.f32 %v2679, 0.2
        %v2899 = vmul.f32 %v2682, 0.2
        %v2900 = vmul.f32 %v2685, 0.2
        %v2901 = vmul.f32 %v2688, 0.2
        %v2902 = vmul.f32 %v2691, 0.2
        %v2903 = vmul.f32 %v2694, 0.2
        %v2904 = vmul.f32 %v2697, 0.2
        %v2905 = vmul.f32 %v2700, 0.2
        %v2906 = vmul.f32 %v2703, 0.2
        %v2907 = vmul.f32 %v2706, 0.2
        %v2908 = vmul.f32 %v2709, 0.2
        %v2909 = vmul.f32 %v2712, 0.2
        %v2910 = vmul.f32 %v2715, 0.2
        %v2911 = vmul.f32 %v2718, 0.2
        %v2912 = vmul.f32 %v2721, 0.2
        %v2913 = vmul.f32 %v2724, 0.2
        %v2914 = vmul.f32 %v2727, 0.2
        %v2915 = vmul.f32 %v2730, 0.2
        %v2916 = vmul.f32 %v2733, 0.2
        %v2917 = vmul.f32 %v2736, 0.2
        %v2918 = vmul.f32 %v2739, 0.2
        %v2919 = vmul.f32 %v2742, 0.2
        %v2920 = vmul.f32 %v2745, 0.2
        %v2921 = vmul.f32 %v2748, 0.2
        %v2922 = vmul.f32 %v2751, 0.2
        %v2923 = vmul.f32 %v2754, 0.2
        %v2924 = vmul.f32 %v2757, 0.2
        %v2925 = vmul.f32 %v2760, 0.2
        %v2926 = vmul.f32 %v2763, 0.2
        %v2927 = vmul.f32 %v2766, 0.2
        %v2928 = vmul.f32 %v2769, 0.2
        %v2929 = vmul.f32 %v2772, 0.2
        %v2930 = vmul.f32 %v2775, 0.2
        %v2931 = vmul.f32 %v2778, 0.2
        %v2932 = vmul.f32 %v2781, 0.2
        %v2933 = vmul.f32 %v2784, 0.2
        %v2934 = vmul.f32 %v2787, 0.2
        %v2935 = vmul.f32 %v2790, 0.2
        %v2936 = vmul.f32 %v2793, 0.2
        %v2937 = vmul.f32 %v2796, 0.2
        %v2938 = vmul.f32 %v2799, 0.2
        %v2939 = vmul.f32 %v2802, 0.2
        %v2940 = vmul.f32 %v2805, 0.2
        %v2941 = vmul.f32 %v2808, 0.2
        %v2942 = vmul.f32 %v2811, 0.2
        %v2943 = vmul.f32 %v2814, 0.2
        %v2944 = vmax.f32 %v2433, %v2816
        %v2945 = vmax.f32 %v2436, %v2817
        %v2946 = vmax.f32 %v2439, %v2818
        %v2947 = vmax.f32 %v2442, %v2819
        %v2948 = vmax.f32 %v2445, %v2820
        %v2949 = vmax.f32 %v2448, %v2821
        %v2950 = vmax.f32 %v2451, %v2822
        %v2951 = vmax.f32 %v2454, %v2823
        %v2952 = vmax.f32 %v2457, %v2824
        %v2953 = vmax.f32 %v2460, %v2825
        %v2954 = vmax.f32 %v2463, %v2826
        %v2955 = vmax.f32 %v2466, %v2827
        %v2956 = vmax.f32 %v2469, %v2828
        %v2957 = vmax.f32 %v2472, %v2829
        %v2958 = vmax.f32 %v2475, %v2830
        %v2959 = vmax.f32 %v2478, %v2831
        %v2960 = vmax.f32 %v2481, %v2832
        %v2961 = vmax.f32 %v2484, %v2833
        %v2962 = vmax.f32 %v2487, %v2834
        %v2963 = vmax.f32 %v2490, %v2835
        %v2964 = vmax.f32 %v2493, %v2836
        %v2965 = vmax.f32 %v2496, %v2837
        %v2966 = vmax.f32 %v2499, %v2838
        %v2967 = vmax.f32 %v2502, %v2839
        %v2968 = vmax.f32 %v2505, %v2840
        %v2969 = vmax.f32 %v2508, %v2841
        %v2970 = vmax.f32 %v2511, %v2842
        %v2971 = vmax.f32 %v2514, %v2843
        %v2972 = vmax.f32 %v2517, %v2844
        %v2973 = vmax.f32 %v2520, %v2845
        %v2974 = vmax.f32 %v2523, %v2846
        %v2975 = vmax.f32 %v2526, %v2847
        %v2976 = vmax.f32 %v2529, %v2848
        %v2977 = vmax.f32 %v2532, %v2849
        %v2978 = vmax.f32 %v2535, %v2850
        %v2979 = vmax.f32 %v2538, %v2851
        %v2980 = vmax.f32 %v2541, %v2852
        %v2981 = vmax.f32 %v2544, %v2853
        %v2982 = vmax.f32 %v2547, %v2854
        %v2983 = vmax.f32 %v2550, %v2855
        %v2984 = vmax.f32 %v2553, %v2856
        %v2985 = vmax.f32 %v2556, %v2857
        %v2986 = vmax.f32 %v2559, %v2858
        %v2987 = vmax.f32 %v2562, %v2859
        %v2988 = vmax.f32 %v2565, %v2860
        %v2989 = vmax.f32 %v2568, %v2861
        %v2990 = vmax.f32 %v2571, %v2862
        %v2991 = vmax.f32 %v2574, %v2863
        %v2992 = vmax.f32 %v2577, %v2864
        %v2993 = vmax.f32 %v2580, %v2865
        %v2994 = vmax.f32 %v2583, %v2866
        %v2995 = vmax.f32 %v2586, %v2867
        %v2996 = vmax.f32 %v2589, %v2868
        %v2997 = vmax.f32 %v2592, %v2869
        %v2998 = vmax.f32 %v2595, %v2870
        %v2999 = vmax.f32 %v2598, %v2871
        %v3000 = vmax.f32 %v2601, %v2872
        %v3001 = vmax.f32 %v2604, %v2873
        %v3002 = vmax.f32 %v2607, %v2874
        %v3003 = vmax.f32 %v2610, %v2875
        %v3004 = vmax.f32 %v2613, %v2876
        %v3005 = vmax.f32 %v2616, %v2877
        %v3006 = vmax.f32 %v2619, %v2878
        %v3007 = vmax.f32 %v2622, %v2879
        %v3008 = vmax.f32 %v2625, %v2880
        %v3009 = vmax.f32 %v2628, %v2881
        %v3010 = vmax.f32 %v2631, %v2882
        %v3011 = vmax.f32 %v2634, %v2883
        %v3012 = vmax.f32 %v2637, %v2884
        %v3013 = vmax.f32 %v2640, %v2885
        %v3014 = vmax.f32 %v2643, %v2886
        %v3015 = vmax.f32 %v2646, %v2887
        %v3016 = vmax.f32 %v2649, %v2888
        %v3017 = vmax.f32 %v2652, %v2889
        %v3018 = vmax.f32 %v2655, %v2890
        %v3019 = vmax.f32 %v2658, %v2891
        %v3020 = vmax.f32 %v2661, %v2892
        %v3021 = vmax.f32 %v2664, %v2893
        %v3022 = vmax.f32 %v2667, %v2894
        %v3023 = vmax.f32 %v2670, %v2895
        %v3024 = vmax.f32 %v2673, %v2896
        %v3025 = vmax.f32 %v2676, %v2897
        %v3026 = vmax.f32 %v2679, %v2898
        %v3027 = vmax.f32 %v2682, %v2899
        %v3028 = vmax.f32 %v2685, %v2900
        %v3029 = vmax.f32 %v2688, %v2901
        %v3030 = vmax.f32 %v2691, %v2902
        %v3031 = vmax.f32 %v2694, %v2903
        %v3032 = vmax.f32 %v2697, %v2904
        %v3033 = vmax.f32 %v2700, %v2905
        %v3034 = vmax.f32 %v2703, %v2906
        %v3035 = vmax.f32 %v2706, %v2907
        %v3036 = vmax.f32 %v2709, %v2908
        %v3037 = vmax.f32 %v2712, %v2909
        %v3038 = vmax.f32 %v2715, %v2910
        %v3039 = vmax.f32 %v2718, %v2911
        %v3040 = vmax.f32 %v2721, %v2912
        %v3041 = vmax.f32 %v2724, %v2913
        %v3042 = vmax.f32 %v2727, %v2914
        %v3043 = vmax.f32 %v2730, %v2915
        %v3044 = vmax.f32 %v2733, %v2916
        %v3045 = vmax.f32 %v2736, %v2917
        %v3046 = vmax.f32 %v2739, %v2918
        %v3047 = vmax.f32 %v2742, %v2919
        %v3048 = vmax.f32 %v2745, %v2920
        %v3049 = vmax.f32 %v2748, %v2921
        %v3050 = vmax.f32 %v2751, %v2922
        %v3051 = vmax.f32 %v2754, %v2923
        %v3052 = vmax.f32 %v2757, %v2924
        %v3053 = vmax.f32 %v2760, %v2925
        %v3054 = vmax.f32 %v2763, %v2926
        %v3055 = vmax.f32 %v2766, %v2927
        %v3056 = vmax.f32 %v2769, %v2928
        %v3057 = vmax.f32 %v2772, %v2929
        %v3058 = vmax.f32 %v2775, %v2930
        %v3059 = vmax.f32 %v2778, %v2931
        %v3060 = vmax.f32 %v2781, %v2932
        %v3061 = vmax.f32 %v2784, %v2933
        %v3062 = vmax.f32 %v2787, %v2934
        %v3063 = vmax.f32 %v2790, %v2935
        %v3064 = vmax.f32 %v2793, %v2936
        %v3065 = vmax.f32 %v2796, %v2937
        %v3066 = vmax.f32 %v2799, %v2938
        %v3067 = vmax.f32 %v2802, %v2939
        %v3068 = vmax.f32 %v2805, %v2940
        %v3069 = vmax.f32 %v2808, %v2941
        %v3070 = vmax.f32 %v2811, %v2942
        %v3071 = vmax.f32 %v2814, %v2943
        %v3072 = vmax.f32 %v2944, %v2945
        %v3073 = vmax.f32 %v3072, %v2946
        %v3074 = vmax.f32 %v3073, %v2947
        %v3075 = vmax.f32 %v3074, %v2948
        %v3076 = vmax.f32 %v3075, %v2949
        %v3077 = vmax.f32 %v3076, %v2950
        %v3078 = vmax.f32 %v3077, %v2951
        %v3079 = vmax.f32 %v3078, %v2952
        %v3080 = vmax.f32 %v3079, %v2953
        %v3081 = vmax.f32 %v3080, %v2954
        %v3082 = vmax.f32 %v3081, %v2955
        %v3083 = vmax.f32 %v3082, %v2956
        %v3084 = vmax.f32 %v3083, %v2957
        %v3085 = vmax.f32 %v3084, %v2958
        %v3086 = vmax.f32 %v3085, %v2959
        %v3087 = vrot.slane %v3086, 4
        %v3088 = vmax.f32 %v3086, %v3087
        %v3089 = vrot.slane %v3088, 2
        %v3090 = vmax.f32 %v3088, %v3089
        %v3091 = vrot.slane %v3090, 1
        %v3092 = vmax.f32 %v3090, %v3091
        %v3093 = vmax.f32 %v2960, %v2961
        %v3094 = vmax.f32 %v3093, %v2962
        %v3095 = vmax.f32 %v3094, %v2963
        %v3096 = vmax.f32 %v3095, %v2964
        %v3097 = vmax.f32 %v3096, %v2965
        %v3098 = vmax.f32 %v3097, %v2966
        %v3099 = vmax.f32 %v3098, %v2967
        %v3100 = vmax.f32 %v3099, %v2968
        %v3101 = vmax.f32 %v3100, %v2969
        %v3102 = vmax.f32 %v3101, %v2970
        %v3103 = vmax.f32 %v3102, %v2971
        %v3104 = vmax.f32 %v3103, %v2972
        %v3105 = vmax.f32 %v3104, %v2973
        %v3106 = vmax.f32 %v3105, %v2974
        %v3107 = vmax.f32 %v3106, %v2975
        %v3108 = vrot.slane %v3107, 4
        %v3109 = vmax.f32 %v3107, %v3108
        %v3110 = vrot.slane %v3109, 2
        %v3111 = vmax.f32 %v3109, %v3110
        %v3112 = vrot.slane %v3111, 1
        %v3113 = vmax.f32 %v3111, %v3112
        %v3114 = vmax.f32 %v2976, %v2977
        %v3115 = vmax.f32 %v3114, %v2978
        %v3116 = vmax.f32 %v3115, %v2979
        %v3117 = vmax.f32 %v3116, %v2980
        %v3118 = vmax.f32 %v3117, %v2981
        %v3119 = vmax.f32 %v3118, %v2982
        %v3120 = vmax.f32 %v3119, %v2983
        %v3121 = vmax.f32 %v3120, %v2984
        %v3122 = vmax.f32 %v3121, %v2985
        %v3123 = vmax.f32 %v3122, %v2986
        %v3124 = vmax.f32 %v3123, %v2987
        %v3125 = vmax.f32 %v3124, %v2988
        %v3126 = vmax.f32 %v3125, %v2989
        %v3127 = vmax.f32 %v3126, %v2990
        %v3128 = vmax.f32 %v3127, %v2991
        %v3129 = vrot.slane %v3128, 4
        %v3130 = vmax.f32 %v3128, %v3129
        %v3131 = vrot.slane %v3130, 2
        %v3132 = vmax.f32 %v3130, %v3131
        %v3133 = vrot.slane %v3132, 1
        %v3134 = vmax.f32 %v3132, %v3133
        %v3135 = vmax.f32 %v2992, %v2993
        %v3136 = vmax.f32 %v3135, %v2994
        %v3137 = vmax.f32 %v3136, %v2995
        %v3138 = vmax.f32 %v3137, %v2996
        %v3139 = vmax.f32 %v3138, %v2997
        %v3140 = vmax.f32 %v3139, %v2998
        %v3141 = vmax.f32 %v3140, %v2999
        %v3142 = vmax.f32 %v3141, %v3000
        %v3143 = vmax.f32 %v3142, %v3001
        %v3144 = vmax.f32 %v3143, %v3002
        %v3145 = vmax.f32 %v3144, %v3003
        %v3146 = vmax.f32 %v3145, %v3004
        %v3147 = vmax.f32 %v3146, %v3005
        %v3148 = vmax.f32 %v3147, %v3006
        %v3149 = vmax.f32 %v3148, %v3007
        %v3150 = vrot.slane %v3149, 4
        %v3151 = vmax.f32 %v3149, %v3150
        %v3152 = vrot.slane %v3151, 2
        %v3153 = vmax.f32 %v3151, %v3152
        %v3154 = vrot.slane %v3153, 1
        %v3155 = vmax.f32 %v3153, %v3154
        %v3156 = vmax.f32 %v3008, %v3009
        %v3157 = vmax.f32 %v3156, %v3010
        %v3158 = vmax.f32 %v3157, %v3011
        %v3159 = vmax.f32 %v3158, %v3012
        %v3160 = vmax.f32 %v3159, %v3013
        %v3161 = vmax.f32 %v3160, %v3014
        %v3162 = vmax.f32 %v3161, %v3015
        %v3163 = vmax.f32 %v3162, %v3016
        %v3164 = vmax.f32 %v3163, %v3017
        %v3165 = vmax.f32 %v3164, %v3018
        %v3166 = vmax.f32 %v3165, %v3019
        %v3167 = vmax.f32 %v3166, %v3020
        %v3168 = vmax.f32 %v3167, %v3021
        %v3169 = vmax.f32 %v3168, %v3022
        %v3170 = vmax.f32 %v3169, %v3023
        %v3171 = vrot.slane %v3170, 4
        %v3172 = vmax.f32 %v3170, %v3171
        %v3173 = vrot.slane %v3172, 2
        %v3174 = vmax.f32 %v3172, %v3173
        %v3175 = vrot.slane %v3174, 1
        %v3176 = vmax.f32 %v3174, %v3175
        %v3177 = vmax.f32 %v3024, %v3025
        %v3178 = vmax.f32 %v3177, %v3026
        %v3179 = vmax.f32 %v3178, %v3027
        %v3180 = vmax.f32 %v3179, %v3028
        %v3181 = vmax.f32 %v3180, %v3029
        %v3182 = vmax.f32 %v3181, %v3030
        %v3183 = vmax.f32 %v3182, %v3031
        %v3184 = vmax.f32 %v3183, %v3032
        %v3185 = vmax.f32 %v3184, %v3033
        %v3186 = vmax.f32 %v3185, %v3034
        %v3187 = vmax.f32 %v3186, %v3035
        %v3188 = vmax.f32 %v3187, %v3036
        %v3189 = vmax.f32 %v3188, %v3037
        %v3190 = vmax.f32 %v3189, %v3038
        %v3191 = vmax.f32 %v3190, %v3039
        %v3192 = vrot.slane %v3191, 4
        %v3193 = vmax.f32 %v3191, %v3192
        %v3194 = vrot.slane %v3193, 2
        %v3195 = vmax.f32 %v3193, %v3194
        %v3196 = vrot.slane %v3195, 1
        %v3197 = vmax.f32 %v3195, %v3196
        %v3198 = vmax.f32 %v3040, %v3041
        %v3199 = vmax.f32 %v3198, %v3042
        %v3200 = vmax.f32 %v3199, %v3043
        %v3201 = vmax.f32 %v3200, %v3044
        %v3202 = vmax.f32 %v3201, %v3045
        %v3203 = vmax.f32 %v3202, %v3046
        %v3204 = vmax.f32 %v3203, %v3047
        %v3205 = vmax.f32 %v3204, %v3048
        %v3206 = vmax.f32 %v3205, %v3049
        %v3207 = vmax.f32 %v3206, %v3050
        %v3208 = vmax.f32 %v3207, %v3051
        %v3209 = vmax.f32 %v3208, %v3052
        %v3210 = vmax.f32 %v3209, %v3053
        %v3211 = vmax.f32 %v3210, %v3054
        %v3212 = vmax.f32 %v3211, %v3055
        %v3213 = vrot.slane %v3212, 4
        %v3214 = vmax.f32 %v3212, %v3213
        %v3215 = vrot.slane %v3214, 2
        %v3216 = vmax.f32 %v3214, %v3215
        %v3217 = vrot.slane %v3216, 1
        %v3218 = vmax.f32 %v3216, %v3217
        %v3219 = vmax.f32 %v3056, %v3057
        %v3220 = vmax.f32 %v3219, %v3058
        %v3221 = vmax.f32 %v3220, %v3059
        %v3222 = vmax.f32 %v3221, %v3060
        %v3223 = vmax.f32 %v3222, %v3061
        %v3224 = vmax.f32 %v3223, %v3062
        %v3225 = vmax.f32 %v3224, %v3063
        %v3226 = vmax.f32 %v3225, %v3064
        %v3227 = vmax.f32 %v3226, %v3065
        %v3228 = vmax.f32 %v3227, %v3066
        %v3229 = vmax.f32 %v3228, %v3067
        %v3230 = vmax.f32 %v3229, %v3068
        %v3231 = vmax.f32 %v3230, %v3069
        %v3232 = vmax.f32 %v3231, %v3070
        %v3233 = vmax.f32 %v3232, %v3071
        %v3234 = vrot.slane %v3233, 4
        %v3235 = vmax.f32 %v3233, %v3234
        %v3236 = vrot.slane %v3235, 2
        %v3237 = vmax.f32 %v3235, %v3236
        %v3238 = vrot.slane %v3237, 1
        %v3239 = vmax.f32 %v3237, %v3238
        %p3240 = scmp.eq.s32.totalorder %s26, 0
        // Predicated region
        $region87: #{tpu_custom_call.1} parent=81 // pred_check
          %p3241 = pneg %p3240
        $region88: #{tpu_custom_call.1} parent=81 // pred_check_branch
          %3243 = sbr.rel (%p3241) target = $region90
        $region89: #{tpu_custom_call.1} parent=81 // pred_region
          %3244 = vst [vmem:[#allocation2] sm:$0xff] -inf
        $region90: #{tpu_custom_call.1} parent=81 // pred_fallthru
          _
        %v3245 = vld [vmem:[#allocation2] sm:$0xff]
        %vm3254 = vcmask 1041409
        %v3255 = vsel %vm3254, %v3113, %v3092
        %vm3256 = vcmask 1042434
        %v3257 = vsel %vm3256, %v3134, %v3255
        %vm3258 = vcmask 1043459
        %v3259 = vsel %vm3258, %v3155, %v3257
        %vm3260 = vcmask 1044484
        %v3261 = vsel %vm3260, %v3176, %v3259
        %vm3262 = vcmask 1045509
        %v3263 = vsel %vm3262, %v3197, %v3261
        %vm3264 = vcmask 1046534
        %v3265 = vsel %vm3264, %v3218, %v3263
        %vm3266 = vcmask 1047559
        %v3267 = vsel %vm3266, %v3239, %v3265
        %v3269 = vmax.f32 %v3245, %v3267
        %3270 = vst [vmem:[#allocation2] sm:$0xff] %v3269
        %p3271 = scmp.eq.s32.totalorder %s26, 1
        // Predicated region
        $region91: #{tpu_custom_call.1} parent=81 // pred_check
          %p3272 = pneg %p3271
        $region92: #{tpu_custom_call.1} parent=81 // pred_check_branch
          %3274 = sbr.rel (%p3272) target = $region94
        $region93: #{tpu_custom_call.1} parent=81 // pred_region
          %v3275 = vld [vmem:[#allocation2] sm:$0xff]
          %v3276 = vld [vmem:[%s5] sm:$0xff]
          %v3277 = vld [vmem:[%s5 + $0x8] sm:$0xff]
          %v3278 = vld [vmem:[%s5 + $0x10] sm:$0xff]
          %v3279 = vld [vmem:[%s5 + $0x18] sm:$0xff]
          %v3280 = vld [vmem:[%s5 + $0x20] sm:$0xff]
          %v3281 = vld [vmem:[%s5 + $0x28] sm:$0xff]
          %v3282 = vld [vmem:[%s5 + $0x30] sm:$0xff]
          %v3283 = vld [vmem:[%s5 + $0x38] sm:$0xff]
          %v3284 = vld [vmem:[%s5 + $0x40] sm:$0xff]
          %v3285 = vld [vmem:[%s5 + $0x48] sm:$0xff]
          %v3286 = vld [vmem:[%s5 + $0x50] sm:$0xff]
          %v3287 = vld [vmem:[%s5 + $0x58] sm:$0xff]
          %v3288 = vld [vmem:[%s5 + $0x60] sm:$0xff]
          %v3289 = vld [vmem:[%s5 + $0x68] sm:$0xff]
          %v3290 = vld [vmem:[%s5 + $0x70] sm:$0xff]
          %v3291 = vld [vmem:[%s5 + $0x78] sm:$0xff]
          %v3292 = vld [vmem:[%s6] sm:$0x1]
          %v3294 = vperm.slane %v3292, 0
          %3296 = vmatpush.msra.mxu0 %v3291
          %3297 = vmatpush.msra.mxu0 %v3290
          %3298 = vmatpush.msra.mxu0 %v3289
          %3299 = vmatpush.msra.mxu0 %v3288
          %3300 = vmatpush.msra.mxu0 %v3287
          %3301 = vmatpush.msra.mxu0 %v3286
          %3302 = vmatpush.msra.mxu0 %v3285
          %3303 = vmatpush.msra.mxu0 %v3284
          %3304 = vmatpush.msra.mxu0 %v3283
          %3305 = vmatpush.msra.mxu0 %v3282
          %3306 = vmatpush.msra.mxu0 %v3281
          %3307 = vmatpush.msra.mxu0 %v3280
          %3308 = vmatpush.msra.mxu0 %v3279
          %3309 = vmatpush.msra.mxu0 %v3278
          %3310 = vmatpush.msra.mxu0 %v3277
          %3311 = vmatpush.msra.mxu0 %v3276
          %3312 = vmatmul.f32.gmra.mxu0 %v3275
          %v3313 = vpop.f32.mrf.mxu0
          %v3314 = vadd.f32 %v3294, %v3313
          %3315 = vdwg.mxu0
          %3316 = vst [vmem:[%s837] sm:$0xff] %v3314
        $region94: #{tpu_custom_call.1} parent=81 // pred_fallthru
          _
        %s3317 = sand.u32 %s195, 1
        %s3318 = scalar_lea.sflag [#allocation5], %s3317
        %s3319 = sand.u32 %s195, 1
        %s3320 = smul.addr %s3319, 8
        %s3321 = scalar_lea.vmem [#allocation4], %s3320
        // Predicated region
        $region95: #{tpu_custom_call.1} parent=81 // pred_check
          %p3322 = pneg %p205
        $region96: #{tpu_custom_call.1} parent=81 // pred_check_branch
          %3324 = sbr.rel (%p3322) target = $region98
        $region97: #{tpu_custom_call.1} parent=81 // pred_region
          %3326 = vsyncadd %s3318, 0
          %s3327 = smul.addr %s25, 8
          %s3328 = scalar_lea.hbm %s7, %s3327
          %s3330 = sshll.u32 %s3321, 4
          %s3331 = int_to_ptr.vmem [resolvable:$true] %s3330
          %s3332 = sshll.u32 %s3328, 4
          %s3333 = int_to_ptr.hbm [resolvable:$true] %s3332
          %3335 = dma.vmem_to_hbm [thread:$0]  %s3331, 128, %s3333, %s3318
        $region98: #{tpu_custom_call.1} parent=81 // pred_fallthru
          _
      $region82: #{tpu_custom_call.1} parent=5 // pred_fallthru
        _
      %p3336 = scmp.le.s32.totalorder 2, %s16
      // Predicated region
      $region99: #{tpu_custom_call.1} parent=5 // pred_check
        %p3337 = pneg %p3336
      $region100: #{tpu_custom_call.1} parent=5 // pred_check_branch
        %3339 = sbr.rel (%p3337) target = $region102
      $region101: #{tpu_custom_call.1} parent=5 // pred_region
        %s3340 = ssub.s32 %s16, 2
        // Predicated region
        $region103: #{tpu_custom_call.1} parent=101 // pred_check
          %p3341 = pneg %p211
        $region104: #{tpu_custom_call.1} parent=101 // pred_check_branch
          %3343 = sbr.rel (%p3341) target = $region106
        $region105: #{tpu_custom_call.1} parent=101 // pred_region
          %s3344 = sand.u32 %s196, 1
          %s3345 = scalar_lea.sflag [#allocation5], %s3344
          %s3346 = sand.u32 %s196, 1
          %s3347 = smul.addr %s3346, 8
          %s3348 = scalar_lea.vmem [#allocation4], %s3347
          %3350 = dma.done %s3345, 128
        $region106: #{tpu_custom_call.1} parent=101 // pred_fallthru
          _
      $region102: #{tpu_custom_call.1} parent=5 // pred_fallthru
        _
    $region6: #{tpu_custom_call.1} parent=1 // loop_footer
      %s20 = sadd.s32 1, %s16
    $region7: #{tpu_custom_call.1} parent=1 // loop_footer_branch
      %15 = sbr.rel target = $region3
    $region8: #{tpu_custom_call.1} parent=1 // loop_exit
      _
    %3351 = vsyncpa [#allocation5], 1
    %s3352 = scalar_lea.sflag [#allocation5], 1
    %3353 = vsyncpa %s3352, 1

// kernel: tpu_custom_call.1
$region0: #{tpu_custom_call.1}
  #allocation0 [shape = 'u32[]', space=smem, size = 0x4, offset = 0x4, fixed_abs, tag = 'smem constant byte address 0x4 - core index']
  #allocation1 [shape = 'u32[72,128]{1,0:T(1,128)}', space=vmem, size = 0x9000, scoped, tag = 'internal scratch']
  #allocation2 [shape = 'f32[8,128]{1,0:T(8,128)}', space=vmem, size = 0x1000, scoped, tag = 'scratch operand']
  %s0 = inlined_call_operand.vmem [shape: f32[16,256,32], index: 0, kind: input, shape index: {}]
  %s1 = inlined_call_operand.vmem [shape: f32[32,64], index: 1, kind: input, shape index: {}]
  %s2 = inlined_call_operand.vmem [shape: f32[1,64], index: 2, kind: input, shape index: {}]
  %s3 = inlined_call_operand.vmem [shape: f32[64,128], index: 3, kind: input, shape index: {}]
  %s4 = inlined_call_operand.vmem [shape: f32[1,128], index: 4, kind: input, shape index: {}]
  %s5 = inlined_call_operand.vmem [shape: f32[128,128], index: 5, kind: input, shape index: {}]
  %s6 = inlined_call_operand.vmem [shape: f32[1,128], index: 6, kind: input, shape index: {}]
  %s7 = inlined_call_operand.hbm [shape: f32[16,128], index: 7, kind: output, shape index: {}]
  %s8 = sld [smem:[#allocation0]]
  $region107: #{tpu_custom_call.1} parent=0
    _
  %s10 = ssub.s32 1, %s8
  %s11 = scalar_select 0, %s10, %s8
  $region1: #{tpu_custom_call.1} parent=0
    #allocation3 [shape = 'u8[1048576]{0}', space=vmem, size = 0x100000, scoped, tag = 'input window, operand 0']
    #allocation4 [shape = 'u8[8192]{0}', space=vmem, size = 0x2000, scoped, tag = 'output window, operand 0']
    #allocation5 [shape = 's32[2]{0}', space=sflag, size = 0x8, scoped, tag = 'scoped memory for tpu_custom_call.1']
    %12 = vsyncpa [#allocation5], 0
    %s13 = scalar_lea.sflag [#allocation5], 1
    %14 = vsyncpa %s13, 0
    loop: start=0, step=1, limit=6
    $region2: #{tpu_custom_call.1} parent=1 // loop_pre_header
      _
    $region3: #{tpu_custom_call.1} parent=1 // loop_header
      %s16 = sphi 0, %s20
      %p17 = scmp.ge.s32.totalorder %s16, 6
      %s23 = sphi 0, %s35
      %s24 = sphi 0, %s31
      %s25 = sphi 0, %s23
      %s26 = sphi 0, %s24
      %s27 = sphi 0, %s25
      %s28 = sphi 0, %s26
      %s40 = sphi 0, %s42
      %s43 = sphi 0, %s40
      %s44 = sphi 0, %s43
      %s60 = sphi 0, %s44
      %s64 = sphi 0, %s64
      %s66 = sphi 0, %s64
      %s67 = sphi 0, %s66
      %s81 = sphi 0, %s67
      %s85 = sphi 0, %s85
      %s87 = sphi 0, %s85
      %s88 = sphi 0, %s87
      %s102 = sphi 0, %s88
      %s106 = sphi 0, %s106
      %s108 = sphi 0, %s106
      %s109 = sphi 0, %s108
      %s123 = sphi 0, %s109
      %s127 = sphi 0, %s127
      %s129 = sphi 0, %s127
      %s130 = sphi 0, %s129
      %s144 = sphi 0, %s130
      %s148 = sphi 0, %s148
      %s150 = sphi 0, %s148
      %s151 = sphi 0, %s150
      %s165 = sphi 0, %s151
      %s169 = sphi 0, %s169
      %s171 = sphi 0, %s169
      %s172 = sphi 0, %s171
      %s186 = sphi 0, %s172
      %s192 = sphi 0, %s194
      %s195 = sphi 0, %s192
      %s196 = sphi 0, %s195
      %s212 = sphi 0, %s196
    $region4: #{tpu_custom_call.1} parent=1 // loop_header_branch
      %19 = sbr.rel (%p17) target = $region8
    $region5: #{tpu_custom_call.1} parent=1 // loop_body
      %s21 = ssub.s32 %s16, 1
      %s22 = ssub.s32 %s16, 2
      %s29 = sadd.s32 1, %s24
      %p30 = scmp.ge.s32.totalorder %s29, 2
      %s31 = scalar_select %p30, 0, %s29
      %s32 = sadd.s32 1, %s23
      %s33 = scalar_select %p30, %s32, %s23
      %p34 = scmp.ge.s32.totalorder %s33, 2
      %s35 = scalar_select %p34, 0, %s33
      %s36 = ssub.s32 %s23, %s35
      %s37 = ssub.s32 %s24, %s31
      %s38 = sor.u32 %s36, %s37
      %p39 = scmp.eq.s32.totalorder %s38, 0
      %s41 = sadd.s32 %s40, 1
      %s42 = scalar_select %p39, %s40, %s41
      %p45 = pneg %p39
      %p46 = scmp.eq.s32.totalorder %s16, 3
      %p47 = por %p45, %p46
      %p48 = scmp.ne.s32.totalorder %s40, %s43
      %p49 = scmp.eq.s32.totalorder %s16, 0
      %p50 = por %p48, %p49
      %p51 = scmp.ne.s32.totalorder %s40, %s43
      %p52 = scmp.eq.s32.totalorder %s21, 3
      %p53 = por %p51, %p52
      %p54 = scmp.ne.s32.totalorder %s43, %s44
      %p55 = scmp.eq.s32.totalorder %s21, 0
      %p56 = por %p54, %p55
      %p57 = scmp.ne.s32.totalorder %s43, %s44
      %p58 = scmp.eq.s32.totalorder %s22, 3
      %p59 = por %p57, %p58
      %p61 = scmp.ne.s32.totalorder %s44, %s60
      %p62 = scmp.eq.s32.totalorder %s22, 0
      %p63 = por %p61, %p62
      %s65 = sadd.s32 %s64, 1
      %p68 = scmp.eq.s32.totalorder %s16, 3
      %p69 = scmp.ne.s32.totalorder %s64, %s66
      %p70 = scmp.eq.s32.totalorder %s16, 0
      %p71 = por %p69, %p70
      %p72 = scmp.ne.s32.totalorder %s64, %s66
      %p73 = scmp.eq.s32.totalorder %s21, 3
      %p74 = por %p72, %p73
      %p75 = scmp.ne.s32.totalorder %s66, %s67
      %p76 = scmp.eq.s32.totalorder %s21, 0
      %p77 = por %p75, %p76
      %p78 = scmp.ne.s32.totalorder %s66, %s67
      %p79 = scmp.eq.s32.totalorder %s22, 3
      %p80 = por %p78, %p79
      %p82 = scmp.ne.s32.totalorder %s67, %s81
      %p83 = scmp.eq.s32.totalorder %s22, 0
      %p84 = por %p82, %p83
      %s86 = sadd.s32 %s85, 1
      %p89 = scmp.eq.s32.totalorder %s16, 3
      %p90 = scmp.ne.s32.totalorder %s85, %s87
      %p91 = scmp.eq.s32.totalorder %s16, 0
      %p92 = por %p90, %p91
      %p93 = scmp.ne.s32.totalorder %s85, %s87
      %p94 = scmp.eq.s32.totalorder %s21, 3
      %p95 = por %p93, %p94
      %p96 = scmp.ne.s32.totalorder %s87, %s88
      %p97 = scmp.eq.s32.totalorder %s21, 0
      %p98 = por %p96, %p97
      %p99 = scmp.ne.s32.totalorder %s87, %s88
      %p100 = scmp.eq.s32.totalorder %s22, 3
      %p101 = por %p99, %p100
      %p103 = scmp.ne.s32.totalorder %s88, %s102
      %p104 = scmp.eq.s32.totalorder %s22, 0
      %p105 = por %p103, %p104
      %s107 = sadd.s32 %s106, 1
      %p110 = scmp.eq.s32.totalorder %s16, 3
      %p111 = scmp.ne.s32.totalorder %s106, %s108
      %p112 = scmp.eq.s32.totalorder %s16, 0
      %p113 = por %p111, %p112
      %p114 = scmp.ne.s32.totalorder %s106, %s108
      %p115 = scmp.eq.s32.totalorder %s21, 3
      %p116 = por %p114, %p115
      %p117 = scmp.ne.s32.totalorder %s108, %s109
      %p118 = scmp.eq.s32.totalorder %s21, 0
      %p119 = por %p117, %p118
      %p120 = scmp.ne.s32.totalorder %s108, %s109
      %p121 = scmp.eq.s32.totalorder %s22, 3
      %p122 = por %p120, %p121
      %p124 = scmp.ne.s32.totalorder %s109, %s123
      %p125 = scmp.eq.s32.totalorder %s22, 0
      %p126 = por %p124, %p125
      %s128 = sadd.s32 %s127, 1
      %p131 = scmp.eq.s32.totalorder %s16, 3
      %p132 = scmp.ne.s32.totalorder %s127, %s129
      %p133 = scmp.eq.s32.totalorder %s16, 0
      %p134 = por %p132, %p133
      %p135 = scmp.ne.s32.totalorder %s127, %s129
      %p136 = scmp.eq.s32.totalorder %s21, 3
      %p137 = por %p135, %p136
      %p138 = scmp.ne.s32.totalorder %s129, %s130
      %p139 = scmp.eq.s32.totalorder %s21, 0
      %p140 = por %p138, %p139
      %p141 = scmp.ne.s32.totalorder %s129, %s130
      %p142 = scmp.eq.s32.totalorder %s22, 3
      %p143 = por %p141, %p142
      %p145 = scmp.ne.s32.totalorder %s130, %s144
      %p146 = scmp.eq.s32.totalorder %s22, 0
      %p147 = por %p145, %p146
      %s149 = sadd.s32 %s148, 1
      %p152 = scmp.eq.s32.totalorder %s16, 3
      %p153 = scmp.ne.s32.totalorder %s148, %s150
      %p154 = scmp.eq.s32.totalorder %s16, 0
      %p155 = por %p153, %p154
      %p156 = scmp.ne.s32.totalorder %s148, %s150
      %p157 = scmp.eq.s32.totalorder %s21, 3
      %p158 = por %p156, %p157
      %p159 = scmp.ne.s32.totalorder %s150, %s151
      %p160 = scmp.eq.s32.totalorder %s21, 0
      %p161 = por %p159, %p160
      %p162 = scmp.ne.s32.totalorder %s150, %s151
      %p163 = scmp.eq.s32.totalorder %s22, 3
      %p164 = por %p162, %p163
      %p166 = scmp.ne.s32.totalorder %s151, %s165
      %p167 = scmp.eq.s32.totalorder %s22, 0
      %p168 = por %p166, %p167
      %s170 = sadd.s32 %s169, 1
      %p173 = scmp.eq.s32.totalorder %s16, 3
      %p174 = scmp.ne.s32.totalorder %s169, %s171
      %p175 = scmp.eq.s32.totalorder %s16, 0
      %p176 = por %p174, %p175
      %p177 = scmp.ne.s32.totalorder %s169, %s171
      %p178 = scmp.eq.s32.totalorder %s21, 3
      %p179 = por %p177, %p178
      %p180 = scmp.ne.s32.totalorder %s171, %s172
      %p181 = scmp.eq.s32.totalorder %s21, 0
      %p182 = por %p180, %p181
      %p183 = scmp.ne.s32.totalorder %s171, %s172
      %p184 = scmp.eq.s32.totalorder %s22, 3
      %p185 = por %p183, %p184
      %p187 = scmp.ne.s32.totalorder %s172, %s186
      %p188 = scmp.eq.s32.totalorder %s22, 0
      %p189 = por %p187, %p188
      %s190 = ssub.s32 %s23, %s35
      %p191 = scmp.eq.s32.totalorder %s190, 0
      %s193 = sadd.s32 %s192, 1
      %s194 = scalar_select %p191, %s192, %s193
      %p197 = pneg %p191
      %p198 = scmp.eq.s32.totalorder %s16, 3
      %p199 = por %p197, %p198
      %p200 = scmp.ne.s32.totalorder %s192, %s195
      %p201 = scmp.eq.s32.totalorder %s16, 0
      %p202 = por %p200, %p201
      %p203 = scmp.ne.s32.totalorder %s192, %s195
      %p204 = scmp.eq.s32.totalorder %s21, 3
      %p205 = por %p203, %p204
      %p206 = scmp.ne.s32.totalorder %s195, %s196
      %p207 = scmp.eq.s32.totalorder %s21, 0
      %p208 = por %p206, %p207
      %p209 = scmp.ne.s32.totalorder %s195, %s196
      %p210 = scmp.eq.s32.totalorder %s22, 3
      %p211 = por %p209, %p210
      %p213 = scmp.ne.s32.totalorder %s196, %s212
      %p214 = scmp.eq.s32.totalorder %s22, 0
      %p215 = por %p213, %p214
      %p216 = scmp.le.s32.totalorder 1, %s16
      %p217 = scmp.lt.s32.totalorder %s16, 5
      %p218 = pnand %p216, %p217
      %p219 = pneg %p218
      // Predicated region
      $region9: #{tpu_custom_call.1} parent=5 // pred_check
        _
      $region10: #{tpu_custom_call.1} parent=5 // pred_check_branch
        %221 = sbr.rel (%p218) target = $region12
      $region11: #{tpu_custom_call.1} parent=5 // pred_region
        %s222 = ssub.s32 %s16, 1
        // Predicated region
        $region13: #{tpu_custom_call.1} parent=11 // pred_check
          %p223 = pneg %p77
        $region14: #{tpu_custom_call.1} parent=11 // pred_check_branch
          %225 = sbr.rel (%p223) target = $region16
        $region15: #{tpu_custom_call.1} parent=11 // pred_region
          _
        $region16: #{tpu_custom_call.1} parent=11 // pred_fallthru
          _
        // Predicated region
        $region17: #{tpu_custom_call.1} parent=11 // pred_check
          %p226 = pneg %p98
        $region18: #{tpu_custom_call.1} parent=11 // pred_check_branch
          %228 = sbr.rel (%p226) target = $region20
        $region19: #{tpu_custom_call.1} parent=11 // pred_region
          _
        $region20: #{tpu_custom_call.1} parent=11 // pred_fallthru
          _
        // Predicated region
        $region21: #{tpu_custom_call.1} parent=11 // pred_check
          %p229 = pneg %p119
        $region22: #{tpu_custom_call.1} parent=11 // pred_check_branch
          %231 = sbr.rel (%p229) target = $region24
        $region23: #{tpu_custom_call.1} parent=11 // pred_region
          _
        $region24: #{tpu_custom_call.1} parent=11 // pred_fallthru
          _
        // Predicated region
        $region25: #{tpu_custom_call.1} parent=11 // pred_check
          %p232 = pneg %p140
        $region26: #{tpu_custom_call.1} parent=11 // pred_check_branch
          %234 = sbr.rel (%p232) target = $region28
        $region27: #{tpu_custom_call.1} parent=11 // pred_region
          _
        $region28: #{tpu_custom_call.1} parent=11 // pred_fallthru
          _
        // Predicated region
        $region29: #{tpu_custom_call.1} parent=11 // pred_check
          %p235 = pneg %p161
        $region30: #{tpu_custom_call.1} parent=11 // pred_check_branch
          %237 = sbr.rel (%p235) target = $region32
        $region31: #{tpu_custom_call.1} parent=11 // pred_region
          _
        $region32: #{tpu_custom_call.1} parent=11 // pred_fallthru
          _
        // Predicated region
        $region33: #{tpu_custom_call.1} parent=11 // pred_check
          %p238 = pneg %p182
        $region34: #{tpu_custom_call.1} parent=11 // pred_check_branch
          %240 = sbr.rel (%p238) target = $region36
        $region35: #{tpu_custom_call.1} parent=11 // pred_region
          _
        $region36: #{tpu_custom_call.1} parent=11 // pred_fallthru
          _
      $region12: #{tpu_custom_call.1} parent=5 // pred_fallthru
        _
      %p241 = scmp.lt.s32.totalorder %s16, 4
      // Predicated region
      $region37: #{tpu_custom_call.1} parent=5 // pred_check
        %p242 = pneg %p241
      $region38: #{tpu_custom_call.1} parent=5 // pred_check_branch
        %244 = sbr.rel (%p242) target = $region40
      $region39: #{tpu_custom_call.1} parent=5 // pred_region
        // Predicated region
        $region41: #{tpu_custom_call.1} parent=39 // pred_check
          %p245 = pneg %p50
        $region42: #{tpu_custom_call.1} parent=39 // pred_check_branch
          %247 = sbr.rel (%p245) target = $region44
        $region43: #{tpu_custom_call.1} parent=39 // pred_region
          %s248 = sand.u32 %s40, 1
          %s249 = sand.u32 %s40, 1
          %s250 = smul.addr %s249, 1024
          %s251 = scalar_lea.vmem [#allocation3], %s250
          %s252 = smul.u32 8, %s23
          %s253 = smul.u32 16, %s24
          %s254 = smul.addr %s252, 32
          %s255 = sadd.s32 %s253, %s254
          %s256 = smul.addr %s255, 8
          %s257 = scalar_lea.vmem %s0, %s256
          // Predicated region
          $region45: #{tpu_custom_call.1} parent=43 // pred_check
            _
          $region46: #{tpu_custom_call.1} parent=43 // pred_check_branch
            %259 = sbr.rel (0) target = $region48
          $region47: #{tpu_custom_call.1} parent=43 // pred_region
            // Predicated region
            $region49: #{tpu_custom_call.1} parent=47 // pred_check
              _
            $region50: #{tpu_custom_call.1} parent=47 // pred_check_branch
              %261 = sbr.rel (0) target = $region52
            $region51: #{tpu_custom_call.1} parent=47 // pred_region
              // Predicated region
              $region64: #{tpu_custom_call.1} parent=51 // pred_check
                _
              $region65: #{tpu_custom_call.1} parent=51 // pred_check_branch
                %531 = sbr.rel (0) target = $region67
              $region66: #{tpu_custom_call.1} parent=51 // pred_region
                loop: start=0, step=1, limit=1
                $region68: #{tpu_custom_call.1} parent=66 // loop_pre_header
                  _
                $region69: #{tpu_custom_call.1} parent=66 // loop_header
                  %s533 = sphi 0, %s537
                  %p534 = scmp.ge.s32.totalorder %s533, 1
                  %s538 = sphi %s257, %s257
                  %s539 = sphi %s251, %s251
                $region70: #{tpu_custom_call.1} parent=66 // loop_header_branch
                  %536 = sbr.rel (%p534) target = $region74
                $region71: #{tpu_custom_call.1} parent=66 // loop_body
                  %v540 = vld [vmem:[%s538] sm:$0xff]
                  %541 = vst [vmem:[%s539] sm:$0xff] %v540
                  %v542 = vld [vmem:[%s538 + $0x8] sm:$0xff]
                  %543 = vst [vmem:[%s539 + $0x8] sm:$0xff] %v542
                  %v544 = vld [vmem:[%s538 + $0x10] sm:$0xff]
                  %545 = vst [vmem:[%s539 + $0x10] sm:$0xff] %v544
                  %v546 = vld [vmem:[%s538 + $0x18] sm:$0xff]
                  %547 = vst [vmem:[%s539 + $0x18] sm:$0xff] %v546
                  %v548 = vld [vmem:[%s538 + $0x20] sm:$0xff]
                  %549 = vst [vmem:[%s539 + $0x20] sm:$0xff] %v548
                  %v550 = vld [vmem:[%s538 + $0x28] sm:$0xff]
                  %551 = vst [vmem:[%s539 + $0x28] sm:$0xff] %v550
                  %v552 = vld [vmem:[%s538 + $0x30] sm:$0xff]
                  %553 = vst [vmem:[%s539 + $0x30] sm:$0xff] %v552
                  %v554 = vld [vmem:[%s538 + $0x38] sm:$0xff]
                  %555 = vst [vmem:[%s539 + $0x38] sm:$0xff] %v554
                  %v556 = vld [vmem:[%s538 + $0x40] sm:$0xff]
                  %557 = vst [vmem:[%s539 + $0x40] sm:$0xff] %v556
                  %v558 = vld [vmem:[%s538 + $0x48] sm:$0xff]
                  %559 = vst [vmem:[%s539 + $0x48] sm:$0xff] %v558
                  %v560 = vld [vmem:[%s538 + $0x50] sm:$0xff]
                  %561 = vst [vmem:[%s539 + $0x50] sm:$0xff] %v560
                  %v562 = vld [vmem:[%s538 + $0x58] sm:$0xff]
                  %563 = vst [vmem:[%s539 + $0x58] sm:$0xff] %v562
                  %v564 = vld [vmem:[%s538 + $0x60] sm:$0xff]
                  %565 = vst [vmem:[%s539 + $0x60] sm:$0xff] %v564
                  %v566 = vld [vmem:[%s538 + $0x68] sm:$0xff]
                  %567 = vst [vmem:[%s539 + $0x68] sm:$0xff] %v566
                  %v568 = vld [vmem:[%s538 + $0x70] sm:$0xff]
                  %569 = vst [vmem:[%s539 + $0x70] sm:$0xff] %v568
                  %v570 = vld [vmem:[%s538 + $0x78] sm:$0xff]
                  %571 = vst [vmem:[%s539 + $0x78] sm:$0xff] %v570
                  %v572 = vld [vmem:[%s538 + $0x100] sm:$0xff]
                  %573 = vst [vmem:[%s539 + $0x80] sm:$0xff] %v572
                  %v574 = vld [vmem:[%s538 + $0x108] sm:$0xff]
                  %575 = vst [vmem:[%s539 + $0x88] sm:$0xff] %v574
                  %v576 = vld [vmem:[%s538 + $0x110] sm:$0xff]
                  %577 = vst [vmem:[%s539 + $0x90] sm:$0xff] %v576
                  %v578 = vld [vmem:[%s538 + $0x118] sm:$0xff]
                  %579 = vst [vmem:[%s539 + $0x98] sm:$0xff] %v578
                  %v580 = vld [vmem:[%s538 + $0x120] sm:$0xff]
                  %581 = vst [vmem:[%s539 + $0xa0] sm:$0xff] %v580
                  %v582 = vld [vmem:[%s538 + $0x128] sm:$0xff]
                  %583 = vst [vmem:[%s539 + $0xa8] sm:$0xff] %v582
                  %v584 = vld [vmem:[%s538 + $0x130] sm:$0xff]
                  %585 = vst [vmem:[%s539 + $0xb0] sm:$0xff] %v584
                  %v586 = vld [vmem:[%s538 + $0x138] sm:$0xff]
                  %587 = vst [vmem:[%s539 + $0xb8] sm:$0xff] %v586
                  %v588 = vld [vmem:[%s538 + $0x140] sm:$0xff]
                  %589 = vst [vmem:[%s539 + $0xc0] sm:$0xff] %v588
                  %v590 = vld [vmem:[%s538 + $0x148] sm:$0xff]
                  %591 = vst [vmem:[%s539 + $0xc8] sm:$0xff] %v590
                  %v592 = vld [vmem:[%s538 + $0x150] sm:$0xff]
                  %593 = vst [vmem:[%s539 + $0xd0] sm:$0xff] %v592
                  %v594 = vld [vmem:[%s538 + $0x158] sm:$0xff]
                  %595 = vst [vmem:[%s539 + $0xd8] sm:$0xff] %v594
                  %v596 = vld [vmem:[%s538 + $0x160] sm:$0xff]
                  %597 = vst [vmem:[%s539 + $0xe0] sm:$0xff] %v596
                  %v598 = vld [vmem:[%s538 + $0x168] sm:$0xff]
                  %599 = vst [vmem:[%s539 + $0xe8] sm:$0xff] %v598
                  %v600 = vld [vmem:[%s538 + $0x170] sm:$0xff]
                  %601 = vst [vmem:[%s539 + $0xf0] sm:$0xff] %v600
                  %v602 = vld [vmem:[%s538 + $0x178] sm:$0xff]
                  %603 = vst [vmem:[%s539 + $0xf8] sm:$0xff] %v602
                  %v604 = vld [vmem:[%s538 + $0x200] sm:$0xff]
                  %605 = vst [vmem:[%s539 + $0x100] sm:$0xff] %v604
                  %v606 = vld [vmem:[%s538 + $0x208] sm:$0xff]
                  %607 = vst [vmem:[%s539 + $0x108] sm:$0xff] %v606
                  %v608 = vld [vmem:[%s538 + $0x210] sm:$0xff]
                  %609 = vst [vmem:[%s539 + $0x110] sm:$0xff] %v608
                  %v610 = vld [vmem:[%s538 + $0x218] sm:$0xff]
                  %611 = vst [vmem:[%s539 + $0x118] sm:$0xff] %v610
                  %v612 = vld [vmem:[%s538 + $0x220] sm:$0xff]
                  %613 = vst [vmem:[%s539 + $0x120] sm:$0xff] %v612
                  %v614 = vld [vmem:[%s538 + $0x228] sm:$0xff]
                  %615 = vst [vmem:[%s539 + $0x128] sm:$0xff] %v614
                  %v616 = vld [vmem:[%s538 + $0x230] sm:$0xff]
                  %617 = vst [vmem:[%s539 + $0x130] sm:$0xff] %v616
                  %v618 = vld [vmem:[%s538 + $0x238] sm:$0xff]
                  %619 = vst [vmem:[%s539 + $0x138] sm:$0xff] %v618
                  %v620 = vld [vmem:[%s538 + $0x240] sm:$0xff]
                  %621 = vst [vmem:[%s539 + $0x140] sm:$0xff] %v620
                  %v622 = vld [vmem:[%s538 + $0x248] sm:$0xff]
                  %623 = vst [vmem:[%s539 + $0x148] sm:$0xff] %v622
                  %v624 = vld [vmem:[%s538 + $0x250] sm:$0xff]
                  %625 = vst [vmem:[%s539 + $0x150] sm:$0xff] %v624
                  %v626 = vld [vmem:[%s538 + $0x258] sm:$0xff]
                  %627 = vst [vmem:[%s539 + $0x158] sm:$0xff] %v626
                  %v628 = vld [vmem:[%s538 + $0x260] sm:$0xff]
                  %629 = vst [vmem:[%s539 + $0x160] sm:$0xff] %v628
                  %v630 = vld [vmem:[%s538 + $0x268] sm:$0xff]
                  %631 = vst [vmem:[%s539 + $0x168] sm:$0xff] %v630
                  %v632 = vld [vmem:[%s538 + $0x270] sm:$0xff]
                  %633 = vst [vmem:[%s539 + $0x170] sm:$0xff] %v632
                  %v634 = vld [vmem:[%s538 + $0x278] sm:$0xff]
                  %635 = vst [vmem:[%s539 + $0x178] sm:$0xff] %v634
                  %v636 = vld [vmem:[%s538 + $0x300] sm:$0xff]
                  %637 = vst [vmem:[%s539 + $0x180] sm:$0xff] %v636
                  %v638 = vld [vmem:[%s538 + $0x308] sm:$0xff]
                  %639 = vst [vmem:[%s539 + $0x188] sm:$0xff] %v638
                  %v640 = vld [vmem:[%s538 + $0x310] sm:$0xff]
                  %641 = vst [vmem:[%s539 + $0x190] sm:$0xff] %v640
                  %v642 = vld [vmem:[%s538 + $0x318] sm:$0xff]
                  %643 = vst [vmem:[%s539 + $0x198] sm:$0xff] %v642
                  %v644 = vld [vmem:[%s538 + $0x320] sm:$0xff]
                  %645 = vst [vmem:[%s539 + $0x1a0] sm:$0xff] %v644
                  %v646 = vld [vmem:[%s538 + $0x328] sm:$0xff]
                  %647 = vst [vmem:[%s539 + $0x1a8] sm:$0xff] %v646
                  %v648 = vld [vmem:[%s538 + $0x330] sm:$0xff]
                  %649 = vst [vmem:[%s539 + $0x1b0] sm:$0xff] %v648
                  %v650 = vld [vmem:[%s538 + $0x338] sm:$0xff]
                  %651 = vst [vmem:[%s539 + $0x1b8] sm:$0xff] %v650
                  %v652 = vld [vmem:[%s538 + $0x340] sm:$0xff]
                  %653 = vst [vmem:[%s539 + $0x1c0] sm:$0xff] %v652
                  %v654 = vld [vmem:[%s538 + $0x348] sm:$0xff]
                  %655 = vst [vmem:[%s539 + $0x1c8] sm:$0xff] %v654
                  %v656 = vld [vmem:[%s538 + $0x350] sm:$0xff]
                  %657 = vst [vmem:[%s539 + $0x1d0] sm:$0xff] %v656
                  %v658 = vld [vmem:[%s538 + $0x358] sm:$0xff]
                  %659 = vst [vmem:[%s539 + $0x1d8] sm:$0xff] %v658
                  %v660 = vld [vmem:[%s538 + $0x360] sm:$0xff]
                  %661 = vst [vmem:[%s539 + $0x1e0] sm:$0xff] %v660
                  %v662 = vld [vmem:[%s538 + $0x368] sm:$0xff]
                  %663 = vst [vmem:[%s539 + $0x1e8] sm:$0xff] %v662
                  %v664 = vld [vmem:[%s538 + $0x370] sm:$0xff]
                  %665 = vst [vmem:[%s539 + $0x1f0] sm:$0xff] %v664
                  %v666 = vld [vmem:[%s538 + $0x378] sm:$0xff]
                  %667 = vst [vmem:[%s539 + $0x1f8] sm:$0xff] %v666
                  %v668 = vld [vmem:[%s538 + $0x400] sm:$0xff]
                  %669 = vst [vmem:[%s539 + $0x200] sm:$0xff] %v668
                  %v670 = vld [vmem:[%s538 + $0x408] sm:$0xff]
                  %671 = vst [vmem:[%s539 + $0x208] sm:$0xff] %v670
                  %v672 = vld [vmem:[%s538 + $0x410] sm:$0xff]
                  %673 = vst [vmem:[%s539 + $0x210] sm:$0xff] %v672
                  %v674 = vld [vmem:[%s538 + $0x418] sm:$0xff]
                  %675 = vst [vmem:[%s539 + $0x218] sm:$0xff] %v674
                  %v676 = vld [vmem:[%s538 + $0x420] sm:$0xff]
                  %677 = vst [vmem:[%s539 + $0x220] sm:$0xff] %v676
                  %v678 = vld [vmem:[%s538 + $0x428] sm:$0xff]
                  %679 = vst [vmem:[%s539 + $0x228] sm:$0xff] %v678
                  %v680 = vld [vmem:[%s538 + $0x430] sm:$0xff]
                  %681 = vst [vmem:[%s539 + $0x230] sm:$0xff] %v680
                  %v682 = vld [vmem:[%s538 + $0x438] sm:$0xff]
                  %683 = vst [vmem:[%s539 + $0x238] sm:$0xff] %v682
                  %v684 = vld [vmem:[%s538 + $0x440] sm:$0xff]
                  %685 = vst [vmem:[%s539 + $0x240] sm:$0xff] %v684
                  %v686 = vld [vmem:[%s538 + $0x448] sm:$0xff]
                  %687 = vst [vmem:[%s539 + $0x248] sm:$0xff] %v686
                  %v688 = vld [vmem:[%s538 + $0x450] sm:$0xff]
                  %689 = vst [vmem:[%s539 + $0x250] sm:$0xff] %v688
                  %v690 = vld [vmem:[%s538 + $0x458] sm:$0xff]
                  %691 = vst [vmem:[%s539 + $0x258] sm:$0xff] %v690
                  %v692 = vld [vmem:[%s538 + $0x460] sm:$0xff]
                  %693 = vst [vmem:[%s539 + $0x260] sm:$0xff] %v692
                  %v694 = vld [vmem:[%s538 + $0x468] sm:$0xff]
                  %695 = vst [vmem:[%s539 + $0x268] sm:$0xff] %v694
                  %v696 = vld [vmem:[%s538 + $0x470] sm:$0xff]
                  %697 = vst [vmem:[%s539 + $0x270] sm:$0xff] %v696
                  %v698 = vld [vmem:[%s538 + $0x478] sm:$0xff]
                  %699 = vst [vmem:[%s539 + $0x278] sm:$0xff] %v698
                  %v700 = vld [vmem:[%s538 + $0x500] sm:$0xff]
                  %701 = vst [vmem:[%s539 + $0x280] sm:$0xff] %v700
                  %v702 = vld [vmem:[%s538 + $0x508] sm:$0xff]
                  %703 = vst [vmem:[%s539 + $0x288] sm:$0xff] %v702
                  %v704 = vld [vmem:[%s538 + $0x510] sm:$0xff]
                  %705 = vst [vmem:[%s539 + $0x290] sm:$0xff] %v704
                  %v706 = vld [vmem:[%s538 + $0x518] sm:$0xff]
                  %707 = vst [vmem:[%s539 + $0x298] sm:$0xff] %v706
                  %v708 = vld [vmem:[%s538 + $0x520] sm:$0xff]
                  %709 = vst [vmem:[%s539 + $0x2a0] sm:$0xff] %v708
                  %v710 = vld [vmem:[%s538 + $0x528] sm:$0xff]
                  %711 = vst [vmem:[%s539 + $0x2a8] sm:$0xff] %v710
                  %v712 = vld [vmem:[%s538 + $0x530] sm:$0xff]
                  %713 = vst [vmem:[%s539 + $0x2b0] sm:$0xff] %v712
                  %v714 = vld [vmem:[%s538 + $0x538] sm:$0xff]
                  %715 = vst [vmem:[%s539 + $0x2b8] sm:$0xff] %v714
                  %v716 = vld [vmem:[%s538 + $0x540] sm:$0xff]
                  %717 = vst [vmem:[%s539 + $0x2c0] sm:$0xff] %v716
                  %v718 = vld [vmem:[%s538 + $0x548] sm:$0xff]
                  %719 = vst [vmem:[%s539 + $0x2c8] sm:$0xff] %v718
                  %v720 = vld [vmem:[%s538 + $0x550] sm:$0xff]
                  %721 = vst [vmem:[%s539 + $0x2d0] sm:$0xff] %v720
                  %v722 = vld [vmem:[%s538 + $0x558] sm:$0xff]
                  %723 = vst [vmem:[%s539 + $0x2d8] sm:$0xff] %v722
                  %v724 = vld [vmem:[%s538 + $0x560] sm:$0xff]
                  %725 = vst [vmem:[%s539 + $0x2e0] sm:$0xff] %v724
                  %v726 = vld [vmem:[%s538 + $0x568] sm:$0xff]
                  %727 = vst [vmem:[%s539 + $0x2e8] sm:$0xff] %v726
                  %v728 = vld [vmem:[%s538 + $0x570] sm:$0xff]
                  %729 = vst [vmem:[%s539 + $0x2f0] sm:$0xff] %v728
                  %v730 = vld [vmem:[%s538 + $0x578] sm:$0xff]
                  %731 = vst [vmem:[%s539 + $0x2f8] sm:$0xff] %v730
                  %v732 = vld [vmem:[%s538 + $0x600] sm:$0xff]
                  %733 = vst [vmem:[%s539 + $0x300] sm:$0xff] %v732
                  %v734 = vld [vmem:[%s538 + $0x608] sm:$0xff]
                  %735 = vst [vmem:[%s539 + $0x308] sm:$0xff] %v734
                  %v736 = vld [vmem:[%s538 + $0x610] sm:$0xff]
                  %737 = vst [vmem:[%s539 + $0x310] sm:$0xff] %v736
                  %v738 = vld [vmem:[%s538 + $0x618] sm:$0xff]
                  %739 = vst [vmem:[%s539 + $0x318] sm:$0xff] %v738
                  %v740 = vld [vmem:[%s538 + $0x620] sm:$0xff]
                  %741 = vst [vmem:[%s539 + $0x320] sm:$0xff] %v740
                  %v742 = vld [vmem:[%s538 + $0x628] sm:$0xff]
                  %743 = vst [vmem:[%s539 + $0x328] sm:$0xff] %v742
                  %v744 = vld [vmem:[%s538 + $0x630] sm:$0xff]
                  %745 = vst [vmem:[%s539 + $0x330] sm:$0xff] %v744
                  %v746 = vld [vmem:[%s538 + $0x638] sm:$0xff]
                  %747 = vst [vmem:[%s539 + $0x338] sm:$0xff] %v746
                  %v748 = vld [vmem:[%s538 + $0x640] sm:$0xff]
                  %749 = vst [vmem:[%s539 + $0x340] sm:$0xff] %v748
                  %v750 = vld [vmem:[%s538 + $0x648] sm:$0xff]
                  %751 = vst [vmem:[%s539 + $0x348] sm:$0xff] %v750
                  %v752 = vld [vmem:[%s538 + $0x650] sm:$0xff]
                  %753 = vst [vmem:[%s539 + $0x350] sm:$0xff] %v752
                  %v754 = vld [vmem:[%s538 + $0x658] sm:$0xff]
                  %755 = vst [vmem:[%s539 + $0x358] sm:$0xff] %v754
                  %v756 = vld [vmem:[%s538 + $0x660] sm:$0xff]
                  %757 = vst [vmem:[%s539 + $0x360] sm:$0xff] %v756
                  %v758 = vld [vmem:[%s538 + $0x668] sm:$0xff]
                  %759 = vst [vmem:[%s539 + $0x368] sm:$0xff] %v758
                  %v760 = vld [vmem:[%s538 + $0x670] sm:$0xff]
                  %761 = vst [vmem:[%s539 + $0x370] sm:$0xff] %v760
                  %v762 = vld [vmem:[%s538 + $0x678] sm:$0xff]
                  %763 = vst [vmem:[%s539 + $0x378] sm:$0xff] %v762
                  %v764 = vld [vmem:[%s538 + $0x700] sm:$0xff]
                  %765 = vst [vmem:[%s539 + $0x380] sm:$0xff] %v764
                  %v766 = vld [vmem:[%s538 + $0x708] sm:$0xff]
                  %767 = vst [vmem:[%s539 + $0x388] sm:$0xff] %v766
                  %v768 = vld [vmem:[%s538 + $0x710] sm:$0xff]
                  %769 = vst [vmem:[%s539 + $0x390] sm:$0xff] %v768
                  %v770 = vld [vmem:[%s538 + $0x718] sm:$0xff]
                  %771 = vst [vmem:[%s539 + $0x398] sm:$0xff] %v770
                  %v772 = vld [vmem:[%s538 + $0x720] sm:$0xff]
                  %773 = vst [vmem:[%s539 + $0x3a0] sm:$0xff] %v772
                  %v774 = vld [vmem:[%s538 + $0x728] sm:$0xff]
                  %775 = vst [vmem:[%s539 + $0x3a8] sm:$0xff] %v774
                  %v776 = vld [vmem:[%s538 + $0x730] sm:$0xff]
                  %777 = vst [vmem:[%s539 + $0x3b0] sm:$0xff] %v776
                  %v778 = vld [vmem:[%s538 + $0x738] sm:$0xff]
                  %779 = vst [vmem:[%s539 + $0x3b8] sm:$0xff] %v778
                  %v780 = vld [vmem:[%s538 + $0x740] sm:$0xff]
                  %781 = vst [vmem:[%s539 + $0x3c0] sm:$0xff] %v780
                  %v782 = vld [vmem:[%s538 + $0x748] sm:$0xff]
                  %783 = vst [vmem:[%s539 + $0x3c8] sm:$0xff] %v782
                  %v784 = vld [vmem:[%s538 + $0x750] sm:$0xff]
                  %785 = vst [vmem:[%s539 + $0x3d0] sm:$0xff] %v784
                  %v786 = vld [vmem:[%s538 + $0x758] sm:$0xff]
                  %787 = vst [vmem:[%s539 + $0x3d8] sm:$0xff] %v786
                  %v788 = vld [vmem:[%s538 + $0x760] sm:$0xff]
                  %789 = vst [vmem:[%s539 + $0x3e0] sm:$0xff] %v788
                  %v790 = vld [vmem:[%s538 + $0x768] sm:$0xff]
                  %791 = vst [vmem:[%s539 + $0x3e8] sm:$0xff] %v790
                  %v792 = vld [vmem:[%s538 + $0x770] sm:$0xff]
                  %793 = vst [vmem:[%s539 + $0x3f0] sm:$0xff] %v792
                  %v794 = vld [vmem:[%s538 + $0x778] sm:$0xff]
                  %795 = vst [vmem:[%s539 + $0x3f8] sm:$0xff] %v794
                $region72: #{tpu_custom_call.1} parent=66 // loop_footer
                  %s537 = sadd.s32 1, %s533
                $region73: #{tpu_custom_call.1} parent=66 // loop_footer_branch
                  %532 = sbr.rel target = $region69
                $region74: #{tpu_custom_call.1} parent=66 // loop_exit
                  _
              $region67: #{tpu_custom_call.1} parent=51 // pred_fallthru
                _
              // Predicated region
              $region75: #{tpu_custom_call.1} parent=51 // pred_check
                _
              $region76: #{tpu_custom_call.1} parent=51 // pred_check_branch
                %797 = sbr.rel target = $region78
              $region77: #{tpu_custom_call.1} parent=51 // pred_region
                _
              $region78: #{tpu_custom_call.1} parent=51 // pred_fallthru
                _
            $region52: #{tpu_custom_call.1} parent=47 // pred_fallthru
              _
            // Predicated region
            $region53: #{tpu_custom_call.1} parent=47 // pred_check
              _
            $region54: #{tpu_custom_call.1} parent=47 // pred_check_branch
              %263 = sbr.rel target = $region56
            $region55: #{tpu_custom_call.1} parent=47 // pred_region
              %s265 = ssub.s32 256, 1
              loop: start=0, step=1, limit=1
              $region57: #{tpu_custom_call.1} parent=55 // loop_pre_header
                _
              $region58: #{tpu_custom_call.1} parent=55 // loop_header
                %s267 = sphi 0, %s271
                %p268 = scmp.ge.s32.totalorder %s267, 1
                %s272 = sphi %s257, %s257
                %s273 = sphi %s251, %s251
              $region59: #{tpu_custom_call.1} parent=55 // loop_header_branch
                %270 = sbr.rel (%p268) target = $region63
              $region60: #{tpu_custom_call.1} parent=55 // loop_body
                %v274 = vld [vmem:[%s272] sm:%s265]
                %275 = vst [vmem:[%s273] sm:%s265] %v274
                %v276 = vld [vmem:[%s272 + $0x8] sm:%s265]
                %277 = vst [vmem:[%s273 + $0x8] sm:%s265] %v276
                %v278 = vld [vmem:[%s272 + $0x10] sm:%s265]
                %279 = vst [vmem:[%s273 + $0x10] sm:%s265] %v278
                %v280 = vld [vmem:[%s272 + $0x18] sm:%s265]
                %281 = vst [vmem:[%s273 + $0x18] sm:%s265] %v280
                %v282 = vld [vmem:[%s272 + $0x20] sm:%s265]
                %283 = vst [vmem:[%s273 + $0x20] sm:%s265] %v282
                %v284 = vld [vmem:[%s272 + $0x28] sm:%s265]
                %285 = vst [vmem:[%s273 + $0x28] sm:%s265] %v284
                %v286 = vld [vmem:[%s272 + $0x30] sm:%s265]
                %287 = vst [vmem:[%s273 + $0x30] sm:%s265] %v286
                %v288 = vld [vmem:[%s272 + $0x38] sm:%s265]
                %289 = vst [vmem:[%s273 + $0x38] sm:%s265] %v288
                %v290 = vld [vmem:[%s272 + $0x40] sm:%s265]
                %291 = vst [vmem:[%s273 + $0x40] sm:%s265] %v290
                %v292 = vld [vmem:[%s272 + $0x48] sm:%s265]
                %293 = vst [vmem:[%s273 + $0x48] sm:%s265] %v292
                %v294 = vld [vmem:[%s272 + $0x50] sm:%s265]
                %295 = vst [vmem:[%s273 + $0x50] sm:%s265] %v294
                %v296 = vld [vmem:[%s272 + $0x58] sm:%s265]
                %297 = vst [vmem:[%s273 + $0x58] sm:%s265] %v296
                %v298 = vld [vmem:[%s272 + $0x60] sm:%s265]
                %299 = vst [vmem:[%s273 + $0x60] sm:%s265] %v298
                %v300 = vld [vmem:[%s272 + $0x68] sm:%s265]
                %301 = vst [vmem:[%s273 + $0x68] sm:%s265] %v300
                %v302 = vld [vmem:[%s272 + $0x70] sm:%s265]
                %303 = vst [vmem:[%s273 + $0x70] sm:%s265] %v302
                %v304 = vld [vmem:[%s272 + $0x78] sm:%s265]
                %305 = vst [vmem:[%s273 + $0x78] sm:%s265] %v304
                %v306 = vld [vmem:[%s272 + $0x100] sm:%s265]
                %307 = vst [vmem:[%s273 + $0x80] sm:%s265] %v306
                %v308 = vld [vmem:[%s272 + $0x108] sm:%s265]
                %309 = vst [vmem:[%s273 + $0x88] sm:%s265] %v308
                %v310 = vld [vmem:[%s272 + $0x110] sm:%s265]
                %311 = vst [vmem:[%s273 + $0x90] sm:%s265] %v310
                %v312 = vld [vmem:[%s272 + $0x118] sm:%s265]
                %313 = vst [vmem:[%s273 + $0x98] sm:%s265] %v312
                %v314 = vld [vmem:[%s272 + $0x120] sm:%s265]
                %315 = vst [vmem:[%s273 + $0xa0] sm:%s265] %v314
                %v316 = vld [vmem:[%s272 + $0x128] sm:%s265]
                %317 = vst [vmem:[%s273 + $0xa8] sm:%s265] %v316
                %v318 = vld [vmem:[%s272 + $0x130] sm:%s265]
                %319 = vst [vmem:[%s273 + $0xb0] sm:%s265] %v318
                %v320 = vld [vmem:[%s272 + $0x138] sm:%s265]
                %321 = vst [vmem:[%s273 + $0xb8] sm:%s265] %v320
                %v322 = vld [vmem:[%s272 + $0x140] sm:%s265]
                %323 = vst [vmem:[%s273 + $0xc0] sm:%s265] %v322
                %v324 = vld [vmem:[%s272 + $0x148] sm:%s265]
                %325 = vst [vmem:[%s273 + $0xc8] sm:%s265] %v324
                %v326 = vld [vmem:[%s272 + $0x150] sm:%s265]
                %327 = vst [vmem:[%s273 + $0xd0] sm:%s265] %v326
                %v328 = vld [vmem:[%s272 + $0x158] sm:%s265]
                %329 = vst [vmem:[%s273 + $0xd8] sm:%s265] %v328
                %v330 = vld [vmem:[%s272 + $0x160] sm:%s265]
                %331 = vst [vmem:[%s273 + $0xe0] sm:%s265] %v330
                %v332 = vld [vmem:[%s272 + $0x168] sm:%s265]
                %333 = vst [vmem:[%s273 + $0xe8] sm:%s265] %v332
                %v334 = vld [vmem:[%s272 + $0x170] sm:%s265]
                %335 = vst [vmem:[%s273 + $0xf0] sm:%s265] %v334
                %v336 = vld [vmem:[%s272 + $0x178] sm:%s265]
                %337 = vst [vmem:[%s273 + $0xf8] sm:%s265] %v336
                %v338 = vld [vmem:[%s272 + $0x200] sm:%s265]
                %339 = vst [vmem:[%s273 + $0x100] sm:%s265] %v338
                %v340 = vld [vmem:[%s272 + $0x208] sm:%s265]
                %341 = vst [vmem:[%s273 + $0x108] sm:%s265] %v340
                %v342 = vld [vmem:[%s272 + $0x210] sm:%s265]
                %343 = vst [vmem:[%s273 + $0x110] sm:%s265] %v342
                %v344 = vld [vmem:[%s272 + $0x218] sm:%s265]
                %345 = vst [vmem:[%s273 + $0x118] sm:%s265] %v344
                %v346 = vld [vmem:[%s272 + $0x220] sm:%s265]
                %347 = vst [vmem:[%s273 + $0x120] sm:%s265] %v346
                %v348 = vld [vmem:[%s272 + $0x228] sm:%s265]
                %349 = vst [vmem:[%s273 + $0x128] sm:%s265] %v348
                %v350 = vld [vmem:[%s272 + $0x230] sm:%s265]
                %351 = vst [vmem:[%s273 + $0x130] sm:%s265] %v350
                %v352 = vld [vmem:[%s272 + $0x238] sm:%s265]
                %353 = vst [vmem:[%s273 + $0x138] sm:%s265] %v352
                %v354 = vld [vmem:[%s272 + $0x240] sm:%s265]
                %355 = vst [vmem:[%s273 + $0x140] sm:%s265] %v354
                %v356 = vld [vmem:[%s272 + $0x248] sm:%s265]
                %357 = vst [vmem:[%s273 + $0x148] sm:%s265] %v356
                %v358 = vld [vmem:[%s272 + $0x250] sm:%s265]
                %359 = vst [vmem:[%s273 + $0x150] sm:%s265] %v358
                %v360 = vld [vmem:[%s272 + $0x258] sm:%s265]
                %361 = vst [vmem:[%s273 + $0x158] sm:%s265] %v360
                %v362 = vld [vmem:[%s272 + $0x260] sm:%s265]
                %363 = vst [vmem:[%s273 + $0x160] sm:%s265] %v362
                %v364 = vld [vmem:[%s272 + $0x268] sm:%s265]
                %365 = vst [vmem:[%s273 + $0x168] sm:%s265] %v364
                %v366 = vld [vmem:[%s272 + $0x270] sm:%s265]
                %367 = vst [vmem:[%s273 + $0x170] sm:%s265] %v366
                %v368 = vld [vmem:[%s272 + $0x278] sm:%s265]
                %369 = vst [vmem:[%s273 + $0x178] sm:%s265] %v368
                %v370 = vld [vmem:[%s272 + $0x300] sm:%s265]
                %371 = vst [vmem:[%s273 + $0x180] sm:%s265] %v370
                %v372 = vld [vmem:[%s272 + $0x308] sm:%s265]
                %373 = vst [vmem:[%s273 + $0x188] sm:%s265] %v372
                %v374 = vld [vmem:[%s272 + $0x310] sm:%s265]
                %375 = vst [vmem:[%s273 + $0x190] sm:%s265] %v374
                %v376 = vld [vmem:[%s272 + $0x318] sm:%s265]
                %377 = vst [vmem:[%s273 + $0x198] sm:%s265] %v376
                %v378 = vld [vmem:[%s272 + $0x320] sm:%s265]
                %379 = vst [vmem:[%s273 + $0x1a0] sm:%s265] %v378
                %v380 = vld [vmem:[%s272 + $0x328] sm:%s265]
                %381 = vst [vmem:[%s273 + $0x1a8] sm:%s265] %v380
                %v382 = vld [vmem:[%s272 + $0x330] sm:%s265]
                %383 = vst [vmem:[%s273 + $0x1b0] sm:%s265] %v382
                %v384 = vld [vmem:[%s272 + $0x338] sm:%s265]
                %385 = vst [vmem:[%s273 + $0x1b8] sm:%s265] %v384
                %v386 = vld [vmem:[%s272 + $0x340] sm:%s265]
                %387 = vst [vmem:[%s273 + $0x1c0] sm:%s265] %v386
                %v388 = vld [vmem:[%s272 + $0x348] sm:%s265]
                %389 = vst [vmem:[%s273 + $0x1c8] sm:%s265] %v388
                %v390 = vld [vmem:[%s272 + $0x350] sm:%s265]
                %391 = vst [vmem:[%s273 + $0x1d0] sm:%s265] %v390
                %v392 = vld [vmem:[%s272 + $0x358] sm:%s265]
                %393 = vst [vmem:[%s273 + $0x1d8] sm:%s265] %v392
                %v394 = vld [vmem:[%s272 + $0x360] sm:%s265]
                %395 = vst [vmem:[%s273 + $0x1e0] sm:%s265] %v394
                %v396 = vld [vmem:[%s272 + $0x368] sm:%s265]
                %397 = vst [vmem:[%s273 + $0x1e8] sm:%s265] %v396
                %v398 = vld [vmem:[%s272 + $0x370] sm:%s265]
                %399 = vst [vmem:[%s273 + $0x1f0] sm:%s265] %v398
                %v400 = vld [vmem:[%s272 + $0x378] sm:%s265]
                %401 = vst [vmem:[%s273 + $0x1f8] sm:%s265] %v400
                %v402 = vld [vmem:[%s272 + $0x400] sm:%s265]
                %403 = vst [vmem:[%s273 + $0x200] sm:%s265] %v402
                %v404 = vld [vmem:[%s272 + $0x408] sm:%s265]
                %405 = vst [vmem:[%s273 + $0x208] sm:%s265] %v404
                %v406 = vld [vmem:[%s272 + $0x410] sm:%s265]
                %407 = vst [vmem:[%s273 + $0x210] sm:%s265] %v406
                %v408 = vld [vmem:[%s272 + $0x418] sm:%s265]
                %409 = vst [vmem:[%s273 + $0x218] sm:%s265] %v408
                %v410 = vld [vmem:[%s272 + $0x420] sm:%s265]
                %411 = vst [vmem:[%s273 + $0x220] sm:%s265] %v410
                %v412 = vld [vmem:[%s272 + $0x428] sm:%s265]
                %413 = vst [vmem:[%s273 + $0x228] sm:%s265] %v412
                %v414 = vld [vmem:[%s272 + $0x430] sm:%s265]
                %415 = vst [vmem:[%s273 + $0x230] sm:%s265] %v414
                %v416 = vld [vmem:[%s272 + $0x438] sm:%s265]
                %417 = vst [vmem:[%s273 + $0x238] sm:%s265] %v416
                %v418 = vld [vmem:[%s272 + $0x440] sm:%s265]
                %419 = vst [vmem:[%s273 + $0x240] sm:%s265] %v418
                %v420 = vld [vmem:[%s272 + $0x448] sm:%s265]
                %421 = vst [vmem:[%s273 + $0x248] sm:%s265] %v420
                %v422 = vld [vmem:[%s272 + $0x450] sm:%s265]
                %423 = vst [vmem:[%s273 + $0x250] sm:%s265] %v422
                %v424 = vld [vmem:[%s272 + $0x458] sm:%s265]
                %425 = vst [vmem:[%s273 + $0x258] sm:%s265] %v424
                %v426 = vld [vmem:[%s272 + $0x460] sm:%s265]
                %427 = vst [vmem:[%s273 + $0x260] sm:%s265] %v426
                %v428 = vld [vmem:[%s272 + $0x468] sm:%s265]
                %429 = vst [vmem:[%s273 + $0x268] sm:%s265] %v428
                %v430 = vld [vmem:[%s272 + $0x470] sm:%s265]
                %431 = vst [vmem:[%s273 + $0x270] sm:%s265] %v430
                %v432 = vld [vmem:[%s272 + $0x478] sm:%s265]
                %433 = vst [vmem:[%s273 + $0x278] sm:%s265] %v432
                %v434 = vld [vmem:[%s272 + $0x500] sm:%s265]
                %435 = vst [vmem:[%s273 + $0x280] sm:%s265] %v434
                %v436 = vld [vmem:[%s272 + $0x508] sm:%s265]
                %437 = vst [vmem:[%s273 + $0x288] sm:%s265] %v436
                %v438 = vld [vmem:[%s272 + $0x510] sm:%s265]
                %439 = vst [vmem:[%s273 + $0x290] sm:%s265] %v438
                %v440 = vld [vmem:[%s272 + $0x518] sm:%s265]
                %441 = vst [vmem:[%s273 + $0x298] sm:%s265] %v440
                %v442 = vld [vmem:[%s272 + $0x520] sm:%s265]
                %443 = vst [vmem:[%s273 + $0x2a0] sm:%s265] %v442
                %v444 = vld [vmem:[%s272 + $0x528] sm:%s265]
                %445 = vst [vmem:[%s273 + $0x2a8] sm:%s265] %v444
                %v446 = vld [vmem:[%s272 + $0x530] sm:%s265]
                %447 = vst [vmem:[%s273 + $0x2b0] sm:%s265] %v446
                %v448 = vld [vmem:[%s272 + $0x538] sm:%s265]
                %449 = vst [vmem:[%s273 + $0x2b8] sm:%s265] %v448
                %v450 = vld [vmem:[%s272 + $0x540] sm:%s265]
                %451 = vst [vmem:[%s273 + $0x2c0] sm:%s265] %v450
                %v452 = vld [vmem:[%s272 + $0x548] sm:%s265]
                %453 = vst [vmem:[%s273 + $0x2c8] sm:%s265] %v452
                %v454 = vld [vmem:[%s272 + $0x550] sm:%s265]
                %455 = vst [vmem:[%s273 + $0x2d0] sm:%s265] %v454
                %v456 = vld [vmem:[%s272 + $0x558] sm:%s265]
                %457 = vst [vmem:[%s273 + $0x2d8] sm:%s265] %v456
                %v458 = vld [vmem:[%s272 + $0x560] sm:%s265]
                %459 = vst [vmem:[%s273 + $0x2e0] sm:%s265] %v458
                %v460 = vld [vmem:[%s272 + $0x568] sm:%s265]
                %461 = vst [vmem:[%s273 + $0x2e8] sm:%s265] %v460
                %v462 = vld [vmem:[%s272 + $0x570] sm:%s265]
                %463 = vst [vmem:[%s273 + $0x2f0] sm:%s265] %v462
                %v464 = vld [vmem:[%s272 + $0x578] sm:%s265]
                %465 = vst [vmem:[%s273 + $0x2f8] sm:%s265] %v464
                %v466 = vld [vmem:[%s272 + $0x600] sm:%s265]
                %467 = vst [vmem:[%s273 + $0x300] sm:%s265] %v466
                %v468 = vld [vmem:[%s272 + $0x608] sm:%s265]
                %469 = vst [vmem:[%s273 + $0x308] sm:%s265] %v468
                %v470 = vld [vmem:[%s272 + $0x610] sm:%s265]
                %471 = vst [vmem:[%s273 + $0x310] sm:%s265] %v470
                %v472 = vld [vmem:[%s272 + $0x618] sm:%s265]
                %473 = vst [vmem:[%s273 + $0x318] sm:%s265] %v472
                %v474 = vld [vmem:[%s272 + $0x620] sm:%s265]
                %475 = vst [vmem:[%s273 + $0x320] sm:%s265] %v474
                %v476 = vld [vmem:[%s272 + $0x628] sm:%s265]
                %477 = vst [vmem:[%s273 + $0x328] sm:%s265] %v476
                %v478 = vld [vmem:[%s272 + $0x630] sm:%s265]
                %479 = vst [vmem:[%s273 + $0x330] sm:%s265] %v478
                %v480 = vld [vmem:[%s272 + $0x638] sm:%s265]
                %481 = vst [vmem:[%s273 + $0x338] sm:%s265] %v480
                %v482 = vld [vmem:[%s272 + $0x640] sm:%s265]
                %483 = vst [vmem:[%s273 + $0x340] sm:%s265] %v482
                %v484 = vld [vmem:[%s272 + $0x648] sm:%s265]
                %485 = vst [vmem:[%s273 + $0x348] sm:%s265] %v484
                %v486 = vld [vmem:[%s272 + $0x650] sm:%s265]
                %487 = vst [vmem:[%s273 + $0x350] sm:%s265] %v486
                %v488 = vld [vmem:[%s272 + $0x658] sm:%s265]
                %489 = vst [vmem:[%s273 + $0x358] sm:%s265] %v488
                %v490 = vld [vmem:[%s272 + $0x660] sm:%s265]
                %491 = vst [vmem:[%s273 + $0x360] sm:%s265] %v490
                %v492 = vld [vmem:[%s272 + $0x668] sm:%s265]
                %493 = vst [vmem:[%s273 + $0x368] sm:%s265] %v492
                %v494 = vld [vmem:[%s272 + $0x670] sm:%s265]
                %495 = vst [vmem:[%s273 + $0x370] sm:%s265] %v494
                %v496 = vld [vmem:[%s272 + $0x678] sm:%s265]
                %497 = vst [vmem:[%s273 + $0x378] sm:%s265] %v496
                %v498 = vld [vmem:[%s272 + $0x700] sm:%s265]
                %499 = vst [vmem:[%s273 + $0x380] sm:%s265] %v498
                %v500 = vld [vmem:[%s272 + $0x708] sm:%s265]
                %501 = vst [vmem:[%s273 + $0x388] sm:%s265] %v500
                %v502 = vld [vmem:[%s272 + $0x710] sm:%s265]
                %503 = vst [vmem:[%s273 + $0x390] sm:%s265] %v502
                %v504 = vld [vmem:[%s272 + $0x718] sm:%s265]
                %505 = vst [vmem:[%s273 + $0x398] sm:%s265] %v504
                %v506 = vld [vmem:[%s272 + $0x720] sm:%s265]
                %507 = vst [vmem:[%s273 + $0x3a0] sm:%s265] %v506
                %v508 = vld [vmem:[%s272 + $0x728] sm:%s265]
                %509 = vst [vmem:[%s273 + $0x3a8] sm:%s265] %v508
                %v510 = vld [vmem:[%s272 + $0x730] sm:%s265]
                %511 = vst [vmem:[%s273 + $0x3b0] sm:%s265] %v510
                %v512 = vld [vmem:[%s272 + $0x738] sm:%s265]
                %513 = vst [vmem:[%s273 + $0x3b8] sm:%s265] %v512
                %v514 = vld [vmem:[%s272 + $0x740] sm:%s265]
                %515 = vst [vmem:[%s273 + $0x3c0] sm:%s265] %v514
                %v516 = vld [vmem:[%s272 + $0x748] sm:%s265]
                %517 = vst [vmem:[%s273 + $0x3c8] sm:%s265] %v516
                %v518 = vld [vmem:[%s272 + $0x750] sm:%s265]
                %519 = vst [vmem:[%s273 + $0x3d0] sm:%s265] %v518
                %v520 = vld [vmem:[%s272 + $0x758] sm:%s265]
                %521 = vst [vmem:[%s273 + $0x3d8] sm:%s265] %v520
                %v522 = vld [vmem:[%s272 + $0x760] sm:%s265]
                %523 = vst [vmem:[%s273 + $0x3e0] sm:%s265] %v522
                %v524 = vld [vmem:[%s272 + $0x768] sm:%s265]
                %525 = vst [vmem:[%s273 + $0x3e8] sm:%s265] %v524
                %v526 = vld [vmem:[%s272 + $0x770] sm:%s265]
                %527 = vst [vmem:[%s273 + $0x3f0] sm:%s265] %v526
                %v528 = vld [vmem:[%s272 + $0x778] sm:%s265]
                %529 = vst [vmem:[%s273 + $0x3f8] sm:%s265] %v528
              $region61: #{tpu_custom_call.1} parent=55 // loop_footer
                %s271 = sadd.s32 1, %s267
              $region62: #{tpu_custom_call.1} parent=55 // loop_footer_branch
                %266 = sbr.rel target = $region58
              $region63: #{tpu_custom_call.1} parent=55 // loop_exit
                _
            $region56: #{tpu_custom_call.1} parent=47 // pred_fallthru
              _
          $region48: #{tpu_custom_call.1} parent=43 // pred_fallthru
            _
          %798 = vnop
        $region44: #{tpu_custom_call.1} parent=39 // pred_fallthru
          _
      $region40: #{tpu_custom_call.1} parent=5 // pred_fallthru
        _
      %p799 = scmp.le.s32.totalorder 1, %s16
      %p800 = scmp.lt.s32.totalorder %s16, 5
      %p801 = pnand %p799, %p800
      %p802 = pneg %p801
      // Predicated region
      $region79: #{tpu_custom_call.1} parent=5 // pred_check
        _
      $region80: #{tpu_custom_call.1} parent=5 // pred_check_branch
        %804 = sbr.rel (%p801) target = $region82
      $region81: #{tpu_custom_call.1} parent=5 // pred_region
        %s805 = ssub.s32 %s16, 1
        %s806 = sand.u32 %s43, 1
        %s807 = sand.u32 %s43, 1
        %s808 = smul.addr %s807, 1024
        %s809 = scalar_lea.vmem [#allocation3], %s808
        // Predicated region
        $region83: #{tpu_custom_call.1} parent=81 // pred_check
          %p810 = pneg %p56
        $region84: #{tpu_custom_call.1} parent=81 // pred_check_branch
          %812 = sbr.rel (%p810) target = $region86
        $region85: #{tpu_custom_call.1} parent=81 // pred_region
          _
        $region86: #{tpu_custom_call.1} parent=81 // pred_fallthru
          _
        %s813 = sand.u32 %s43, 1
        %s814 = sand.u32 %s43, 1
        %s815 = smul.addr %s814, 1024
        %s816 = scalar_lea.vmem [#allocation3], %s815
        %p817 = pneg %p56
        %p818 = pneg %p53
        %p819 = pneg %p77
        %p820 = pneg %p74
        %p821 = pneg %p98
        %p822 = pneg %p95
        %p823 = pneg %p119
        %p824 = pneg %p116
        %p825 = pneg %p140
        %p826 = pneg %p137
        %p827 = pneg %p161
        %p828 = pneg %p158
        %p829 = pneg %p182
        %p830 = pneg %p179
        %p831 = pneg %p208
        %p832 = pneg %p205
        %s833 = sand.u32 %s195, 1
        %s834 = scalar_lea.sflag [#allocation5], %s833
        %s835 = sand.u32 %s195, 1
        %s836 = smul.addr %s835, 8
        %s837 = scalar_lea.vmem [#allocation4], %s836
        %s838 = smul.u32 8, %s25
        %s839 = smul.u32 16, %s26
        %v840 = vld [vmem:[%s809] sm:$0xff]
        %v841 = vld [vmem:[%s809 + $0x8] sm:$0xff]
        %v842 = vld [vmem:[%s809 + $0x10] sm:$0xff]
        %v843 = vld [vmem:[%s809 + $0x18] sm:$0xff]
        %v844 = vld [vmem:[%s809 + $0x20] sm:$0xff]
        %v845 = vld [vmem:[%s809 + $0x28] sm:$0xff]
        %v846 = vld [vmem:[%s809 + $0x30] sm:$0xff]
        %v847 = vld [vmem:[%s809 + $0x38] sm:$0xff]
        %v848 = vld [vmem:[%s809 + $0x40] sm:$0xff]
        %v849 = vld [vmem:[%s809 + $0x48] sm:$0xff]
        %v850 = vld [vmem:[%s809 + $0x50] sm:$0xff]
        %v851 = vld [vmem:[%s809 + $0x58] sm:$0xff]
        %v852 = vld [vmem:[%s809 + $0x60] sm:$0xff]
        %v853 = vld [vmem:[%s809 + $0x68] sm:$0xff]
        %v854 = vld [vmem:[%s809 + $0x70] sm:$0xff]
        %v855 = vld [vmem:[%s809 + $0x78] sm:$0xff]
        %v856 = vld [vmem:[%s809 + $0x80] sm:$0xff]
        %v857 = vld [vmem:[%s809 + $0x88] sm:$0xff]
        %v858 = vld [vmem:[%s809 + $0x90] sm:$0xff]
        %v859 = vld [vmem:[%s809 + $0x98] sm:$0xff]
        %v860 = vld [vmem:[%s809 + $0xa0] sm:$0xff]
        %v861 = vld [vmem:[%s809 + $0xa8] sm:$0xff]
        %v862 = vld [vmem:[%s809 + $0xb0] sm:$0xff]
        %v863 = vld [vmem:[%s809 + $0xb8] sm:$0xff]
        %v864 = vld [vmem:[%s809 + $0xc0] sm:$0xff]
        %v865 = vld [vmem:[%s809 + $0xc8] sm:$0xff]
        %v866 = vld [vmem:[%s809 + $0xd0] sm:$0xff]
        %v867 = vld [vmem:[%s809 + $0xd8] sm:$0xff]
        %v868 = vld [vmem:[%s809 + $0xe0] sm:$0xff]
        %v869 = vld [vmem:[%s809 + $0xe8] sm:$0xff]
        %v870 = vld [vmem:[%s809 + $0xf0] sm:$0xff]
        %v871 = vld [vmem:[%s809 + $0xf8] sm:$0xff]
        %v872 = vld [vmem:[%s809 + $0x100] sm:$0xff]
        %v873 = vld [vmem:[%s809 + $0x108] sm:$0xff]
        %v874 = vld [vmem:[%s809 + $0x110] sm:$0xff]
        %v875 = vld [vmem:[%s809 + $0x118] sm:$0xff]
        %v876 = vld [vmem:[%s809 + $0x120] sm:$0xff]
        %v877 = vld [vmem:[%s809 + $0x128] sm:$0xff]
        %v878 = vld [vmem:[%s809 + $0x130] sm:$0xff]
        %v879 = vld [vmem:[%s809 + $0x138] sm:$0xff]
        %v880 = vld [vmem:[%s809 + $0x140] sm:$0xff]
        %v881 = vld [vmem:[%s809 + $0x148] sm:$0xff]
        %v882 = vld [vmem:[%s809 + $0x150] sm:$0xff]
        %v883 = vld [vmem:[%s809 + $0x158] sm:$0xff]
        %v884 = vld [vmem:[%s809 + $0x160] sm:$0xff]
        %v885 = vld [vmem:[%s809 + $0x168] sm:$0xff]
        %v886 = vld [vmem:[%s809 + $0x170] sm:$0xff]
        %v887 = vld [vmem:[%s809 + $0x178] sm:$0xff]
        %v888 = vld [vmem:[%s809 + $0x180] sm:$0xff]
        %v889 = vld [vmem:[%s809 + $0x188] sm:$0xff]
        %v890 = vld [vmem:[%s809 + $0x190] sm:$0xff]
        %v891 = vld [vmem:[%s809 + $0x198] sm:$0xff]
        %v892 = vld [vmem:[%s809 + $0x1a0] sm:$0xff]
        %v893 = vld [vmem:[%s809 + $0x1a8] sm:$0xff]
        %v894 = vld [vmem:[%s809 + $0x1b0] sm:$0xff]
        %v895 = vld [vmem:[%s809 + $0x1b8] sm:$0xff]
        %v896 = vld [vmem:[%s809 + $0x1c0] sm:$0xff]
        %v897 = vld [vmem:[%s809 + $0x1c8] sm:$0xff]
        %v898 = vld [vmem:[%s809 + $0x1d0] sm:$0xff]
        %v899 = vld [vmem:[%s809 + $0x1d8] sm:$0xff]
        %v900 = vld [vmem:[%s809 + $0x1e0] sm:$0xff]
        %v901 = vld [vmem:[%s809 + $0x1e8] sm:$0xff]
        %v902 = vld [vmem:[%s809 + $0x1f0] sm:$0xff]
        %v903 = vld [vmem:[%s809 + $0x1f8] sm:$0xff]
        %v904 = vld [vmem:[%s809 + $0x200] sm:$0xff]
        %v905 = vld [vmem:[%s809 + $0x208] sm:$0xff]
        %v906 = vld [vmem:[%s809 + $0x210] sm:$0xff]
        %v907 = vld [vmem:[%s809 + $0x218] sm:$0xff]
        %v908 = vld [vmem:[%s809 + $0x220] sm:$0xff]
        %v909 = vld [vmem:[%s809 + $0x228] sm:$0xff]
        %v910 = vld [vmem:[%s809 + $0x230] sm:$0xff]
        %v911 = vld [vmem:[%s809 + $0x238] sm:$0xff]
        %v912 = vld [vmem:[%s809 + $0x240] sm:$0xff]
        %v913 = vld [vmem:[%s809 + $0x248] sm:$0xff]
        %v914 = vld [vmem:[%s809 + $0x250] sm:$0xff]
        %v915 = vld [vmem:[%s809 + $0x258] sm:$0xff]
        %v916 = vld [vmem:[%s809 + $0x260] sm:$0xff]
        %v917 = vld [vmem:[%s809 + $0x268] sm:$0xff]
        %v918 = vld [vmem:[%s809 + $0x270] sm:$0xff]
        %v919 = vld [vmem:[%s809 + $0x278] sm:$0xff]
        %v920 = vld [vmem:[%s809 + $0x280] sm:$0xff]
        %v921 = vld [vmem:[%s809 + $0x288] sm:$0xff]
        %v922 = vld [vmem:[%s809 + $0x290] sm:$0xff]
        %v923 = vld [vmem:[%s809 + $0x298] sm:$0xff]
        %v924 = vld [vmem:[%s809 + $0x2a0] sm:$0xff]
        %v925 = vld [vmem:[%s809 + $0x2a8] sm:$0xff]
        %v926 = vld [vmem:[%s809 + $0x2b0] sm:$0xff]
        %v927 = vld [vmem:[%s809 + $0x2b8] sm:$0xff]
        %v928 = vld [vmem:[%s809 + $0x2c0] sm:$0xff]
        %v929 = vld [vmem:[%s809 + $0x2c8] sm:$0xff]
        %v930 = vld [vmem:[%s809 + $0x2d0] sm:$0xff]
        %v931 = vld [vmem:[%s809 + $0x2d8] sm:$0xff]
        %v932 = vld [vmem:[%s809 + $0x2e0] sm:$0xff]
        %v933 = vld [vmem:[%s809 + $0x2e8] sm:$0xff]
        %v934 = vld [vmem:[%s809 + $0x2f0] sm:$0xff]
        %v935 = vld [vmem:[%s809 + $0x2f8] sm:$0xff]
        %v936 = vld [vmem:[%s809 + $0x300] sm:$0xff]
        %v937 = vld [vmem:[%s809 + $0x308] sm:$0xff]
        %v938 = vld [vmem:[%s809 + $0x310] sm:$0xff]
        %v939 = vld [vmem:[%s809 + $0x318] sm:$0xff]
        %v940 = vld [vmem:[%s809 + $0x320] sm:$0xff]
        %v941 = vld [vmem:[%s809 + $0x328] sm:$0xff]
        %v942 = vld [vmem:[%s809 + $0x330] sm:$0xff]
        %v943 = vld [vmem:[%s809 + $0x338] sm:$0xff]
        %v944 = vld [vmem:[%s809 + $0x340] sm:$0xff]
        %v945 = vld [vmem:[%s809 + $0x348] sm:$0xff]
        %v946 = vld [vmem:[%s809 + $0x350] sm:$0xff]
        %v947 = vld [vmem:[%s809 + $0x358] sm:$0xff]
        %v948 = vld [vmem:[%s809 + $0x360] sm:$0xff]
        %v949 = vld [vmem:[%s809 + $0x368] sm:$0xff]
        %v950 = vld [vmem:[%s809 + $0x370] sm:$0xff]
        %v951 = vld [vmem:[%s809 + $0x378] sm:$0xff]
        %v952 = vld [vmem:[%s809 + $0x380] sm:$0xff]
        %v953 = vld [vmem:[%s809 + $0x388] sm:$0xff]
        %v954 = vld [vmem:[%s809 + $0x390] sm:$0xff]
        %v955 = vld [vmem:[%s809 + $0x398] sm:$0xff]
        %v956 = vld [vmem:[%s809 + $0x3a0] sm:$0xff]
        %v957 = vld [vmem:[%s809 + $0x3a8] sm:$0xff]
        %v958 = vld [vmem:[%s809 + $0x3b0] sm:$0xff]
        %v959 = vld [vmem:[%s809 + $0x3b8] sm:$0xff]
        %v960 = vld [vmem:[%s809 + $0x3c0] sm:$0xff]
        %v961 = vld [vmem:[%s809 + $0x3c8] sm:$0xff]
        %v962 = vld [vmem:[%s809 + $0x3d0] sm:$0xff]
        %v963 = vld [vmem:[%s809 + $0x3d8] sm:$0xff]
        %v964 = vld [vmem:[%s809 + $0x3e0] sm:$0xff]
        %v965 = vld [vmem:[%s809 + $0x3e8] sm:$0xff]
        %v966 = vld [vmem:[%s809 + $0x3f0] sm:$0xff]
        %v967 = vld [vmem:[%s809 + $0x3f8] sm:$0xff]
        %v968 = vld [vmem:[%s1] sm:$0xff]
        %v969 = vld [vmem:[%s1 + $0x8] sm:$0xff]
        %v970 = vld [vmem:[%s1 + $0x10] sm:$0xff]
        %v971 = vld [vmem:[%s1 + $0x18] sm:$0xff]
        %v972 = vld [vmem:[%s2] sm:$0x1]
        %v974 = vperm.slane %v972, 0
        %vm976 = vcmask 261120
        %v978 = vsel %vm976, %v840, 0
        %v981 = vsel %vm976, %v841, 0
        %v984 = vsel %vm976, %v842, 0
        %v987 = vsel %vm976, %v843, 0
        %v990 = vsel %vm976, %v844, 0
        %v993 = vsel %vm976, %v845, 0
        %v996 = vsel %vm976, %v846, 0
        %v999 = vsel %vm976, %v847, 0
        %v1002 = vsel %vm976, %v848, 0
        %v1005 = vsel %vm976, %v849, 0
        %v1008 = vsel %vm976, %v850, 0
        %v1011 = vsel %vm976, %v851, 0
        %v1014 = vsel %vm976, %v852, 0
        %v1017 = vsel %vm976, %v853, 0
        %v1020 = vsel %vm976, %v854, 0
        %v1023 = vsel %vm976, %v855, 0
        %v1026 = vsel %vm976, %v856, 0
        %v1029 = vsel %vm976, %v857, 0
        %v1032 = vsel %vm976, %v858, 0
        %v1035 = vsel %vm976, %v859, 0
        %v1038 = vsel %vm976, %v860, 0
        %v1041 = vsel %vm976, %v861, 0
        %v1044 = vsel %vm976, %v862, 0
        %v1047 = vsel %vm976, %v863, 0
        %v1050 = vsel %vm976, %v864, 0
        %v1053 = vsel %vm976, %v865, 0
        %v1056 = vsel %vm976, %v866, 0
        %v1059 = vsel %vm976, %v867, 0
        %v1062 = vsel %vm976, %v868, 0
        %v1065 = vsel %vm976, %v869, 0
        %v1068 = vsel %vm976, %v870, 0
        %v1071 = vsel %vm976, %v871, 0
        %v1074 = vsel %vm976, %v872, 0
        %v1077 = vsel %vm976, %v873, 0
        %v1080 = vsel %vm976, %v874, 0
        %v1083 = vsel %vm976, %v875, 0
        %v1086 = vsel %vm976, %v876, 0
        %v1089 = vsel %vm976, %v877, 0
        %v1092 = vsel %vm976, %v878, 0
        %v1095 = vsel %vm976, %v879, 0
        %v1098 = vsel %vm976, %v880, 0
        %v1101 = vsel %vm976, %v881, 0
        %v1104 = vsel %vm976, %v882, 0
        %v1107 = vsel %vm976, %v883, 0
        %v1110 = vsel %vm976, %v884, 0
        %v1113 = vsel %vm976, %v885, 0
        %v1116 = vsel %vm976, %v886, 0
        %v1119 = vsel %vm976, %v887, 0
        %v1122 = vsel %vm976, %v888, 0
        %v1125 = vsel %vm976, %v889, 0
        %v1128 = vsel %vm976, %v890, 0
        %v1131 = vsel %vm976, %v891, 0
        %v1134 = vsel %vm976, %v892, 0
        %v1137 = vsel %vm976, %v893, 0
        %v1140 = vsel %vm976, %v894, 0
        %v1143 = vsel %vm976, %v895, 0
        %v1146 = vsel %vm976, %v896, 0
        %v1149 = vsel %vm976, %v897, 0
        %v1152 = vsel %vm976, %v898, 0
        %v1155 = vsel %vm976, %v899, 0
        %v1158 = vsel %vm976, %v900, 0
        %v1161 = vsel %vm976, %v901, 0
        %v1164 = vsel %vm976, %v902, 0
        %v1167 = vsel %vm976, %v903, 0
        %v1170 = vsel %vm976, %v904, 0
        %v1173 = vsel %vm976, %v905, 0
        %v1176 = vsel %vm976, %v906, 0
        %v1179 = vsel %vm976, %v907, 0
        %v1182 = vsel %vm976, %v908, 0
        %v1185 = vsel %vm976, %v909, 0
        %v1188 = vsel %vm976, %v910, 0
        %v1191 = vsel %vm976, %v911, 0
        %v1194 = vsel %vm976, %v912, 0
        %v1197 = vsel %vm976, %v913, 0
        %v1200 = vsel %vm976, %v914, 0
        %v1203 = vsel %vm976, %v915, 0
        %v1206 = vsel %vm976, %v916, 0
        %v1209 = vsel %vm976, %v917, 0
        %v1212 = vsel %vm976, %v918, 0
        %v1215 = vsel %vm976, %v919, 0
        %v1218 = vsel %vm976, %v920, 0
        %v1221 = vsel %vm976, %v921, 0
        %v1224 = vsel %vm976, %v922, 0
        %v1227 = vsel %vm976, %v923, 0
        %v1230 = vsel %vm976, %v924, 0
        %v1233 = vsel %vm976, %v925, 0
        %v1236 = vsel %vm976, %v926, 0
        %v1239 = vsel %vm976, %v927, 0
        %v1242 = vsel %vm976, %v928, 0
        %v1245 = vsel %vm976, %v929, 0
        %v1248 = vsel %vm976, %v930, 0
        %v1251 = vsel %vm976, %v931, 0
        %v1254 = vsel %vm976, %v932, 0
        %v1257 = vsel %vm976, %v933, 0
        %v1260 = vsel %vm976, %v934, 0
        %v1263 = vsel %vm976, %v935, 0
        %v1266 = vsel %vm976, %v936, 0
        %v1269 = vsel %vm976, %v937, 0
        %v1272 = vsel %vm976, %v938, 0
        %v1275 = vsel %vm976, %v939, 0
        %v1278 = vsel %vm976, %v940, 0
        %v1281 = vsel %vm976, %v941, 0
        %v1284 = vsel %vm976, %v942, 0
        %v1287 = vsel %vm976, %v943, 0
        %v1290 = vsel %vm976, %v944, 0
        %v1293 = vsel %vm976, %v945, 0
        %v1296 = vsel %vm976, %v946, 0
        %v1299 = vsel %vm976, %v947, 0
        %v1302 = vsel %vm976, %v948, 0
        %v1305 = vsel %vm976, %v949, 0
        %v1308 = vsel %vm976, %v950, 0
        %v1311 = vsel %vm976, %v951, 0
        %v1314 = vsel %vm976, %v952, 0
        %v1317 = vsel %vm976, %v953, 0
        %v1320 = vsel %vm976, %v954, 0
        %v1323 = vsel %vm976, %v955, 0
        %v1326 = vsel %vm976, %v956, 0
        %v1329 = vsel %vm976, %v957, 0
        %v1332 = vsel %vm976, %v958, 0
        %v1335 = vsel %vm976, %v959, 0
        %v1338 = vsel %vm976, %v960, 0
        %v1341 = vsel %vm976, %v961, 0
        %v1344 = vsel %vm976, %v962, 0
        %v1347 = vsel %vm976, %v963, 0
        %v1350 = vsel %vm976, %v964, 0
        %v1353 = vsel %vm976, %v965, 0
        %v1356 = vsel %vm976, %v966, 0
        %v1359 = vsel %vm976, %v967, 0
        %1361 = vmatpush.msra.mxu0 0.0
        %1362 = vmatpush.msra.mxu0 0.0
        %1363 = vmatpush.msra.mxu0 0.0
        %1364 = vmatpush.msra.mxu0 0.0
        %1365 = vmatpush.msra.mxu0 0.0
        %1366 = vmatpush.msra.mxu0 0.0
        %1367 = vmatpush.msra.mxu0 0.0
        %1368 = vmatpush.msra.mxu0 0.0
        %1369 = vmatpush.msra.mxu0 0.0
        %1370 = vmatpush.msra.mxu0 0.0
        %1371 = vmatpush.msra.mxu0 0.0
        %1372 = vmatpush.msra.mxu0 0.0
        %1373 = vmatpush.msra.mxu0 %v971
        %1374 = vmatpush.msra.mxu0 %v970
        %1375 = vmatpush.msra.mxu0 %v969
        %1376 = vmatpush.msra.mxu0 %v968
        %1377 = vmatmul.f32.gmra.mxu0 %v978
        %v1378 = vpop.f32.mrf.mxu0
        %v1379 = vadd.f32 %v974, %v1378
        %1380 = vmatmul.f32.gmra.mxu0 %v981
        %v1381 = vpop.f32.mrf.mxu0
        %v1382 = vadd.f32 %v974, %v1381
        %1383 = vmatmul.f32.gmra.mxu0 %v984
        %v1384 = vpop.f32.mrf.mxu0
        %v1385 = vadd.f32 %v974, %v1384
        %1386 = vmatmul.f32.gmra.mxu0 %v987
        %v1387 = vpop.f32.mrf.mxu0
        %v1388 = vadd.f32 %v974, %v1387
        %1389 = vmatmul.f32.gmra.mxu0 %v990
        %v1390 = vpop.f32.mrf.mxu0
        %v1391 = vadd.f32 %v974, %v1390
        %1392 = vmatmul.f32.gmra.mxu0 %v993
        %v1393 = vpop.f32.mrf.mxu0
        %v1394 = vadd.f32 %v974, %v1393
        %1395 = vmatmul.f32.gmra.mxu0 %v996
        %v1396 = vpop.f32.mrf.mxu0
        %v1397 = vadd.f32 %v974, %v1396
        %1398 = vmatmul.f32.gmra.mxu0 %v999
        %v1399 = vpop.f32.mrf.mxu0
        %v1400 = vadd.f32 %v974, %v1399
        %1401 = vmatmul.f32.gmra.mxu0 %v1002
        %v1402 = vpop.f32.mrf.mxu0
        %v1403 = vadd.f32 %v974, %v1402
        %1404 = vmatmul.f32.gmra.mxu0 %v1005
        %v1405 = vpop.f32.mrf.mxu0
        %v1406 = vadd.f32 %v974, %v1405
        %1407 = vmatmul.f32.gmra.mxu0 %v1008
        %v1408 = vpop.f32.mrf.mxu0
        %v1409 = vadd.f32 %v974, %v1408
        %1410 = vmatmul.f32.gmra.mxu0 %v1011
        %v1411 = vpop.f32.mrf.mxu0
        %v1412 = vadd.f32 %v974, %v1411
        %1413 = vmatmul.f32.gmra.mxu0 %v1014
        %v1414 = vpop.f32.mrf.mxu0
        %v1415 = vadd.f32 %v974, %v1414
        %1416 = vmatmul.f32.gmra.mxu0 %v1017
        %v1417 = vpop.f32.mrf.mxu0
        %v1418 = vadd.f32 %v974, %v1417
        %1419 = vmatmul.f32.gmra.mxu0 %v1020
        %v1420 = vpop.f32.mrf.mxu0
        %v1421 = vadd.f32 %v974, %v1420
        %1422 = vmatmul.f32.gmra.mxu0 %v1023
        %v1423 = vpop.f32.mrf.mxu0
        %v1424 = vadd.f32 %v974, %v1423
        %1425 = vmatmul.f32.gmra.mxu0 %v1026
        %v1426 = vpop.f32.mrf.mxu0
        %v1427 = vadd.f32 %v974, %v1426
        %1428 = vmatmul.f32.gmra.mxu0 %v1029
        %v1429 = vpop.f32.mrf.mxu0
        %v1430 = vadd.f32 %v974, %v1429
        %1431 = vmatmul.f32.gmra.mxu0 %v1032
        %v1432 = vpop.f32.mrf.mxu0
        %v1433 = vadd.f32 %v974, %v1432
        %1434 = vmatmul.f32.gmra.mxu0 %v1035
        %v1435 = vpop.f32.mrf.mxu0
        %v1436 = vadd.f32 %v974, %v1435
        %1437 = vmatmul.f32.gmra.mxu0 %v1038
        %v1438 = vpop.f32.mrf.mxu0
        %v1439 = vadd.f32 %v974, %v1438
        %1440 = vmatmul.f32.gmra.mxu0 %v1041
        %v1441 = vpop.f32.mrf.mxu0
        %v1442 = vadd.f32 %v974, %v1441
        %1443 = vmatmul.f32.gmra.mxu0 %v1044
        %v1444 = vpop.f32.mrf.mxu0
        %v1445 = vadd.f32 %v974, %v1444
        %1446 = vmatmul.f32.gmra.mxu0 %v1047
        %v1447 = vpop.f32.mrf.mxu0
        %v1448 = vadd.f32 %v974, %v1447
        %1449 = vmatmul.f32.gmra.mxu0 %v1050
        %v1450 = vpop.f32.mrf.mxu0
        %v1451 = vadd.f32 %v974, %v1450
        %1452 = vmatmul.f32.gmra.mxu0 %v1053
        %v1453 = vpop.f32.mrf.mxu0
        %v1454 = vadd.f32 %v974, %v1453
        %1455 = vmatmul.f32.gmra.mxu0 %v1056
        %v1456 = vpop.f32.mrf.mxu0
        %v1457 = vadd.f32 %v974, %v1456
        %1458 = vmatmul.f32.gmra.mxu0 %v1059
        %v1459 = vpop.f32.mrf.mxu0
        %v1460 = vadd.f32 %v974, %v1459
        %1461 = vmatmul.f32.gmra.mxu0 %v1062
        %v1462 = vpop.f32.mrf.mxu0
        %v1463 = vadd.f32 %v974, %v1462
        %1464 = vmatmul.f32.gmra.mxu0 %v1065
        %v1465 = vpop.f32.mrf.mxu0
        %v1466 = vadd.f32 %v974, %v1465
        %1467 = vmatmul.f32.gmra.mxu0 %v1068
        %v1468 = vpop.f32.mrf.mxu0
        %v1469 = vadd.f32 %v974, %v1468
        %1470 = vmatmul.f32.gmra.mxu0 %v1071
        %v1471 = vpop.f32.mrf.mxu0
        %v1472 = vadd.f32 %v974, %v1471
        %1473 = vmatmul.f32.gmra.mxu0 %v1074
        %v1474 = vpop.f32.mrf.mxu0
        %v1475 = vadd.f32 %v974, %v1474
        %1476 = vmatmul.f32.gmra.mxu0 %v1077
        %v1477 = vpop.f32.mrf.mxu0
        %v1478 = vadd.f32 %v974, %v1477
        %1479 = vmatmul.f32.gmra.mxu0 %v1080
        %v1480 = vpop.f32.mrf.mxu0
        %v1481 = vadd.f32 %v974, %v1480
        %1482 = vmatmul.f32.gmra.mxu0 %v1083
        %v1483 = vpop.f32.mrf.mxu0
        %v1484 = vadd.f32 %v974, %v1483
        %1485 = vmatmul.f32.gmra.mxu0 %v1086
        %v1486 = vpop.f32.mrf.mxu0
        %v1487 = vadd.f32 %v974, %v1486
        %1488 = vmatmul.f32.gmra.mxu0 %v1089
        %v1489 = vpop.f32.mrf.mxu0
        %v1490 = vadd.f32 %v974, %v1489
        %1491 = vmatmul.f32.gmra.mxu0 %v1092
        %v1492 = vpop.f32.mrf.mxu0
        %v1493 = vadd.f32 %v974, %v1492
        %1494 = vmatmul.f32.gmra.mxu0 %v1095
        %v1495 = vpop.f32.mrf.mxu0
        %v1496 = vadd.f32 %v974, %v1495
        %1497 = vmatmul.f32.gmra.mxu0 %v1098
        %v1498 = vpop.f32.mrf.mxu0
        %v1499 = vadd.f32 %v974, %v1498
        %1500 = vmatmul.f32.gmra.mxu0 %v1101
        %v1501 = vpop.f32.mrf.mxu0
        %v1502 = vadd.f32 %v974, %v1501
        %1503 = vmatmul.f32.gmra.mxu0 %v1104
        %v1504 = vpop.f32.mrf.mxu0
        %v1505 = vadd.f32 %v974, %v1504
        %1506 = vmatmul.f32.gmra.mxu0 %v1107
        %v1507 = vpop.f32.mrf.mxu0
        %v1508 = vadd.f32 %v974, %v1507
        %1509 = vmatmul.f32.gmra.mxu0 %v1110
        %v1510 = vpop.f32.mrf.mxu0
        %v1511 = vadd.f32 %v974, %v1510
        %1512 = vmatmul.f32.gmra.mxu0 %v1113
        %v1513 = vpop.f32.mrf.mxu0
        %v1514 = vadd.f32 %v974, %v1513
        %1515 = vmatmul.f32.gmra.mxu0 %v1116
        %v1516 = vpop.f32.mrf.mxu0
        %v1517 = vadd.f32 %v974, %v1516
        %1518 = vmatmul.f32.gmra.mxu0 %v1119
        %v1519 = vpop.f32.mrf.mxu0
        %v1520 = vadd.f32 %v974, %v1519
        %1521 = vmatmul.f32.gmra.mxu0 %v1122
        %v1522 = vpop.f32.mrf.mxu0
        %v1523 = vadd.f32 %v974, %v1522
        %1524 = vmatmul.f32.gmra.mxu0 %v1125
        %v1525 = vpop.f32.mrf.mxu0
        %v1526 = vadd.f32 %v974, %v1525
        %1527 = vmatmul.f32.gmra.mxu0 %v1128
        %v1528 = vpop.f32.mrf.mxu0
        %v1529 = vadd.f32 %v974, %v1528
        %1530 = vmatmul.f32.gmra.mxu0 %v1131
        %v1531 = vpop.f32.mrf.mxu0
        %v1532 = vadd.f32 %v974, %v1531
        %1533 = vmatmul.f32.gmra.mxu0 %v1134
        %v1534 = vpop.f32.mrf.mxu0
        %v1535 = vadd.f32 %v974, %v1534
        %1536 = vmatmul.f32.gmra.mxu0 %v1137
        %v1537 = vpop.f32.mrf.mxu0
        %v1538 = vadd.f32 %v974, %v1537
        %1539 = vmatmul.f32.gmra.mxu0 %v1140
        %v1540 = vpop.f32.mrf.mxu0
        %v1541 = vadd.f32 %v974, %v1540
        %1542 = vmatmul.f32.gmra.mxu0 %v1143
        %v1543 = vpop.f32.mrf.mxu0
        %v1544 = vadd.f32 %v974, %v1543
        %1545 = vmatmul.f32.gmra.mxu0 %v1146
        %v1546 = vpop.f32.mrf.mxu0
        %v1547 = vadd.f32 %v974, %v1546
        %1548 = vmatmul.f32.gmra.mxu0 %v1149
        %v1549 = vpop.f32.mrf.mxu0
        %v1550 = vadd.f32 %v974, %v1549
        %1551 = vmatmul.f32.gmra.mxu0 %v1152
        %v1552 = vpop.f32.mrf.mxu0
        %v1553 = vadd.f32 %v974, %v1552
        %1554 = vmatmul.f32.gmra.mxu0 %v1155
        %v1555 = vpop.f32.mrf.mxu0
        %v1556 = vadd.f32 %v974, %v1555
        %1557 = vmatmul.f32.gmra.mxu0 %v1158
        %v1558 = vpop.f32.mrf.mxu0
        %v1559 = vadd.f32 %v974, %v1558
        %1560 = vmatmul.f32.gmra.mxu0 %v1161
        %v1561 = vpop.f32.mrf.mxu0
        %v1562 = vadd.f32 %v974, %v1561
        %1563 = vmatmul.f32.gmra.mxu0 %v1164
        %v1564 = vpop.f32.mrf.mxu0
        %v1565 = vadd.f32 %v974, %v1564
        %1566 = vmatmul.f32.gmra.mxu0 %v1167
        %v1567 = vpop.f32.mrf.mxu0
        %v1568 = vadd.f32 %v974, %v1567
        %1569 = vmatmul.f32.gmra.mxu0 %v1170
        %v1570 = vpop.f32.mrf.mxu0
        %v1571 = vadd.f32 %v974, %v1570
        %1572 = vmatmul.f32.gmra.mxu0 %v1173
        %v1573 = vpop.f32.mrf.mxu0
        %v1574 = vadd.f32 %v974, %v1573
        %1575 = vmatmul.f32.gmra.mxu0 %v1176
        %v1576 = vpop.f32.mrf.mxu0
        %v1577 = vadd.f32 %v974, %v1576
        %1578 = vmatmul.f32.gmra.mxu0 %v1179
        %v1579 = vpop.f32.mrf.mxu0
        %v1580 = vadd.f32 %v974, %v1579
        %1581 = vmatmul.f32.gmra.mxu0 %v1182
        %v1582 = vpop.f32.mrf.mxu0
        %v1583 = vadd.f32 %v974, %v1582
        %1584 = vmatmul.f32.gmra.mxu0 %v1185
        %v1585 = vpop.f32.mrf.mxu0
        %v1586 = vadd.f32 %v974, %v1585
        %1587 = vmatmul.f32.gmra.mxu0 %v1188
        %v1588 = vpop.f32.mrf.mxu0
        %v1589 = vadd.f32 %v974, %v1588
        %1590 = vmatmul.f32.gmra.mxu0 %v1191
        %v1591 = vpop.f32.mrf.mxu0
        %v1592 = vadd.f32 %v974, %v1591
        %1593 = vmatmul.f32.gmra.mxu0 %v1194
        %v1594 = vpop.f32.mrf.mxu0
        %v1595 = vadd.f32 %v974, %v1594
        %1596 = vmatmul.f32.gmra.mxu0 %v1197
        %v1597 = vpop.f32.mrf.mxu0
        %v1598 = vadd.f32 %v974, %v1597
        %1599 = vmatmul.f32.gmra.mxu0 %v1200
        %v1600 = vpop.f32.mrf.mxu0
        %v1601 = vadd.f32 %v974, %v1600
        %1602 = vmatmul.f32.gmra.mxu0 %v1203
        %v1603 = vpop.f32.mrf.mxu0
        %v1604 = vadd.f32 %v974, %v1603
        %1605 = vmatmul.f32.gmra.mxu0 %v1206
        %v1606 = vpop.f32.mrf.mxu0
        %v1607 = vadd.f32 %v974, %v1606
        %1608 = vmatmul.f32.gmra.mxu0 %v1209
        %v1609 = vpop.f32.mrf.mxu0
        %v1610 = vadd.f32 %v974, %v1609
        %1611 = vmatmul.f32.gmra.mxu0 %v1212
        %v1612 = vpop.f32.mrf.mxu0
        %v1613 = vadd.f32 %v974, %v1612
        %1614 = vmatmul.f32.gmra.mxu0 %v1215
        %v1615 = vpop.f32.mrf.mxu0
        %v1616 = vadd.f32 %v974, %v1615
        %1617 = vmatmul.f32.gmra.mxu0 %v1218
        %v1618 = vpop.f32.mrf.mxu0
        %v1619 = vadd.f32 %v974, %v1618
        %1620 = vmatmul.f32.gmra.mxu0 %v1221
        %v1621 = vpop.f32.mrf.mxu0
        %v1622 = vadd.f32 %v974, %v1621
        %1623 = vmatmul.f32.gmra.mxu0 %v1224
        %v1624 = vpop.f32.mrf.mxu0
        %v1625 = vadd.f32 %v974, %v1624
        %1626 = vmatmul.f32.gmra.mxu0 %v1227
        %v1627 = vpop.f32.mrf.mxu0
        %v1628 = vadd.f32 %v974, %v1627
        %1629 = vmatmul.f32.gmra.mxu0 %v1230
        %v1630 = vpop.f32.mrf.mxu0
        %v1631 = vadd.f32 %v974, %v1630
        %1632 = vmatmul.f32.gmra.mxu0 %v1233
        %v1633 = vpop.f32.mrf.mxu0
        %v1634 = vadd.f32 %v974, %v1633
        %1635 = vmatmul.f32.gmra.mxu0 %v1236
        %v1636 = vpop.f32.mrf.mxu0
        %v1637 = vadd.f32 %v974, %v1636
        %1638 = vmatmul.f32.gmra.mxu0 %v1239
        %v1639 = vpop.f32.mrf.mxu0
        %v1640 = vadd.f32 %v974, %v1639
        %1641 = vmatmul.f32.gmra.mxu0 %v1242
        %v1642 = vpop.f32.mrf.mxu0
        %v1643 = vadd.f32 %v974, %v1642
        %1644 = vmatmul.f32.gmra.mxu0 %v1245
        %v1645 = vpop.f32.mrf.mxu0
        %v1646 = vadd.f32 %v974, %v1645
        %1647 = vmatmul.f32.gmra.mxu0 %v1248
        %v1648 = vpop.f32.mrf.mxu0
        %v1649 = vadd.f32 %v974, %v1648
        %1650 = vmatmul.f32.gmra.mxu0 %v1251
        %v1651 = vpop.f32.mrf.mxu0
        %v1652 = vadd.f32 %v974, %v1651
        %1653 = vmatmul.f32.gmra.mxu0 %v1254
        %v1654 = vpop.f32.mrf.mxu0
        %v1655 = vadd.f32 %v974, %v1654
        %1656 = vmatmul.f32.gmra.mxu0 %v1257
        %v1657 = vpop.f32.mrf.mxu0
        %v1658 = vadd.f32 %v974, %v1657
        %1659 = vmatmul.f32.gmra.mxu0 %v1260
        %v1660 = vpop.f32.mrf.mxu0
        %v1661 = vadd.f32 %v974, %v1660
        %1662 = vmatmul.f32.gmra.mxu0 %v1263
        %v1663 = vpop.f32.mrf.mxu0
        %v1664 = vadd.f32 %v974, %v1663
        %1665 = vmatmul.f32.gmra.mxu0 %v1266
        %v1666 = vpop.f32.mrf.mxu0
        %v1667 = vadd.f32 %v974, %v1666
        %1668 = vmatmul.f32.gmra.mxu0 %v1269
        %v1669 = vpop.f32.mrf.mxu0
        %v1670 = vadd.f32 %v974, %v1669
        %1671 = vmatmul.f32.gmra.mxu0 %v1272
        %v1672 = vpop.f32.mrf.mxu0
        %v1673 = vadd.f32 %v974, %v1672
        %1674 = vmatmul.f32.gmra.mxu0 %v1275
        %v1675 = vpop.f32.mrf.mxu0
        %v1676 = vadd.f32 %v974, %v1675
        %1677 = vmatmul.f32.gmra.mxu0 %v1278
        %v1678 = vpop.f32.mrf.mxu0
        %v1679 = vadd.f32 %v974, %v1678
        %1680 = vmatmul.f32.gmra.mxu0 %v1281
        %v1681 = vpop.f32.mrf.mxu0
        %v1682 = vadd.f32 %v974, %v1681
        %1683 = vmatmul.f32.gmra.mxu0 %v1284
        %v1684 = vpop.f32.mrf.mxu0
        %v1685 = vadd.f32 %v974, %v1684
        %1686 = vmatmul.f32.gmra.mxu0 %v1287
        %v1687 = vpop.f32.mrf.mxu0
        %v1688 = vadd.f32 %v974, %v1687
        %1689 = vmatmul.f32.gmra.mxu0 %v1290
        %v1690 = vpop.f32.mrf.mxu0
        %v1691 = vadd.f32 %v974, %v1690
        %1692 = vmatmul.f32.gmra.mxu0 %v1293
        %v1693 = vpop.f32.mrf.mxu0
        %v1694 = vadd.f32 %v974, %v1693
        %1695 = vmatmul.f32.gmra.mxu0 %v1296
        %v1696 = vpop.f32.mrf.mxu0
        %v1697 = vadd.f32 %v974, %v1696
        %1698 = vmatmul.f32.gmra.mxu0 %v1299
        %v1699 = vpop.f32.mrf.mxu0
        %v1700 = vadd.f32 %v974, %v1699
        %1701 = vmatmul.f32.gmra.mxu0 %v1302
        %v1702 = vpop.f32.mrf.mxu0
        %v1703 = vadd.f32 %v974, %v1702
        %1704 = vmatmul.f32.gmra.mxu0 %v1305
        %v1705 = vpop.f32.mrf.mxu0
        %v1706 = vadd.f32 %v974, %v1705
        %1707 = vmatmul.f32.gmra.mxu0 %v1308
        %v1708 = vpop.f32.mrf.mxu0
        %v1709 = vadd.f32 %v974, %v1708
        %1710 = vmatmul.f32.gmra.mxu0 %v1311
        %v1711 = vpop.f32.mrf.mxu0
        %v1712 = vadd.f32 %v974, %v1711
        %1713 = vmatmul.f32.gmra.mxu0 %v1314
        %v1714 = vpop.f32.mrf.mxu0
        %v1715 = vadd.f32 %v974, %v1714
        %1716 = vmatmul.f32.gmra.mxu0 %v1317
        %v1717 = vpop.f32.mrf.mxu0
        %v1718 = vadd.f32 %v974, %v1717
        %1719 = vmatmul.f32.gmra.mxu0 %v1320
        %v1720 = vpop.f32.mrf.mxu0
        %v1721 = vadd.f32 %v974, %v1720
        %1722 = vmatmul.f32.gmra.mxu0 %v1323
        %v1723 = vpop.f32.mrf.mxu0
        %v1724 = vadd.f32 %v974, %v1723
        %1725 = vmatmul.f32.gmra.mxu0 %v1326
        %v1726 = vpop.f32.mrf.mxu0
        %v1727 = vadd.f32 %v974, %v1726
        %1728 = vmatmul.f32.gmra.mxu0 %v1329
        %v1729 = vpop.f32.mrf.mxu0
        %v1730 = vadd.f32 %v974, %v1729
        %1731 = vmatmul.f32.gmra.mxu0 %v1332
        %v1732 = vpop.f32.mrf.mxu0
        %v1733 = vadd.f32 %v974, %v1732
        %1734 = vmatmul.f32.gmra.mxu0 %v1335
        %v1735 = vpop.f32.mrf.mxu0
        %v1736 = vadd.f32 %v974, %v1735
        %1737 = vmatmul.f32.gmra.mxu0 %v1338
        %v1738 = vpop.f32.mrf.mxu0
        %v1739 = vadd.f32 %v974, %v1738
        %1740 = vmatmul.f32.gmra.mxu0 %v1341
        %v1741 = vpop.f32.mrf.mxu0
        %v1742 = vadd.f32 %v974, %v1741
        %1743 = vmatmul.f32.gmra.mxu0 %v1344
        %v1744 = vpop.f32.mrf.mxu0
        %v1745 = vadd.f32 %v974, %v1744
        %1746 = vmatmul.f32.gmra.mxu0 %v1347
        %v1747 = vpop.f32.mrf.mxu0
        %v1748 = vadd.f32 %v974, %v1747
        %1749 = vmatmul.f32.gmra.mxu0 %v1350
        %v1750 = vpop.f32.mrf.mxu0
        %v1751 = vadd.f32 %v974, %v1750
        %1752 = vmatmul.f32.gmra.mxu0 %v1353
        %v1753 = vpop.f32.mrf.mxu0
        %v1754 = vadd.f32 %v974, %v1753
        %1755 = vmatmul.f32.gmra.mxu0 %v1356
        %v1756 = vpop.f32.mrf.mxu0
        %v1757 = vadd.f32 %v974, %v1756
        %1758 = vmatmul.f32.gmra.mxu0 %v1359
        %v1759 = vpop.f32.mrf.mxu0
        %v1760 = vadd.f32 %v974, %v1759
        %1761 = vdwg.mxu0
        %v1762 = vmul.f32 %v1379, 0.2
        %v1763 = vmul.f32 %v1382, 0.2
        %v1764 = vmul.f32 %v1385, 0.2
        %v1765 = vmul.f32 %v1388, 0.2
        %v1766 = vmul.f32 %v1391, 0.2
        %v1767 = vmul.f32 %v1394, 0.2
        %v1768 = vmul.f32 %v1397, 0.2
        %v1769 = vmul.f32 %v1400, 0.2
        %v1770 = vmul.f32 %v1403, 0.2
        %v1771 = vmul.f32 %v1406, 0.2
        %v1772 = vmul.f32 %v1409, 0.2
        %v1773 = vmul.f32 %v1412, 0.2
        %v1774 = vmul.f32 %v1415, 0.2
        %v1775 = vmul.f32 %v1418, 0.2
        %v1776 = vmul.f32 %v1421, 0.2
        %v1777 = vmul.f32 %v1424, 0.2
        %v1778 = vmul.f32 %v1427, 0.2
        %v1779 = vmul.f32 %v1430, 0.2
        %v1780 = vmul.f32 %v1433, 0.2
        %v1781 = vmul.f32 %v1436, 0.2
        %v1782 = vmul.f32 %v1439, 0.2
        %v1783 = vmul.f32 %v1442, 0.2
        %v1784 = vmul.f32 %v1445, 0.2
        %v1785 = vmul.f32 %v1448, 0.2
        %v1786 = vmul.f32 %v1451, 0.2
        %v1787 = vmul.f32 %v1454, 0.2
        %v1788 = vmul.f32 %v1457, 0.2
        %v1789 = vmul.f32 %v1460, 0.2
        %v1790 = vmul.f32 %v1463, 0.2
        %v1791 = vmul.f32 %v1466, 0.2
        %v1792 = vmul.f32 %v1469, 0.2
        %v1793 = vmul.f32 %v1472, 0.2
        %v1794 = vmul.f32 %v1475, 0.2
        %v1795 = vmul.f32 %v1478, 0.2
        %v1796 = vmul.f32 %v1481, 0.2
        %v1797 = vmul.f32 %v1484, 0.2
        %v1798 = vmul.f32 %v1487, 0.2
        %v1799 = vmul.f32 %v1490, 0.2
        %v1800 = vmul.f32 %v1493, 0.2
        %v1801 = vmul.f32 %v1496, 0.2
        %v1802 = vmul.f32 %v1499, 0.2
        %v1803 = vmul.f32 %v1502, 0.2
        %v1804 = vmul.f32 %v1505, 0.2
        %v1805 = vmul.f32 %v1508, 0.2
        %v1806 = vmul.f32 %v1511, 0.2
        %v1807 = vmul.f32 %v1514, 0.2
        %v1808 = vmul.f32 %v1517, 0.2
        %v1809 = vmul.f32 %v1520, 0.2
        %v1810 = vmul.f32 %v1523, 0.2
        %v1811 = vmul.f32 %v1526, 0.2
        %v1812 = vmul.f32 %v1529, 0.2
        %v1813 = vmul.f32 %v1532, 0.2
        %v1814 = vmul.f32 %v1535, 0.2
        %v1815 = vmul.f32 %v1538, 0.2
        %v1816 = vmul.f32 %v1541, 0.2
        %v1817 = vmul.f32 %v1544, 0.2
        %v1818 = vmul.f32 %v1547, 0.2
        %v1819 = vmul.f32 %v1550, 0.2
        %v1820 = vmul.f32 %v1553, 0.2
        %v1821 = vmul.f32 %v1556, 0.2
        %v1822 = vmul.f32 %v1559, 0.2
        %v1823 = vmul.f32 %v1562, 0.2
        %v1824 = vmul.f32 %v1565, 0.2
        %v1825 = vmul.f32 %v1568, 0.2
        %v1826 = vmul.f32 %v1571, 0.2
        %v1827 = vmul.f32 %v1574, 0.2
        %v1828 = vmul.f32 %v1577, 0.2
        %v1829 = vmul.f32 %v1580, 0.2
        %v1830 = vmul.f32 %v1583, 0.2
        %v1831 = vmul.f32 %v1586, 0.2
        %v1832 = vmul.f32 %v1589, 0.2
        %v1833 = vmul.f32 %v1592, 0.2
        %v1834 = vmul.f32 %v1595, 0.2
        %v1835 = vmul.f32 %v1598, 0.2
        %v1836 = vmul.f32 %v1601, 0.2
        %v1837 = vmul.f32 %v1604, 0.2
        %v1838 = vmul.f32 %v1607, 0.2
        %v1839 = vmul.f32 %v1610, 0.2
        %v1840 = vmul.f32 %v1613, 0.2
        %v1841 = vmul.f32 %v1616, 0.2
        %v1842 = vmul.f32 %v1619, 0.2
        %v1843 = vmul.f32 %v1622, 0.2
        %v1844 = vmul.f32 %v1625, 0.2
        %v1845 = vmul.f32 %v1628, 0.2
        %v1846 = vmul.f32 %v1631, 0.2
        %v1847 = vmul.f32 %v1634, 0.2
        %v1848 = vmul.f32 %v1637, 0.2
        %v1849 = vmul.f32 %v1640, 0.2
        %v1850 = vmul.f32 %v1643, 0.2
        %v1851 = vmul.f32 %v1646, 0.2
        %v1852 = vmul.f32 %v1649, 0.2
        %v1853 = vmul.f32 %v1652, 0.2
        %v1854 = vmul.f32 %v1655, 0.2
        %v1855 = vmul.f32 %v1658, 0.2
        %v1856 = vmul.f32 %v1661, 0.2
        %v1857 = vmul.f32 %v1664, 0.2
        %v1858 = vmul.f32 %v1667, 0.2
        %v1859 = vmul.f32 %v1670, 0.2
        %v1860 = vmul.f32 %v1673, 0.2
        %v1861 = vmul.f32 %v1676, 0.2
        %v1862 = vmul.f32 %v1679, 0.2
        %v1863 = vmul.f32 %v1682, 0.2
        %v1864 = vmul.f32 %v1685, 0.2
        %v1865 = vmul.f32 %v1688, 0.2
        %v1866 = vmul.f32 %v1691, 0.2
        %v1867 = vmul.f32 %v1694, 0.2
        %v1868 = vmul.f32 %v1697, 0.2
        %v1869 = vmul.f32 %v1700, 0.2
        %v1870 = vmul.f32 %v1703, 0.2
        %v1871 = vmul.f32 %v1706, 0.2
        %v1872 = vmul.f32 %v1709, 0.2
        %v1873 = vmul.f32 %v1712, 0.2
        %v1874 = vmul.f32 %v1715, 0.2
        %v1875 = vmul.f32 %v1718, 0.2
        %v1876 = vmul.f32 %v1721, 0.2
        %v1877 = vmul.f32 %v1724, 0.2
        %v1878 = vmul.f32 %v1727, 0.2
        %v1879 = vmul.f32 %v1730, 0.2
        %v1880 = vmul.f32 %v1733, 0.2
        %v1881 = vmul.f32 %v1736, 0.2
        %v1882 = vmul.f32 %v1739, 0.2
        %v1883 = vmul.f32 %v1742, 0.2
        %v1884 = vmul.f32 %v1745, 0.2
        %v1885 = vmul.f32 %v1748, 0.2
        %v1886 = vmul.f32 %v1751, 0.2
        %v1887 = vmul.f32 %v1754, 0.2
        %v1888 = vmul.f32 %v1757, 0.2
        %v1889 = vmul.f32 %v1760, 0.2
        %v1890 = vmax.f32 %v1379, %v1762
        %v1891 = vmax.f32 %v1382, %v1763
        %v1892 = vmax.f32 %v1385, %v1764
        %v1893 = vmax.f32 %v1388, %v1765
        %v1894 = vmax.f32 %v1391, %v1766
        %v1895 = vmax.f32 %v1394, %v1767
        %v1896 = vmax.f32 %v1397, %v1768
        %v1897 = vmax.f32 %v1400, %v1769
        %v1898 = vmax.f32 %v1403, %v1770
        %v1899 = vmax.f32 %v1406, %v1771
        %v1900 = vmax.f32 %v1409, %v1772
        %v1901 = vmax.f32 %v1412, %v1773
        %v1902 = vmax.f32 %v1415, %v1774
        %v1903 = vmax.f32 %v1418, %v1775
        %v1904 = vmax.f32 %v1421, %v1776
        %v1905 = vmax.f32 %v1424, %v1777
        %v1906 = vmax.f32 %v1427, %v1778
        %v1907 = vmax.f32 %v1430, %v1779
        %v1908 = vmax.f32 %v1433, %v1780
        %v1909 = vmax.f32 %v1436, %v1781
        %v1910 = vmax.f32 %v1439, %v1782
        %v1911 = vmax.f32 %v1442, %v1783
        %v1912 = vmax.f32 %v1445, %v1784
        %v1913 = vmax.f32 %v1448, %v1785
        %v1914 = vmax.f32 %v1451, %v1786
        %v1915 = vmax.f32 %v1454, %v1787
        %v1916 = vmax.f32 %v1457, %v1788
        %v1917 = vmax.f32 %v1460, %v1789
        %v1918 = vmax.f32 %v1463, %v1790
        %v1919 = vmax.f32 %v1466, %v1791
        %v1920 = vmax.f32 %v1469, %v1792
        %v1921 = vmax.f32 %v1472, %v1793
        %v1922 = vmax.f32 %v1475, %v1794
        %v1923 = vmax.f32 %v1478, %v1795
        %v1924 = vmax.f32 %v1481, %v1796
        %v1925 = vmax.f32 %v1484, %v1797
        %v1926 = vmax.f32 %v1487, %v1798
        %v1927 = vmax.f32 %v1490, %v1799
        %v1928 = vmax.f32 %v1493, %v1800
        %v1929 = vmax.f32 %v1496, %v1801
        %v1930 = vmax.f32 %v1499, %v1802
        %v1931 = vmax.f32 %v1502, %v1803
        %v1932 = vmax.f32 %v1505, %v1804
        %v1933 = vmax.f32 %v1508, %v1805
        %v1934 = vmax.f32 %v1511, %v1806
        %v1935 = vmax.f32 %v1514, %v1807
        %v1936 = vmax.f32 %v1517, %v1808
        %v1937 = vmax.f32 %v1520, %v1809
        %v1938 = vmax.f32 %v1523, %v1810
        %v1939 = vmax.f32 %v1526, %v1811
        %v1940 = vmax.f32 %v1529, %v1812
        %v1941 = vmax.f32 %v1532, %v1813
        %v1942 = vmax.f32 %v1535, %v1814
        %v1943 = vmax.f32 %v1538, %v1815
        %v1944 = vmax.f32 %v1541, %v1816
        %v1945 = vmax.f32 %v1544, %v1817
        %v1946 = vmax.f32 %v1547, %v1818
        %v1947 = vmax.f32 %v1550, %v1819
        %v1948 = vmax.f32 %v1553, %v1820
        %v1949 = vmax.f32 %v1556, %v1821
        %v1950 = vmax.f32 %v1559, %v1822
        %v1951 = vmax.f32 %v1562, %v1823
        %v1952 = vmax.f32 %v1565, %v1824
        %v1953 = vmax.f32 %v1568, %v1825
        %v1954 = vmax.f32 %v1571, %v1826
        %v1955 = vmax.f32 %v1574, %v1827
        %v1956 = vmax.f32 %v1577, %v1828
        %v1957 = vmax.f32 %v1580, %v1829
        %v1958 = vmax.f32 %v1583, %v1830
        %v1959 = vmax.f32 %v1586, %v1831
        %v1960 = vmax.f32 %v1589, %v1832
        %v1961 = vmax.f32 %v1592, %v1833
        %v1962 = vmax.f32 %v1595, %v1834
        %v1963 = vmax.f32 %v1598, %v1835
        %v1964 = vmax.f32 %v1601, %v1836
        %v1965 = vmax.f32 %v1604, %v1837
        %v1966 = vmax.f32 %v1607, %v1838
        %v1967 = vmax.f32 %v1610, %v1839
        %v1968 = vmax.f32 %v1613, %v1840
        %v1969 = vmax.f32 %v1616, %v1841
        %v1970 = vmax.f32 %v1619, %v1842
        %v1971 = vmax.f32 %v1622, %v1843
        %v1972 = vmax.f32 %v1625, %v1844
        %v1973 = vmax.f32 %v1628, %v1845
        %v1974 = vmax.f32 %v1631, %v1846
        %v1975 = vmax.f32 %v1634, %v1847
        %v1976 = vmax.f32 %v1637, %v1848
        %v1977 = vmax.f32 %v1640, %v1849
        %v1978 = vmax.f32 %v1643, %v1850
        %v1979 = vmax.f32 %v1646, %v1851
        %v1980 = vmax.f32 %v1649, %v1852
        %v1981 = vmax.f32 %v1652, %v1853
        %v1982 = vmax.f32 %v1655, %v1854
        %v1983 = vmax.f32 %v1658, %v1855
        %v1984 = vmax.f32 %v1661, %v1856
        %v1985 = vmax.f32 %v1664, %v1857
        %v1986 = vmax.f32 %v1667, %v1858
        %v1987 = vmax.f32 %v1670, %v1859
        %v1988 = vmax.f32 %v1673, %v1860
        %v1989 = vmax.f32 %v1676, %v1861
        %v1990 = vmax.f32 %v1679, %v1862
        %v1991 = vmax.f32 %v1682, %v1863
        %v1992 = vmax.f32 %v1685, %v1864
        %v1993 = vmax.f32 %v1688, %v1865
        %v1994 = vmax.f32 %v1691, %v1866
        %v1995 = vmax.f32 %v1694, %v1867
        %v1996 = vmax.f32 %v1697, %v1868
        %v1997 = vmax.f32 %v1700, %v1869
        %v1998 = vmax.f32 %v1703, %v1870
        %v1999 = vmax.f32 %v1706, %v1871
        %v2000 = vmax.f32 %v1709, %v1872
        %v2001 = vmax.f32 %v1712, %v1873
        %v2002 = vmax.f32 %v1715, %v1874
        %v2003 = vmax.f32 %v1718, %v1875
        %v2004 = vmax.f32 %v1721, %v1876
        %v2005 = vmax.f32 %v1724, %v1877
        %v2006 = vmax.f32 %v1727, %v1878
        %v2007 = vmax.f32 %v1730, %v1879
        %v2008 = vmax.f32 %v1733, %v1880
        %v2009 = vmax.f32 %v1736, %v1881
        %v2010 = vmax.f32 %v1739, %v1882
        %v2011 = vmax.f32 %v1742, %v1883
        %v2012 = vmax.f32 %v1745, %v1884
        %v2013 = vmax.f32 %v1748, %v1885
        %v2014 = vmax.f32 %v1751, %v1886
        %v2015 = vmax.f32 %v1754, %v1887
        %v2016 = vmax.f32 %v1757, %v1888
        %v2017 = vmax.f32 %v1760, %v1889
        %v2018 = vld [vmem:[%s3] sm:$0xff]
        %v2019 = vld [vmem:[%s3 + $0x8] sm:$0xff]
        %v2020 = vld [vmem:[%s3 + $0x10] sm:$0xff]
        %v2021 = vld [vmem:[%s3 + $0x18] sm:$0xff]
        %v2022 = vld [vmem:[%s3 + $0x20] sm:$0xff]
        %v2023 = vld [vmem:[%s3 + $0x28] sm:$0xff]
        %v2024 = vld [vmem:[%s3 + $0x30] sm:$0xff]
        %v2025 = vld [vmem:[%s3 + $0x38] sm:$0xff]
        %v2026 = vld [vmem:[%s4] sm:$0x1]
        %v2028 = vperm.slane %v2026, 0
        %vm2030 = vcmask 523264
        %v2032 = vsel %vm2030, %v1890, 0
        %v2035 = vsel %vm2030, %v1891, 0
        %v2038 = vsel %vm2030, %v1892, 0
        %v2041 = vsel %vm2030, %v1893, 0
        %v2044 = vsel %vm2030, %v1894, 0
        %v2047 = vsel %vm2030, %v1895, 0
        %v2050 = vsel %vm2030, %v1896, 0
        %v2053 = vsel %vm2030, %v1897, 0
        %v2056 = vsel %vm2030, %v1898, 0
        %v2059 = vsel %vm2030, %v1899, 0
        %v2062 = vsel %vm2030, %v1900, 0
        %v2065 = vsel %vm2030, %v1901, 0
        %v2068 = vsel %vm2030, %v1902, 0
        %v2071 = vsel %vm2030, %v1903, 0
        %v2074 = vsel %vm2030, %v1904, 0
        %v2077 = vsel %vm2030, %v1905, 0
        %v2080 = vsel %vm2030, %v1906, 0
        %v2083 = vsel %vm2030, %v1907, 0
        %v2086 = vsel %vm2030, %v1908, 0
        %v2089 = vsel %vm2030, %v1909, 0
        %v2092 = vsel %vm2030, %v1910, 0
        %v2095 = vsel %vm2030, %v1911, 0
        %v2098 = vsel %vm2030, %v1912, 0
        %v2101 = vsel %vm2030, %v1913, 0
        %v2104 = vsel %vm2030, %v1914, 0
        %v2107 = vsel %vm2030, %v1915, 0
        %v2110 = vsel %vm2030, %v1916, 0
        %v2113 = vsel %vm2030, %v1917, 0
        %v2116 = vsel %vm2030, %v1918, 0
        %v2119 = vsel %vm2030, %v1919, 0
        %v2122 = vsel %vm2030, %v1920, 0
        %v2125 = vsel %vm2030, %v1921, 0
        %v2128 = vsel %vm2030, %v1922, 0
        %v2131 = vsel %vm2030, %v1923, 0
        %v2134 = vsel %vm2030, %v1924, 0
        %v2137 = vsel %vm2030, %v1925, 0
        %v2140 = vsel %vm2030, %v1926, 0
        %v2143 = vsel %vm2030, %v1927, 0
        %v2146 = vsel %vm2030, %v1928, 0
        %v2149 = vsel %vm2030, %v1929, 0
        %v2152 = vsel %vm2030, %v1930, 0
        %v2155 = vsel %vm2030, %v1931, 0
        %v2158 = vsel %vm2030, %v1932, 0
        %v2161 = vsel %vm2030, %v1933, 0
        %v2164 = vsel %vm2030, %v1934, 0
        %v2167 = vsel %vm2030, %v1935, 0
        %v2170 = vsel %vm2030, %v1936, 0
        %v2173 = vsel %vm2030, %v1937, 0
        %v2176 = vsel %vm2030, %v1938, 0
        %v2179 = vsel %vm2030, %v1939, 0
        %v2182 = vsel %vm2030, %v1940, 0
        %v2185 = vsel %vm2030, %v1941, 0
        %v2188 = vsel %vm2030, %v1942, 0
        %v2191 = vsel %vm2030, %v1943, 0
        %v2194 = vsel %vm2030, %v1944, 0
        %v2197 = vsel %vm2030, %v1945, 0
        %v2200 = vsel %vm2030, %v1946, 0
        %v2203 = vsel %vm2030, %v1947, 0
        %v2206 = vsel %vm2030, %v1948, 0
        %v2209 = vsel %vm2030, %v1949, 0
        %v2212 = vsel %vm2030, %v1950, 0
        %v2215 = vsel %vm2030, %v1951, 0
        %v2218 = vsel %vm2030, %v1952, 0
        %v2221 = vsel %vm2030, %v1953, 0
        %v2224 = vsel %vm2030, %v1954, 0
        %v2227 = vsel %vm2030, %v1955, 0
        %v2230 = vsel %vm2030, %v1956, 0
        %v2233 = vsel %vm2030, %v1957, 0
        %v2236 = vsel %vm2030, %v1958, 0
        %v2239 = vsel %vm2030, %v1959, 0
        %v2242 = vsel %vm2030, %v1960, 0
        %v2245 = vsel %vm2030, %v1961, 0
        %v2248 = vsel %vm2030, %v1962, 0
        %v2251 = vsel %vm2030, %v1963, 0
        %v2254 = vsel %vm2030, %v1964, 0
        %v2257 = vsel %vm2030, %v1965, 0
        %v2260 = vsel %vm2030, %v1966, 0
        %v2263 = vsel %vm2030, %v1967, 0
        %v2266 = vsel %vm2030, %v1968, 0
        %v2269 = vsel %vm2030, %v1969, 0
        %v2272 = vsel %vm2030, %v1970, 0
        %v2275 = vsel %vm2030, %v1971, 0
        %v2278 = vsel %vm2030, %v1972, 0
        %v2281 = vsel %vm2030, %v1973, 0
        %v2284 = vsel %vm2030, %v1974, 0
        %v2287 = vsel %vm2030, %v1975, 0
        %v2290 = vsel %vm2030, %v1976, 0
        %v2293 = vsel %vm2030, %v1977, 0
        %v2296 = vsel %vm2030, %v1978, 0
        %v2299 = vsel %vm2030, %v1979, 0
        %v2302 = vsel %vm2030, %v1980, 0
        %v2305 = vsel %vm2030, %v1981, 0
        %v2308 = vsel %vm2030, %v1982, 0
        %v2311 = vsel %vm2030, %v1983, 0
        %v2314 = vsel %vm2030, %v1984, 0
        %v2317 = vsel %vm2030, %v1985, 0
        %v2320 = vsel %vm2030, %v1986, 0
        %v2323 = vsel %vm2030, %v1987, 0
        %v2326 = vsel %vm2030, %v1988, 0
        %v2329 = vsel %vm2030, %v1989, 0
        %v2332 = vsel %vm2030, %v1990, 0
        %v2335 = vsel %vm2030, %v1991, 0
        %v2338 = vsel %vm2030, %v1992, 0
        %v2341 = vsel %vm2030, %v1993, 0
        %v2344 = vsel %vm2030, %v1994, 0
        %v2347 = vsel %vm2030, %v1995, 0
        %v2350 = vsel %vm2030, %v1996, 0
        %v2353 = vsel %vm2030, %v1997, 0
        %v2356 = vsel %vm2030, %v1998, 0
        %v2359 = vsel %vm2030, %v1999, 0
        %v2362 = vsel %vm2030, %v2000, 0
        %v2365 = vsel %vm2030, %v2001, 0
        %v2368 = vsel %vm2030, %v2002, 0
        %v2371 = vsel %vm2030, %v2003, 0
        %v2374 = vsel %vm2030, %v2004, 0
        %v2377 = vsel %vm2030, %v2005, 0
        %v2380 = vsel %vm2030, %v2006, 0
        %v2383 = vsel %vm2030, %v2007, 0
        %v2386 = vsel %vm2030, %v2008, 0
        %v2389 = vsel %vm2030, %v2009, 0
        %v2392 = vsel %vm2030, %v2010, 0
        %v2395 = vsel %vm2030, %v2011, 0
        %v2398 = vsel %vm2030, %v2012, 0
        %v2401 = vsel %vm2030, %v2013, 0
        %v2404 = vsel %vm2030, %v2014, 0
        %v2407 = vsel %vm2030, %v2015, 0
        %v2410 = vsel %vm2030, %v2016, 0
        %v2413 = vsel %vm2030, %v2017, 0
        %2415 = vmatpush.msra.mxu0 0.0
        %2416 = vmatpush.msra.mxu0 0.0
        %2417 = vmatpush.msra.mxu0 0.0
        %2418 = vmatpush.msra.mxu0 0.0
        %2419 = vmatpush.msra.mxu0 0.0
        %2420 = vmatpush.msra.mxu0 0.0
        %2421 = vmatpush.msra.mxu0 0.0
        %2422 = vmatpush.msra.mxu0 0.0
        %2423 = vmatpush.msra.mxu0 %v2025
        %2424 = vmatpush.msra.mxu0 %v2024
        %2425 = vmatpush.msra.mxu0 %v2023
        %2426 = vmatpush.msra.mxu0 %v2022
        %2427 = vmatpush.msra.mxu0 %v2021
        %2428 = vmatpush.msra.mxu0 %v2020
        %2429 = vmatpush.msra.mxu0 %v2019
        %2430 = vmatpush.msra.mxu0 %v2018
        %2431 = vmatmul.f32.gmra.mxu0 %v2032
        %v2432 = vpop.f32.mrf.mxu0
        %v2433 = vadd.f32 %v2028, %v2432
        %2434 = vmatmul.f32.gmra.mxu0 %v2035
        %v2435 = vpop.f32.mrf.mxu0
        %v2436 = vadd.f32 %v2028, %v2435
        %2437 = vmatmul.f32.gmra.mxu0 %v2038
        %v2438 = vpop.f32.mrf.mxu0
        %v2439 = vadd.f32 %v2028, %v2438
        %2440 = vmatmul.f32.gmra.mxu0 %v2041
        %v2441 = vpop.f32.mrf.mxu0
        %v2442 = vadd.f32 %v2028, %v2441
        %2443 = vmatmul.f32.gmra.mxu0 %v2044
        %v2444 = vpop.f32.mrf.mxu0
        %v2445 = vadd.f32 %v2028, %v2444
        %2446 = vmatmul.f32.gmra.mxu0 %v2047
        %v2447 = vpop.f32.mrf.mxu0
        %v2448 = vadd.f32 %v2028, %v2447
        %2449 = vmatmul.f32.gmra.mxu0 %v2050
        %v2450 = vpop.f32.mrf.mxu0
        %v2451 = vadd.f32 %v2028, %v2450
        %2452 = vmatmul.f32.gmra.mxu0 %v2053
        %v2453 = vpop.f32.mrf.mxu0
        %v2454 = vadd.f32 %v2028, %v2453
        %2455 = vmatmul.f32.gmra.mxu0 %v2056
        %v2456 = vpop.f32.mrf.mxu0
        %v2457 = vadd.f32 %v2028, %v2456
        %2458 = vmatmul.f32.gmra.mxu0 %v2059
        %v2459 = vpop.f32.mrf.mxu0
        %v2460 = vadd.f32 %v2028, %v2459
        %2461 = vmatmul.f32.gmra.mxu0 %v2062
        %v2462 = vpop.f32.mrf.mxu0
        %v2463 = vadd.f32 %v2028, %v2462
        %2464 = vmatmul.f32.gmra.mxu0 %v2065
        %v2465 = vpop.f32.mrf.mxu0
        %v2466 = vadd.f32 %v2028, %v2465
        %2467 = vmatmul.f32.gmra.mxu0 %v2068
        %v2468 = vpop.f32.mrf.mxu0
        %v2469 = vadd.f32 %v2028, %v2468
        %2470 = vmatmul.f32.gmra.mxu0 %v2071
        %v2471 = vpop.f32.mrf.mxu0
        %v2472 = vadd.f32 %v2028, %v2471
        %2473 = vmatmul.f32.gmra.mxu0 %v2074
        %v2474 = vpop.f32.mrf.mxu0
        %v2475 = vadd.f32 %v2028, %v2474
        %2476 = vmatmul.f32.gmra.mxu0 %v2077
        %v2477 = vpop.f32.mrf.mxu0
        %v2478 = vadd.f32 %v2028, %v2477
        %2479 = vmatmul.f32.gmra.mxu0 %v2080
        %v2480 = vpop.f32.mrf.mxu0
        %v2481 = vadd.f32 %v2028, %v2480
        %2482 = vmatmul.f32.gmra.mxu0 %v2083
        %v2483 = vpop.f32.mrf.mxu0
        %v2484 = vadd.f32 %v2028, %v2483
        %2485 = vmatmul.f32.gmra.mxu0 %v2086
        %v2486 = vpop.f32.mrf.mxu0
        %v2487 = vadd.f32 %v2028, %v2486
        %2488 = vmatmul.f32.gmra.mxu0 %v2089
        %v2489 = vpop.f32.mrf.mxu0
        %v2490 = vadd.f32 %v2028, %v2489
        %2491 = vmatmul.f32.gmra.mxu0 %v2092
        %v2492 = vpop.f32.mrf.mxu0
        %v2493 = vadd.f32 %v2028, %v2492
        %2494 = vmatmul.f32.gmra.mxu0 %v2095
        %v2495 = vpop.f32.mrf.mxu0
        %v2496 = vadd.f32 %v2028, %v2495
        %2497 = vmatmul.f32.gmra.mxu0 %v2098
        %v2498 = vpop.f32.mrf.mxu0
        %v2499 = vadd.f32 %v2028, %v2498
        %2500 = vmatmul.f32.gmra.mxu0 %v2101
        %v2501 = vpop.f32.mrf.mxu0
        %v2502 = vadd.f32 %v2028, %v2501
        %2503 = vmatmul.f32.gmra.mxu0 %v2104
        %v2504 = vpop.f32.mrf.mxu0
        %v2505 = vadd.f32 %v2028, %v2504
        %2506 = vmatmul.f32.gmra.mxu0 %v2107
        %v2507 = vpop.f32.mrf.mxu0
        %v2508 = vadd.f32 %v2028, %v2507
        %2509 = vmatmul.f32.gmra.mxu0 %v2110
        %v2510 = vpop.f32.mrf.mxu0
        %v2511 = vadd.f32 %v2028, %v2510
        %2512 = vmatmul.f32.gmra.mxu0 %v2113
        %v2513 = vpop.f32.mrf.mxu0
        %v2514 = vadd.f32 %v2028, %v2513
        %2515 = vmatmul.f32.gmra.mxu0 %v2116
        %v2516 = vpop.f32.mrf.mxu0
        %v2517 = vadd.f32 %v2028, %v2516
        %2518 = vmatmul.f32.gmra.mxu0 %v2119
        %v2519 = vpop.f32.mrf.mxu0
        %v2520 = vadd.f32 %v2028, %v2519
        %2521 = vmatmul.f32.gmra.mxu0 %v2122
        %v2522 = vpop.f32.mrf.mxu0
        %v2523 = vadd.f32 %v2028, %v2522
        %2524 = vmatmul.f32.gmra.mxu0 %v2125
        %v2525 = vpop.f32.mrf.mxu0
        %v2526 = vadd.f32 %v2028, %v2525
        %2527 = vmatmul.f32.gmra.mxu0 %v2128
        %v2528 = vpop.f32.mrf.mxu0
        %v2529 = vadd.f32 %v2028, %v2528
        %2530 = vmatmul.f32.gmra.mxu0 %v2131
        %v2531 = vpop.f32.mrf.mxu0
        %v2532 = vadd.f32 %v2028, %v2531
        %2533 = vmatmul.f32.gmra.mxu0 %v2134
        %v2534 = vpop.f32.mrf.mxu0
        %v2535 = vadd.f32 %v2028, %v2534
        %2536 = vmatmul.f32.gmra.mxu0 %v2137
        %v2537 = vpop.f32.mrf.mxu0
        %v2538 = vadd.f32 %v2028, %v2537
        %2539 = vmatmul.f32.gmra.mxu0 %v2140
        %v2540 = vpop.f32.mrf.mxu0
        %v2541 = vadd.f32 %v2028, %v2540
        %2542 = vmatmul.f32.gmra.mxu0 %v2143
        %v2543 = vpop.f32.mrf.mxu0
        %v2544 = vadd.f32 %v2028, %v2543
        %2545 = vmatmul.f32.gmra.mxu0 %v2146
        %v2546 = vpop.f32.mrf.mxu0
        %v2547 = vadd.f32 %v2028, %v2546
        %2548 = vmatmul.f32.gmra.mxu0 %v2149
        %v2549 = vpop.f32.mrf.mxu0
        %v2550 = vadd.f32 %v2028, %v2549
        %2551 = vmatmul.f32.gmra.mxu0 %v2152
        %v2552 = vpop.f32.mrf.mxu0
        %v2553 = vadd.f32 %v2028, %v2552
        %2554 = vmatmul.f32.gmra.mxu0 %v2155
        %v2555 = vpop.f32.mrf.mxu0
        %v2556 = vadd.f32 %v2028, %v2555
        %2557 = vmatmul.f32.gmra.mxu0 %v2158
        %v2558 = vpop.f32.mrf.mxu0
        %v2559 = vadd.f32 %v2028, %v2558
        %2560 = vmatmul.f32.gmra.mxu0 %v2161
        %v2561 = vpop.f32.mrf.mxu0
        %v2562 = vadd.f32 %v2028, %v2561
        %2563 = vmatmul.f32.gmra.mxu0 %v2164
        %v2564 = vpop.f32.mrf.mxu0
        %v2565 = vadd.f32 %v2028, %v2564
        %2566 = vmatmul.f32.gmra.mxu0 %v2167
        %v2567 = vpop.f32.mrf.mxu0
        %v2568 = vadd.f32 %v2028, %v2567
        %2569 = vmatmul.f32.gmra.mxu0 %v2170
        %v2570 = vpop.f32.mrf.mxu0
        %v2571 = vadd.f32 %v2028, %v2570
        %2572 = vmatmul.f32.gmra.mxu0 %v2173
        %v2573 = vpop.f32.mrf.mxu0
        %v2574 = vadd.f32 %v2028, %v2573
        %2575 = vmatmul.f32.gmra.mxu0 %v2176
        %v2576 = vpop.f32.mrf.mxu0
        %v2577 = vadd.f32 %v2028, %v2576
        %2578 = vmatmul.f32.gmra.mxu0 %v2179
        %v2579 = vpop.f32.mrf.mxu0
        %v2580 = vadd.f32 %v2028, %v2579
        %2581 = vmatmul.f32.gmra.mxu0 %v2182
        %v2582 = vpop.f32.mrf.mxu0
        %v2583 = vadd.f32 %v2028, %v2582
        %2584 = vmatmul.f32.gmra.mxu0 %v2185
        %v2585 = vpop.f32.mrf.mxu0
        %v2586 = vadd.f32 %v2028, %v2585
        %2587 = vmatmul.f32.gmra.mxu0 %v2188
        %v2588 = vpop.f32.mrf.mxu0
        %v2589 = vadd.f32 %v2028, %v2588
        %2590 = vmatmul.f32.gmra.mxu0 %v2191
        %v2591 = vpop.f32.mrf.mxu0
        %v2592 = vadd.f32 %v2028, %v2591
        %2593 = vmatmul.f32.gmra.mxu0 %v2194
        %v2594 = vpop.f32.mrf.mxu0
        %v2595 = vadd.f32 %v2028, %v2594
        %2596 = vmatmul.f32.gmra.mxu0 %v2197
        %v2597 = vpop.f32.mrf.mxu0
        %v2598 = vadd.f32 %v2028, %v2597
        %2599 = vmatmul.f32.gmra.mxu0 %v2200
        %v2600 = vpop.f32.mrf.mxu0
        %v2601 = vadd.f32 %v2028, %v2600
        %2602 = vmatmul.f32.gmra.mxu0 %v2203
        %v2603 = vpop.f32.mrf.mxu0
        %v2604 = vadd.f32 %v2028, %v2603
        %2605 = vmatmul.f32.gmra.mxu0 %v2206
        %v2606 = vpop.f32.mrf.mxu0
        %v2607 = vadd.f32 %v2028, %v2606
        %2608 = vmatmul.f32.gmra.mxu0 %v2209
        %v2609 = vpop.f32.mrf.mxu0
        %v2610 = vadd.f32 %v2028, %v2609
        %2611 = vmatmul.f32.gmra.mxu0 %v2212
        %v2612 = vpop.f32.mrf.mxu0
        %v2613 = vadd.f32 %v2028, %v2612
        %2614 = vmatmul.f32.gmra.mxu0 %v2215
        %v2615 = vpop.f32.mrf.mxu0
        %v2616 = vadd.f32 %v2028, %v2615
        %2617 = vmatmul.f32.gmra.mxu0 %v2218
        %v2618 = vpop.f32.mrf.mxu0
        %v2619 = vadd.f32 %v2028, %v2618
        %2620 = vmatmul.f32.gmra.mxu0 %v2221
        %v2621 = vpop.f32.mrf.mxu0
        %v2622 = vadd.f32 %v2028, %v2621
        %2623 = vmatmul.f32.gmra.mxu0 %v2224
        %v2624 = vpop.f32.mrf.mxu0
        %v2625 = vadd.f32 %v2028, %v2624
        %2626 = vmatmul.f32.gmra.mxu0 %v2227
        %v2627 = vpop.f32.mrf.mxu0
        %v2628 = vadd.f32 %v2028, %v2627
        %2629 = vmatmul.f32.gmra.mxu0 %v2230
        %v2630 = vpop.f32.mrf.mxu0
        %v2631 = vadd.f32 %v2028, %v2630
        %2632 = vmatmul.f32.gmra.mxu0 %v2233
        %v2633 = vpop.f32.mrf.mxu0
        %v2634 = vadd.f32 %v2028, %v2633
        %2635 = vmatmul.f32.gmra.mxu0 %v2236
        %v2636 = vpop.f32.mrf.mxu0
        %v2637 = vadd.f32 %v2028, %v2636
        %2638 = vmatmul.f32.gmra.mxu0 %v2239
        %v2639 = vpop.f32.mrf.mxu0
        %v2640 = vadd.f32 %v2028, %v2639
        %2641 = vmatmul.f32.gmra.mxu0 %v2242
        %v2642 = vpop.f32.mrf.mxu0
        %v2643 = vadd.f32 %v2028, %v2642
        %2644 = vmatmul.f32.gmra.mxu0 %v2245
        %v2645 = vpop.f32.mrf.mxu0
        %v2646 = vadd.f32 %v2028, %v2645
        %2647 = vmatmul.f32.gmra.mxu0 %v2248
        %v2648 = vpop.f32.mrf.mxu0
        %v2649 = vadd.f32 %v2028, %v2648
        %2650 = vmatmul.f32.gmra.mxu0 %v2251
        %v2651 = vpop.f32.mrf.mxu0
        %v2652 = vadd.f32 %v2028, %v2651
        %2653 = vmatmul.f32.gmra.mxu0 %v2254
        %v2654 = vpop.f32.mrf.mxu0
        %v2655 = vadd.f32 %v2028, %v2654
        %2656 = vmatmul.f32.gmra.mxu0 %v2257
        %v2657 = vpop.f32.mrf.mxu0
        %v2658 = vadd.f32 %v2028, %v2657
        %2659 = vmatmul.f32.gmra.mxu0 %v2260
        %v2660 = vpop.f32.mrf.mxu0
        %v2661 = vadd.f32 %v2028, %v2660
        %2662 = vmatmul.f32.gmra.mxu0 %v2263
        %v2663 = vpop.f32.mrf.mxu0
        %v2664 = vadd.f32 %v2028, %v2663
        %2665 = vmatmul.f32.gmra.mxu0 %v2266
        %v2666 = vpop.f32.mrf.mxu0
        %v2667 = vadd.f32 %v2028, %v2666
        %2668 = vmatmul.f32.gmra.mxu0 %v2269
        %v2669 = vpop.f32.mrf.mxu0
        %v2670 = vadd.f32 %v2028, %v2669
        %2671 = vmatmul.f32.gmra.mxu0 %v2272
        %v2672 = vpop.f32.mrf.mxu0
        %v2673 = vadd.f32 %v2028, %v2672
        %2674 = vmatmul.f32.gmra.mxu0 %v2275
        %v2675 = vpop.f32.mrf.mxu0
        %v2676 = vadd.f32 %v2028, %v2675
        %2677 = vmatmul.f32.gmra.mxu0 %v2278
        %v2678 = vpop.f32.mrf.mxu0
        %v2679 = vadd.f32 %v2028, %v2678
        %2680 = vmatmul.f32.gmra.mxu0 %v2281
        %v2681 = vpop.f32.mrf.mxu0
        %v2682 = vadd.f32 %v2028, %v2681
        %2683 = vmatmul.f32.gmra.mxu0 %v2284
        %v2684 = vpop.f32.mrf.mxu0
        %v2685 = vadd.f32 %v2028, %v2684
        %2686 = vmatmul.f32.gmra.mxu0 %v2287
        %v2687 = vpop.f32.mrf.mxu0
        %v2688 = vadd.f32 %v2028, %v2687
        %2689 = vmatmul.f32.gmra.mxu0 %v2290
        %v2690 = vpop.f32.mrf.mxu0
        %v2691 = vadd.f32 %v2028, %v2690
        %2692 = vmatmul.f32.gmra.mxu0 %v2293
        %v2693 = vpop.f32.mrf.mxu0
        %v2694 = vadd.f32 %v2028, %v2693
        %2695 = vmatmul.f32.gmra.mxu0 %v2296
        %v2696 = vpop.f32.mrf.mxu0
        %v2697 = vadd.f32 %v2028, %v2696
        %2698 = vmatmul.f32.gmra.mxu0 %v2299
        %v2699 = vpop.f32.mrf.mxu0
        %v2700 = vadd.f32 %v2028, %v2699
        %2701 = vmatmul.f32.gmra.mxu0 %v2302
        %v2702 = vpop.f32.mrf.mxu0
        %v2703 = vadd.f32 %v2028, %v2702
        %2704 = vmatmul.f32.gmra.mxu0 %v2305
        %v2705 = vpop.f32.mrf.mxu0
        %v2706 = vadd.f32 %v2028, %v2705
        %2707 = vmatmul.f32.gmra.mxu0 %v2308
        %v2708 = vpop.f32.mrf.mxu0
        %v2709 = vadd.f32 %v2028, %v2708
        %2710 = vmatmul.f32.gmra.mxu0 %v2311
        %v2711 = vpop.f32.mrf.mxu0
        %v2712 = vadd.f32 %v2028, %v2711
        %2713 = vmatmul.f32.gmra.mxu0 %v2314
        %v2714 = vpop.f32.mrf.mxu0
        %v2715 = vadd.f32 %v2028, %v2714
        %2716 = vmatmul.f32.gmra.mxu0 %v2317
        %v2717 = vpop.f32.mrf.mxu0
        %v2718 = vadd.f32 %v2028, %v2717
        %2719 = vmatmul.f32.gmra.mxu0 %v2320
        %v2720 = vpop.f32.mrf.mxu0
        %v2721 = vadd.f32 %v2028, %v2720
        %2722 = vmatmul.f32.gmra.mxu0 %v2323
        %v2723 = vpop.f32.mrf.mxu0
        %v2724 = vadd.f32 %v2028, %v2723
        %2725 = vmatmul.f32.gmra.mxu0 %v2326
        %v2726 = vpop.f32.mrf.mxu0
        %v2727 = vadd.f32 %v2028, %v2726
        %2728 = vmatmul.f32.gmra.mxu0 %v2329
        %v2729 = vpop.f32.mrf.mxu0
        %v2730 = vadd.f32 %v2028, %v2729
        %2731 = vmatmul.f32.gmra.mxu0 %v2332
        %v2732 = vpop.f32.mrf.mxu0
        %v2733 = vadd.f32 %v2028, %v2732
        %2734 = vmatmul.f32.gmra.mxu0 %v2335
        %v2735 = vpop.f32.mrf.mxu0
        %v2736 = vadd.f32 %v2028, %v2735
        %2737 = vmatmul.f32.gmra.mxu0 %v2338
        %v2738 = vpop.f32.mrf.mxu0
        %v2739 = vadd.f32 %v2028, %v2738
        %2740 = vmatmul.f32.gmra.mxu0 %v2341
        %v2741 = vpop.f32.mrf.mxu0
        %v2742 = vadd.f32 %v2028, %v2741
        %2743 = vmatmul.f32.gmra.mxu0 %v2344
        %v2744 = vpop.f32.mrf.mxu0
        %v2745 = vadd.f32 %v2028, %v2744
        %2746 = vmatmul.f32.gmra.mxu0 %v2347
        %v2747 = vpop.f32.mrf.mxu0
        %v2748 = vadd.f32 %v2028, %v2747
        %2749 = vmatmul.f32.gmra.mxu0 %v2350
        %v2750 = vpop.f32.mrf.mxu0
        %v2751 = vadd.f32 %v2028, %v2750
        %2752 = vmatmul.f32.gmra.mxu0 %v2353
        %v2753 = vpop.f32.mrf.mxu0
        %v2754 = vadd.f32 %v2028, %v2753
        %2755 = vmatmul.f32.gmra.mxu0 %v2356
        %v2756 = vpop.f32.mrf.mxu0
        %v2757 = vadd.f32 %v2028, %v2756
        %2758 = vmatmul.f32.gmra.mxu0 %v2359
        %v2759 = vpop.f32.mrf.mxu0
        %v2760 = vadd.f32 %v2028, %v2759
        %2761 = vmatmul.f32.gmra.mxu0 %v2362
        %v2762 = vpop.f32.mrf.mxu0
        %v2763 = vadd.f32 %v2028, %v2762
        %2764 = vmatmul.f32.gmra.mxu0 %v2365
        %v2765 = vpop.f32.mrf.mxu0
        %v2766 = vadd.f32 %v2028, %v2765
        %2767 = vmatmul.f32.gmra.mxu0 %v2368
        %v2768 = vpop.f32.mrf.mxu0
        %v2769 = vadd.f32 %v2028, %v2768
        %2770 = vmatmul.f32.gmra.mxu0 %v2371
        %v2771 = vpop.f32.mrf.mxu0
        %v2772 = vadd.f32 %v2028, %v2771
        %2773 = vmatmul.f32.gmra.mxu0 %v2374
        %v2774 = vpop.f32.mrf.mxu0
        %v2775 = vadd.f32 %v2028, %v2774
        %2776 = vmatmul.f32.gmra.mxu0 %v2377
        %v2777 = vpop.f32.mrf.mxu0
        %v2778 = vadd.f32 %v2028, %v2777
        %2779 = vmatmul.f32.gmra.mxu0 %v2380
        %v2780 = vpop.f32.mrf.mxu0
        %v2781 = vadd.f32 %v2028, %v2780
        %2782 = vmatmul.f32.gmra.mxu0 %v2383
        %v2783 = vpop.f32.mrf.mxu0
        %v2784 = vadd.f32 %v2028, %v2783
        %2785 = vmatmul.f32.gmra.mxu0 %v2386
        %v2786 = vpop.f32.mrf.mxu0
        %v2787 = vadd.f32 %v2028, %v2786
        %2788 = vmatmul.f32.gmra.mxu0 %v2389
        %v2789 = vpop.f32.mrf.mxu0
        %v2790 = vadd.f32 %v2028, %v2789
        %2791 = vmatmul.f32.gmra.mxu0 %v2392
        %v2792 = vpop.f32.mrf.mxu0
        %v2793 = vadd.f32 %v2028, %v2792
        %2794 = vmatmul.f32.gmra.mxu0 %v2395
        %v2795 = vpop.f32.mrf.mxu0
        %v2796 = vadd.f32 %v2028, %v2795
        %2797 = vmatmul.f32.gmra.mxu0 %v2398
        %v2798 = vpop.f32.mrf.mxu0
        %v2799 = vadd.f32 %v2028, %v2798
        %2800 = vmatmul.f32.gmra.mxu0 %v2401
        %v2801 = vpop.f32.mrf.mxu0
        %v2802 = vadd.f32 %v2028, %v2801
        %2803 = vmatmul.f32.gmra.mxu0 %v2404
        %v2804 = vpop.f32.mrf.mxu0
        %v2805 = vadd.f32 %v2028, %v2804
        %2806 = vmatmul.f32.gmra.mxu0 %v2407
        %v2807 = vpop.f32.mrf.mxu0
        %v2808 = vadd.f32 %v2028, %v2807
        %2809 = vmatmul.f32.gmra.mxu0 %v2410
        %v2810 = vpop.f32.mrf.mxu0
        %v2811 = vadd.f32 %v2028, %v2810
        %2812 = vmatmul.f32.gmra.mxu0 %v2413
        %v2813 = vpop.f32.mrf.mxu0
        %v2814 = vadd.f32 %v2028, %v2813
        %2815 = vdwg.mxu0
        %v2816 = vmul.f32 %v2433, 0.2
        %v2817 = vmul.f32 %v2436, 0.2
        %v2818 = vmul.f32 %v2439, 0.2
        %v2819 = vmul.f32 %v2442, 0.2
        %v2820 = vmul.f32 %v2445, 0.2
        %v2821 = vmul.f32 %v2448, 0.2
        %v2822 = vmul.f32 %v2451, 0.2
        %v2823 = vmul.f32 %v2454, 0.2
        %v2824 = vmul.f32 %v2457, 0.2
        %v2825 = vmul.f32 %v2460, 0.2
        %v2826 = vmul.f32 %v2463, 0.2
        %v2827 = vmul.f32 %v2466, 0.2
        %v2828 = vmul.f32 %v2469, 0.2
        %v2829 = vmul.f32 %v2472, 0.2
        %v2830 = vmul.f32 %v2475, 0.2
        %v2831 = vmul.f32 %v2478, 0.2
        %v2832 = vmul.f32 %v2481, 0.2
        %v2833 = vmul.f32 %v2484, 0.2
        %v2834 = vmul.f32 %v2487, 0.2
        %v2835 = vmul.f32 %v2490, 0.2
        %v2836 = vmul.f32 %v2493, 0.2
        %v2837 = vmul.f32 %v2496, 0.2
        %v2838 = vmul.f32 %v2499, 0.2
        %v2839 = vmul.f32 %v2502, 0.2
        %v2840 = vmul.f32 %v2505, 0.2
        %v2841 = vmul.f32 %v2508, 0.2
        %v2842 = vmul.f32 %v2511, 0.2
        %v2843 = vmul.f32 %v2514, 0.2
        %v2844 = vmul.f32 %v2517, 0.2
        %v2845 = vmul.f32 %v2520, 0.2
        %v2846 = vmul.f32 %v2523, 0.2
        %v2847 = vmul.f32 %v2526, 0.2
        %v2848 = vmul.f32 %v2529, 0.2
        %v2849 = vmul.f32 %v2532, 0.2
        %v2850 = vmul.f32 %v2535, 0.2
        %v2851 = vmul.f32 %v2538, 0.2
        %v2852 = vmul.f32 %v2541, 0.2
        %v2853 = vmul.f32 %v2544, 0.2
        %v2854 = vmul.f32 %v2547, 0.2
        %v2855 = vmul.f32 %v2550, 0.2
        %v2856 = vmul.f32 %v2553, 0.2
        %v2857 = vmul.f32 %v2556, 0.2
        %v2858 = vmul.f32 %v2559, 0.2
        %v2859 = vmul.f32 %v2562, 0.2
        %v2860 = vmul.f32 %v2565, 0.2
        %v2861 = vmul.f32 %v2568, 0.2
        %v2862 = vmul.f32 %v2571, 0.2
        %v2863 = vmul.f32 %v2574, 0.2
        %v2864 = vmul.f32 %v2577, 0.2
        %v2865 = vmul.f32 %v2580, 0.2
        %v2866 = vmul.f32 %v2583, 0.2
        %v2867 = vmul.f32 %v2586, 0.2
        %v2868 = vmul.f32 %v2589, 0.2
        %v2869 = vmul.f32 %v2592, 0.2
        %v2870 = vmul.f32 %v2595, 0.2
        %v2871 = vmul.f32 %v2598, 0.2
        %v2872 = vmul.f32 %v2601, 0.2
        %v2873 = vmul.f32 %v2604, 0.2
        %v2874 = vmul.f32 %v2607, 0.2
        %v2875 = vmul.f32 %v2610, 0.2
        %v2876 = vmul.f32 %v2613, 0.2
        %v2877 = vmul.f32 %v2616, 0.2
        %v2878 = vmul.f32 %v2619, 0.2
        %v2879 = vmul.f32 %v2622, 0.2
        %v2880 = vmul.f32 %v2625, 0.2
        %v2881 = vmul.f32 %v2628, 0.2
        %v2882 = vmul.f32 %v2631, 0.2
        %v2883 = vmul.f32 %v2634, 0.2
        %v2884 = vmul.f32 %v2637, 0.2
        %v2885 = vmul.f32 %v2640, 0.2
        %v2886 = vmul.f32 %v2643, 0.2
        %v2887 = vmul.f32 %v2646, 0.2
        %v2888 = vmul.f32 %v2649, 0.2
        %v2889 = vmul.f32 %v2652, 0.2
        %v2890 = vmul.f32 %v2655, 0.2
        %v2891 = vmul.f32 %v2658, 0.2
        %v2892 = vmul.f32 %v2661, 0.2
        %v2893 = vmul.f32 %v2664, 0.2
        %v2894 = vmul.f32 %v2667, 0.2
        %v2895 = vmul.f32 %v2670, 0.2
        %v2896 = vmul.f32 %v2673, 0.2
        %v2897 = vmul.f32 %v2676, 0.2
        %v2898 = vmul.f32 %v2679, 0.2
        %v2899 = vmul.f32 %v2682, 0.2
        %v2900 = vmul.f32 %v2685, 0.2
        %v2901 = vmul.f32 %v2688, 0.2
        %v2902 = vmul.f32 %v2691, 0.2
        %v2903 = vmul.f32 %v2694, 0.2
        %v2904 = vmul.f32 %v2697, 0.2
        %v2905 = vmul.f32 %v2700, 0.2
        %v2906 = vmul.f32 %v2703, 0.2
        %v2907 = vmul.f32 %v2706, 0.2
        %v2908 = vmul.f32 %v2709, 0.2
        %v2909 = vmul.f32 %v2712, 0.2
        %v2910 = vmul.f32 %v2715, 0.2
        %v2911 = vmul.f32 %v2718, 0.2
        %v2912 = vmul.f32 %v2721, 0.2
        %v2913 = vmul.f32 %v2724, 0.2
        %v2914 = vmul.f32 %v2727, 0.2
        %v2915 = vmul.f32 %v2730, 0.2
        %v2916 = vmul.f32 %v2733, 0.2
        %v2917 = vmul.f32 %v2736, 0.2
        %v2918 = vmul.f32 %v2739, 0.2
        %v2919 = vmul.f32 %v2742, 0.2
        %v2920 = vmul.f32 %v2745, 0.2
        %v2921 = vmul.f32 %v2748, 0.2
        %v2922 = vmul.f32 %v2751, 0.2
        %v2923 = vmul.f32 %v2754, 0.2
        %v2924 = vmul.f32 %v2757, 0.2
        %v2925 = vmul.f32 %v2760, 0.2
        %v2926 = vmul.f32 %v2763, 0.2
        %v2927 = vmul.f32 %v2766, 0.2
        %v2928 = vmul.f32 %v2769, 0.2
        %v2929 = vmul.f32 %v2772, 0.2
        %v2930 = vmul.f32 %v2775, 0.2
        %v2931 = vmul.f32 %v2778, 0.2
        %v2932 = vmul.f32 %v2781, 0.2
        %v2933 = vmul.f32 %v2784, 0.2
        %v2934 = vmul.f32 %v2787, 0.2
        %v2935 = vmul.f32 %v2790, 0.2
        %v2936 = vmul.f32 %v2793, 0.2
        %v2937 = vmul.f32 %v2796, 0.2
        %v2938 = vmul.f32 %v2799, 0.2
        %v2939 = vmul.f32 %v2802, 0.2
        %v2940 = vmul.f32 %v2805, 0.2
        %v2941 = vmul.f32 %v2808, 0.2
        %v2942 = vmul.f32 %v2811, 0.2
        %v2943 = vmul.f32 %v2814, 0.2
        %v2944 = vmax.f32 %v2433, %v2816
        %v2945 = vmax.f32 %v2436, %v2817
        %v2946 = vmax.f32 %v2439, %v2818
        %v2947 = vmax.f32 %v2442, %v2819
        %v2948 = vmax.f32 %v2445, %v2820
        %v2949 = vmax.f32 %v2448, %v2821
        %v2950 = vmax.f32 %v2451, %v2822
        %v2951 = vmax.f32 %v2454, %v2823
        %v2952 = vmax.f32 %v2457, %v2824
        %v2953 = vmax.f32 %v2460, %v2825
        %v2954 = vmax.f32 %v2463, %v2826
        %v2955 = vmax.f32 %v2466, %v2827
        %v2956 = vmax.f32 %v2469, %v2828
        %v2957 = vmax.f32 %v2472, %v2829
        %v2958 = vmax.f32 %v2475, %v2830
        %v2959 = vmax.f32 %v2478, %v2831
        %v2960 = vmax.f32 %v2481, %v2832
        %v2961 = vmax.f32 %v2484, %v2833
        %v2962 = vmax.f32 %v2487, %v2834
        %v2963 = vmax.f32 %v2490, %v2835
        %v2964 = vmax.f32 %v2493, %v2836
        %v2965 = vmax.f32 %v2496, %v2837
        %v2966 = vmax.f32 %v2499, %v2838
        %v2967 = vmax.f32 %v2502, %v2839
        %v2968 = vmax.f32 %v2505, %v2840
        %v2969 = vmax.f32 %v2508, %v2841
        %v2970 = vmax.f32 %v2511, %v2842
        %v2971 = vmax.f32 %v2514, %v2843
        %v2972 = vmax.f32 %v2517, %v2844
        %v2973 = vmax.f32 %v2520, %v2845
        %v2974 = vmax.f32 %v2523, %v2846
        %v2975 = vmax.f32 %v2526, %v2847
        %v2976 = vmax.f32 %v2529, %v2848
        %v2977 = vmax.f32 %v2532, %v2849
        %v2978 = vmax.f32 %v2535, %v2850
        %v2979 = vmax.f32 %v2538, %v2851
        %v2980 = vmax.f32 %v2541, %v2852
        %v2981 = vmax.f32 %v2544, %v2853
        %v2982 = vmax.f32 %v2547, %v2854
        %v2983 = vmax.f32 %v2550, %v2855
        %v2984 = vmax.f32 %v2553, %v2856
        %v2985 = vmax.f32 %v2556, %v2857
        %v2986 = vmax.f32 %v2559, %v2858
        %v2987 = vmax.f32 %v2562, %v2859
        %v2988 = vmax.f32 %v2565, %v2860
        %v2989 = vmax.f32 %v2568, %v2861
        %v2990 = vmax.f32 %v2571, %v2862
        %v2991 = vmax.f32 %v2574, %v2863
        %v2992 = vmax.f32 %v2577, %v2864
        %v2993 = vmax.f32 %v2580, %v2865
        %v2994 = vmax.f32 %v2583, %v2866
        %v2995 = vmax.f32 %v2586, %v2867
        %v2996 = vmax.f32 %v2589, %v2868
        %v2997 = vmax.f32 %v2592, %v2869
        %v2998 = vmax.f32 %v2595, %v2870
        %v2999 = vmax.f32 %v2598, %v2871
        %v3000 = vmax.f32 %v2601, %v2872
        %v3001 = vmax.f32 %v2604, %v2873
        %v3002 = vmax.f32 %v2607, %v2874
        %v3003 = vmax.f32 %v2610, %v2875
        %v3004 = vmax.f32 %v2613, %v2876
        %v3005 = vmax.f32 %v2616, %v2877
        %v3006 = vmax.f32 %v2619, %v2878
        %v3007 = vmax.f32 %v2622, %v2879
        %v3008 = vmax.f32 %v2625, %v2880
        %v3009 = vmax.f32 %v2628, %v2881
        %v3010 = vmax.f32 %v2631, %v2882
        %v3011 = vmax.f32 %v2634, %v2883
        %v3012 = vmax.f32 %v2637, %v2884
        %v3013 = vmax.f32 %v2640, %v2885
        %v3014 = vmax.f32 %v2643, %v2886
        %v3015 = vmax.f32 %v2646, %v2887
        %v3016 = vmax.f32 %v2649, %v2888
        %v3017 = vmax.f32 %v2652, %v2889
        %v3018 = vmax.f32 %v2655, %v2890
        %v3019 = vmax.f32 %v2658, %v2891
        %v3020 = vmax.f32 %v2661, %v2892
        %v3021 = vmax.f32 %v2664, %v2893
        %v3022 = vmax.f32 %v2667, %v2894
        %v3023 = vmax.f32 %v2670, %v2895
        %v3024 = vmax.f32 %v2673, %v2896
        %v3025 = vmax.f32 %v2676, %v2897
        %v3026 = vmax.f32 %v2679, %v2898
        %v3027 = vmax.f32 %v2682, %v2899
        %v3028 = vmax.f32 %v2685, %v2900
        %v3029 = vmax.f32 %v2688, %v2901
        %v3030 = vmax.f32 %v2691, %v2902
        %v3031 = vmax.f32 %v2694, %v2903
        %v3032 = vmax.f32 %v2697, %v2904
        %v3033 = vmax.f32 %v2700, %v2905
        %v3034 = vmax.f32 %v2703, %v2906
        %v3035 = vmax.f32 %v2706, %v2907
        %v3036 = vmax.f32 %v2709, %v2908
        %v3037 = vmax.f32 %v2712, %v2909
        %v3038 = vmax.f32 %v2715, %v2910
        %v3039 = vmax.f32 %v2718, %v2911
        %v3040 = vmax.f32 %v2721, %v2912
        %v3041 = vmax.f32 %v2724, %v2913
        %v3042 = vmax.f32 %v2727, %v2914
        %v3043 = vmax.f32 %v2730, %v2915
        %v3044 = vmax.f32 %v2733, %v2916
        %v3045 = vmax.f32 %v2736, %v2917
        %v3046 = vmax.f32 %v2739, %v2918
        %v3047 = vmax.f32 %v2742, %v2919
        %v3048 = vmax.f32 %v2745, %v2920
        %v3049 = vmax.f32 %v2748, %v2921
        %v3050 = vmax.f32 %v2751, %v2922
        %v3051 = vmax.f32 %v2754, %v2923
        %v3052 = vmax.f32 %v2757, %v2924
        %v3053 = vmax.f32 %v2760, %v2925
        %v3054 = vmax.f32 %v2763, %v2926
        %v3055 = vmax.f32 %v2766, %v2927
        %v3056 = vmax.f32 %v2769, %v2928
        %v3057 = vmax.f32 %v2772, %v2929
        %v3058 = vmax.f32 %v2775, %v2930
        %v3059 = vmax.f32 %v2778, %v2931
        %v3060 = vmax.f32 %v2781, %v2932
        %v3061 = vmax.f32 %v2784, %v2933
        %v3062 = vmax.f32 %v2787, %v2934
        %v3063 = vmax.f32 %v2790, %v2935
        %v3064 = vmax.f32 %v2793, %v2936
        %v3065 = vmax.f32 %v2796, %v2937
        %v3066 = vmax.f32 %v2799, %v2938
        %v3067 = vmax.f32 %v2802, %v2939
        %v3068 = vmax.f32 %v2805, %v2940
        %v3069 = vmax.f32 %v2808, %v2941
        %v3070 = vmax.f32 %v2811, %v2942
        %v3071 = vmax.f32 %v2814, %v2943
        %v3072 = vmax.f32 %v2944, %v2945
        %v3073 = vmax.f32 %v3072, %v2946
        %v3074 = vmax.f32 %v3073, %v2947
        %v3075 = vmax.f32 %v3074, %v2948
        %v3076 = vmax.f32 %v3075, %v2949
        %v3077 = vmax.f32 %v3076, %v2950
        %v3078 = vmax.f32 %v3077, %v2951
        %v3079 = vmax.f32 %v3078, %v2952
        %v3080 = vmax.f32 %v3079, %v2953
        %v3081 = vmax.f32 %v3080, %v2954
        %v3082 = vmax.f32 %v3081, %v2955
        %v3083 = vmax.f32 %v3082, %v2956
        %v3084 = vmax.f32 %v3083, %v2957
        %v3085 = vmax.f32 %v3084, %v2958
        %v3086 = vmax.f32 %v3085, %v2959
        %v3087 = vrot.slane %v3086, 4
        %v3088 = vmax.f32 %v3086, %v3087
        %v3089 = vrot.slane %v3088, 2
        %v3090 = vmax.f32 %v3088, %v3089
        %v3091 = vrot.slane %v3090, 1
        %v3092 = vmax.f32 %v3090, %v3091
        %v3093 = vmax.f32 %v2960, %v2961
        %v3094 = vmax.f32 %v3093, %v2962
        %v3095 = vmax.f32 %v3094, %v2963
        %v3096 = vmax.f32 %v3095, %v2964
        %v3097 = vmax.f32 %v3096, %v2965
        %v3098 = vmax.f32 %v3097, %v2966
        %v3099 = vmax.f32 %v3098, %v2967
        %v3100 = vmax.f32 %v3099, %v2968
        %v3101 = vmax.f32 %v3100, %v2969
        %v3102 = vmax.f32 %v3101, %v2970
        %v3103 = vmax.f32 %v3102, %v2971
        %v3104 = vmax.f32 %v3103, %v2972
        %v3105 = vmax.f32 %v3104, %v2973
        %v3106 = vmax.f32 %v3105, %v2974
        %v3107 = vmax.f32 %v3106, %v2975
        %v3108 = vrot.slane %v3107, 4
        %v3109 = vmax.f32 %v3107, %v3108
        %v3110 = vrot.slane %v3109, 2
        %v3111 = vmax.f32 %v3109, %v3110
        %v3112 = vrot.slane %v3111, 1
        %v3113 = vmax.f32 %v3111, %v3112
        %v3114 = vmax.f32 %v2976, %v2977
        %v3115 = vmax.f32 %v3114, %v2978
        %v3116 = vmax.f32 %v3115, %v2979
        %v3117 = vmax.f32 %v3116, %v2980
        %v3118 = vmax.f32 %v3117, %v2981
        %v3119 = vmax.f32 %v3118, %v2982
        %v3120 = vmax.f32 %v3119, %v2983
        %v3121 = vmax.f32 %v3120, %v2984
        %v3122 = vmax.f32 %v3121, %v2985
        %v3123 = vmax.f32 %v3122, %v2986
        %v3124 = vmax.f32 %v3123, %v2987
        %v3125 = vmax.f32 %v3124, %v2988
        %v3126 = vmax.f32 %v3125, %v2989
        %v3127 = vmax.f32 %v3126, %v2990
        %v3128 = vmax.f32 %v3127, %v2991
        %v3129 = vrot.slane %v3128, 4
        %v3130 = vmax.f32 %v3128, %v3129
        %v3131 = vrot.slane %v3130, 2
        %v3132 = vmax.f32 %v3130, %v3131
        %v3133 = vrot.slane %v3132, 1
        %v3134 = vmax.f32 %v3132, %v3133
        %v3135 = vmax.f32 %v2992, %v2993
        %v3136 = vmax.f32 %v3135, %v2994
        %v3137 = vmax.f32 %v3136, %v2995
        %v3138 = vmax.f32 %v3137, %v2996
        %v3139 = vmax.f32 %v3138, %v2997
        %v3140 = vmax.f32 %v3139, %v2998
        %v3141 = vmax.f32 %v3140, %v2999
        %v3142 = vmax.f32 %v3141, %v3000
        %v3143 = vmax.f32 %v3142, %v3001
        %v3144 = vmax.f32 %v3143, %v3002
        %v3145 = vmax.f32 %v3144, %v3003
        %v3146 = vmax.f32 %v3145, %v3004
        %v3147 = vmax.f32 %v3146, %v3005
        %v3148 = vmax.f32 %v3147, %v3006
        %v3149 = vmax.f32 %v3148, %v3007
        %v3150 = vrot.slane %v3149, 4
        %v3151 = vmax.f32 %v3149, %v3150
        %v3152 = vrot.slane %v3151, 2
        %v3153 = vmax.f32 %v3151, %v3152
        %v3154 = vrot.slane %v3153, 1
        %v3155 = vmax.f32 %v3153, %v3154
        %v3156 = vmax.f32 %v3008, %v3009
        %v3157 = vmax.f32 %v3156, %v3010
        %v3158 = vmax.f32 %v3157, %v3011
        %v3159 = vmax.f32 %v3158, %v3012
        %v3160 = vmax.f32 %v3159, %v3013
        %v3161 = vmax.f32 %v3160, %v3014
        %v3162 = vmax.f32 %v3161, %v3015
        %v3163 = vmax.f32 %v3162, %v3016
        %v3164 = vmax.f32 %v3163, %v3017
        %v3165 = vmax.f32 %v3164, %v3018
        %v3166 = vmax.f32 %v3165, %v3019
        %v3167 = vmax.f32 %v3166, %v3020
        %v3168 = vmax.f32 %v3167, %v3021
        %v3169 = vmax.f32 %v3168, %v3022
        %v3170 = vmax.f32 %v3169, %v3023
        %v3171 = vrot.slane %v3170, 4
        %v3172 = vmax.f32 %v3170, %v3171
        %v3173 = vrot.slane %v3172, 2
        %v3174 = vmax.f32 %v3172, %v3173
        %v3175 = vrot.slane %v3174, 1
        %v3176 = vmax.f32 %v3174, %v3175
        %v3177 = vmax.f32 %v3024, %v3025
        %v3178 = vmax.f32 %v3177, %v3026
        %v3179 = vmax.f32 %v3178, %v3027
        %v3180 = vmax.f32 %v3179, %v3028
        %v3181 = vmax.f32 %v3180, %v3029
        %v3182 = vmax.f32 %v3181, %v3030
        %v3183 = vmax.f32 %v3182, %v3031
        %v3184 = vmax.f32 %v3183, %v3032
        %v3185 = vmax.f32 %v3184, %v3033
        %v3186 = vmax.f32 %v3185, %v3034
        %v3187 = vmax.f32 %v3186, %v3035
        %v3188 = vmax.f32 %v3187, %v3036
        %v3189 = vmax.f32 %v3188, %v3037
        %v3190 = vmax.f32 %v3189, %v3038
        %v3191 = vmax.f32 %v3190, %v3039
        %v3192 = vrot.slane %v3191, 4
        %v3193 = vmax.f32 %v3191, %v3192
        %v3194 = vrot.slane %v3193, 2
        %v3195 = vmax.f32 %v3193, %v3194
        %v3196 = vrot.slane %v3195, 1
        %v3197 = vmax.f32 %v3195, %v3196
        %v3198 = vmax.f32 %v3040, %v3041
        %v3199 = vmax.f32 %v3198, %v3042
        %v3200 = vmax.f32 %v3199, %v3043
        %v3201 = vmax.f32 %v3200, %v3044
        %v3202 = vmax.f32 %v3201, %v3045
        %v3203 = vmax.f32 %v3202, %v3046
        %v3204 = vmax.f32 %v3203, %v3047
        %v3205 = vmax.f32 %v3204, %v3048
        %v3206 = vmax.f32 %v3205, %v3049
        %v3207 = vmax.f32 %v3206, %v3050
        %v3208 = vmax.f32 %v3207, %v3051
        %v3209 = vmax.f32 %v3208, %v3052
        %v3210 = vmax.f32 %v3209, %v3053
        %v3211 = vmax.f32 %v3210, %v3054
        %v3212 = vmax.f32 %v3211, %v3055
        %v3213 = vrot.slane %v3212, 4
        %v3214 = vmax.f32 %v3212, %v3213
        %v3215 = vrot.slane %v3214, 2
        %v3216 = vmax.f32 %v3214, %v3215
        %v3217 = vrot.slane %v3216, 1
        %v3218 = vmax.f32 %v3216, %v3217
        %v3219 = vmax.f32 %v3056, %v3057
        %v3220 = vmax.f32 %v3219, %v3058
        %v3221 = vmax.f32 %v3220, %v3059
        %v3222 = vmax.f32 %v3221, %v3060
        %v3223 = vmax.f32 %v3222, %v3061
        %v3224 = vmax.f32 %v3223, %v3062
        %v3225 = vmax.f32 %v3224, %v3063
        %v3226 = vmax.f32 %v3225, %v3064
        %v3227 = vmax.f32 %v3226, %v3065
        %v3228 = vmax.f32 %v3227, %v3066
        %v3229 = vmax.f32 %v3228, %v3067
        %v3230 = vmax.f32 %v3229, %v3068
        %v3231 = vmax.f32 %v3230, %v3069
        %v3232 = vmax.f32 %v3231, %v3070
        %v3233 = vmax.f32 %v3232, %v3071
        %v3234 = vrot.slane %v3233, 4
        %v3235 = vmax.f32 %v3233, %v3234
        %v3236 = vrot.slane %v3235, 2
        %v3237 = vmax.f32 %v3235, %v3236
        %v3238 = vrot.slane %v3237, 1
        %v3239 = vmax.f32 %v3237, %v3238
        %p3240 = scmp.eq.s32.totalorder %s26, 0
        // Predicated region
        $region87: #{tpu_custom_call.1} parent=81 // pred_check
          %p3241 = pneg %p3240
        $region88: #{tpu_custom_call.1} parent=81 // pred_check_branch
          %3243 = sbr.rel (%p3241) target = $region90
        $region89: #{tpu_custom_call.1} parent=81 // pred_region
          %3244 = vst [vmem:[#allocation2] sm:$0xff] -inf
        $region90: #{tpu_custom_call.1} parent=81 // pred_fallthru
          _
        %v3245 = vld [vmem:[#allocation2] sm:$0xff]
        %vm3254 = vcmask 1041409
        %v3255 = vsel %vm3254, %v3113, %v3092
        %vm3256 = vcmask 1042434
        %v3257 = vsel %vm3256, %v3134, %v3255
        %vm3258 = vcmask 1043459
        %v3259 = vsel %vm3258, %v3155, %v3257
        %vm3260 = vcmask 1044484
        %v3261 = vsel %vm3260, %v3176, %v3259
        %vm3262 = vcmask 1045509
        %v3263 = vsel %vm3262, %v3197, %v3261
        %vm3264 = vcmask 1046534
        %v3265 = vsel %vm3264, %v3218, %v3263
        %vm3266 = vcmask 1047559
        %v3267 = vsel %vm3266, %v3239, %v3265
        %v3269 = vmax.f32 %v3245, %v3267
        %3270 = vst [vmem:[#allocation2] sm:$0xff] %v3269
        %p3271 = scmp.eq.s32.totalorder %s26, 1
        // Predicated region
        $region91: #{tpu_custom_call.1} parent=81 // pred_check
          %p3272 = pneg %p3271
        $region92: #{tpu_custom_call.1} parent=81 // pred_check_branch
          %3274 = sbr.rel (%p3272) target = $region94
        $region93: #{tpu_custom_call.1} parent=81 // pred_region
          %v3275 = vld [vmem:[#allocation2] sm:$0xff]
          %v3276 = vld [vmem:[%s5] sm:$0xff]
          %v3277 = vld [vmem:[%s5 + $0x8] sm:$0xff]
          %v3278 = vld [vmem:[%s5 + $0x10] sm:$0xff]
          %v3279 = vld [vmem:[%s5 + $0x18] sm:$0xff]
          %v3280 = vld [vmem:[%s5 + $0x20] sm:$0xff]
          %v3281 = vld [vmem:[%s5 + $0x28] sm:$0xff]
          %v3282 = vld [vmem:[%s5 + $0x30] sm:$0xff]
          %v3283 = vld [vmem:[%s5 + $0x38] sm:$0xff]
          %v3284 = vld [vmem:[%s5 + $0x40] sm:$0xff]
          %v3285 = vld [vmem:[%s5 + $0x48] sm:$0xff]
          %v3286 = vld [vmem:[%s5 + $0x50] sm:$0xff]
          %v3287 = vld [vmem:[%s5 + $0x58] sm:$0xff]
          %v3288 = vld [vmem:[%s5 + $0x60] sm:$0xff]
          %v3289 = vld [vmem:[%s5 + $0x68] sm:$0xff]
          %v3290 = vld [vmem:[%s5 + $0x70] sm:$0xff]
          %v3291 = vld [vmem:[%s5 + $0x78] sm:$0xff]
          %v3292 = vld [vmem:[%s6] sm:$0x1]
          %v3294 = vperm.slane %v3292, 0
          %3296 = vmatpush.msra.mxu0 %v3291
          %3297 = vmatpush.msra.mxu0 %v3290
          %3298 = vmatpush.msra.mxu0 %v3289
          %3299 = vmatpush.msra.mxu0 %v3288
          %3300 = vmatpush.msra.mxu0 %v3287
          %3301 = vmatpush.msra.mxu0 %v3286
          %3302 = vmatpush.msra.mxu0 %v3285
          %3303 = vmatpush.msra.mxu0 %v3284
          %3304 = vmatpush.msra.mxu0 %v3283
          %3305 = vmatpush.msra.mxu0 %v3282
          %3306 = vmatpush.msra.mxu0 %v3281
          %3307 = vmatpush.msra.mxu0 %v3280
          %3308 = vmatpush.msra.mxu0 %v3279
          %3309 = vmatpush.msra.mxu0 %v3278
          %3310 = vmatpush.msra.mxu0 %v3277
          %3311 = vmatpush.msra.mxu0 %v3276
          %3312 = vmatmul.f32.gmra.mxu0 %v3275
          %v3313 = vpop.f32.mrf.mxu0
          %v3314 = vadd.f32 %v3294, %v3313
          %3315 = vdwg.mxu0
          %3316 = vst [vmem:[%s837] sm:$0xff] %v3314
        $region94: #{tpu_custom_call.1} parent=81 // pred_fallthru
          _
        %s3317 = sand.u32 %s195, 1
        %s3318 = scalar_lea.sflag [#allocation5], %s3317
        %s3319 = sand.u32 %s195, 1
        %s3320 = smul.addr %s3319, 8
        %s3321 = scalar_lea.vmem [#allocation4], %s3320
        // Predicated region
        $region95: #{tpu_custom_call.1} parent=81 // pred_check
          %p3322 = pneg %p205
        $region96: #{tpu_custom_call.1} parent=81 // pred_check_branch
          %3324 = sbr.rel (%p3322) target = $region98
        $region97: #{tpu_custom_call.1} parent=81 // pred_region
          %3326 = vsyncadd %s3318, 0
          %s3327 = smul.addr %s25, 8
          %s3328 = scalar_lea.hbm %s7, %s3327
          %s3330 = sshll.u32 %s3321, 4
          %s3331 = int_to_ptr.vmem [resolvable:$true] %s3330
          %s3332 = sshll.u32 %s3328, 4
          %s3333 = int_to_ptr.hbm [resolvable:$true] %s3332
          %3335 = dma.vmem_to_hbm [thread:$0]  %s3331, 128, %s3333, %s3318
        $region98: #{tpu_custom_call.1} parent=81 // pred_fallthru
          _
      $region82: #{tpu_custom_call.1} parent=5 // pred_fallthru
        _
      %p3336 = scmp.le.s32.totalorder 2, %s16
      // Predicated region
      $region99: #{tpu_custom_call.1} parent=5 // pred_check
        %p3337 = pneg %p3336
      $region100: #{tpu_custom_call.1} parent=5 // pred_check_branch
        %3339 = sbr.rel (%p3337) target = $region102
      $region101: #{tpu_custom_call.1} parent=5 // pred_region
        %s3340 = ssub.s32 %s16, 2
        // Predicated region
        $region103: #{tpu_custom_call.1} parent=101 // pred_check
          %p3341 = pneg %p211
        $region104: #{tpu_custom_call.1} parent=101 // pred_check_branch
          %3343 = sbr.rel (%p3341) target = $region106
        $region105: #{tpu_custom_call.1} parent=101 // pred_region
          %s3344 = sand.u32 %s196, 1
          %s3345 = scalar_lea.sflag [#allocation5], %s3344
          %s3346 = sand.u32 %s196, 1
          %s3347 = smul.addr %s3346, 8
          %s3348 = scalar_lea.vmem [#allocation4], %s3347
          %3350 = dma.done %s3345, 128
        $region106: #{tpu_custom_call.1} parent=101 // pred_fallthru
          _
      $region102: #{tpu_custom_call.1} parent=5 // pred_fallthru
        _
    $region6: #{tpu_custom_call.1} parent=1 // loop_footer
      %s20 = sadd.s32 1, %s16
    $region7: #{tpu_custom_call.1} parent=1 // loop_footer_branch
      %15 = sbr.rel target = $region3
    $region8: #{tpu_custom_call.1} parent=1 // loop_exit
      _
    %3351 = vsyncpa [#allocation5], 1
    %s3352 = scalar_lea.sflag [#allocation5], 1
    %3353 = vsyncpa %s3352, 1

</llo_original>
